<compile_context>
chip_gen: v7x
topology: tpu7x:2x2x1
jax: 0.10.0
libtpu: 0.0.40
codegen_flags: <defaults>
</compile_context>

<pallas_src>
import functools

import jax
import jax.numpy as jnp
from jax.experimental import pallas as pl
from jax.experimental.pallas import tpu as pltpu


_VMEM_LIMIT = 32 * 1024 * 1024


# --------------------- layer-1 matmul (im2col'd 4x4 conv) ---------------------

def _mm_bias_lrelu_kernel(x_ref, w_ref, b_ref, o_ref):
    """One lane-dense matmul: (tm, K) @ (K, Cout) + bias, LeakyReLU(0.2)."""
    z = jnp.dot(x_ref[...], w_ref[...], preferred_element_type=jnp.float32)
    z = z + b_ref[...]
    z = jnp.where(z > 0, z, 0.2 * z)
    o_ref[...] = z.astype(o_ref.dtype)


def _matmul_bias_lrelu(x2d, w2d, bias):
    m, k = x2d.shape
    cout = w2d.shape[1]
    tm = m
    while tm > 2048 and tm % 2 == 0 and (tm // 2) % 8 == 0:
        tm //= 2
    return pl.pallas_call(
        _mm_bias_lrelu_kernel,
        out_shape=jax.ShapeDtypeStruct((m, cout), jnp.bfloat16),
        grid=(m // tm,),
        in_specs=[
            pl.BlockSpec((tm, k), lambda i: (i, 0)),
            pl.BlockSpec((k, cout), lambda i: (0, 0)),
            pl.BlockSpec((1, cout), lambda i: (0, 0)),
        ],
        out_specs=pl.BlockSpec((tm, cout), lambda i: (i, 0)),
        compiler_params=pltpu.CompilerParams(
            dimension_semantics=("parallel",),
            vmem_limit_bytes=_VMEM_LIMIT),
    )(x2d, w2d, bias.reshape(1, -1).astype(jnp.float32))


# ------------------ conv block kernel (2x2 conv over s2d view) ----------------

def _conv_kernel(x_ref, w_ref, b_ref, o_ref, s_ref, *, th, wo):
    """4x4/stride-2 conv (as 2x2/stride-1 over s2d input) for one row tile.

    x_ref : (1, 1, th+1, wo+1, K) bf16  halo row-tile of s2d padded input
    w_ref : (4, K, Cout)          bf16  weights (a*2+b offset major, K = 4*Cin)
    b_ref : (1, Cout)             f32   bias
    o_ref : (1, th*wo, Cout)            conv output rows (pre-BN)
    s_ref : (1, 1, 2, Cout)       f32   per-tile (sum, sum_sq) for BatchNorm
    """
    rows = th * wo
    k = x_ref.shape[-1]
    cout = w_ref.shape[-1]

    # SSA accumulation across the 4 kernel-offset matmuls (no scratch RMW).
    acc = None
    for a in range(2):
        for b in range(2):
            win = x_ref[0, 0, pl.ds(a, th), pl.ds(b, wo), :]       # (th, wo, K)
            part = jnp.dot(win.reshape(rows, k), w_ref[a * 2 + b],
                           preferred_element_type=jnp.float32)     # MXU, f32 acc
            acc = part if acc is None else acc + part

    z = acc + b_ref[...]                               # bias added once, in f32
    ssum = jnp.sum(z, axis=0, keepdims=True)
    ssq = jnp.sum(z * z, axis=0, keepdims=True)
    s_ref[...] = jnp.concatenate([ssum, ssq], axis=0).reshape(1, 1, 2, cout)
    o_ref[...] = z.reshape(1, rows, cout).astype(o_ref.dtype)


def _pick_th(ho, wo, cout):
    """Byte-aware row-tile size: keep the f32 accumulator around <= 2 MiB.

    Explicit fallback: if the tile cannot be halved while keeping rows a
    multiple of 8 (or the full extent), we accept the larger tile -- the
    vmem_limit below covers PatchGAN-scale layers in that case.
    """
    row_budget = max(256, (2 * 1024 * 1024) // (4 * cout))
    th = ho
    while th * wo > row_budget and th % 2 == 0 and ((th // 2) * wo) % 8 == 0:
        th //= 2
    return th


def _pad_s2d(x_nhwc):
    """(N,H,W,C) -> factor-2 space-to-depth of the zero-padded activation.

    Returns (z, Ho, Wo) with z of shape (N, Ho+1, Wo+1, 4C) and channel index
    (di, dj, c) so the 4x4/stride-2 conv becomes a 2x2/stride-1 conv over z.
    """
    n, h, w, c = x_nhwc.shape
    ho, wo = h // 2, w // 2
    xp = jnp.pad(x_nhwc, ((0, 0), (1, 1), (1, 1), (0, 0)))
    z = xp.reshape(n, ho + 1, 2, wo + 1, 2, c).transpose(0, 1, 3, 2, 4, 5)
    return z.reshape(n, ho + 1, wo + 1, 4 * c), ho, wo


def _halo_row_tiles(z, th):
    """(N, Hz, Wz, K) -> (N, n_t, th+1, Wz, K) overlapping (1-row halo) tiles."""
    n, hz, wz, k = z.shape
    n_t = (hz - 1) // th
    if n_t == 1:
        zt = z[:, None]
    else:
        idx = jnp.arange(n_t)[:, None] * th + jnp.arange(th + 1)[None, :]
        zt = z[:, idx]
    return zt.astype(jnp.bfloat16)


def _w_to_2x2(w, cin_pad=None, cout_pad=None):
    """PyTorch (Cout, Cin, 4, 4) -> (4, 4*Cin, Cout) bf16.

    Axis 0 is the 2x2-conv offset a*2+b; the K axis ordering (di, dj, c)
    matches the space-to-depth channel layout produced by _pad_s2d.
    """
    cout, cin, _, _ = w.shape
    if cin_pad is not None and cin_pad > cin:
        w = jnp.pad(w, ((0, 0), (0, cin_pad - cin), (0, 0), (0, 0)))
        cin = cin_pad
    if cout_pad is not None and cout_pad > cout:
        w = jnp.pad(w, ((0, cout_pad - cout), (0, 0), (0, 0), (0, 0)))
        cout = cout_pad
    w = w.transpose(2, 3, 1, 0)                 # (i, j, Cin, Cout)
    w = w.reshape(2, 2, 2, 2, cin, cout)        # (a, di, b, dj, Cin, Cout)
    w = w.transpose(0, 2, 1, 3, 4, 5)           # (a, b, di, dj, Cin, Cout)
    return w.reshape(4, 4 * cin, cout).astype(jnp.bfloat16)


def _im2col_4x4_s2(x_nhwc):
    """Tiny JAX-side im2col for the small-Cin first layer: K = 16*Cin."""
    z, ho, wo = _pad_s2d(x_nhwc)
    n = x_nhwc.shape[0]
    c = x_nhwc.shape[-1]
    cols = jnp.concatenate(
        [z[:, a:a + ho, b:b + wo, :] for a in (0, 1) for b in (0, 1)], axis=-1)
    return cols.reshape(n * ho * wo, 16 * c).astype(jnp.bfloat16), ho, wo


def _conv4x4_s2_bn(a_nhwc, w_torch, bias, *, out_dtype, cin_pad=None):
    """Conv layer returning (z, per-tile BN partial stats, Ho, Wo)."""
    n = a_nhwc.shape[0]
    z_s2d, ho, wo = _pad_s2d(a_nhwc)
    wm = _w_to_2x2(w_torch, cin_pad=cin_pad)        # (4, K, Cout) bf16
    k4, cout = wm.shape[1], wm.shape[2]
    th = _pick_th(ho, wo, cout)
    n_t = ho // th
    rows = th * wo
    xt = _halo_row_tiles(z_s2d, th)                 # (N, n_t, th+1, wo+1, K)

    kernel = functools.partial(_conv_kernel, th=th, wo=wo)
    z, stats = pl.pallas_call(
        kernel,
        out_shape=(jax.ShapeDtypeStruct((n, ho * wo, cout), out_dtype),
                   jax.ShapeDtypeStruct((n, n_t, 2, cout), jnp.float32)),
        grid=(n, n_t),
        in_specs=[
            pl.BlockSpec((1, 1, th + 1, wo + 1, k4),
                         lambda b, t: (b, t, 0, 0, 0)),
            pl.BlockSpec((4, k4, cout), lambda b, t: (0, 0, 0)),
            pl.BlockSpec((1, cout), lambda b, t: (0, 0)),
        ],
        out_specs=(
            pl.BlockSpec((1, rows, cout), lambda b, t: (b, t, 0)),
            pl.BlockSpec((1, 1, 2, cout), lambda b, t: (b, t, 0, 0)),
        ),
        compiler_params=pltpu.CompilerParams(
            dimension_semantics=("parallel", "parallel"),
            vmem_limit_bytes=_VMEM_LIMIT),
    )(xt, wm, bias.reshape(1, -1).astype(jnp.float32))
    return z, stats, ho, wo


# -------- fused layer-4 BN + LeakyReLU + final 1x1 conv + bias + sigmoid ------

def _final_kernel(z_ref, sc_ref, sh_ref, wf_ref, bf_ref, o_ref):
    h = z_ref[...].astype(jnp.float32) * sc_ref[...] + sh_ref[...]   # BN affine
    h = jnp.where(h > 0, h, 0.2 * h)                                 # LeakyReLU
    logit = jnp.sum(h * wf_ref[...], axis=-1, keepdims=True) + bf_ref[...]
    # TODO(synk): a lane-dense (1, tm) logit layout would avoid masked 1-lane
    # stores; negligible at this tensor size.
    o_ref[...] = 1.0 / (1.0 + jnp.exp(-logit))                       # sigmoid


def _final_fused(z, scale, shift, wf_row, bf):
    m, c = z.shape
    tm = m
    while tm > 1024 and tm % 2 == 0 and (tm // 2) % 8 == 0:
        tm //= 2
    return pl.pallas_call(
        _final_kernel,
        out_shape=jax.ShapeDtypeStruct((m, 1), jnp.float32),
        grid=(m // tm,),
        in_specs=[
            pl.BlockSpec((tm, c), lambda i: (i, 0)),
            pl.BlockSpec((1, c), lambda i: (0, 0)),
            pl.BlockSpec((1, c), lambda i: (0, 0)),
            pl.BlockSpec((1, c), lambda i: (0, 0)),
            pl.BlockSpec((1, 1), lambda i: (0, 0)),
        ],
        out_specs=pl.BlockSpec((tm, 1), lambda i: (i, 0)),
        compiler_params=pltpu.CompilerParams(
            dimension_semantics=("parallel",),
            vmem_limit_bytes=_VMEM_LIMIT),
    )(z, scale, shift, wf_row, bf)


# ----------------------------- JAX glue -----------------------------

def _bn_affine(stats, m, gamma, beta, eps=1e-5):
    """Training-mode BatchNorm folded to per-channel scale/shift from partials."""
    s = jnp.sum(stats, axis=(0, 1))                     # (2, C)
    mean = s[0] / m
    var = jnp.maximum(s[1] / m - mean * mean, 0.0)      # biased variance
    scale = gamma * jax.lax.rsqrt(var + eps)
    shift = beta - mean * scale
    return scale, shift


def _leaky(x):
    return jnp.where(x > 0, x, 0.2 * x)


def init_params(input_nc, key):
    def conv_init(k, cout, cin, kh, kw):
        kw_, kb_ = jax.random.split(k)
        fan_in = cin * kh * kw
        bound = 1.0 / jnp.sqrt(fan_in)
        w = jax.random.uniform(kw_, (cout, cin, kh, kw), jnp.float32, -bound, bound)
        b = jax.random.uniform(kb_, (cout,), jnp.float32, -bound, bound)
        return w, b

    ks = jax.random.split(key, 5)
    p = {}
    p['w1'], p['b1'] = conv_init(ks[0], 64, input_nc, 4, 4)
    p['w2'], p['b2'] = conv_init(ks[1], 128, 64, 4, 4)
    p['w3'], p['b3'] = conv_init(ks[2], 256, 128, 4, 4)
    p['w4'], p['b4'] = conv_init(ks[3], 512, 256, 4, 4)
    p['wf'], p['bf'] = conv_init(ks[4], 1, 512, 1, 1)
    # BatchNorm2d default init: gamma = 1, beta = 0 (training-mode batch stats).
    for name, c in (('g2', 128), ('g3', 256), ('g4', 512)):
        p[name] = jnp.ones((c,), jnp.float32)
    for name, c in (('bt2', 128), ('bt3', 256), ('bt4', 512)):
        p[name] = jnp.zeros((c,), jnp.float32)
    return p


def pathgan_forward(p, x, y):
    n, _, hh, ww = x.shape
    assert hh % 16 == 0 and ww % 16 == 0, "spatial dims must be divisible by 16"
    h = jnp.concatenate([x, y], axis=1).transpose(0, 2, 3, 1)   # NHWC, once
    cin0 = h.shape[-1]

    # ---- layer 1: all 16 offsets folded into K (=16*Cin=128), Cout padded
    #      64->128, fused bias + LeakyReLU, bf16 lane-dense output (no BN) ----
    cols, h1, w1 = _im2col_4x4_s2(h)
    w1m = _w_to_2x2(p['w1'], cout_pad=128).reshape(16 * cin0, 128)
    b1p = jnp.pad(p['b1'], (0, 128 - p['b1'].shape[0]))
    a = _matmul_bias_lrelu(cols, w1m, b1p).reshape(n, h1, w1, 128)

    # ---- layer 2 (Cin padded 64->128 with zero weight rows) ----
    z2, st2, h2, w2_ = _conv4x4_s2_bn(a, p['w2'], p['b2'],
                                      out_dtype=jnp.bfloat16, cin_pad=128)
    sc2, sh2 = _bn_affine(st2, n * h2 * w2_, p['g2'], p['bt2'])
    a = _leaky(z2.astype(jnp.float32) * sc2 + sh2).reshape(n, h2, w2_, 128)

    # ---- layer 3 ----
    z3, st3, h3, w3_ = _conv4x4_s2_bn(a, p['w3'], p['b3'], out_dtype=jnp.bfloat16)
    sc3, sh3 = _bn_affine(st3, n * h3 * w3_, p['g3'], p['bt3'])
    a = _leaky(z3.astype(jnp.float32) * sc3 + sh3).reshape(n, h3, w3_, 256)

    # ---- layer 4 conv; its BN + LeakyReLU + final 1x1 conv + sigmoid fused ----
    z4, st4, h4, w4_ = _conv4x4_s2_bn(a, p['w4'], p['b4'], out_dtype=jnp.float32)
    sc4, sh4 = _bn_affine(st4, n * h4 * w4_, p['g4'], p['bt4'])
    out = _final_fused(z4.reshape(n * h4 * w4_, 512),
                       sc4.reshape(1, -1), sh4.reshape(1, -1),
                       p['wf'].reshape(1, 512), p['bf'].reshape(1, 1))
    return out.reshape(n, h4, w4_, 1).transpose(0, 3, 1, 2)     # back to NCHW


# ----------------------------- pure-JAX reference -----------------------------

def _ref_forward(p, x, y):
    def conv(h, w, b, stride, pad):
        out = jax.lax.conv_general_dilated(
            h, w, (stride, stride), [(pad, pad), (pad, pad)],
            dimension_numbers=('NCHW', 'OIHW', 'NCHW'))
        return out + b.reshape(1, -1, 1, 1)

    def bn(h):
        mean = h.mean(axis=(0, 2, 3), keepdims=True)
        var = ((h - mean) ** 2).mean(axis=(0, 2, 3), keepdims=True)
        return (h - mean) * jax.lax.rsqrt(var + 1e-5)

    def lrelu(h):
        return jnp.where(h > 0, h, 0.2 * h)

    h = jnp.concatenate([x, y], axis=1)
    h = lrelu(conv(h, p['w1'], p['b1'], 2, 1))
    h = lrelu(bn(conv(h, p['w2'], p['b2'], 2, 1)))
    h = lrelu(bn(conv(h, p['w3'], p['b3'], 2, 1)))
    h = lrelu(bn(conv(h, p['w4'], p['b4'], 2, 1)))
    h = conv(h, p['wf'], p['bf'], 1, 0)
    return jax.nn.sigmoid(h)


# ----------------------------- main -----------------------------

if __name__ == "__main__":
    key = jax.random.PRNGKey(0)
    kx, ky, kp = jax.random.split(key, 3)

    # PathGan(input_nc=8): x, y each 4 channels (concatenated -> 8), 16x16 spatial.
    x = jax.random.normal(kx, (2, 4, 16, 16), jnp.float32)
    y = jax.random.normal(ky, (2, 4, 16, 16), jnp.float32)
    params = init_params(input_nc=8, key=kp)

    out = jax.jit(pathgan_forward)(params, x, y)
    out = jax.block_until_ready(out)
    assert out.shape == (2, 1, 1, 1), out.shape

    ref = _ref_forward(params, x, y)
    # bf16 MXU inputs / bf16 activation storage (f32 accumulation) vs. the
    # pure-f32 reference: compare at a relaxed tolerance on the sigmoid output.
    assert jnp.allclose(out, ref, atol=2e-2, rtol=2e-2), (out, ref)

    print("KERNEL_OK")
</pallas_src>

<mosaic_0001>
module attributes {stable_mosaic.version = 11 : i64} {
  func.func @_mm_bias_lrelu_kernel(%arg0: i32, %arg1: memref<128x128xbf16, #tpu.memory_space<vmem>>, %arg2: memref<128x128xbf16, #tpu.memory_space<vmem>>, %arg3: memref<1x128xf32, #tpu.memory_space<vmem>>, %arg4: memref<128x128xbf16, #tpu.memory_space<vmem>>) attributes {dimension_semantics = [#tpu.dimension_semantics<parallel>], iteration_bounds = array<i64: 1>, scalar_prefetch = 0 : i64, scratch_operands = 0 : i64, tpu.core_type = #tpu.core_type<tc>, window_params = [{transform_indices = @transform_0, window_bounds = array<i64: 128, 128>}, {pipeline_mode = #tpu.pipeline_mode<synchronous>, transform_indices = @transform_1, window_bounds = array<i64: 128, 128>}, {pipeline_mode = #tpu.pipeline_mode<synchronous>, transform_indices = @transform_2, window_bounds = array<i64: 1, 128>}, {transform_indices = @transform_3, window_bounds = array<i64: 128, 128>}]} {
    %c0 = arith.constant 0 : index
    %c0_0 = arith.constant 0 : index
    %0 = vector.load %arg1[%c0, %c0_0] : memref<128x128xbf16, #tpu.memory_space<vmem>>, vector<128x128xbf16>
    %c0_1 = arith.constant 0 : index
    %c0_2 = arith.constant 0 : index
    %1 = vector.load %arg2[%c0_1, %c0_2] : memref<128x128xbf16, #tpu.memory_space<vmem>>, vector<128x128xbf16>
    %cst = arith.constant dense<0.000000e+00> : vector<128x128xf32>
    %2 = tpu.matmul %0, %1, %cst {dimension_numbers = #tpu.dot_dimension_numbers<[1], [0], [0], [1], [0, 0, 1, 1], [], []>} : vector<128x128xbf16>, vector<128x128xbf16>, vector<128x128xf32> -> vector<128x128xf32>
    %c0_3 = arith.constant 0 : index
    %c0_4 = arith.constant 0 : index
    %3 = vector.load %arg3[%c0_3, %c0_4] : memref<1x128xf32, #tpu.memory_space<vmem>>, vector<1x128xf32>
    %4 = vector.broadcast %3 : vector<1x128xf32> to vector<128x128xf32>
    %5 = arith.addf %2, %4 : vector<128x128xf32>
    %cst_5 = arith.constant 0.000000e+00 : f32
    %6 = vector.broadcast %cst_5 : f32 to vector<128x128xf32>
    %7 = arith.cmpf ogt, %5, %6 : vector<128x128xf32>
    %cst_6 = arith.constant 2.000000e-01 : f32
    %8 = vector.broadcast %cst_6 : f32 to vector<128x128xf32>
    %9 = arith.mulf %8, %5 : vector<128x128xf32>
    %10 = arith.select %7, %5, %9 : vector<128x128xi1>, vector<128x128xf32>
    %11 = arith.truncf %10 : vector<128x128xf32> to vector<128x128xbf16>
    %c0_7 = arith.constant 0 : index
    %c0_8 = arith.constant 0 : index
    %12 = vector.load %arg4[%c0_7, %c0_8] : memref<128x128xbf16, #tpu.memory_space<vmem>>, vector<128x128xbf16>
    tpu.vector_store %arg4[%c0_7, %c0_8], %11 {strides = array<i32>} : memref<128x128xbf16, #tpu.memory_space<vmem>>, vector<128x128xbf16>,
    return
  }
  func.func @transform_0(%arg0: i32) -> (i32, i32) {
    %c0_i32 = arith.constant 0 : i32
    %c0_i32_0 = arith.constant 0 : i32
    return %arg0, %c0_i32 : i32, i32
  }
  func.func @transform_1(%arg0: i32) -> (i32, i32) {
    %c0_i32 = arith.constant 0 : i32
    %c0_i32_0 = arith.constant 0 : i32
    %c0_i32_1 = arith.constant 0 : i32
    return %c0_i32, %c0_i32_0 : i32, i32
  }
  func.func @transform_2(%arg0: i32) -> (i32, i32) {
    %c0_i32 = arith.constant 0 : i32
    %c0_i32_0 = arith.constant 0 : i32
    %c0_i32_1 = arith.constant 0 : i32
    return %c0_i32, %c0_i32_0 : i32, i32
  }
  func.func @transform_3(%arg0: i32) -> (i32, i32) {
    %c0_i32 = arith.constant 0 : i32
    %c0_i32_0 = arith.constant 0 : i32
    return %arg0, %c0_i32 : i32, i32
  }
}

module attributes {stable_mosaic.version = 11 : i64} {
  func.func @_conv_kernel(%arg0: i32, %arg1: i32, %arg2: memref<1x1x5x5x512xbf16, #tpu.memory_space<vmem>>, %arg3: memref<4x512x128xbf16, #tpu.memory_space<vmem>>, %arg4: memref<1x128xf32, #tpu.memory_space<vmem>>, %arg5: memref<1x16x128xbf16, #tpu.memory_space<vmem>>, %arg6: memref<1x1x2x128xf32, #tpu.memory_space<vmem>>) attributes {dimension_semantics = [#tpu.dimension_semantics<parallel>, #tpu.dimension_semantics<parallel>], iteration_bounds = array<i64: 2, 1>, scalar_prefetch = 0 : i64, scratch_operands = 0 : i64, tpu.core_type = #tpu.core_type<tc>, window_params = [{transform_indices = @transform_0, window_bounds = array<i64: 1, 1, 5, 5, 512>}, {pipeline_mode = #tpu.pipeline_mode<synchronous>, transform_indices = @transform_1, window_bounds = array<i64: 4, 512, 128>}, {pipeline_mode = #tpu.pipeline_mode<synchronous>, transform_indices = @transform_2, window_bounds = array<i64: 1, 128>}, {transform_indices = @transform_3, window_bounds = array<i64: 1, 16, 128>}, {transform_indices = @transform_4, window_bounds = array<i64: 1, 1, 2, 128>}]} {
    %c0 = arith.constant 0 : index
    %c0_0 = arith.constant 0 : index
    %c0_1 = arith.constant 0 : index
    %c0_2 = arith.constant 0 : index
    %c0_3 = arith.constant 0 : index
    %0 = vector.load %arg2[%c0, %c0_0, %c0_1, %c0_2, %c0_3] : memref<1x1x5x5x512xbf16, #tpu.memory_space<vmem>>, vector<1x1x4x4x512xbf16>
    %1 = vector.shape_cast %0 : vector<1x1x4x4x512xbf16> to vector<4x4x512xbf16>
    %2 = vector.shape_cast %1 : vector<4x4x512xbf16> to vector<16x512xbf16>
    %c0_4 = arith.constant 0 : index
    %c0_5 = arith.constant 0 : index
    %c0_6 = arith.constant 0 : index
    %3 = vector.load %arg3[%c0_4, %c0_5, %c0_6] : memref<4x512x128xbf16, #tpu.memory_space<vmem>>, vector<1x512x128xbf16>
    %4 = vector.shape_cast %3 : vector<1x512x128xbf16> to vector<512x128xbf16>
    %cst = arith.constant dense<0.000000e+00> : vector<16x128xf32>
    %5 = tpu.matmul %2, %4, %cst {dimension_numbers = #tpu.dot_dimension_numbers<[1], [0], [0], [1], [0, 0, 1, 1], [], []>} : vector<16x512xbf16>, vector<512x128xbf16>, vector<16x128xf32> -> vector<16x128xf32>
    %c0_7 = arith.constant 0 : index
    %c0_8 = arith.constant 0 : index
    %c0_9 = arith.constant 0 : index
    %c1 = arith.constant 1 : index
    %c0_10 = arith.constant 0 : index
    %6 = vector.load %arg2[%c0_7, %c0_8, %c0_9, %c1, %c0_10] : memref<1x1x5x5x512xbf16, #tpu.memory_space<vmem>>, vector<1x1x4x4x512xbf16>
    %7 = vector.shape_cast %6 : vector<1x1x4x4x512xbf16> to vector<4x4x512xbf16>
    %8 = vector.shape_cast %7 : vector<4x4x512xbf16> to vector<16x512xbf16>
    %c1_11 = arith.constant 1 : index
    %c0_12 = arith.constant 0 : index
    %c0_13 = arith.constant 0 : index
    %9 = vector.load %arg3[%c1_11, %c0_12, %c0_13] : memref<4x512x128xbf16, #tpu.memory_space<vmem>>, vector<1x512x128xbf16>
    %10 = vector.shape_cast %9 : vector<1x512x128xbf16> to vector<512x128xbf16>
    %cst_14 = arith.constant dense<0.000000e+00> : vector<16x128xf32>
    %11 = tpu.matmul %8, %10, %cst_14 {dimension_numbers = #tpu.dot_dimension_numbers<[1], [0], [0], [1], [0, 0, 1, 1], [], []>} : vector<16x512xbf16>, vector<512x128xbf16>, vector<16x128xf32> -> vector<16x128xf32>
    %12 = arith.addf %5, %11 : vector<16x128xf32>
    %c0_15 = arith.constant 0 : index
    %c0_16 = arith.constant 0 : index
    %c1_17 = arith.constant 1 : index
    %c0_18 = arith.constant 0 : index
    %c0_19 = arith.constant 0 : index
    %13 = vector.load %arg2[%c0_15, %c0_16, %c1_17, %c0_18, %c0_19] : memref<1x1x5x5x512xbf16, #tpu.memory_space<vmem>>, vector<1x1x4x4x512xbf16>
    %14 = vector.shape_cast %13 : vector<1x1x4x4x512xbf16> to vector<4x4x512xbf16>
    %15 = vector.shape_cast %14 : vector<4x4x512xbf16> to vector<16x512xbf16>
    %c2 = arith.constant 2 : index
    %c0_20 = arith.constant 0 : index
    %c0_21 = arith.constant 0 : index
    %16 = vector.load %arg3[%c2, %c0_20, %c0_21] : memref<4x512x128xbf16, #tpu.memory_space<vmem>>, vector<1x512x128xbf16>
    %17 = vector.shape_cast %16 : vector<1x512x128xbf16> to vector<512x128xbf16>
    %cst_22 = arith.constant dense<0.000000e+00> : vector<16x128xf32>
    %18 = tpu.matmul %15, %17, %cst_22 {dimension_numbers = #tpu.dot_dimension_numbers<[1], [0], [0], [1], [0, 0, 1, 1], [], []>} : vector<16x512xbf16>, vector<512x128xbf16>, vector<16x128xf32> -> vector<16x128xf32>
    %19 = arith.addf %12, %18 : vector<16x128xf32>
    %c0_23 = arith.constant 0 : index
    %c0_24 = arith.constant 0 : index
    %c1_25 = arith.constant 1 : index
    %c1_26 = arith.constant 1 : index
    %c0_27 = arith.constant 0 : index
    %20 = vector.load %arg2[%c0_23, %c0_24, %c1_25, %c1_26, %c0_27] : memref<1x1x5x5x512xbf16, #tpu.memory_space<vmem>>, vector<1x1x4x4x512xbf16>
    %21 = vector.shape_cast %20 : vector<1x1x4x4x512xbf16> to vector<4x4x512xbf16>
    %22 = vector.shape_cast %21 : vector<4x4x512xbf16> to vector<16x512xbf16>
    %c3 = arith.constant 3 : index
    %c0_28 = arith.constant 0 : index
    %c0_29 = arith.constant 0 : index
    %23 = vector.load %arg3[%c3, %c0_28, %c0_29] : memref<4x512x128xbf16, #tpu.memory_space<vmem>>, vector<1x512x128xbf16>
    %24 = vector.shape_cast %23 : vector<1x512x128xbf16> to vector<512x128xbf16>
    %cst_30 = arith.constant dense<0.000000e+00> : vector<16x128xf32>
    %25 = tpu.matmul %22, %24, %cst_30 {dimension_numbers = #tpu.dot_dimension_numbers<[1], [0], [0], [1], [0, 0, 1, 1], [], []>} : vector<16x512xbf16>, vector<512x128xbf16>, vector<16x128xf32> -> vector<16x128xf32>
    %26 = arith.addf %19, %25 : vector<16x128xf32>
    %c0_31 = arith.constant 0 : index
    %c0_32 = arith.constant 0 : index
    %27 = vector.load %arg4[%c0_31, %c0_32] : memref<1x128xf32, #tpu.memory_space<vmem>>, vector<1x128xf32>
    %28 = vector.broadcast %27 : vector<1x128xf32> to vector<16x128xf32>
    %29 = arith.addf %26, %28 : vector<16x128xf32>
    %cst_33 = arith.constant dense<0.000000e+00> : vector<128xf32>
    %30 = vector.multi_reduction <add>, %29, %cst_33 [0] : vector<16x128xf32> to vector<128xf32>
    %31 = vector.shape_cast %30 : vector<128xf32> to vector<1x128xf32>
    %32 = arith.mulf %29, %29 : vector<16x128xf32>
    %cst_34 = arith.constant dense<0.000000e+00> : vector<128xf32>
    %33 = vector.multi_reduction <add>, %32, %cst_34 [0] : vector<16x128xf32> to vector<128xf32>
    %34 = vector.shape_cast %33 : vector<128xf32> to vector<1x128xf32>
    %35 = tpu.concatenate %31, %34 in 0 : vector<1x128xf32>, vector<1x128xf32> -> vector<2x128xf32>
    %36 = vector.shape_cast %35 : vector<2x128xf32> to vector<1x1x2x128xf32>
    %c0_35 = arith.constant 0 : index
    %c0_36 = arith.constant 0 : index
    %c0_37 = arith.constant 0 : index
    %c0_38 = arith.constant 0 : index
    %37 = vector.load %arg6[%c0_35, %c0_36, %c0_37, %c0_38] : memref<1x1x2x128xf32, #tpu.memory_space<vmem>>, vector<1x1x2x128xf32>
    tpu.vector_store %arg6[%c0_35, %c0_36, %c0_37, %c0_38], %36 {strides = array<i32>} : memref<1x1x2x128xf32, #tpu.memory_space<vmem>>, vector<1x1x2x128xf32>,
    %38 = vector.shape_cast %29 : vector<16x128xf32> to vector<1x16x128xf32>
    %39 = arith.truncf %38 : vector<1x16x128xf32> to vector<1x16x128xbf16>
    %c0_39 = arith.constant 0 : index
    %c0_40 = arith.constant 0 : index
    %c0_41 = arith.constant 0 : index
    %40 = vector.load %arg5[%c0_39, %c0_40, %c0_41] : memref<1x16x128xbf16, #tpu.memory_space<vmem>>, vector<1x16x128xbf16>
    tpu.vector_store %arg5[%c0_39, %c0_40, %c0_41], %39 {strides = array<i32>} : memref<1x16x128xbf16, #tpu.memory_space<vmem>>, vector<1x16x128xbf16>,
    return
  }
  func.func @transform_0(%arg0: i32, %arg1: i32) -> (i32, i32, i32, i32, i32) {
    %c0_i32 = arith.constant 0 : i32
    %c0_i32_0 = arith.constant 0 : i32
    %c0_i32_1 = arith.constant 0 : i32
    %c0_i32_2 = arith.constant 0 : i32
    return %arg0, %arg1, %c0_i32, %c0_i32_0, %c0_i32_1 : i32, i32, i32, i32, i32
  }
  func.func @transform_1(%arg0: i32, %arg1: i32) -> (i32, i32, i32) {
    %c0_i32 = arith.constant 0 : i32
    %c0_i32_0 = arith.constant 0 : i32
    %c0_i32_1 = arith.constant 0 : i32
    %c0_i32_2 = arith.constant 0 : i32
    return %c0_i32, %c0_i32_0, %c0_i32_1 : i32, i32, i32
  }
  func.func @transform_2(%arg0: i32, %arg1: i32) -> (i32, i32) {
    %c0_i32 = arith.constant 0 : i32
    %c0_i32_0 = arith.constant 0 : i32
    %c0_i32_1 = arith.constant 0 : i32
    return %c0_i32, %c0_i32_0 : i32, i32
  }
  func.func @transform_3(%arg0: i32, %arg1: i32) -> (i32, i32, i32) {
    %c0_i32 = arith.constant 0 : i32
    %c0_i32_0 = arith.constant 0 : i32
    return %arg0, %arg1, %c0_i32 : i32, i32, i32
  }
  func.func @transform_4(%arg0: i32, %arg1: i32) -> (i32, i32, i32, i32) {
    %c0_i32 = arith.constant 0 : i32
    %c0_i32_0 = arith.constant 0 : i32
    %c0_i32_1 = arith.constant 0 : i32
    return %arg0, %arg1, %c0_i32, %c0_i32_0 : i32, i32, i32, i32
  }
}

module attributes {stable_mosaic.version = 11 : i64} {
  func.func @_conv_kernel(%arg0: i32, %arg1: i32, %arg2: memref<1x1x3x3x512xbf16, #tpu.memory_space<vmem>>, %arg3: memref<4x512x256xbf16, #tpu.memory_space<vmem>>, %arg4: memref<1x256xf32, #tpu.memory_space<vmem>>, %arg5: memref<1x4x256xbf16, #tpu.memory_space<vmem>>, %arg6: memref<1x1x2x256xf32, #tpu.memory_space<vmem>>) attributes {dimension_semantics = [#tpu.dimension_semantics<parallel>, #tpu.dimension_semantics<parallel>], iteration_bounds = array<i64: 2, 1>, scalar_prefetch = 0 : i64, scratch_operands = 0 : i64, tpu.core_type = #tpu.core_type<tc>, window_params = [{transform_indices = @transform_0, window_bounds = array<i64: 1, 1, 3, 3, 512>}, {pipeline_mode = #tpu.pipeline_mode<synchronous>, transform_indices = @transform_1, window_bounds = array<i64: 4, 512, 256>}, {pipeline_mode = #tpu.pipeline_mode<synchronous>, transform_indices = @transform_2, window_bounds = array<i64: 1, 256>}, {transform_indices = @transform_3, window_bounds = array<i64: 1, 4, 256>}, {transform_indices = @transform_4, window_bounds = array<i64: 1, 1, 2, 256>}]} {
    %c0 = arith.constant 0 : index
    %c0_0 = arith.constant 0 : index
    %c0_1 = arith.constant 0 : index
    %c0_2 = arith.constant 0 : index
    %c0_3 = arith.constant 0 : index
    %0 = vector.load %arg2[%c0, %c0_0, %c0_1, %c0_2, %c0_3] : memref<1x1x3x3x512xbf16, #tpu.memory_space<vmem>>, vector<1x1x2x2x512xbf16>
    %1 = vector.shape_cast %0 : vector<1x1x2x2x512xbf16> to vector<2x2x512xbf16>
    %2 = vector.shape_cast %1 : vector<2x2x512xbf16> to vector<4x512xbf16>
    %c0_4 = arith.constant 0 : index
    %c0_5 = arith.constant 0 : index
    %c0_6 = arith.constant 0 : index
    %3 = vector.load %arg3[%c0_4, %c0_5, %c0_6] : memref<4x512x256xbf16, #tpu.memory_space<vmem>>, vector<1x512x256xbf16>
    %4 = vector.shape_cast %3 : vector<1x512x256xbf16> to vector<512x256xbf16>
    %cst = arith.constant dense<0.000000e+00> : vector<4x256xf32>
    %5 = tpu.matmul %2, %4, %cst {dimension_numbers = #tpu.dot_dimension_numbers<[1], [0], [0], [1], [0, 0, 1, 1], [], []>} : vector<4x512xbf16>, vector<512x256xbf16>, vector<4x256xf32> -> vector<4x256xf32>
    %c0_7 = arith.constant 0 : index
    %c0_8 = arith.constant 0 : index
    %c0_9 = arith.constant 0 : index
    %c1 = arith.constant 1 : index
    %c0_10 = arith.constant 0 : index
    %6 = vector.load %arg2[%c0_7, %c0_8, %c0_9, %c1, %c0_10] : memref<1x1x3x3x512xbf16, #tpu.memory_space<vmem>>, vector<1x1x2x2x512xbf16>
    %7 = vector.shape_cast %6 : vector<1x1x2x2x512xbf16> to vector<2x2x512xbf16>
    %8 = vector.shape_cast %7 : vector<2x2x512xbf16> to vector<4x512xbf16>
    %c1_11 = arith.constant 1 : index
    %c0_12 = arith.constant 0 : index
    %c0_13 = arith.constant 0 : index
    %9 = vector.load %arg3[%c1_11, %c0_12, %c0_13] : memref<4x512x256xbf16, #tpu.memory_space<vmem>>, vector<1x512x256xbf16>
    %10 = vector.shape_cast %9 : vector<1x512x256xbf16> to vector<512x256xbf16>
    %cst_14 = arith.constant dense<0.000000e+00> : vector<4x256xf32>
    %11 = tpu.matmul %8, %10, %cst_14 {dimension_numbers = #tpu.dot_dimension_numbers<[1], [0], [0], [1], [0, 0, 1, 1], [], []>} : vector<4x512xbf16>, vector<512x256xbf16>, vector<4x256xf32> -> vector<4x256xf32>
    %12 = arith.addf %5, %11 : vector<4x256xf32>
    %c0_15 = arith.constant 0 : index
    %c0_16 = arith.constant 0 : index
    %c1_17 = arith.constant 1 : index
    %c0_18 = arith.constant 0 : index
    %c0_19 = arith.constant 0 : index
    %13 = vector.load %arg2[%c0_15, %c0_16, %c1_17, %c0_18, %c0_19] : memref<1x1x3x3x512xbf16, #tpu.memory_space<vmem>>, vector<1x1x2x2x512xbf16>
    %14 = vector.shape_cast %13 : vector<1x1x2x2x512xbf16> to vector<2x2x512xbf16>
    %15 = vector.shape_cast %14 : vector<2x2x512xbf16> to vector<4x512xbf16>
    %c2 = arith.constant 2 : index
    %c0_20 = arith.constant 0 : index
    %c0_21 = arith.constant 0 : index
    %16 = vector.load %arg3[%c2, %c0_20, %c0_21] : memref<4x512x256xbf16, #tpu.memory_space<vmem>>, vector<1x512x256xbf16>
    %17 = vector.shape_cast %16 : vector<1x512x256xbf16> to vector<512x256xbf16>
    %cst_22 = arith.constant dense<0.000000e+00> : vector<4x256xf32>
    %18 = tpu.matmul %15, %17, %cst_22 {dimension_numbers = #tpu.dot_dimension_numbers<[1], [0], [0], [1], [0, 0, 1, 1], [], []>} : vector<4x512xbf16>, vector<512x256xbf16>, vector<4x256xf32> -> vector<4x256xf32>
    %19 = arith.addf %12, %18 : vector<4x256xf32>
    %c0_23 = arith.constant 0 : index
    %c0_24 = arith.constant 0 : index
    %c1_25 = arith.constant 1 : index
    %c1_26 = arith.constant 1 : index
    %c0_27 = arith.constant 0 : index
    %20 = vector.load %arg2[%c0_23, %c0_24, %c1_25, %c1_26, %c0_27] : memref<1x1x3x3x512xbf16, #tpu.memory_space<vmem>>, vector<1x1x2x2x512xbf16>
    %21 = vector.shape_cast %20 : vector<1x1x2x2x512xbf16> to vector<2x2x512xbf16>
    %22 = vector.shape_cast %21 : vector<2x2x512xbf16> to vector<4x512xbf16>
    %c3 = arith.constant 3 : index
    %c0_28 = arith.constant 0 : index
    %c0_29 = arith.constant 0 : index
    %23 = vector.load %arg3[%c3, %c0_28, %c0_29] : memref<4x512x256xbf16, #tpu.memory_space<vmem>>, vector<1x512x256xbf16>
    %24 = vector.shape_cast %23 : vector<1x512x256xbf16> to vector<512x256xbf16>
    %cst_30 = arith.constant dense<0.000000e+00> : vector<4x256xf32>
    %25 = tpu.matmul %22, %24, %cst_30 {dimension_numbers = #tpu.dot_dimension_numbers<[1], [0], [0], [1], [0, 0, 1, 1], [], []>} : vector<4x512xbf16>, vector<512x256xbf16>, vector<4x256xf32> -> vector<4x256xf32>
    %26 = arith.addf %19, %25 : vector<4x256xf32>
    %c0_31 = arith.constant 0 : index
    %c0_32 = arith.constant 0 : index
    %27 = vector.load %arg4[%c0_31, %c0_32] : memref<1x256xf32, #tpu.memory_space<vmem>>, vector<1x256xf32>
    %28 = vector.broadcast %27 : vector<1x256xf32> to vector<4x256xf32>
    %29 = arith.addf %26, %28 : vector<4x256xf32>
    %cst_33 = arith.constant dense<0.000000e+00> : vector<256xf32>
    %30 = vector.multi_reduction <add>, %29, %cst_33 [0] : vector<4x256xf32> to vector<256xf32>
    %31 = vector.shape_cast %30 : vector<256xf32> to vector<1x256xf32>
    %32 = arith.mulf %29, %29 : vector<4x256xf32>
    %cst_34 = arith.constant dense<0.000000e+00> : vector<256xf32>
    %33 = vector.multi_reduction <add>, %32, %cst_34 [0] : vector<4x256xf32> to vector<256xf32>
    %34 = vector.shape_cast %33 : vector<256xf32> to vector<1x256xf32>
    %35 = tpu.concatenate %31, %34 in 0 : vector<1x256xf32>, vector<1x256xf32> -> vector<2x256xf32>
    %36 = vector.shape_cast %35 : vector<2x256xf32> to vector<1x1x2x256xf32>
    %c0_35 = arith.constant 0 : index
    %c0_36 = arith.constant 0 : index
    %c0_37 = arith.constant 0 : index
    %c0_38 = arith.constant 0 : index
    %37 = vector.load %arg6[%c0_35, %c0_36, %c0_37, %c0_38] : memref<1x1x2x256xf32, #tpu.memory_space<vmem>>, vector<1x1x2x256xf32>
    tpu.vector_store %arg6[%c0_35, %c0_36, %c0_37, %c0_38], %36 {strides = array<i32>} : memref<1x1x2x256xf32, #tpu.memory_space<vmem>>, vector<1x1x2x256xf32>,
    %38 = vector.shape_cast %29 : vector<4x256xf32> to vector<1x4x256xf32>
    %39 = arith.truncf %38 : vector<1x4x256xf32> to vector<1x4x256xbf16>
    %c0_39 = arith.constant 0 : index
    %c0_40 = arith.constant 0 : index
    %c0_41 = arith.constant 0 : index
    %40 = vector.load %arg5[%c0_39, %c0_40, %c0_41] : memref<1x4x256xbf16, #tpu.memory_space<vmem>>, vector<1x4x256xbf16>
    tpu.vector_store %arg5[%c0_39, %c0_40, %c0_41], %39 {strides = array<i32>} : memref<1x4x256xbf16, #tpu.memory_space<vmem>>, vector<1x4x256xbf16>,
    return
  }
  func.func @transform_0(%arg0: i32, %arg1: i32) -> (i32, i32, i32, i32, i32) {
    %c0_i32 = arith.constant 0 : i32
    %c0_i32_0 = arith.constant 0 : i32
    %c0_i32_1 = arith.constant 0 : i32
    %c0_i32_2 = arith.constant 0 : i32
    return %arg0, %arg1, %c0_i32, %c0_i32_0, %c0_i32_1 : i32, i32, i32, i32, i32
  }
  func.func @transform_1(%arg0: i32, %arg1: i32) -> (i32, i32, i32) {
    %c0_i32 = arith.constant 0 : i32
    %c0_i32_0 = arith.constant 0 : i32
    %c0_i32_1 = arith.constant 0 : i32
    %c0_i32_2 = arith.constant 0 : i32
    return %c0_i32, %c0_i32_0, %c0_i32_1 : i32, i32, i32
  }
  func.func @transform_2(%arg0: i32, %arg1: i32) -> (i32, i32) {
    %c0_i32 = arith.constant 0 : i32
    %c0_i32_0 = arith.constant 0 : i32
    %c0_i32_1 = arith.constant 0 : i32
    return %c0_i32, %c0_i32_0 : i32, i32
  }
  func.func @transform_3(%arg0: i32, %arg1: i32) -> (i32, i32, i32) {
    %c0_i32 = arith.constant 0 : i32
    %c0_i32_0 = arith.constant 0 : i32
    return %arg0, %arg1, %c0_i32 : i32, i32, i32
  }
  func.func @transform_4(%arg0: i32, %arg1: i32) -> (i32, i32, i32, i32) {
    %c0_i32 = arith.constant 0 : i32
    %c0_i32_0 = arith.constant 0 : i32
    %c0_i32_1 = arith.constant 0 : i32
    return %arg0, %arg1, %c0_i32, %c0_i32_0 : i32, i32, i32, i32
  }
}

module attributes {stable_mosaic.version = 11 : i64} {
  func.func @_conv_kernel(%arg0: i32, %arg1: i32, %arg2: memref<1x1x2x2x1024xbf16, #tpu.memory_space<vmem>>, %arg3: memref<4x1024x512xbf16, #tpu.memory_space<vmem>>, %arg4: memref<1x512xf32, #tpu.memory_space<vmem>>, %arg5: memref<1x1x512xf32, #tpu.memory_space<vmem>>, %arg6: memref<1x1x2x512xf32, #tpu.memory_space<vmem>>) attributes {dimension_semantics = [#tpu.dimension_semantics<parallel>, #tpu.dimension_semantics<parallel>], iteration_bounds = array<i64: 2, 1>, scalar_prefetch = 0 : i64, scratch_operands = 0 : i64, tpu.core_type = #tpu.core_type<tc>, window_params = [{transform_indices = @transform_0, window_bounds = array<i64: 1, 1, 2, 2, 1024>}, {pipeline_mode = #tpu.pipeline_mode<synchronous>, transform_indices = @transform_1, window_bounds = array<i64: 4, 1024, 512>}, {pipeline_mode = #tpu.pipeline_mode<synchronous>, transform_indices = @transform_2, window_bounds = array<i64: 1, 512>}, {transform_indices = @transform_3, window_bounds = array<i64: 1, 1, 512>}, {transform_indices = @transform_4, window_bounds = array<i64: 1, 1, 2, 512>}]} {
    %c0 = arith.constant 0 : index
    %c0_0 = arith.constant 0 : index
    %c0_1 = arith.constant 0 : index
    %c0_2 = arith.constant 0 : index
    %c0_3 = arith.constant 0 : index
    %0 = vector.load %arg2[%c0, %c0_0, %c0_1, %c0_2, %c0_3] : memref<1x1x2x2x1024xbf16, #tpu.memory_space<vmem>>, vector<1x1x1x1x1024xbf16>
    %1 = vector.shape_cast %0 : vector<1x1x1x1x1024xbf16> to vector<1x1x1024xbf16>
    %2 = vector.shape_cast %1 : vector<1x1x1024xbf16> to vector<1x1024xbf16>
    %c0_4 = arith.constant 0 : index
    %c0_5 = arith.constant 0 : index
    %c0_6 = arith.constant 0 : index
    %3 = vector.load %arg3[%c0_4, %c0_5, %c0_6] : memref<4x1024x512xbf16, #tpu.memory_space<vmem>>, vector<1x1024x512xbf16>
    %4 = vector.shape_cast %3 : vector<1x1024x512xbf16> to vector<1024x512xbf16>
    %cst = arith.constant dense<0.000000e+00> : vector<1x512xf32>
    %5 = tpu.matmul %2, %4, %cst {dimension_numbers = #tpu.dot_dimension_numbers<[1], [0], [0], [1], [0, 0, 1, 1], [], []>} : vector<1x1024xbf16>, vector<1024x512xbf16>, vector<1x512xf32> -> vector<1x512xf32>
    %c0_7 = arith.constant 0 : index
    %c0_8 = arith.constant 0 : index
    %c0_9 = arith.constant 0 : index
    %c1 = arith.constant 1 : index
    %c0_10 = arith.constant 0 : index
    %6 = vector.load %arg2[%c0_7, %c0_8, %c0_9, %c1, %c0_10] : memref<1x1x2x2x1024xbf16, #tpu.memory_space<vmem>>, vector<1x1x1x1x1024xbf16>
    %7 = vector.shape_cast %6 : vector<1x1x1x1x1024xbf16> to vector<1x1x1024xbf16>
    %8 = vector.shape_cast %7 : vector<1x1x1024xbf16> to vector<1x1024xbf16>
    %c1_11 = arith.constant 1 : index
    %c0_12 = arith.constant 0 : index
    %c0_13 = arith.constant 0 : index
    %9 = vector.load %arg3[%c1_11, %c0_12, %c0_13] : memref<4x1024x512xbf16, #tpu.memory_space<vmem>>, vector<1x1024x512xbf16>
    %10 = vector.shape_cast %9 : vector<1x1024x512xbf16> to vector<1024x512xbf16>
    %cst_14 = arith.constant dense<0.000000e+00> : vector<1x512xf32>
    %11 = tpu.matmul %8, %10, %cst_14 {dimension_numbers = #tpu.dot_dimension_numbers<[1], [0], [0], [1], [0, 0, 1, 1], [], []>} : vector<1x1024xbf16>, vector<1024x512xbf16>, vector<1x512xf32> -> vector<1x512xf32>
    %12 = arith.addf %5, %11 : vector<1x512xf32>
    %c0_15 = arith.constant 0 : index
    %c0_16 = arith.constant 0 : index
    %c1_17 = arith.constant 1 : index
    %c0_18 = arith.constant 0 : index
    %c0_19 = arith.constant 0 : index
    %13 = vector.load %arg2[%c0_15, %c0_16, %c1_17, %c0_18, %c0_19] : memref<1x1x2x2x1024xbf16, #tpu.memory_space<vmem>>, vector<1x1x1x1x1024xbf16>
    %14 = vector.shape_cast %13 : vector<1x1x1x1x1024xbf16> to vector<1x1x1024xbf16>
    %15 = vector.shape_cast %14 : vector<1x1x1024xbf16> to vector<1x1024xbf16>
    %c2 = arith.constant 2 : index
    %c0_20 = arith.constant 0 : index
    %c0_21 = arith.constant 0 : index
    %16 = vector.load %arg3[%c2, %c0_20, %c0_21] : memref<4x1024x512xbf16, #tpu.memory_space<vmem>>, vector<1x1024x512xbf16>
    %17 = vector.shape_cast %16 : vector<1x1024x512xbf16> to vector<1024x512xbf16>
    %cst_22 = arith.constant dense<0.000000e+00> : vector<1x512xf32>
    %18 = tpu.matmul %15, %17, %cst_22 {dimension_numbers = #tpu.dot_dimension_numbers<[1], [0], [0], [1], [0, 0, 1, 1], [], []>} : vector<1x1024xbf16>, vector<1024x512xbf16>, vector<1x512xf32> -> vector<1x512xf32>
    %19 = arith.addf %12, %18 : vector<1x512xf32>
    %c0_23 = arith.constant 0 : index
    %c0_24 = arith.constant 0 : index
    %c1_25 = arith.constant 1 : index
    %c1_26 = arith.constant 1 : index
    %c0_27 = arith.constant 0 : index
    %20 = vector.load %arg2[%c0_23, %c0_24, %c1_25, %c1_26, %c0_27] : memref<1x1x2x2x1024xbf16, #tpu.memory_space<vmem>>, vector<1x1x1x1x1024xbf16>
    %21 = vector.shape_cast %20 : vector<1x1x1x1x1024xbf16> to vector<1x1x1024xbf16>
    %22 = vector.shape_cast %21 : vector<1x1x1024xbf16> to vector<1x1024xbf16>
    %c3 = arith.constant 3 : index
    %c0_28 = arith.constant 0 : index
    %c0_29 = arith.constant 0 : index
    %23 = vector.load %arg3[%c3, %c0_28, %c0_29] : memref<4x1024x512xbf16, #tpu.memory_space<vmem>>, vector<1x1024x512xbf16>
    %24 = vector.shape_cast %23 : vector<1x1024x512xbf16> to vector<1024x512xbf16>
    %cst_30 = arith.constant dense<0.000000e+00> : vector<1x512xf32>
    %25 = tpu.matmul %22, %24, %cst_30 {dimension_numbers = #tpu.dot_dimension_numbers<[1], [0], [0], [1], [0, 0, 1, 1], [], []>} : vector<1x1024xbf16>, vector<1024x512xbf16>, vector<1x512xf32> -> vector<1x512xf32>
    %26 = arith.addf %19, %25 : vector<1x512xf32>
    %c0_31 = arith.constant 0 : index
    %c0_32 = arith.constant 0 : index
    %27 = vector.load %arg4[%c0_31, %c0_32] : memref<1x512xf32, #tpu.memory_space<vmem>>, vector<1x512xf32>
    %28 = arith.addf %26, %27 : vector<1x512xf32>
    %cst_33 = arith.constant dense<0.000000e+00> : vector<512xf32>
    %29 = vector.multi_reduction <add>, %28, %cst_33 [0] : vector<1x512xf32> to vector<512xf32>
    %30 = vector.shape_cast %29 : vector<512xf32> to vector<1x512xf32>
    %31 = arith.mulf %28, %28 : vector<1x512xf32>
    %cst_34 = arith.constant dense<0.000000e+00> : vector<512xf32>
    %32 = vector.multi_reduction <add>, %31, %cst_34 [0] : vector<1x512xf32> to vector<512xf32>
    %33 = vector.shape_cast %32 : vector<512xf32> to vector<1x512xf32>
    %34 = tpu.concatenate %30, %33 in 0 : vector<1x512xf32>, vector<1x512xf32> -> vector<2x512xf32>
    %35 = vector.shape_cast %34 : vector<2x512xf32> to vector<1x1x2x512xf32>
    %c0_35 = arith.constant 0 : index
    %c0_36 = arith.constant 0 : index
    %c0_37 = arith.constant 0 : index
    %c0_38 = arith.constant 0 : index
    %36 = vector.load %arg6[%c0_35, %c0_36, %c0_37, %c0_38] : memref<1x1x2x512xf32, #tpu.memory_space<vmem>>, vector<1x1x2x512xf32>
    tpu.vector_store %arg6[%c0_35, %c0_36, %c0_37, %c0_38], %35 {strides = array<i32>} : memref<1x1x2x512xf32, #tpu.memory_space<vmem>>, vector<1x1x2x512xf32>,
    %37 = vector.shape_cast %28 : vector<1x512xf32> to vector<1x1x512xf32>
    %c0_39 = arith.constant 0 : index
    %c0_40 = arith.constant 0 : index
    %c0_41 = arith.constant 0 : index
    %38 = vector.load %arg5[%c0_39, %c0_40, %c0_41] : memref<1x1x512xf32, #tpu.memory_space<vmem>>, vector<1x1x512xf32>
    tpu.vector_store %arg5[%c0_39, %c0_40, %c0_41], %37 {strides = array<i32>} : memref<1x1x512xf32, #tpu.memory_space<vmem>>, vector<1x1x512xf32>,
    return
  }
  func.func @transform_0(%arg0: i32, %arg1: i32) -> (i32, i32, i32, i32, i32) {
    %c0_i32 = arith.constant 0 : i32
    %c0_i32_0 = arith.constant 0 : i32
    %c0_i32_1 = arith.constant 0 : i32
    %c0_i32_2 = arith.constant 0 : i32
    return %arg0, %arg1, %c0_i32, %c0_i32_0, %c0_i32_1 : i32, i32, i32, i32, i32
  }
  func.func @transform_1(%arg0: i32, %arg1: i32) -> (i32, i32, i32) {
    %c0_i32 = arith.constant 0 : i32
    %c0_i32_0 = arith.constant 0 : i32
    %c0_i32_1 = arith.constant 0 : i32
    %c0_i32_2 = arith.constant 0 : i32
    return %c0_i32, %c0_i32_0, %c0_i32_1 : i32, i32, i32
  }
  func.func @transform_2(%arg0: i32, %arg1: i32) -> (i32, i32) {
    %c0_i32 = arith.constant 0 : i32
    %c0_i32_0 = arith.constant 0 : i32
    %c0_i32_1 = arith.constant 0 : i32
    return %c0_i32, %c0_i32_0 : i32, i32
  }
  func.func @transform_3(%arg0: i32, %arg1: i32) -> (i32, i32, i32) {
    %c0_i32 = arith.constant 0 : i32
    %c0_i32_0 = arith.constant 0 : i32
    return %arg0, %arg1, %c0_i32 : i32, i32, i32
  }
  func.func @transform_4(%arg0: i32, %arg1: i32) -> (i32, i32, i32, i32) {
    %c0_i32 = arith.constant 0 : i32
    %c0_i32_0 = arith.constant 0 : i32
    %c0_i32_1 = arith.constant 0 : i32
    return %arg0, %arg1, %c0_i32, %c0_i32_0 : i32, i32, i32, i32
  }
}

module attributes {stable_mosaic.version = 11 : i64} {
  func.func @_final_kernel(%arg0: i32, %arg1: memref<2x512xf32, #tpu.memory_space<vmem>>, %arg2: memref<1x512xf32, #tpu.memory_space<vmem>>, %arg3: memref<1x512xf32, #tpu.memory_space<vmem>>, %arg4: memref<1x512xf32, #tpu.memory_space<vmem>>, %arg5: memref<1x1xf32, #tpu.memory_space<vmem>>, %arg6: memref<2x1xf32, #tpu.memory_space<vmem>>) attributes {dimension_semantics = [#tpu.dimension_semantics<parallel>], iteration_bounds = array<i64: 1>, scalar_prefetch = 0 : i64, scratch_operands = 0 : i64, tpu.core_type = #tpu.core_type<tc>, window_params = [{transform_indices = @transform_0, window_bounds = array<i64: 2, 512>}, {pipeline_mode = #tpu.pipeline_mode<synchronous>, transform_indices = @transform_1, window_bounds = array<i64: 1, 512>}, {pipeline_mode = #tpu.pipeline_mode<synchronous>, transform_indices = @transform_2, window_bounds = array<i64: 1, 512>}, {pipeline_mode = #tpu.pipeline_mode<synchronous>, transform_indices = @transform_3, window_bounds = array<i64: 1, 512>}, {pipeline_mode = #tpu.pipeline_mode<synchronous>, transform_indices = @transform_4, window_bounds = array<i64: 1, 1>}, {transform_indices = @transform_5, window_bounds = array<i64: 2, 1>}]} {
    %c0 = arith.constant 0 : index
    %c0_0 = arith.constant 0 : index
    %0 = vector.load %arg1[%c0, %c0_0] : memref<2x512xf32, #tpu.memory_space<vmem>>, vector<2x512xf32>
    %c0_1 = arith.constant 0 : index
    %c0_2 = arith.constant 0 : index
    %1 = vector.load %arg2[%c0_1, %c0_2] : memref<1x512xf32, #tpu.memory_space<vmem>>, vector<1x512xf32>
    %2 = vector.broadcast %1 : vector<1x512xf32> to vector<2x512xf32>
    %3 = arith.mulf %0, %2 : vector<2x512xf32>
    %c0_3 = arith.constant 0 : index
    %c0_4 = arith.constant 0 : index
    %4 = vector.load %arg3[%c0_3, %c0_4] : memref<1x512xf32, #tpu.memory_space<vmem>>, vector<1x512xf32>
    %5 = vector.broadcast %4 : vector<1x512xf32> to vector<2x512xf32>
    %6 = arith.addf %3, %5 : vector<2x512xf32>
    %cst = arith.constant 0.000000e+00 : f32
    %7 = vector.broadcast %cst : f32 to vector<2x512xf32>
    %8 = arith.cmpf ogt, %6, %7 : vector<2x512xf32>
    %cst_5 = arith.constant 2.000000e-01 : f32
    %9 = vector.broadcast %cst_5 : f32 to vector<2x512xf32>
    %10 = arith.mulf %9, %6 : vector<2x512xf32>
    %11 = arith.select %8, %6, %10 : vector<2x512xi1>, vector<2x512xf32>
    %c0_6 = arith.constant 0 : index
    %c0_7 = arith.constant 0 : index
    %12 = vector.load %arg4[%c0_6, %c0_7] : memref<1x512xf32, #tpu.memory_space<vmem>>, vector<1x512xf32>
    %13 = vector.broadcast %12 : vector<1x512xf32> to vector<2x512xf32>
    %14 = arith.mulf %11, %13 : vector<2x512xf32>
    %cst_8 = arith.constant dense<0.000000e+00> : vector<2xf32>
    %15 = vector.multi_reduction <add>, %14, %cst_8 [1] : vector<2x512xf32> to vector<2xf32>
    %16 = vector.shape_cast %15 : vector<2xf32> to vector<2x1xf32>
    %c0_9 = arith.constant 0 : index
    %c0_10 = arith.constant 0 : index
    %17 = vector.load %arg5[%c0_9, %c0_10] : memref<1x1xf32, #tpu.memory_space<vmem>>, vector<1x1xf32>
    %18 = vector.broadcast %17 : vector<1x1xf32> to vector<2x1xf32>
    %19 = arith.addf %16, %18 : vector<2x1xf32>
    %cst_11 = arith.constant 0.000000e+00 : f32
    %20 = vector.broadcast %cst_11 : f32 to vector<2x1xf32>
    %21 = arith.subf %20, %19 : vector<2x1xf32>
    %22 = math.exp %21 : vector<2x1xf32>
    %cst_12 = arith.constant 1.000000e+00 : f32
    %23 = vector.broadcast %cst_12 : f32 to vector<2x1xf32>
    %24 = arith.addf %23, %22 : vector<2x1xf32>
    %cst_13 = arith.constant 1.000000e+00 : f32
    %25 = vector.broadcast %cst_13 : f32 to vector<2x1xf32>
    %26 = arith.divf %25, %24 : vector<2x1xf32>
    %c0_14 = arith.constant 0 : index
    %c0_15 = arith.constant 0 : index
    %27 = vector.load %arg6[%c0_14, %c0_15] : memref<2x1xf32, #tpu.memory_space<vmem>>, vector<2x1xf32>
    tpu.vector_store %arg6[%c0_14, %c0_15], %26 {strides = array<i32>} : memref<2x1xf32, #tpu.memory_space<vmem>>, vector<2x1xf32>,
    return
  }
  func.func @transform_0(%arg0: i32) -> (i32, i32) {
    %c0_i32 = arith.constant 0 : i32
    %c0_i32_0 = arith.constant 0 : i32
    return %arg0, %c0_i32 : i32, i32
  }
  func.func @transform_1(%arg0: i32) -> (i32, i32) {
    %c0_i32 = arith.constant 0 : i32
    %c0_i32_0 = arith.constant 0 : i32
    %c0_i32_1 = arith.constant 0 : i32
    return %c0_i32, %c0_i32_0 : i32, i32
  }
  func.func @transform_2(%arg0: i32) -> (i32, i32) {
    %c0_i32 = arith.constant 0 : i32
    %c0_i32_0 = arith.constant 0 : i32
    %c0_i32_1 = arith.constant 0 : i32
    return %c0_i32, %c0_i32_0 : i32, i32
  }
  func.func @transform_3(%arg0: i32) -> (i32, i32) {
    %c0_i32 = arith.constant 0 : i32
    %c0_i32_0 = arith.constant 0 : i32
    %c0_i32_1 = arith.constant 0 : i32
    return %c0_i32, %c0_i32_0 : i32, i32
  }
  func.func @transform_4(%arg0: i32) -> (i32, i32) {
    %c0_i32 = arith.constant 0 : i32
    %c0_i32_0 = arith.constant 0 : i32
    %c0_i32_1 = arith.constant 0 : i32
    return %c0_i32, %c0_i32_0 : i32, i32
  }
  func.func @transform_5(%arg0: i32) -> (i32, i32) {
    %c0_i32 = arith.constant 0 : i32
    %c0_i32_0 = arith.constant 0 : i32
    return %arg0, %c0_i32 : i32, i32
  }
}

</mosaic_0001>

<llo_original>
// kernel: pathgan_forward.5
$region0: #{pathgan_forward.5}
  #allocation0 [shape = 'u32[]', space=smem, size = 0x4, offset = 0x4, fixed_abs, tag = 'smem constant byte address 0x4 - core index']
  #allocation1 [shape = 'u32[144,128]{1,0:T(1,128)}', space=vmem, size = 0x12000, scoped, tag = 'internal scratch']
  %s0 = inlined_call_operand.vmem [shape: bf16[128,128], index: 0, kind: input, shape index: {}]
  %s1 = inlined_call_operand.vmem [shape: bf16[128,128], index: 1, kind: input, shape index: {}]
  %s2 = inlined_call_operand.vmem [shape: f32[1,128], index: 2, kind: input, shape index: {}]
  %s3 = inlined_call_operand.vmem [shape: bf16[128,128], index: 3, kind: output, shape index: {}]
  %s4 = sld [smem:[#allocation0]]
  $region22: #{pathgan_forward.5} parent=0
    _
  %s6 = ssub.s32 1, %s4
  %s7 = scalar_select 0, %s6, %s4
  // Predicated region
  $region2: #{pathgan_forward.5} parent=0 // pred_check
    _
  $region3: #{pathgan_forward.5} parent=0 // pred_check_branch
    %9 = sbr.rel (0) target = $region5
  $region4: #{pathgan_forward.5} parent=0 // pred_region
    _
  $region5: #{pathgan_forward.5} parent=0 // pred_fallthru
    _
  // Predicated region
  $region6: #{pathgan_forward.5} parent=0 // pred_check
    _
  $region7: #{pathgan_forward.5} parent=0 // pred_check_branch
    %11 = sbr.rel (0) target = $region9
  $region8: #{pathgan_forward.5} parent=0 // pred_region
    _
  $region9: #{pathgan_forward.5} parent=0 // pred_fallthru
    _
  // Predicated region
  $region10: #{pathgan_forward.5} parent=0 // pred_check
    _
  $region11: #{pathgan_forward.5} parent=0 // pred_check_branch
    %13 = sbr.rel (0) target = $region13
  $region12: #{pathgan_forward.5} parent=0 // pred_region
    _
  $region13: #{pathgan_forward.5} parent=0 // pred_fallthru
    _
  %v15 = vld [vmem:[%s0] sm:$0xf]
  %v16 = vld [vmem:[%s0 + $0x4] sm:$0xf]
  %v17 = vld [vmem:[%s0 + $0x8] sm:$0xf]
  %v18 = vld [vmem:[%s0 + $0xc] sm:$0xf]
  %v19 = vld [vmem:[%s0 + $0x10] sm:$0xf]
  %v20 = vld [vmem:[%s0 + $0x14] sm:$0xf]
  %v21 = vld [vmem:[%s0 + $0x18] sm:$0xf]
  %v22 = vld [vmem:[%s0 + $0x1c] sm:$0xf]
  %v23 = vld [vmem:[%s0 + $0x20] sm:$0xf]
  %v24 = vld [vmem:[%s0 + $0x24] sm:$0xf]
  %v25 = vld [vmem:[%s0 + $0x28] sm:$0xf]
  %v26 = vld [vmem:[%s0 + $0x2c] sm:$0xf]
  %v27 = vld [vmem:[%s0 + $0x30] sm:$0xf]
  %v28 = vld [vmem:[%s0 + $0x34] sm:$0xf]
  %v29 = vld [vmem:[%s0 + $0x38] sm:$0xf]
  %v30 = vld [vmem:[%s0 + $0x3c] sm:$0xf]
  %v31 = vld [vmem:[%s1] sm:$0xf]
  %v32 = vld [vmem:[%s1 + $0x4] sm:$0xf]
  %v33 = vld [vmem:[%s1 + $0x8] sm:$0xf]
  %v34 = vld [vmem:[%s1 + $0xc] sm:$0xf]
  %v35 = vld [vmem:[%s1 + $0x10] sm:$0xf]
  %v36 = vld [vmem:[%s1 + $0x14] sm:$0xf]
  %v37 = vld [vmem:[%s1 + $0x18] sm:$0xf]
  %v38 = vld [vmem:[%s1 + $0x1c] sm:$0xf]
  %v39 = vld [vmem:[%s1 + $0x20] sm:$0xf]
  %v40 = vld [vmem:[%s1 + $0x24] sm:$0xf]
  %v41 = vld [vmem:[%s1 + $0x28] sm:$0xf]
  %v42 = vld [vmem:[%s1 + $0x2c] sm:$0xf]
  %v43 = vld [vmem:[%s1 + $0x30] sm:$0xf]
  %v44 = vld [vmem:[%s1 + $0x34] sm:$0xf]
  %v45 = vld [vmem:[%s1 + $0x38] sm:$0xf]
  %v46 = vld [vmem:[%s1 + $0x3c] sm:$0xf]
  %v47 = vld [vmem:[%s2] sm:$0x1]
  %v49 = vlaneseq
  %v50 = vshrl.u32 %v49, 7
  %v51 = vsub.s32 0, %v50
  %v52 = vrot.slane %v47, %v51
  %v70 = vunpack.c.l.b16 %v15
  %v71 = vunpack.c.l.b16 %v16
  %v72 = vunpack.c.l.b16 %v17
  %v73 = vunpack.c.l.b16 %v18
  %v74 = vunpack.c.l.b16 %v19
  %v75 = vunpack.c.l.b16 %v20
  %v76 = vunpack.c.l.b16 %v21
  %v77 = vunpack.c.l.b16 %v22
  %v78 = vunpack.c.l.b16 %v23
  %v79 = vunpack.c.l.b16 %v24
  %v80 = vunpack.c.l.b16 %v25
  %v81 = vunpack.c.l.b16 %v26
  %v82 = vunpack.c.l.b16 %v27
  %v83 = vunpack.c.l.b16 %v28
  %v84 = vunpack.c.l.b16 %v29
  %v85 = vunpack.c.l.b16 %v30
  %v86 = vpack.c.b16 %v71, %v70
  %v87 = vpack.c.b16 %v73, %v72
  %v88 = vpack.c.b16 %v75, %v74
  %v89 = vpack.c.b16 %v77, %v76
  %v90 = vpack.c.b16 %v79, %v78
  %v91 = vpack.c.b16 %v81, %v80
  %v92 = vpack.c.b16 %v83, %v82
  %v93 = vpack.c.b16 %v85, %v84
  %v118 = vunpack.c.l.b16 %v31
  %v119 = vunpack.c.l.b16 %v32
  %v120 = vunpack.c.l.b16 %v33
  %v121 = vunpack.c.l.b16 %v34
  %v122 = vunpack.c.l.b16 %v35
  %v123 = vunpack.c.l.b16 %v36
  %v124 = vunpack.c.l.b16 %v37
  %v125 = vunpack.c.l.b16 %v38
  %v126 = vunpack.c.l.b16 %v39
  %v127 = vunpack.c.l.b16 %v40
  %v128 = vunpack.c.l.b16 %v41
  %v129 = vunpack.c.l.b16 %v42
  %v130 = vunpack.c.l.b16 %v43
  %v131 = vunpack.c.l.b16 %v44
  %v132 = vunpack.c.l.b16 %v45
  %v133 = vunpack.c.l.b16 %v46
  %v134 = vpack.c.b16 %v119, %v118
  %v135 = vpack.c.b16 %v121, %v120
  %v136 = vpack.c.b16 %v123, %v122
  %v137 = vpack.c.b16 %v125, %v124
  %v138 = vpack.c.b16 %v127, %v126
  %v139 = vpack.c.b16 %v129, %v128
  %v140 = vpack.c.b16 %v131, %v130
  %v141 = vpack.c.b16 %v133, %v132
  %150 = vmatprep.subr.bf16.mxu0 0
  %151 = vmatpush1.bf16.msra.mxu0 %v134
  %152 = vmatprep.subr.bf16.mxu0 0
  %153 = vmatpush1.bf16.msra.mxu0 %v135
  %154 = vmatprep.subr.bf16.mxu0 0
  %155 = vmatpush1.bf16.msra.mxu0 %v136
  %156 = vmatprep.subr.bf16.mxu0 0
  %157 = vmatpush1.bf16.msra.mxu0 %v137
  %158 = vmatprep.subr.bf16.mxu0 0
  %159 = vmatpush1.bf16.msra.mxu0 %v138
  %160 = vmatprep.subr.bf16.mxu0 0
  %161 = vmatpush1.bf16.msra.mxu0 %v139
  %162 = vmatprep.subr.bf16.mxu0 0
  %163 = vmatpush1.bf16.msra.mxu0 %v140
  %164 = vmatprep.subr.bf16.mxu0 0
  %165 = vmatpush1.bf16.msra.mxu0 %v141
  %166 = vmatprep.subr.bf16.mxu0 0
  %167 = vmatpush1.bf16.msra.mxu0 0
  %168 = vmatprep.subr.bf16.mxu0 0
  %169 = vmatpush1.bf16.msra.mxu0 0
  %170 = vmatprep.subr.bf16.mxu0 0
  %171 = vmatpush1.bf16.msra.mxu0 0
  %172 = vmatprep.subr.bf16.mxu0 0
  %173 = vmatpush1.bf16.msra.mxu0 0
  %174 = vmatprep.subr.bf16.mxu0 0
  %175 = vmatpush1.bf16.msra.mxu0 0
  %176 = vmatprep.subr.bf16.mxu0 0
  %177 = vmatpush1.bf16.msra.mxu0 0
  %178 = vmatprep.subr.bf16.mxu0 0
  %179 = vmatpush1.bf16.msra.mxu0 0
  %180 = vmatprep.subr.bf16.mxu0 0
  %181 = vmatpush1.bf16.msra.mxu0 0
  %182 = vmatprep.mubr.bf16.mxu0 0
  %183 = vmatmul.mubr.bf16.gmra.mrb[0].mxu0 %v86
  %v184 = vpop.f32.mrb[0].mxu0
  %v185 = vadd.f32 %v52, %v184
  %v186 = vpop.f32.mrb[0].mxu0
  %v187 = vpop.f32.mrb[0].mxu0
  %v188 = vadd.f32 %v52, %v187
  %v189 = vpop.f32.mrb[0].mxu0
  %190 = vmatprep.mubr.bf16.mxu0 0
  %191 = vmatmul.mubr.bf16.gmra.mrb[0].mxu0 %v87
  %v192 = vpop.f32.mrb[0].mxu0
  %v193 = vadd.f32 %v52, %v192
  %v194 = vpop.f32.mrb[0].mxu0
  %v195 = vpop.f32.mrb[0].mxu0
  %v196 = vadd.f32 %v52, %v195
  %v197 = vpop.f32.mrb[0].mxu0
  %198 = vmatprep.mubr.bf16.mxu0 0
  %199 = vmatmul.mubr.bf16.gmra.mrb[0].mxu0 %v88
  %v200 = vpop.f32.mrb[0].mxu0
  %v201 = vadd.f32 %v52, %v200
  %v202 = vpop.f32.mrb[0].mxu0
  %v203 = vpop.f32.mrb[0].mxu0
  %v204 = vadd.f32 %v52, %v203
  %v205 = vpop.f32.mrb[0].mxu0
  %206 = vmatprep.mubr.bf16.mxu0 0
  %207 = vmatmul.mubr.bf16.gmra.mrb[0].mxu0 %v89
  %v208 = vpop.f32.mrb[0].mxu0
  %v209 = vadd.f32 %v52, %v208
  %v210 = vpop.f32.mrb[0].mxu0
  %v211 = vpop.f32.mrb[0].mxu0
  %v212 = vadd.f32 %v52, %v211
  %v213 = vpop.f32.mrb[0].mxu0
  %214 = vmatprep.mubr.bf16.mxu0 0
  %215 = vmatmul.mubr.bf16.gmra.mrb[0].mxu0 %v90
  %v216 = vpop.f32.mrb[0].mxu0
  %v217 = vadd.f32 %v52, %v216
  %v218 = vpop.f32.mrb[0].mxu0
  %v219 = vpop.f32.mrb[0].mxu0
  %v220 = vadd.f32 %v52, %v219
  %v221 = vpop.f32.mrb[0].mxu0
  %222 = vmatprep.mubr.bf16.mxu0 0
  %223 = vmatmul.mubr.bf16.gmra.mrb[0].mxu0 %v91
  %v224 = vpop.f32.mrb[0].mxu0
  %v225 = vadd.f32 %v52, %v224
  %v226 = vpop.f32.mrb[0].mxu0
  %v227 = vpop.f32.mrb[0].mxu0
  %v228 = vadd.f32 %v52, %v227
  %v229 = vpop.f32.mrb[0].mxu0
  %230 = vmatprep.mubr.bf16.mxu0 0
  %231 = vmatmul.mubr.bf16.gmra.mrb[0].mxu0 %v92
  %v232 = vpop.f32.mrb[0].mxu0
  %v233 = vadd.f32 %v52, %v232
  %v234 = vpop.f32.mrb[0].mxu0
  %v235 = vpop.f32.mrb[0].mxu0
  %v236 = vadd.f32 %v52, %v235
  %v237 = vpop.f32.mrb[0].mxu0
  %238 = vmatprep.mubr.bf16.mxu0 0
  %239 = vmatmul.mubr.bf16.gmra.mrb[0].mxu0 %v93
  %v240 = vpop.f32.mrb[0].mxu0
  %v241 = vadd.f32 %v52, %v240
  %v242 = vpop.f32.mrb[0].mxu0
  %v243 = vpop.f32.mrb[0].mxu0
  %v244 = vadd.f32 %v52, %v243
  %v245 = vpop.f32.mrb[0].mxu0
  %246 = vdwg.mxu0
  %vm247 = vcmp.gt.f32.partialorder %v185, 0.0
  %vm248 = vcmp.gt.f32.partialorder %v188, 0.0
  %vm249 = vcmp.gt.f32.partialorder %v193, 0.0
  %vm250 = vcmp.gt.f32.partialorder %v196, 0.0
  %vm251 = vcmp.gt.f32.partialorder %v201, 0.0
  %vm252 = vcmp.gt.f32.partialorder %v204, 0.0
  %vm253 = vcmp.gt.f32.partialorder %v209, 0.0
  %vm254 = vcmp.gt.f32.partialorder %v212, 0.0
  %vm255 = vcmp.gt.f32.partialorder %v217, 0.0
  %vm256 = vcmp.gt.f32.partialorder %v220, 0.0
  %vm257 = vcmp.gt.f32.partialorder %v225, 0.0
  %vm258 = vcmp.gt.f32.partialorder %v228, 0.0
  %vm259 = vcmp.gt.f32.partialorder %v233, 0.0
  %vm260 = vcmp.gt.f32.partialorder %v236, 0.0
  %vm261 = vcmp.gt.f32.partialorder %v241, 0.0
  %vm262 = vcmp.gt.f32.partialorder %v244, 0.0
  %v263 = vmul.f32 %v185, 0.2
  %v264 = vmul.f32 %v188, 0.2
  %v265 = vmul.f32 %v193, 0.2
  %v266 = vmul.f32 %v196, 0.2
  %v267 = vmul.f32 %v201, 0.2
  %v268 = vmul.f32 %v204, 0.2
  %v269 = vmul.f32 %v209, 0.2
  %v270 = vmul.f32 %v212, 0.2
  %v271 = vmul.f32 %v217, 0.2
  %v272 = vmul.f32 %v220, 0.2
  %v273 = vmul.f32 %v225, 0.2
  %v274 = vmul.f32 %v228, 0.2
  %v275 = vmul.f32 %v233, 0.2
  %v276 = vmul.f32 %v236, 0.2
  %v277 = vmul.f32 %v241, 0.2
  %v278 = vmul.f32 %v244, 0.2
  %v279 = vsel %vm247, %v185, %v263
  %v280 = vsel %vm248, %v188, %v264
  %v281 = vsel %vm249, %v193, %v265
  %v282 = vsel %vm250, %v196, %v266
  %v283 = vsel %vm251, %v201, %v267
  %v284 = vsel %vm252, %v204, %v268
  %v285 = vsel %vm253, %v209, %v269
  %v286 = vsel %vm254, %v212, %v270
  %v287 = vsel %vm255, %v217, %v271
  %v288 = vsel %vm256, %v220, %v272
  %v289 = vsel %vm257, %v225, %v273
  %v290 = vsel %vm258, %v228, %v274
  %v291 = vsel %vm259, %v233, %v275
  %v292 = vsel %vm260, %v236, %v276
  %v293 = vsel %vm261, %v241, %v277
  %v294 = vsel %vm262, %v244, %v278
  %v295 = vpack.c.bf16 %v280, %v279
  %v296 = vpack.c.bf16 %v282, %v281
  %v297 = vpack.c.bf16 %v284, %v283
  %v298 = vpack.c.bf16 %v286, %v285
  %v299 = vpack.c.bf16 %v288, %v287
  %v300 = vpack.c.bf16 %v290, %v289
  %v301 = vpack.c.bf16 %v292, %v291
  %v302 = vpack.c.bf16 %v294, %v293
  %v311 = vunpack.c.l.b16 %v295
  %v312 = vunpack.c.h.b16 %v295
  %v313 = vunpack.c.l.b16 %v296
  %v314 = vunpack.c.h.b16 %v296
  %v315 = vunpack.c.l.b16 %v297
  %v316 = vunpack.c.h.b16 %v297
  %v317 = vunpack.c.l.b16 %v298
  %v318 = vunpack.c.h.b16 %v298
  %v319 = vunpack.c.l.b16 %v299
  %v320 = vunpack.c.h.b16 %v299
  %v321 = vunpack.c.l.b16 %v300
  %v322 = vunpack.c.h.b16 %v300
  %v323 = vunpack.c.l.b16 %v301
  %v324 = vunpack.c.h.b16 %v301
  %v325 = vunpack.c.l.b16 %v302
  %v326 = vunpack.c.h.b16 %v302
  %v327 = vpack.c.b16 %v311, %v311
  %v328 = vpack.c.b16 %v312, %v312
  %v329 = vpack.c.b16 %v313, %v313
  %v330 = vpack.c.b16 %v314, %v314
  %v331 = vpack.c.b16 %v315, %v315
  %v332 = vpack.c.b16 %v316, %v316
  %v333 = vpack.c.b16 %v317, %v317
  %v334 = vpack.c.b16 %v318, %v318
  %v335 = vpack.c.b16 %v319, %v319
  %v336 = vpack.c.b16 %v320, %v320
  %v337 = vpack.c.b16 %v321, %v321
  %v338 = vpack.c.b16 %v322, %v322
  %v339 = vpack.c.b16 %v323, %v323
  %v340 = vpack.c.b16 %v324, %v324
  %v341 = vpack.c.b16 %v325, %v325
  %v342 = vpack.c.b16 %v326, %v326
  %359 = vst [vmem:[%s3] sm:$0xf] %v327
  %360 = vst [vmem:[%s3 + $0x4] sm:$0xf] %v328
  %361 = vst [vmem:[%s3 + $0x8] sm:$0xf] %v329
  %362 = vst [vmem:[%s3 + $0xc] sm:$0xf] %v330
  %363 = vst [vmem:[%s3 + $0x10] sm:$0xf] %v331
  %364 = vst [vmem:[%s3 + $0x14] sm:$0xf] %v332
  %365 = vst [vmem:[%s3 + $0x18] sm:$0xf] %v333
  %366 = vst [vmem:[%s3 + $0x1c] sm:$0xf] %v334
  %367 = vst [vmem:[%s3 + $0x20] sm:$0xf] %v335
  %368 = vst [vmem:[%s3 + $0x24] sm:$0xf] %v336
  %369 = vst [vmem:[%s3 + $0x28] sm:$0xf] %v337
  %370 = vst [vmem:[%s3 + $0x2c] sm:$0xf] %v338
  %371 = vst [vmem:[%s3 + $0x30] sm:$0xf] %v339
  %372 = vst [vmem:[%s3 + $0x34] sm:$0xf] %v340
  %373 = vst [vmem:[%s3 + $0x38] sm:$0xf] %v341
  %374 = vst [vmem:[%s3 + $0x3c] sm:$0xf] %v342
  // Predicated region
  $region14: #{pathgan_forward.5} parent=0 // pred_check
    _
  $region15: #{pathgan_forward.5} parent=0 // pred_check_branch
    %376 = sbr.rel (0) target = $region17
  $region16: #{pathgan_forward.5} parent=0 // pred_region
    _
  $region17: #{pathgan_forward.5} parent=0 // pred_fallthru
    _
  // Predicated region
  $region18: #{pathgan_forward.5} parent=0 // pred_check
    _
  $region19: #{pathgan_forward.5} parent=0 // pred_check_branch
    %378 = sbr.rel (0) target = $region21
  $region20: #{pathgan_forward.5} parent=0 // pred_region
    _
  $region21: #{pathgan_forward.5} parent=0 // pred_fallthru
    _

// kernel: pathgan_forward.6
$region0: #{pathgan_forward.6}
  #allocation0 [shape = 'u32[]', space=smem, size = 0x4, offset = 0x4, fixed_abs, tag = 'smem constant byte address 0x4 - core index']
  #allocation1 [shape = 'u32[144,128]{1,0:T(1,128)}', space=vmem, size = 0x12000, scoped, tag = 'internal scratch']
  %s0 = inlined_call_operand.vmem [shape: bf16[2,1,5,5,512], index: 0, kind: input, shape index: {}]
  %s1 = inlined_call_operand.vmem [shape: bf16[4,512,128], index: 1, kind: input, shape index: {}]
  %s2 = inlined_call_operand.vmem [shape: f32[1,128], index: 2, kind: input, shape index: {}]
  %s3 = inlined_call_operand.vmem [shape: bf16[2,16,128], index: 3, kind: output, shape index: {0}]
  %s4 = inlined_call_operand.vmem [shape: f32[2,1,2,128], index: 4, kind: output, shape index: {1}]
  %5 = xla_tuple %s3, %s4
  %s6 = sld [smem:[#allocation0]]
  $region53: #{pathgan_forward.6} parent=0
    _
  %s8 = ssub.s32 1, %s6
  %s9 = scalar_select 0, %s8, %s6
  loop: start=0, step=1, limit=4
  $region2: #{pathgan_forward.6} parent=0 // loop_pre_header
    _
  $region3: #{pathgan_forward.6} parent=0 // loop_header
    %s11 = sphi 0, %s15
    %p12 = scmp.ge.s32.totalorder %s11, 4
    %s18 = sphi 0, %s30
    %s19 = sphi 0, %s26
    %s20 = sphi 0, %s18
    %s21 = sphi 0, %s19
    %s22 = sphi 0, %s20
    %s23 = sphi 0, %s21
    %s35 = sphi 0, %s37
    %s38 = sphi 0, %s35
    %s39 = sphi 0, %s38
    %s55 = sphi 0, %s39
    %s59 = sphi 0, %s59
    %s61 = sphi 0, %s59
    %s62 = sphi 0, %s61
    %s76 = sphi 0, %s62
    %s80 = sphi 0, %s80
    %s82 = sphi 0, %s80
    %s83 = sphi 0, %s82
    %s97 = sphi 0, %s83
    %s105 = sphi 0, %s107
    %s108 = sphi 0, %s105
    %s109 = sphi 0, %s108
    %s125 = sphi 0, %s109
    %s133 = sphi 0, %s135
    %s136 = sphi 0, %s133
    %s137 = sphi 0, %s136
    %s153 = sphi 0, %s137
  $region4: #{pathgan_forward.6} parent=0 // loop_header_branch
    %14 = sbr.rel (%p12) target = $region8
  $region5: #{pathgan_forward.6} parent=0 // loop_body
    %s16 = ssub.s32 %s11, 1
    %s17 = ssub.s32 %s11, 2
    %s24 = sadd.s32 1, %s19
    %p25 = scmp.ge.s32.totalorder %s24, 1
    %s26 = scalar_select %p25, 0, %s24
    %s27 = sadd.s32 1, %s18
    %s28 = scalar_select %p25, %s27, %s18
    %p29 = scmp.ge.s32.totalorder %s28, 2
    %s30 = scalar_select %p29, 0, %s28
    %s31 = ssub.s32 %s18, %s30
    %s32 = ssub.s32 %s19, %s26
    %s33 = sor.u32 %s31, %s32
    %p34 = scmp.eq.s32.totalorder %s33, 0
    %s36 = sadd.s32 %s35, 1
    %s37 = scalar_select %p34, %s35, %s36
    %p40 = pneg %p34
    %p41 = scmp.eq.s32.totalorder %s11, 1
    %p42 = por %p40, %p41
    %p43 = scmp.ne.s32.totalorder %s35, %s38
    %p44 = scmp.eq.s32.totalorder %s11, 0
    %p45 = por %p43, %p44
    %p46 = scmp.ne.s32.totalorder %s35, %s38
    %p47 = scmp.eq.s32.totalorder %s16, 1
    %p48 = por %p46, %p47
    %p49 = scmp.ne.s32.totalorder %s38, %s39
    %p50 = scmp.eq.s32.totalorder %s16, 0
    %p51 = por %p49, %p50
    %p52 = scmp.ne.s32.totalorder %s38, %s39
    %p53 = scmp.eq.s32.totalorder %s17, 1
    %p54 = por %p52, %p53
    %p56 = scmp.ne.s32.totalorder %s39, %s55
    %p57 = scmp.eq.s32.totalorder %s17, 0
    %p58 = por %p56, %p57
    %s60 = sadd.s32 %s59, 1
    %p63 = scmp.eq.s32.totalorder %s11, 1
    %p64 = scmp.ne.s32.totalorder %s59, %s61
    %p65 = scmp.eq.s32.totalorder %s11, 0
    %p66 = por %p64, %p65
    %p67 = scmp.ne.s32.totalorder %s59, %s61
    %p68 = scmp.eq.s32.totalorder %s16, 1
    %p69 = por %p67, %p68
    %p70 = scmp.ne.s32.totalorder %s61, %s62
    %p71 = scmp.eq.s32.totalorder %s16, 0
    %p72 = por %p70, %p71
    %p73 = scmp.ne.s32.totalorder %s61, %s62
    %p74 = scmp.eq.s32.totalorder %s17, 1
    %p75 = por %p73, %p74
    %p77 = scmp.ne.s32.totalorder %s62, %s76
    %p78 = scmp.eq.s32.totalorder %s17, 0
    %p79 = por %p77, %p78
    %s81 = sadd.s32 %s80, 1
    %p84 = scmp.eq.s32.totalorder %s11, 1
    %p85 = scmp.ne.s32.totalorder %s80, %s82
    %p86 = scmp.eq.s32.totalorder %s11, 0
    %p87 = por %p85, %p86
    %p88 = scmp.ne.s32.totalorder %s80, %s82
    %p89 = scmp.eq.s32.totalorder %s16, 1
    %p90 = por %p88, %p89
    %p91 = scmp.ne.s32.totalorder %s82, %s83
    %p92 = scmp.eq.s32.totalorder %s16, 0
    %p93 = por %p91, %p92
    %p94 = scmp.ne.s32.totalorder %s82, %s83
    %p95 = scmp.eq.s32.totalorder %s17, 1
    %p96 = por %p94, %p95
    %p98 = scmp.ne.s32.totalorder %s83, %s97
    %p99 = scmp.eq.s32.totalorder %s17, 0
    %p100 = por %p98, %p99
    %s101 = ssub.s32 %s18, %s30
    %s102 = ssub.s32 %s19, %s26
    %s103 = sor.u32 %s101, %s102
    %p104 = scmp.eq.s32.totalorder %s103, 0
    %s106 = sadd.s32 %s105, 1
    %s107 = scalar_select %p104, %s105, %s106
    %p110 = pneg %p104
    %p111 = scmp.eq.s32.totalorder %s11, 1
    %p112 = por %p110, %p111
    %p113 = scmp.ne.s32.totalorder %s105, %s108
    %p114 = scmp.eq.s32.totalorder %s11, 0
    %p115 = por %p113, %p114
    %p116 = scmp.ne.s32.totalorder %s105, %s108
    %p117 = scmp.eq.s32.totalorder %s16, 1
    %p118 = por %p116, %p117
    %p119 = scmp.ne.s32.totalorder %s108, %s109
    %p120 = scmp.eq.s32.totalorder %s16, 0
    %p121 = por %p119, %p120
    %p122 = scmp.ne.s32.totalorder %s108, %s109
    %p123 = scmp.eq.s32.totalorder %s17, 1
    %p124 = por %p122, %p123
    %p126 = scmp.ne.s32.totalorder %s109, %s125
    %p127 = scmp.eq.s32.totalorder %s17, 0
    %p128 = por %p126, %p127
    %s129 = ssub.s32 %s18, %s30
    %s130 = ssub.s32 %s19, %s26
    %s131 = sor.u32 %s129, %s130
    %p132 = scmp.eq.s32.totalorder %s131, 0
    %s134 = sadd.s32 %s133, 1
    %s135 = scalar_select %p132, %s133, %s134
    %p138 = pneg %p132
    %p139 = scmp.eq.s32.totalorder %s11, 1
    %p140 = por %p138, %p139
    %p141 = scmp.ne.s32.totalorder %s133, %s136
    %p142 = scmp.eq.s32.totalorder %s11, 0
    %p143 = por %p141, %p142
    %p144 = scmp.ne.s32.totalorder %s133, %s136
    %p145 = scmp.eq.s32.totalorder %s16, 1
    %p146 = por %p144, %p145
    %p147 = scmp.ne.s32.totalorder %s136, %s137
    %p148 = scmp.eq.s32.totalorder %s16, 0
    %p149 = por %p147, %p148
    %p150 = scmp.ne.s32.totalorder %s136, %s137
    %p151 = scmp.eq.s32.totalorder %s17, 1
    %p152 = por %p150, %p151
    %p154 = scmp.ne.s32.totalorder %s137, %s153
    %p155 = scmp.eq.s32.totalorder %s17, 0
    %p156 = por %p154, %p155
    %p157 = scmp.le.s32.totalorder 1, %s11
    %p158 = scmp.lt.s32.totalorder %s11, 3
    %p159 = pnand %p157, %p158
    %p160 = pneg %p159
    // Predicated region
    $region9: #{pathgan_forward.6} parent=5 // pred_check
      _
    $region10: #{pathgan_forward.6} parent=5 // pred_check_branch
      %162 = sbr.rel (%p159) target = $region12
    $region11: #{pathgan_forward.6} parent=5 // pred_region
      %s163 = ssub.s32 %s11, 1
      // Predicated region
      $region13: #{pathgan_forward.6} parent=11 // pred_check
        %p164 = pneg %p72
      $region14: #{pathgan_forward.6} parent=11 // pred_check_branch
        %166 = sbr.rel (%p164) target = $region16
      $region15: #{pathgan_forward.6} parent=11 // pred_region
        _
      $region16: #{pathgan_forward.6} parent=11 // pred_fallthru
        _
      // Predicated region
      $region17: #{pathgan_forward.6} parent=11 // pred_check
        %p167 = pneg %p93
      $region18: #{pathgan_forward.6} parent=11 // pred_check_branch
        %169 = sbr.rel (%p167) target = $region20
      $region19: #{pathgan_forward.6} parent=11 // pred_region
        _
      $region20: #{pathgan_forward.6} parent=11 // pred_fallthru
        _
    $region12: #{pathgan_forward.6} parent=5 // pred_fallthru
      _
    %p170 = scmp.lt.s32.totalorder %s11, 2
    // Predicated region
    $region21: #{pathgan_forward.6} parent=5 // pred_check
      %p171 = pneg %p170
    $region22: #{pathgan_forward.6} parent=5 // pred_check_branch
      %173 = sbr.rel (%p171) target = $region24
    $region23: #{pathgan_forward.6} parent=5 // pred_region
      // Predicated region
      $region25: #{pathgan_forward.6} parent=23 // pred_check
        %p174 = pneg %p45
      $region26: #{pathgan_forward.6} parent=23 // pred_check_branch
        %176 = sbr.rel (%p174) target = $region28
      $region27: #{pathgan_forward.6} parent=23 // pred_region
        %p177 = scmp.lt.s32.totalorder %s18, 1
        %s178 = scalar_select %p177, %s18, 1
        %p179 = scmp.lt.s32.totalorder %s19, 0
        %s180 = scalar_select %p179, %s19, 0
        %s181 = smul.addr %s180, 20
        %s182 = smul.addr %s178, 20
        %s183 = sadd.s32 %s181, %s182
        %s184 = smul.addr %s183, 4
        %s185 = scalar_lea.vmem %s0, %s184
      $region28: #{pathgan_forward.6} parent=23 // pred_fallthru
        _
    $region24: #{pathgan_forward.6} parent=5 // pred_fallthru
      _
    %p186 = scmp.le.s32.totalorder 1, %s11
    %p187 = scmp.lt.s32.totalorder %s11, 3
    %p188 = pnand %p186, %p187
    %p189 = pneg %p188
    // Predicated region
    $region29: #{pathgan_forward.6} parent=5 // pred_check
      _
    $region30: #{pathgan_forward.6} parent=5 // pred_check_branch
      %191 = sbr.rel (%p188) target = $region32
    $region31: #{pathgan_forward.6} parent=5 // pred_region
      %s192 = ssub.s32 %s11, 1
      %p193 = scmp.lt.s32.totalorder %s20, 1
      %s194 = scalar_select %p193, %s20, 1
      %p195 = scmp.lt.s32.totalorder %s21, 0
      %s196 = scalar_select %p195, %s21, 0
      %s197 = smul.addr %s196, 20
      %s198 = smul.addr %s194, 20
      %s199 = sadd.s32 %s197, %s198
      %s200 = smul.addr %s199, 4
      %s201 = scalar_lea.vmem %s0, %s200
      %p202 = pneg %p51
      %p203 = pneg %p48
      %p204 = pneg %p72
      %p205 = pneg %p69
      %p206 = pneg %p93
      %p207 = pneg %p90
      %p208 = pneg %p121
      %p209 = pneg %p118
      %s210 = smul.u32 2, %s21
      %p211 = scmp.lt.s32.totalorder %s20, 1
      %s212 = scalar_select %p211, %s20, 1
      %p213 = scmp.lt.s32.totalorder %s210, 1
      %s214 = scalar_select %p213, %s210, 1
      %s215 = smul.addr %s212, 2
      %s216 = sadd.s32 %s214, %s215
      %s217 = smul.addr %s216, 4
      %s218 = scalar_lea.vmem %s3, %s217
      %p219 = pneg %p149
      %p220 = pneg %p146
      %p221 = scmp.lt.s32.totalorder %s20, 1
      %s222 = scalar_select %p221, %s20, 1
      %p223 = scmp.lt.s32.totalorder %s21, 0
      %s224 = scalar_select %p223, %s21, 0
      %s225 = sadd.s32 %s224, %s222
      %s226 = smul.addr %s225, 2
      %s227 = scalar_lea.vmem %s4, %s226
      %p228 = scmp.lt.s32.totalorder %s20, 1
      %s229 = scalar_select %p228, %s20, 1
      %p230 = scmp.lt.s32.totalorder %s21, 0
      %s231 = scalar_select %p230, %s21, 0
      %s232 = smul.addr %s231, 20
      %s233 = smul.addr %s229, 20
      %s234 = sadd.s32 %s232, %s233
      %s235 = smul.addr %s234, 4
      %s236 = scalar_lea.vmem %s0, %s235
      %s237 = smul.u32 2, %s21
      %p238 = scmp.lt.s32.totalorder %s20, 1
      %s239 = scalar_select %p238, %s20, 1
      %p240 = scmp.lt.s32.totalorder %s237, 1
      %s241 = scalar_select %p240, %s237, 1
      %s242 = smul.addr %s239, 2
      %s243 = sadd.s32 %s241, %s242
      %s244 = smul.addr %s243, 4
      %s245 = scalar_lea.vmem %s3, %s244
      %s246 = smul.u32 2, %s21
      %p247 = scmp.lt.s32.totalorder %s20, 1
      %s248 = scalar_select %p247, %s20, 1
      %p249 = scmp.lt.s32.totalorder %s21, 0
      %s250 = scalar_select %p249, %s21, 0
      %s251 = sadd.s32 %s250, %s248
      %s252 = smul.addr %s251, 2
      %s253 = scalar_lea.vmem %s4, %s252
      %v255 = vld [vmem:[%s236] sm:$0x33]
      %v256 = vld [vmem:[%s236 + $0x8] sm:$0x33]
      %v257 = vld [vmem:[%s236 + $0x10] sm:$0x33]
      %v258 = vld [vmem:[%s236 + $0x18] sm:$0x33]
      %v259 = vld [vmem:[%s236 + $0x20] sm:$0x33]
      %v260 = vld [vmem:[%s236 + $0x28] sm:$0x33]
      %v261 = vld [vmem:[%s236 + $0x30] sm:$0x33]
      %v262 = vld [vmem:[%s236 + $0x38] sm:$0x33]
      %v272 = vunpack.c.l.s4 1983009808
      %v273 = vunpack.c.0.s8 %v272
      %v274 = vlaneseq
      %v275 = vshrl.u32 %v274, 7
      %v276 = vsub.s32 %v273, %v275
      %v277 = vrot.slane %v255, %v276
      %v279 = vunpack.c.l.s4 1983009808
      %v280 = vunpack.c.0.s8 %v279
      %v281 = vlaneseq
      %v282 = vshrl.u32 %v281, 7
      %v283 = vsub.s32 %v280, %v282
      %v284 = vrot.slane %v256, %v283
      %v285 = vcombine.low %v277, %v284
      %v287 = vunpack.c.l.s4 1983009808
      %v288 = vunpack.c.0.s8 %v287
      %v289 = vlaneseq
      %v290 = vshrl.u32 %v289, 7
      %v291 = vsub.s32 %v288, %v290
      %v292 = vrot.slane %v257, %v291
      %v294 = vunpack.c.l.s4 1983009808
      %v295 = vunpack.c.0.s8 %v294
      %v296 = vlaneseq
      %v297 = vshrl.u32 %v296, 7
      %v298 = vsub.s32 %v295, %v297
      %v299 = vrot.slane %v258, %v298
      %v300 = vcombine.low %v292, %v299
      %v302 = vunpack.c.l.s4 1983009808
      %v303 = vunpack.c.0.s8 %v302
      %v304 = vlaneseq
      %v305 = vshrl.u32 %v304, 7
      %v306 = vsub.s32 %v303, %v305
      %v307 = vrot.slane %v259, %v306
      %v309 = vunpack.c.l.s4 1983009808
      %v310 = vunpack.c.0.s8 %v309
      %v311 = vlaneseq
      %v312 = vshrl.u32 %v311, 7
      %v313 = vsub.s32 %v310, %v312
      %v314 = vrot.slane %v260, %v313
      %v315 = vcombine.low %v307, %v314
      %v317 = vunpack.c.l.s4 1983009808
      %v318 = vunpack.c.0.s8 %v317
      %v319 = vlaneseq
      %v320 = vshrl.u32 %v319, 7
      %v321 = vsub.s32 %v318, %v320
      %v322 = vrot.slane %v261, %v321
      %v324 = vunpack.c.l.s4 1983009808
      %v325 = vunpack.c.0.s8 %v324
      %v326 = vlaneseq
      %v327 = vshrl.u32 %v326, 7
      %v328 = vsub.s32 %v325, %v327
      %v329 = vrot.slane %v262, %v328
      %v330 = vcombine.low %v322, %v329
      %v331 = vld [vmem:[%s1] sm:$0xf]
      %v332 = vld [vmem:[%s1 + $0x4] sm:$0xf]
      %v333 = vld [vmem:[%s1 + $0x8] sm:$0xf]
      %v334 = vld [vmem:[%s1 + $0xc] sm:$0xf]
      %v335 = vld [vmem:[%s1 + $0x10] sm:$0xf]
      %v336 = vld [vmem:[%s1 + $0x14] sm:$0xf]
      %v337 = vld [vmem:[%s1 + $0x18] sm:$0xf]
      %v338 = vld [vmem:[%s1 + $0x1c] sm:$0xf]
      %v339 = vld [vmem:[%s1 + $0x20] sm:$0xf]
      %v340 = vld [vmem:[%s1 + $0x24] sm:$0xf]
      %v341 = vld [vmem:[%s1 + $0x28] sm:$0xf]
      %v342 = vld [vmem:[%s1 + $0x2c] sm:$0xf]
      %v343 = vld [vmem:[%s1 + $0x30] sm:$0xf]
      %v344 = vld [vmem:[%s1 + $0x34] sm:$0xf]
      %v345 = vld [vmem:[%s1 + $0x38] sm:$0xf]
      %v346 = vld [vmem:[%s1 + $0x3c] sm:$0xf]
      %v347 = vld [vmem:[%s1 + $0x40] sm:$0xf]
      %v348 = vld [vmem:[%s1 + $0x44] sm:$0xf]
      %v349 = vld [vmem:[%s1 + $0x48] sm:$0xf]
      %v350 = vld [vmem:[%s1 + $0x4c] sm:$0xf]
      %v351 = vld [vmem:[%s1 + $0x50] sm:$0xf]
      %v352 = vld [vmem:[%s1 + $0x54] sm:$0xf]
      %v353 = vld [vmem:[%s1 + $0x58] sm:$0xf]
      %v354 = vld [vmem:[%s1 + $0x5c] sm:$0xf]
      %v355 = vld [vmem:[%s1 + $0x60] sm:$0xf]
      %v356 = vld [vmem:[%s1 + $0x64] sm:$0xf]
      %v357 = vld [vmem:[%s1 + $0x68] sm:$0xf]
      %v358 = vld [vmem:[%s1 + $0x6c] sm:$0xf]
      %v359 = vld [vmem:[%s1 + $0x70] sm:$0xf]
      %v360 = vld [vmem:[%s1 + $0x74] sm:$0xf]
      %v361 = vld [vmem:[%s1 + $0x78] sm:$0xf]
      %v362 = vld [vmem:[%s1 + $0x7c] sm:$0xf]
      %v363 = vld [vmem:[%s1 + $0x80] sm:$0xf]
      %v364 = vld [vmem:[%s1 + $0x84] sm:$0xf]
      %v365 = vld [vmem:[%s1 + $0x88] sm:$0xf]
      %v366 = vld [vmem:[%s1 + $0x8c] sm:$0xf]
      %v367 = vld [vmem:[%s1 + $0x90] sm:$0xf]
      %v368 = vld [vmem:[%s1 + $0x94] sm:$0xf]
      %v369 = vld [vmem:[%s1 + $0x98] sm:$0xf]
      %v370 = vld [vmem:[%s1 + $0x9c] sm:$0xf]
      %v371 = vld [vmem:[%s1 + $0xa0] sm:$0xf]
      %v372 = vld [vmem:[%s1 + $0xa4] sm:$0xf]
      %v373 = vld [vmem:[%s1 + $0xa8] sm:$0xf]
      %v374 = vld [vmem:[%s1 + $0xac] sm:$0xf]
      %v375 = vld [vmem:[%s1 + $0xb0] sm:$0xf]
      %v376 = vld [vmem:[%s1 + $0xb4] sm:$0xf]
      %v377 = vld [vmem:[%s1 + $0xb8] sm:$0xf]
      %v378 = vld [vmem:[%s1 + $0xbc] sm:$0xf]
      %v379 = vld [vmem:[%s1 + $0xc0] sm:$0xf]
      %v380 = vld [vmem:[%s1 + $0xc4] sm:$0xf]
      %v381 = vld [vmem:[%s1 + $0xc8] sm:$0xf]
      %v382 = vld [vmem:[%s1 + $0xcc] sm:$0xf]
      %v383 = vld [vmem:[%s1 + $0xd0] sm:$0xf]
      %v384 = vld [vmem:[%s1 + $0xd4] sm:$0xf]
      %v385 = vld [vmem:[%s1 + $0xd8] sm:$0xf]
      %v386 = vld [vmem:[%s1 + $0xdc] sm:$0xf]
      %v387 = vld [vmem:[%s1 + $0xe0] sm:$0xf]
      %v388 = vld [vmem:[%s1 + $0xe4] sm:$0xf]
      %v389 = vld [vmem:[%s1 + $0xe8] sm:$0xf]
      %v390 = vld [vmem:[%s1 + $0xec] sm:$0xf]
      %v391 = vld [vmem:[%s1 + $0xf0] sm:$0xf]
      %v392 = vld [vmem:[%s1 + $0xf4] sm:$0xf]
      %v393 = vld [vmem:[%s1 + $0xf8] sm:$0xf]
      %v394 = vld [vmem:[%s1 + $0xfc] sm:$0xf]
      %v395 = vld [vmem:[%s236] sm:$0x77]
      %v396 = vld [vmem:[%s236 + $0x8] sm:$0x77]
      %v397 = vld [vmem:[%s236 + $0x10] sm:$0x77]
      %v398 = vld [vmem:[%s236 + $0x18] sm:$0x77]
      %v399 = vld [vmem:[%s236 + $0x20] sm:$0x77]
      %v400 = vld [vmem:[%s236 + $0x28] sm:$0x77]
      %v401 = vld [vmem:[%s236 + $0x30] sm:$0x77]
      %v402 = vld [vmem:[%s236 + $0x38] sm:$0x77]
      %v412 = vunpack.c.l.s4 1983009808
      %v413 = vunpack.c.0.s8 %v412
      %v414 = vlaneseq
      %v415 = vshrl.u32 %v414, 7
      %v416 = vsub.s32 %v413, %v415
      %v417 = vrot.slane %v395, %v416
      %v419 = vunpack.c.l.s4 1983009808
      %v420 = vunpack.c.0.s8 %v419
      %v421 = vlaneseq
      %v422 = vshrl.u32 %v421, 7
      %v423 = vsub.s32 %v420, %v422
      %v424 = vrot.slane %v396, %v423
      %v425 = vcombine.low %v417, %v424
      %v426 = vcombine.high %v417, %v424
      %v428 = vunpack.c.l.s4 1983009808
      %v429 = vunpack.c.0.s8 %v428
      %v430 = vlaneseq
      %v431 = vshrl.u32 %v430, 7
      %v432 = vsub.s32 %v429, %v431
      %v433 = vrot.slane %v397, %v432
      %v435 = vunpack.c.l.s4 1983009808
      %v436 = vunpack.c.0.s8 %v435
      %v437 = vlaneseq
      %v438 = vshrl.u32 %v437, 7
      %v439 = vsub.s32 %v436, %v438
      %v440 = vrot.slane %v398, %v439
      %v441 = vcombine.low %v433, %v440
      %v442 = vcombine.high %v433, %v440
      %v444 = vunpack.c.l.s4 1983009808
      %v445 = vunpack.c.0.s8 %v444
      %v446 = vlaneseq
      %v447 = vshrl.u32 %v446, 7
      %v448 = vsub.s32 %v445, %v447
      %v449 = vrot.slane %v399, %v448
      %v451 = vunpack.c.l.s4 1983009808
      %v452 = vunpack.c.0.s8 %v451
      %v453 = vlaneseq
      %v454 = vshrl.u32 %v453, 7
      %v455 = vsub.s32 %v452, %v454
      %v456 = vrot.slane %v400, %v455
      %v457 = vcombine.low %v449, %v456
      %v458 = vcombine.high %v449, %v456
      %v460 = vunpack.c.l.s4 1983009808
      %v461 = vunpack.c.0.s8 %v460
      %v462 = vlaneseq
      %v463 = vshrl.u32 %v462, 7
      %v464 = vsub.s32 %v461, %v463
      %v465 = vrot.slane %v401, %v464
      %v467 = vunpack.c.l.s4 1983009808
      %v468 = vunpack.c.0.s8 %v467
      %v469 = vlaneseq
      %v470 = vshrl.u32 %v469, 7
      %v471 = vsub.s32 %v468, %v470
      %v472 = vrot.slane %v402, %v471
      %v473 = vcombine.low %v465, %v472
      %v474 = vcombine.high %v465, %v472
      %vm475 = vsmask.f32 1280
      %vm476 = vsmask.f32 3336
      %vm477 = vmor %vm475, %vm476
      %vm478 = vsmask.f32 5392
      %vm479 = vmor %vm477, %vm478
      %vm480 = vsmask.f32 7448
      %vm481 = vmor %vm479, %vm480
      %v483 = vshrl.u32 %v425, 16
      %v485 = vrot.slane %v483, 6
      %v486 = vshll.u32 %v425, 16
      %v488 = vrot.slane %v486, 7
      %v489 = vor.u32 %v485, %v488
      %v490 = vrot.slane %v489, 2
      %v492 = vshll.u32 %v426, 16
      %v494 = vrot.slane %v492, 7
      %v495 = vsel %vm481, %v490, %v494
      %v497 = vshrl.u32 %v441, 16
      %v499 = vrot.slane %v497, 6
      %v500 = vshll.u32 %v441, 16
      %v502 = vrot.slane %v500, 7
      %v503 = vor.u32 %v499, %v502
      %v504 = vrot.slane %v503, 2
      %v506 = vshll.u32 %v442, 16
      %v508 = vrot.slane %v506, 7
      %v509 = vsel %vm481, %v504, %v508
      %v511 = vshrl.u32 %v457, 16
      %v513 = vrot.slane %v511, 6
      %v514 = vshll.u32 %v457, 16
      %v516 = vrot.slane %v514, 7
      %v517 = vor.u32 %v513, %v516
      %v518 = vrot.slane %v517, 2
      %v520 = vshll.u32 %v458, 16
      %v522 = vrot.slane %v520, 7
      %v523 = vsel %vm481, %v518, %v522
      %v525 = vshrl.u32 %v473, 16
      %v527 = vrot.slane %v525, 6
      %v528 = vshll.u32 %v473, 16
      %v530 = vrot.slane %v528, 7
      %v531 = vor.u32 %v527, %v530
      %v532 = vrot.slane %v531, 2
      %v534 = vshll.u32 %v474, 16
      %v536 = vrot.slane %v534, 7
      %v537 = vsel %vm481, %v532, %v536
      %s538 = scalar_lea.vmem %s1, 256
      %v539 = vld [vmem:[%s538] sm:$0xf]
      %v540 = vld [vmem:[%s538 + $0x4] sm:$0xf]
      %v541 = vld [vmem:[%s538 + $0x8] sm:$0xf]
      %v542 = vld [vmem:[%s538 + $0xc] sm:$0xf]
      %v543 = vld [vmem:[%s538 + $0x10] sm:$0xf]
      %v544 = vld [vmem:[%s538 + $0x14] sm:$0xf]
      %v545 = vld [vmem:[%s538 + $0x18] sm:$0xf]
      %v546 = vld [vmem:[%s538 + $0x1c] sm:$0xf]
      %v547 = vld [vmem:[%s538 + $0x20] sm:$0xf]
      %v548 = vld [vmem:[%s538 + $0x24] sm:$0xf]
      %v549 = vld [vmem:[%s538 + $0x28] sm:$0xf]
      %v550 = vld [vmem:[%s538 + $0x2c] sm:$0xf]
      %v551 = vld [vmem:[%s538 + $0x30] sm:$0xf]
      %v552 = vld [vmem:[%s538 + $0x34] sm:$0xf]
      %v553 = vld [vmem:[%s538 + $0x38] sm:$0xf]
      %v554 = vld [vmem:[%s538 + $0x3c] sm:$0xf]
      %v555 = vld [vmem:[%s538 + $0x40] sm:$0xf]
      %v556 = vld [vmem:[%s538 + $0x44] sm:$0xf]
      %v557 = vld [vmem:[%s538 + $0x48] sm:$0xf]
      %v558 = vld [vmem:[%s538 + $0x4c] sm:$0xf]
      %v559 = vld [vmem:[%s538 + $0x50] sm:$0xf]
      %v560 = vld [vmem:[%s538 + $0x54] sm:$0xf]
      %v561 = vld [vmem:[%s538 + $0x58] sm:$0xf]
      %v562 = vld [vmem:[%s538 + $0x5c] sm:$0xf]
      %v563 = vld [vmem:[%s538 + $0x60] sm:$0xf]
      %v564 = vld [vmem:[%s538 + $0x64] sm:$0xf]
      %v565 = vld [vmem:[%s538 + $0x68] sm:$0xf]
      %v566 = vld [vmem:[%s538 + $0x6c] sm:$0xf]
      %v567 = vld [vmem:[%s538 + $0x70] sm:$0xf]
      %v568 = vld [vmem:[%s538 + $0x74] sm:$0xf]
      %v569 = vld [vmem:[%s538 + $0x78] sm:$0xf]
      %v570 = vld [vmem:[%s538 + $0x7c] sm:$0xf]
      %v571 = vld [vmem:[%s538 + $0x80] sm:$0xf]
      %v572 = vld [vmem:[%s538 + $0x84] sm:$0xf]
      %v573 = vld [vmem:[%s538 + $0x88] sm:$0xf]
      %v574 = vld [vmem:[%s538 + $0x8c] sm:$0xf]
      %v575 = vld [vmem:[%s538 + $0x90] sm:$0xf]
      %v576 = vld [vmem:[%s538 + $0x94] sm:$0xf]
      %v577 = vld [vmem:[%s538 + $0x98] sm:$0xf]
      %v578 = vld [vmem:[%s538 + $0x9c] sm:$0xf]
      %v579 = vld [vmem:[%s538 + $0xa0] sm:$0xf]
      %v580 = vld [vmem:[%s538 + $0xa4] sm:$0xf]
      %v581 = vld [vmem:[%s538 + $0xa8] sm:$0xf]
      %v582 = vld [vmem:[%s538 + $0xac] sm:$0xf]
      %v583 = vld [vmem:[%s538 + $0xb0] sm:$0xf]
      %v584 = vld [vmem:[%s538 + $0xb4] sm:$0xf]
      %v585 = vld [vmem:[%s538 + $0xb8] sm:$0xf]
      %v586 = vld [vmem:[%s538 + $0xbc] sm:$0xf]
      %v587 = vld [vmem:[%s538 + $0xc0] sm:$0xf]
      %v588 = vld [vmem:[%s538 + $0xc4] sm:$0xf]
      %v589 = vld [vmem:[%s538 + $0xc8] sm:$0xf]
      %v590 = vld [vmem:[%s538 + $0xcc] sm:$0xf]
      %v591 = vld [vmem:[%s538 + $0xd0] sm:$0xf]
      %v592 = vld [vmem:[%s538 + $0xd4] sm:$0xf]
      %v593 = vld [vmem:[%s538 + $0xd8] sm:$0xf]
      %v594 = vld [vmem:[%s538 + $0xdc] sm:$0xf]
      %v595 = vld [vmem:[%s538 + $0xe0] sm:$0xf]
      %v596 = vld [vmem:[%s538 + $0xe4] sm:$0xf]
      %v597 = vld [vmem:[%s538 + $0xe8] sm:$0xf]
      %v598 = vld [vmem:[%s538 + $0xec] sm:$0xf]
      %v599 = vld [vmem:[%s538 + $0xf0] sm:$0xf]
      %v600 = vld [vmem:[%s538 + $0xf4] sm:$0xf]
      %v601 = vld [vmem:[%s538 + $0xf8] sm:$0xf]
      %v602 = vld [vmem:[%s538 + $0xfc] sm:$0xf]
      %v603 = vcombine.low %v495, %v509
      %v604 = vcombine.high %v495, %v509
      %v605 = vcombine.low %v523, %v537
      %v606 = vcombine.high %v523, %v537
      %v608 = vunpack.c.l.s4 1983009808
      %v609 = vunpack.c.0.s8 %v608
      %v610 = vlaneseq
      %v611 = vshrl.u32 %v610, 7
      %v612 = vsub.s32 %v609, %v611
      %v613 = vrot.slane %v603, %v612
      %v615 = vunpack.c.l.s4 1983009808
      %v616 = vunpack.c.0.s8 %v615
      %v617 = vlaneseq
      %v618 = vshrl.u32 %v617, 7
      %v619 = vsub.s32 %v616, %v618
      %v620 = vrot.slane %v604, %v619
      %v622 = vunpack.c.l.s4 1983009808
      %v623 = vunpack.c.0.s8 %v622
      %v624 = vlaneseq
      %v625 = vshrl.u32 %v624, 7
      %v626 = vsub.s32 %v623, %v625
      %v627 = vrot.slane %v605, %v626
      %v629 = vunpack.c.l.s4 1983009808
      %v630 = vunpack.c.0.s8 %v629
      %v631 = vlaneseq
      %v632 = vshrl.u32 %v631, 7
      %v633 = vsub.s32 %v630, %v632
      %v634 = vrot.slane %v606, %v633
      %v635 = vcombine.low %v613, %v627
      %v636 = vcombine.high %v613, %v627
      %v637 = vcombine.low %v620, %v634
      %v638 = vcombine.high %v620, %v634
      %v707 = vunpack.c.l.b16 %v539
      %v708 = vunpack.c.l.b16 %v540
      %v709 = vunpack.c.l.b16 %v541
      %v710 = vunpack.c.l.b16 %v542
      %v711 = vunpack.c.l.b16 %v543
      %v712 = vunpack.c.l.b16 %v544
      %v713 = vunpack.c.l.b16 %v545
      %v714 = vunpack.c.l.b16 %v546
      %v715 = vunpack.c.l.b16 %v547
      %v716 = vunpack.c.l.b16 %v548
      %v717 = vunpack.c.l.b16 %v549
      %v718 = vunpack.c.l.b16 %v550
      %v719 = vunpack.c.l.b16 %v551
      %v720 = vunpack.c.l.b16 %v552
      %v721 = vunpack.c.l.b16 %v553
      %v722 = vunpack.c.l.b16 %v554
      %v723 = vunpack.c.l.b16 %v555
      %v724 = vunpack.c.l.b16 %v556
      %v725 = vunpack.c.l.b16 %v557
      %v726 = vunpack.c.l.b16 %v558
      %v727 = vunpack.c.l.b16 %v559
      %v728 = vunpack.c.l.b16 %v560
      %v729 = vunpack.c.l.b16 %v561
      %v730 = vunpack.c.l.b16 %v562
      %v731 = vunpack.c.l.b16 %v563
      %v732 = vunpack.c.l.b16 %v564
      %v733 = vunpack.c.l.b16 %v565
      %v734 = vunpack.c.l.b16 %v566
      %v735 = vunpack.c.l.b16 %v567
      %v736 = vunpack.c.l.b16 %v568
      %v737 = vunpack.c.l.b16 %v569
      %v738 = vunpack.c.l.b16 %v570
      %v739 = vunpack.c.l.b16 %v571
      %v740 = vunpack.c.l.b16 %v572
      %v741 = vunpack.c.l.b16 %v573
      %v742 = vunpack.c.l.b16 %v574
      %v743 = vunpack.c.l.b16 %v575
      %v744 = vunpack.c.l.b16 %v576
      %v745 = vunpack.c.l.b16 %v577
      %v746 = vunpack.c.l.b16 %v578
      %v747 = vunpack.c.l.b16 %v579
      %v748 = vunpack.c.l.b16 %v580
      %v749 = vunpack.c.l.b16 %v581
      %v750 = vunpack.c.l.b16 %v582
      %v751 = vunpack.c.l.b16 %v583
      %v752 = vunpack.c.l.b16 %v584
      %v753 = vunpack.c.l.b16 %v585
      %v754 = vunpack.c.l.b16 %v586
      %v755 = vunpack.c.l.b16 %v587
      %v756 = vunpack.c.l.b16 %v588
      %v757 = vunpack.c.l.b16 %v589
      %v758 = vunpack.c.l.b16 %v590
      %v759 = vunpack.c.l.b16 %v591
      %v760 = vunpack.c.l.b16 %v592
      %v761 = vunpack.c.l.b16 %v593
      %v762 = vunpack.c.l.b16 %v594
      %v763 = vunpack.c.l.b16 %v595
      %v764 = vunpack.c.l.b16 %v596
      %v765 = vunpack.c.l.b16 %v597
      %v766 = vunpack.c.l.b16 %v598
      %v767 = vunpack.c.l.b16 %v599
      %v768 = vunpack.c.l.b16 %v600
      %v769 = vunpack.c.l.b16 %v601
      %v770 = vunpack.c.l.b16 %v602
      %v771 = vpack.c.b16 %v708, %v707
      %v772 = vpack.c.b16 %v710, %v709
      %v773 = vpack.c.b16 %v712, %v711
      %v774 = vpack.c.b16 %v714, %v713
      %v775 = vpack.c.b16 %v716, %v715
      %v776 = vpack.c.b16 %v718, %v717
      %v777 = vpack.c.b16 %v720, %v719
      %v778 = vpack.c.b16 %v722, %v721
      %v779 = vpack.c.b16 %v724, %v723
      %v780 = vpack.c.b16 %v726, %v725
      %v781 = vpack.c.b16 %v728, %v727
      %v782 = vpack.c.b16 %v730, %v729
      %v783 = vpack.c.b16 %v732, %v731
      %v784 = vpack.c.b16 %v734, %v733
      %v785 = vpack.c.b16 %v736, %v735
      %v786 = vpack.c.b16 %v738, %v737
      %v787 = vpack.c.b16 %v740, %v739
      %v788 = vpack.c.b16 %v742, %v741
      %v789 = vpack.c.b16 %v744, %v743
      %v790 = vpack.c.b16 %v746, %v745
      %v791 = vpack.c.b16 %v748, %v747
      %v792 = vpack.c.b16 %v750, %v749
      %v793 = vpack.c.b16 %v752, %v751
      %v794 = vpack.c.b16 %v754, %v753
      %v795 = vpack.c.b16 %v756, %v755
      %v796 = vpack.c.b16 %v758, %v757
      %v797 = vpack.c.b16 %v760, %v759
      %v798 = vpack.c.b16 %v762, %v761
      %v799 = vpack.c.b16 %v764, %v763
      %v800 = vpack.c.b16 %v766, %v765
      %v801 = vpack.c.b16 %v768, %v767
      %v802 = vpack.c.b16 %v770, %v769
      %835 = vmatprep.subr.bf16.mxu0 0
      %836 = vmatpush1.bf16.msra.mxu0 %v771
      %837 = vmatprep.subr.bf16.mxu0 0
      %838 = vmatpush1.bf16.msra.mxu0 %v772
      %839 = vmatprep.subr.bf16.mxu0 0
      %840 = vmatpush1.bf16.msra.mxu0 %v773
      %841 = vmatprep.subr.bf16.mxu0 0
      %842 = vmatpush1.bf16.msra.mxu0 %v774
      %843 = vmatprep.subr.bf16.mxu0 0
      %844 = vmatpush1.bf16.msra.mxu0 %v775
      %845 = vmatprep.subr.bf16.mxu0 0
      %846 = vmatpush1.bf16.msra.mxu0 %v776
      %847 = vmatprep.subr.bf16.mxu0 0
      %848 = vmatpush1.bf16.msra.mxu0 %v777
      %849 = vmatprep.subr.bf16.mxu0 0
      %850 = vmatpush1.bf16.msra.mxu0 %v778
      %851 = vmatprep.subr.bf16.mxu0 0
      %852 = vmatpush1.bf16.msra.mxu0 %v779
      %853 = vmatprep.subr.bf16.mxu0 0
      %854 = vmatpush1.bf16.msra.mxu0 %v780
      %855 = vmatprep.subr.bf16.mxu0 0
      %856 = vmatpush1.bf16.msra.mxu0 %v781
      %857 = vmatprep.subr.bf16.mxu0 0
      %858 = vmatpush1.bf16.msra.mxu0 %v782
      %859 = vmatprep.subr.bf16.mxu0 0
      %860 = vmatpush1.bf16.msra.mxu0 %v783
      %861 = vmatprep.subr.bf16.mxu0 0
      %862 = vmatpush1.bf16.msra.mxu0 %v784
      %863 = vmatprep.subr.bf16.mxu0 0
      %864 = vmatpush1.bf16.msra.mxu0 %v785
      %865 = vmatprep.subr.bf16.mxu0 0
      %866 = vmatpush1.bf16.msra.mxu0 %v786
      %867 = vmatprep.mubr.bf16.mxu0 %v636
      %868 = vmatmul.mubr.bf16.gmra.mrb[0].mxu0 %v635
      %v869 = vpop.f32.mrb[0].mxu0
      %v870 = vadd.f32 0.0, %v869
      %v871 = vpop.f32.mrb[0].mxu0
      %v872 = vpop.f32.mrb[0].mxu0
      %v873 = vadd.f32 0.0, %v872
      %v874 = vpop.f32.mrb[0].mxu0
      %875 = vdwg.mxu0
      %876 = vmatprep.subr.bf16.mxu0 0
      %877 = vmatpush1.bf16.msra.mxu0 %v787
      %878 = vmatprep.subr.bf16.mxu0 0
      %879 = vmatpush1.bf16.msra.mxu0 %v788
      %880 = vmatprep.subr.bf16.mxu0 0
      %881 = vmatpush1.bf16.msra.mxu0 %v789
      %882 = vmatprep.subr.bf16.mxu0 0
      %883 = vmatpush1.bf16.msra.mxu0 %v790
      %884 = vmatprep.subr.bf16.mxu0 0
      %885 = vmatpush1.bf16.msra.mxu0 %v791
      %886 = vmatprep.subr.bf16.mxu0 0
      %887 = vmatpush1.bf16.msra.mxu0 %v792
      %888 = vmatprep.subr.bf16.mxu0 0
      %889 = vmatpush1.bf16.msra.mxu0 %v793
      %890 = vmatprep.subr.bf16.mxu0 0
      %891 = vmatpush1.bf16.msra.mxu0 %v794
      %892 = vmatprep.subr.bf16.mxu0 0
      %893 = vmatpush1.bf16.msra.mxu0 %v795
      %894 = vmatprep.subr.bf16.mxu0 0
      %895 = vmatpush1.bf16.msra.mxu0 %v796
      %896 = vmatprep.subr.bf16.mxu0 0
      %897 = vmatpush1.bf16.msra.mxu0 %v797
      %898 = vmatprep.subr.bf16.mxu0 0
      %899 = vmatpush1.bf16.msra.mxu0 %v798
      %900 = vmatprep.subr.bf16.mxu0 0
      %901 = vmatpush1.bf16.msra.mxu0 %v799
      %902 = vmatprep.subr.bf16.mxu0 0
      %903 = vmatpush1.bf16.msra.mxu0 %v800
      %904 = vmatprep.subr.bf16.mxu0 0
      %905 = vmatpush1.bf16.msra.mxu0 %v801
      %906 = vmatprep.subr.bf16.mxu0 0
      %907 = vmatpush1.bf16.msra.mxu0 %v802
      %908 = vmatprep.mubr.bf16.mxu0 %v638
      %909 = vmatmul.mubr.bf16.gmra.mrb[0].mxu0 %v637
      %v910 = vpop.f32.mrb[0].mxu0
      %v911 = vadd.f32 %v870, %v910
      %v912 = vpop.f32.mrb[0].mxu0
      %v913 = vpop.f32.mrb[0].mxu0
      %v914 = vadd.f32 %v873, %v913
      %v915 = vpop.f32.mrb[0].mxu0
      %916 = vdwg.mxu0
      %v917 = vcombine.low %v285, %v300
      %v918 = vcombine.high %v285, %v300
      %v919 = vcombine.low %v315, %v330
      %v920 = vcombine.high %v315, %v330
      %v922 = vunpack.c.l.s4 1983009808
      %v923 = vunpack.c.0.s8 %v922
      %v924 = vlaneseq
      %v925 = vshrl.u32 %v924, 7
      %v926 = vsub.s32 %v923, %v925
      %v927 = vrot.slane %v917, %v926
      %v929 = vunpack.c.l.s4 1983009808
      %v930 = vunpack.c.0.s8 %v929
      %v931 = vlaneseq
      %v932 = vshrl.u32 %v931, 7
      %v933 = vsub.s32 %v930, %v932
      %v934 = vrot.slane %v918, %v933
      %v936 = vunpack.c.l.s4 1983009808
      %v937 = vunpack.c.0.s8 %v936
      %v938 = vlaneseq
      %v939 = vshrl.u32 %v938, 7
      %v940 = vsub.s32 %v937, %v939
      %v941 = vrot.slane %v919, %v940
      %v943 = vunpack.c.l.s4 1983009808
      %v944 = vunpack.c.0.s8 %v943
      %v945 = vlaneseq
      %v946 = vshrl.u32 %v945, 7
      %v947 = vsub.s32 %v944, %v946
      %v948 = vrot.slane %v920, %v947
      %v949 = vcombine.low %v927, %v941
      %v950 = vcombine.high %v927, %v941
      %v951 = vcombine.low %v934, %v948
      %v952 = vcombine.high %v934, %v948
      %v1021 = vunpack.c.l.b16 %v331
      %v1022 = vunpack.c.l.b16 %v332
      %v1023 = vunpack.c.l.b16 %v333
      %v1024 = vunpack.c.l.b16 %v334
      %v1025 = vunpack.c.l.b16 %v335
      %v1026 = vunpack.c.l.b16 %v336
      %v1027 = vunpack.c.l.b16 %v337
      %v1028 = vunpack.c.l.b16 %v338
      %v1029 = vunpack.c.l.b16 %v339
      %v1030 = vunpack.c.l.b16 %v340
      %v1031 = vunpack.c.l.b16 %v341
      %v1032 = vunpack.c.l.b16 %v342
      %v1033 = vunpack.c.l.b16 %v343
      %v1034 = vunpack.c.l.b16 %v344
      %v1035 = vunpack.c.l.b16 %v345
      %v1036 = vunpack.c.l.b16 %v346
      %v1037 = vunpack.c.l.b16 %v347
      %v1038 = vunpack.c.l.b16 %v348
      %v1039 = vunpack.c.l.b16 %v349
      %v1040 = vunpack.c.l.b16 %v350
      %v1041 = vunpack.c.l.b16 %v351
      %v1042 = vunpack.c.l.b16 %v352
      %v1043 = vunpack.c.l.b16 %v353
      %v1044 = vunpack.c.l.b16 %v354
      %v1045 = vunpack.c.l.b16 %v355
      %v1046 = vunpack.c.l.b16 %v356
      %v1047 = vunpack.c.l.b16 %v357
      %v1048 = vunpack.c.l.b16 %v358
      %v1049 = vunpack.c.l.b16 %v359
      %v1050 = vunpack.c.l.b16 %v360
      %v1051 = vunpack.c.l.b16 %v361
      %v1052 = vunpack.c.l.b16 %v362
      %v1053 = vunpack.c.l.b16 %v363
      %v1054 = vunpack.c.l.b16 %v364
      %v1055 = vunpack.c.l.b16 %v365
      %v1056 = vunpack.c.l.b16 %v366
      %v1057 = vunpack.c.l.b16 %v367
      %v1058 = vunpack.c.l.b16 %v368
      %v1059 = vunpack.c.l.b16 %v369
      %v1060 = vunpack.c.l.b16 %v370
      %v1061 = vunpack.c.l.b16 %v371
      %v1062 = vunpack.c.l.b16 %v372
      %v1063 = vunpack.c.l.b16 %v373
      %v1064 = vunpack.c.l.b16 %v374
      %v1065 = vunpack.c.l.b16 %v375
      %v1066 = vunpack.c.l.b16 %v376
      %v1067 = vunpack.c.l.b16 %v377
      %v1068 = vunpack.c.l.b16 %v378
      %v1069 = vunpack.c.l.b16 %v379
      %v1070 = vunpack.c.l.b16 %v380
      %v1071 = vunpack.c.l.b16 %v381
      %v1072 = vunpack.c.l.b16 %v382
      %v1073 = vunpack.c.l.b16 %v383
      %v1074 = vunpack.c.l.b16 %v384
      %v1075 = vunpack.c.l.b16 %v385
      %v1076 = vunpack.c.l.b16 %v386
      %v1077 = vunpack.c.l.b16 %v387
      %v1078 = vunpack.c.l.b16 %v388
      %v1079 = vunpack.c.l.b16 %v389
      %v1080 = vunpack.c.l.b16 %v390
      %v1081 = vunpack.c.l.b16 %v391
      %v1082 = vunpack.c.l.b16 %v392
      %v1083 = vunpack.c.l.b16 %v393
      %v1084 = vunpack.c.l.b16 %v394
      %v1085 = vpack.c.b16 %v1022, %v1021
      %v1086 = vpack.c.b16 %v1024, %v1023
      %v1087 = vpack.c.b16 %v1026, %v1025
      %v1088 = vpack.c.b16 %v1028, %v1027
      %v1089 = vpack.c.b16 %v1030, %v1029
      %v1090 = vpack.c.b16 %v1032, %v1031
      %v1091 = vpack.c.b16 %v1034, %v1033
      %v1092 = vpack.c.b16 %v1036, %v1035
      %v1093 = vpack.c.b16 %v1038, %v1037
      %v1094 = vpack.c.b16 %v1040, %v1039
      %v1095 = vpack.c.b16 %v1042, %v1041
      %v1096 = vpack.c.b16 %v1044, %v1043
      %v1097 = vpack.c.b16 %v1046, %v1045
      %v1098 = vpack.c.b16 %v1048, %v1047
      %v1099 = vpack.c.b16 %v1050, %v1049
      %v1100 = vpack.c.b16 %v1052, %v1051
      %v1101 = vpack.c.b16 %v1054, %v1053
      %v1102 = vpack.c.b16 %v1056, %v1055
      %v1103 = vpack.c.b16 %v1058, %v1057
      %v1104 = vpack.c.b16 %v1060, %v1059
      %v1105 = vpack.c.b16 %v1062, %v1061
      %v1106 = vpack.c.b16 %v1064, %v1063
      %v1107 = vpack.c.b16 %v1066, %v1065
      %v1108 = vpack.c.b16 %v1068, %v1067
      %v1109 = vpack.c.b16 %v1070, %v1069
      %v1110 = vpack.c.b16 %v1072, %v1071
      %v1111 = vpack.c.b16 %v1074, %v1073
      %v1112 = vpack.c.b16 %v1076, %v1075
      %v1113 = vpack.c.b16 %v1078, %v1077
      %v1114 = vpack.c.b16 %v1080, %v1079
      %v1115 = vpack.c.b16 %v1082, %v1081
      %v1116 = vpack.c.b16 %v1084, %v1083
      %1149 = vmatprep.subr.bf16.mxu0 0
      %1150 = vmatpush1.bf16.msra.mxu0 %v1085
      %1151 = vmatprep.subr.bf16.mxu0 0
      %1152 = vmatpush1.bf16.msra.mxu0 %v1086
      %1153 = vmatprep.subr.bf16.mxu0 0
      %1154 = vmatpush1.bf16.msra.mxu0 %v1087
      %1155 = vmatprep.subr.bf16.mxu0 0
      %1156 = vmatpush1.bf16.msra.mxu0 %v1088
      %1157 = vmatprep.subr.bf16.mxu0 0
      %1158 = vmatpush1.bf16.msra.mxu0 %v1089
      %1159 = vmatprep.subr.bf16.mxu0 0
      %1160 = vmatpush1.bf16.msra.mxu0 %v1090
      %1161 = vmatprep.subr.bf16.mxu0 0
      %1162 = vmatpush1.bf16.msra.mxu0 %v1091
      %1163 = vmatprep.subr.bf16.mxu0 0
      %1164 = vmatpush1.bf16.msra.mxu0 %v1092
      %1165 = vmatprep.subr.bf16.mxu0 0
      %1166 = vmatpush1.bf16.msra.mxu0 %v1093
      %1167 = vmatprep.subr.bf16.mxu0 0
      %1168 = vmatpush1.bf16.msra.mxu0 %v1094
      %1169 = vmatprep.subr.bf16.mxu0 0
      %1170 = vmatpush1.bf16.msra.mxu0 %v1095
      %1171 = vmatprep.subr.bf16.mxu0 0
      %1172 = vmatpush1.bf16.msra.mxu0 %v1096
      %1173 = vmatprep.subr.bf16.mxu0 0
      %1174 = vmatpush1.bf16.msra.mxu0 %v1097
      %1175 = vmatprep.subr.bf16.mxu0 0
      %1176 = vmatpush1.bf16.msra.mxu0 %v1098
      %1177 = vmatprep.subr.bf16.mxu0 0
      %1178 = vmatpush1.bf16.msra.mxu0 %v1099
      %1179 = vmatprep.subr.bf16.mxu0 0
      %1180 = vmatpush1.bf16.msra.mxu0 %v1100
      %1181 = vmatprep.mubr.bf16.mxu0 %v950
      %1182 = vmatmul.mubr.bf16.gmra.mrb[0].mxu0 %v949
      %v1183 = vpop.f32.mrb[0].mxu0
      %v1184 = vadd.f32 %v911, %v1183
      %v1185 = vpop.f32.mrb[0].mxu0
      %v1186 = vpop.f32.mrb[0].mxu0
      %v1187 = vadd.f32 %v914, %v1186
      %v1188 = vpop.f32.mrb[0].mxu0
      %1189 = vdwg.mxu0
      %1190 = vmatprep.subr.bf16.mxu0 0
      %1191 = vmatpush1.bf16.msra.mxu0 %v1101
      %1192 = vmatprep.subr.bf16.mxu0 0
      %1193 = vmatpush1.bf16.msra.mxu0 %v1102
      %1194 = vmatprep.subr.bf16.mxu0 0
      %1195 = vmatpush1.bf16.msra.mxu0 %v1103
      %1196 = vmatprep.subr.bf16.mxu0 0
      %1197 = vmatpush1.bf16.msra.mxu0 %v1104
      %1198 = vmatprep.subr.bf16.mxu0 0
      %1199 = vmatpush1.bf16.msra.mxu0 %v1105
      %1200 = vmatprep.subr.bf16.mxu0 0
      %1201 = vmatpush1.bf16.msra.mxu0 %v1106
      %1202 = vmatprep.subr.bf16.mxu0 0
      %1203 = vmatpush1.bf16.msra.mxu0 %v1107
      %1204 = vmatprep.subr.bf16.mxu0 0
      %1205 = vmatpush1.bf16.msra.mxu0 %v1108
      %1206 = vmatprep.subr.bf16.mxu0 0
      %1207 = vmatpush1.bf16.msra.mxu0 %v1109
      %1208 = vmatprep.subr.bf16.mxu0 0
      %1209 = vmatpush1.bf16.msra.mxu0 %v1110
      %1210 = vmatprep.subr.bf16.mxu0 0
      %1211 = vmatpush1.bf16.msra.mxu0 %v1111
      %1212 = vmatprep.subr.bf16.mxu0 0
      %1213 = vmatpush1.bf16.msra.mxu0 %v1112
      %1214 = vmatprep.subr.bf16.mxu0 0
      %1215 = vmatpush1.bf16.msra.mxu0 %v1113
      %1216 = vmatprep.subr.bf16.mxu0 0
      %1217 = vmatpush1.bf16.msra.mxu0 %v1114
      %1218 = vmatprep.subr.bf16.mxu0 0
      %1219 = vmatpush1.bf16.msra.mxu0 %v1115
      %1220 = vmatprep.subr.bf16.mxu0 0
      %1221 = vmatpush1.bf16.msra.mxu0 %v1116
      %1222 = vmatprep.mubr.bf16.mxu0 %v952
      %1223 = vmatmul.mubr.bf16.gmra.mrb[0].mxu0 %v951
      %v1224 = vpop.f32.mrb[0].mxu0
      %v1225 = vadd.f32 %v1184, %v1224
      %v1226 = vpop.f32.mrb[0].mxu0
      %v1227 = vpop.f32.mrb[0].mxu0
      %v1228 = vadd.f32 %v1187, %v1227
      %v1229 = vpop.f32.mrb[0].mxu0
      %1230 = vdwg.mxu0
      %s1231 = scalar_lea.vmem %s236, 16
      %v1232 = vld [vmem:[%s1231] sm:$0x33]
      %v1233 = vld [vmem:[%s1231 + $0x8] sm:$0x33]
      %v1234 = vld [vmem:[%s1231 + $0x10] sm:$0x33]
      %v1235 = vld [vmem:[%s1231 + $0x18] sm:$0x33]
      %v1236 = vld [vmem:[%s1231 + $0x20] sm:$0x33]
      %v1237 = vld [vmem:[%s1231 + $0x28] sm:$0x33]
      %v1238 = vld [vmem:[%s1231 + $0x30] sm:$0x33]
      %v1239 = vld [vmem:[%s1231 + $0x38] sm:$0x33]
      %v1249 = vunpack.c.l.s4 1983009808
      %v1250 = vunpack.c.0.s8 %v1249
      %v1251 = vlaneseq
      %v1252 = vshrl.u32 %v1251, 7
      %v1253 = vsub.s32 %v1250, %v1252
      %v1254 = vrot.slane %v1232, %v1253
      %v1256 = vunpack.c.l.s4 1983009808
      %v1257 = vunpack.c.0.s8 %v1256
      %v1258 = vlaneseq
      %v1259 = vshrl.u32 %v1258, 7
      %v1260 = vsub.s32 %v1257, %v1259
      %v1261 = vrot.slane %v1233, %v1260
      %v1262 = vcombine.low %v1254, %v1261
      %v1264 = vunpack.c.l.s4 1983009808
      %v1265 = vunpack.c.0.s8 %v1264
      %v1266 = vlaneseq
      %v1267 = vshrl.u32 %v1266, 7
      %v1268 = vsub.s32 %v1265, %v1267
      %v1269 = vrot.slane %v1234, %v1268
      %v1271 = vunpack.c.l.s4 1983009808
      %v1272 = vunpack.c.0.s8 %v1271
      %v1273 = vlaneseq
      %v1274 = vshrl.u32 %v1273, 7
      %v1275 = vsub.s32 %v1272, %v1274
      %v1276 = vrot.slane %v1235, %v1275
      %v1277 = vcombine.low %v1269, %v1276
      %v1279 = vunpack.c.l.s4 1983009808
      %v1280 = vunpack.c.0.s8 %v1279
      %v1281 = vlaneseq
      %v1282 = vshrl.u32 %v1281, 7
      %v1283 = vsub.s32 %v1280, %v1282
      %v1284 = vrot.slane %v1236, %v1283
      %v1286 = vunpack.c.l.s4 1983009808
      %v1287 = vunpack.c.0.s8 %v1286
      %v1288 = vlaneseq
      %v1289 = vshrl.u32 %v1288, 7
      %v1290 = vsub.s32 %v1287, %v1289
      %v1291 = vrot.slane %v1237, %v1290
      %v1292 = vcombine.low %v1284, %v1291
      %v1294 = vunpack.c.l.s4 1983009808
      %v1295 = vunpack.c.0.s8 %v1294
      %v1296 = vlaneseq
      %v1297 = vshrl.u32 %v1296, 7
      %v1298 = vsub.s32 %v1295, %v1297
      %v1299 = vrot.slane %v1238, %v1298
      %v1301 = vunpack.c.l.s4 1983009808
      %v1302 = vunpack.c.0.s8 %v1301
      %v1303 = vlaneseq
      %v1304 = vshrl.u32 %v1303, 7
      %v1305 = vsub.s32 %v1302, %v1304
      %v1306 = vrot.slane %v1239, %v1305
      %v1307 = vcombine.low %v1299, %v1306
      %s1308 = scalar_lea.vmem %s1, 512
      %v1309 = vld [vmem:[%s1308] sm:$0xf]
      %v1310 = vld [vmem:[%s1308 + $0x4] sm:$0xf]
      %v1311 = vld [vmem:[%s1308 + $0x8] sm:$0xf]
      %v1312 = vld [vmem:[%s1308 + $0xc] sm:$0xf]
      %v1313 = vld [vmem:[%s1308 + $0x10] sm:$0xf]
      %v1314 = vld [vmem:[%s1308 + $0x14] sm:$0xf]
      %v1315 = vld [vmem:[%s1308 + $0x18] sm:$0xf]
      %v1316 = vld [vmem:[%s1308 + $0x1c] sm:$0xf]
      %v1317 = vld [vmem:[%s1308 + $0x20] sm:$0xf]
      %v1318 = vld [vmem:[%s1308 + $0x24] sm:$0xf]
      %v1319 = vld [vmem:[%s1308 + $0x28] sm:$0xf]
      %v1320 = vld [vmem:[%s1308 + $0x2c] sm:$0xf]
      %v1321 = vld [vmem:[%s1308 + $0x30] sm:$0xf]
      %v1322 = vld [vmem:[%s1308 + $0x34] sm:$0xf]
      %v1323 = vld [vmem:[%s1308 + $0x38] sm:$0xf]
      %v1324 = vld [vmem:[%s1308 + $0x3c] sm:$0xf]
      %v1325 = vld [vmem:[%s1308 + $0x40] sm:$0xf]
      %v1326 = vld [vmem:[%s1308 + $0x44] sm:$0xf]
      %v1327 = vld [vmem:[%s1308 + $0x48] sm:$0xf]
      %v1328 = vld [vmem:[%s1308 + $0x4c] sm:$0xf]
      %v1329 = vld [vmem:[%s1308 + $0x50] sm:$0xf]
      %v1330 = vld [vmem:[%s1308 + $0x54] sm:$0xf]
      %v1331 = vld [vmem:[%s1308 + $0x58] sm:$0xf]
      %v1332 = vld [vmem:[%s1308 + $0x5c] sm:$0xf]
      %v1333 = vld [vmem:[%s1308 + $0x60] sm:$0xf]
      %v1334 = vld [vmem:[%s1308 + $0x64] sm:$0xf]
      %v1335 = vld [vmem:[%s1308 + $0x68] sm:$0xf]
      %v1336 = vld [vmem:[%s1308 + $0x6c] sm:$0xf]
      %v1337 = vld [vmem:[%s1308 + $0x70] sm:$0xf]
      %v1338 = vld [vmem:[%s1308 + $0x74] sm:$0xf]
      %v1339 = vld [vmem:[%s1308 + $0x78] sm:$0xf]
      %v1340 = vld [vmem:[%s1308 + $0x7c] sm:$0xf]
      %v1341 = vld [vmem:[%s1308 + $0x80] sm:$0xf]
      %v1342 = vld [vmem:[%s1308 + $0x84] sm:$0xf]
      %v1343 = vld [vmem:[%s1308 + $0x88] sm:$0xf]
      %v1344 = vld [vmem:[%s1308 + $0x8c] sm:$0xf]
      %v1345 = vld [vmem:[%s1308 + $0x90] sm:$0xf]
      %v1346 = vld [vmem:[%s1308 + $0x94] sm:$0xf]
      %v1347 = vld [vmem:[%s1308 + $0x98] sm:$0xf]
      %v1348 = vld [vmem:[%s1308 + $0x9c] sm:$0xf]
      %v1349 = vld [vmem:[%s1308 + $0xa0] sm:$0xf]
      %v1350 = vld [vmem:[%s1308 + $0xa4] sm:$0xf]
      %v1351 = vld [vmem:[%s1308 + $0xa8] sm:$0xf]
      %v1352 = vld [vmem:[%s1308 + $0xac] sm:$0xf]
      %v1353 = vld [vmem:[%s1308 + $0xb0] sm:$0xf]
      %v1354 = vld [vmem:[%s1308 + $0xb4] sm:$0xf]
      %v1355 = vld [vmem:[%s1308 + $0xb8] sm:$0xf]
      %v1356 = vld [vmem:[%s1308 + $0xbc] sm:$0xf]
      %v1357 = vld [vmem:[%s1308 + $0xc0] sm:$0xf]
      %v1358 = vld [vmem:[%s1308 + $0xc4] sm:$0xf]
      %v1359 = vld [vmem:[%s1308 + $0xc8] sm:$0xf]
      %v1360 = vld [vmem:[%s1308 + $0xcc] sm:$0xf]
      %v1361 = vld [vmem:[%s1308 + $0xd0] sm:$0xf]
      %v1362 = vld [vmem:[%s1308 + $0xd4] sm:$0xf]
      %v1363 = vld [vmem:[%s1308 + $0xd8] sm:$0xf]
      %v1364 = vld [vmem:[%s1308 + $0xdc] sm:$0xf]
      %v1365 = vld [vmem:[%s1308 + $0xe0] sm:$0xf]
      %v1366 = vld [vmem:[%s1308 + $0xe4] sm:$0xf]
      %v1367 = vld [vmem:[%s1308 + $0xe8] sm:$0xf]
      %v1368 = vld [vmem:[%s1308 + $0xec] sm:$0xf]
      %v1369 = vld [vmem:[%s1308 + $0xf0] sm:$0xf]
      %v1370 = vld [vmem:[%s1308 + $0xf4] sm:$0xf]
      %v1371 = vld [vmem:[%s1308 + $0xf8] sm:$0xf]
      %v1372 = vld [vmem:[%s1308 + $0xfc] sm:$0xf]
      %v1373 = vcombine.low %v1262, %v1277
      %v1374 = vcombine.high %v1262, %v1277
      %v1375 = vcombine.low %v1292, %v1307
      %v1376 = vcombine.high %v1292, %v1307
      %v1378 = vunpack.c.l.s4 1983009808
      %v1379 = vunpack.c.0.s8 %v1378
      %v1380 = vlaneseq
      %v1381 = vshrl.u32 %v1380, 7
      %v1382 = vsub.s32 %v1379, %v1381
      %v1383 = vrot.slane %v1373, %v1382
      %v1385 = vunpack.c.l.s4 1983009808
      %v1386 = vunpack.c.0.s8 %v1385
      %v1387 = vlaneseq
      %v1388 = vshrl.u32 %v1387, 7
      %v1389 = vsub.s32 %v1386, %v1388
      %v1390 = vrot.slane %v1374, %v1389
      %v1392 = vunpack.c.l.s4 1983009808
      %v1393 = vunpack.c.0.s8 %v1392
      %v1394 = vlaneseq
      %v1395 = vshrl.u32 %v1394, 7
      %v1396 = vsub.s32 %v1393, %v1395
      %v1397 = vrot.slane %v1375, %v1396
      %v1399 = vunpack.c.l.s4 1983009808
      %v1400 = vunpack.c.0.s8 %v1399
      %v1401 = vlaneseq
      %v1402 = vshrl.u32 %v1401, 7
      %v1403 = vsub.s32 %v1400, %v1402
      %v1404 = vrot.slane %v1376, %v1403
      %v1405 = vcombine.low %v1383, %v1397
      %v1406 = vcombine.high %v1383, %v1397
      %v1407 = vcombine.low %v1390, %v1404
      %v1408 = vcombine.high %v1390, %v1404
      %v1477 = vunpack.c.l.b16 %v1309
      %v1478 = vunpack.c.l.b16 %v1310
      %v1479 = vunpack.c.l.b16 %v1311
      %v1480 = vunpack.c.l.b16 %v1312
      %v1481 = vunpack.c.l.b16 %v1313
      %v1482 = vunpack.c.l.b16 %v1314
      %v1483 = vunpack.c.l.b16 %v1315
      %v1484 = vunpack.c.l.b16 %v1316
      %v1485 = vunpack.c.l.b16 %v1317
      %v1486 = vunpack.c.l.b16 %v1318
      %v1487 = vunpack.c.l.b16 %v1319
      %v1488 = vunpack.c.l.b16 %v1320
      %v1489 = vunpack.c.l.b16 %v1321
      %v1490 = vunpack.c.l.b16 %v1322
      %v1491 = vunpack.c.l.b16 %v1323
      %v1492 = vunpack.c.l.b16 %v1324
      %v1493 = vunpack.c.l.b16 %v1325
      %v1494 = vunpack.c.l.b16 %v1326
      %v1495 = vunpack.c.l.b16 %v1327
      %v1496 = vunpack.c.l.b16 %v1328
      %v1497 = vunpack.c.l.b16 %v1329
      %v1498 = vunpack.c.l.b16 %v1330
      %v1499 = vunpack.c.l.b16 %v1331
      %v1500 = vunpack.c.l.b16 %v1332
      %v1501 = vunpack.c.l.b16 %v1333
      %v1502 = vunpack.c.l.b16 %v1334
      %v1503 = vunpack.c.l.b16 %v1335
      %v1504 = vunpack.c.l.b16 %v1336
      %v1505 = vunpack.c.l.b16 %v1337
      %v1506 = vunpack.c.l.b16 %v1338
      %v1507 = vunpack.c.l.b16 %v1339
      %v1508 = vunpack.c.l.b16 %v1340
      %v1509 = vunpack.c.l.b16 %v1341
      %v1510 = vunpack.c.l.b16 %v1342
      %v1511 = vunpack.c.l.b16 %v1343
      %v1512 = vunpack.c.l.b16 %v1344
      %v1513 = vunpack.c.l.b16 %v1345
      %v1514 = vunpack.c.l.b16 %v1346
      %v1515 = vunpack.c.l.b16 %v1347
      %v1516 = vunpack.c.l.b16 %v1348
      %v1517 = vunpack.c.l.b16 %v1349
      %v1518 = vunpack.c.l.b16 %v1350
      %v1519 = vunpack.c.l.b16 %v1351
      %v1520 = vunpack.c.l.b16 %v1352
      %v1521 = vunpack.c.l.b16 %v1353
      %v1522 = vunpack.c.l.b16 %v1354
      %v1523 = vunpack.c.l.b16 %v1355
      %v1524 = vunpack.c.l.b16 %v1356
      %v1525 = vunpack.c.l.b16 %v1357
      %v1526 = vunpack.c.l.b16 %v1358
      %v1527 = vunpack.c.l.b16 %v1359
      %v1528 = vunpack.c.l.b16 %v1360
      %v1529 = vunpack.c.l.b16 %v1361
      %v1530 = vunpack.c.l.b16 %v1362
      %v1531 = vunpack.c.l.b16 %v1363
      %v1532 = vunpack.c.l.b16 %v1364
      %v1533 = vunpack.c.l.b16 %v1365
      %v1534 = vunpack.c.l.b16 %v1366
      %v1535 = vunpack.c.l.b16 %v1367
      %v1536 = vunpack.c.l.b16 %v1368
      %v1537 = vunpack.c.l.b16 %v1369
      %v1538 = vunpack.c.l.b16 %v1370
      %v1539 = vunpack.c.l.b16 %v1371
      %v1540 = vunpack.c.l.b16 %v1372
      %v1541 = vpack.c.b16 %v1478, %v1477
      %v1542 = vpack.c.b16 %v1480, %v1479
      %v1543 = vpack.c.b16 %v1482, %v1481
      %v1544 = vpack.c.b16 %v1484, %v1483
      %v1545 = vpack.c.b16 %v1486, %v1485
      %v1546 = vpack.c.b16 %v1488, %v1487
      %v1547 = vpack.c.b16 %v1490, %v1489
      %v1548 = vpack.c.b16 %v1492, %v1491
      %v1549 = vpack.c.b16 %v1494, %v1493
      %v1550 = vpack.c.b16 %v1496, %v1495
      %v1551 = vpack.c.b16 %v1498, %v1497
      %v1552 = vpack.c.b16 %v1500, %v1499
      %v1553 = vpack.c.b16 %v1502, %v1501
      %v1554 = vpack.c.b16 %v1504, %v1503
      %v1555 = vpack.c.b16 %v1506, %v1505
      %v1556 = vpack.c.b16 %v1508, %v1507
      %v1557 = vpack.c.b16 %v1510, %v1509
      %v1558 = vpack.c.b16 %v1512, %v1511
      %v1559 = vpack.c.b16 %v1514, %v1513
      %v1560 = vpack.c.b16 %v1516, %v1515
      %v1561 = vpack.c.b16 %v1518, %v1517
      %v1562 = vpack.c.b16 %v1520, %v1519
      %v1563 = vpack.c.b16 %v1522, %v1521
      %v1564 = vpack.c.b16 %v1524, %v1523
      %v1565 = vpack.c.b16 %v1526, %v1525
      %v1566 = vpack.c.b16 %v1528, %v1527
      %v1567 = vpack.c.b16 %v1530, %v1529
      %v1568 = vpack.c.b16 %v1532, %v1531
      %v1569 = vpack.c.b16 %v1534, %v1533
      %v1570 = vpack.c.b16 %v1536, %v1535
      %v1571 = vpack.c.b16 %v1538, %v1537
      %v1572 = vpack.c.b16 %v1540, %v1539
      %1605 = vmatprep.subr.bf16.mxu0 0
      %1606 = vmatpush1.bf16.msra.mxu0 %v1541
      %1607 = vmatprep.subr.bf16.mxu0 0
      %1608 = vmatpush1.bf16.msra.mxu0 %v1542
      %1609 = vmatprep.subr.bf16.mxu0 0
      %1610 = vmatpush1.bf16.msra.mxu0 %v1543
      %1611 = vmatprep.subr.bf16.mxu0 0
      %1612 = vmatpush1.bf16.msra.mxu0 %v1544
      %1613 = vmatprep.subr.bf16.mxu0 0
      %1614 = vmatpush1.bf16.msra.mxu0 %v1545
      %1615 = vmatprep.subr.bf16.mxu0 0
      %1616 = vmatpush1.bf16.msra.mxu0 %v1546
      %1617 = vmatprep.subr.bf16.mxu0 0
      %1618 = vmatpush1.bf16.msra.mxu0 %v1547
      %1619 = vmatprep.subr.bf16.mxu0 0
      %1620 = vmatpush1.bf16.msra.mxu0 %v1548
      %1621 = vmatprep.subr.bf16.mxu0 0
      %1622 = vmatpush1.bf16.msra.mxu0 %v1549
      %1623 = vmatprep.subr.bf16.mxu0 0
      %1624 = vmatpush1.bf16.msra.mxu0 %v1550
      %1625 = vmatprep.subr.bf16.mxu0 0
      %1626 = vmatpush1.bf16.msra.mxu0 %v1551
      %1627 = vmatprep.subr.bf16.mxu0 0
      %1628 = vmatpush1.bf16.msra.mxu0 %v1552
      %1629 = vmatprep.subr.bf16.mxu0 0
      %1630 = vmatpush1.bf16.msra.mxu0 %v1553
      %1631 = vmatprep.subr.bf16.mxu0 0
      %1632 = vmatpush1.bf16.msra.mxu0 %v1554
      %1633 = vmatprep.subr.bf16.mxu0 0
      %1634 = vmatpush1.bf16.msra.mxu0 %v1555
      %1635 = vmatprep.subr.bf16.mxu0 0
      %1636 = vmatpush1.bf16.msra.mxu0 %v1556
      %1637 = vmatprep.mubr.bf16.mxu0 %v1406
      %1638 = vmatmul.mubr.bf16.gmra.mrb[0].mxu0 %v1405
      %v1639 = vpop.f32.mrb[0].mxu0
      %v1640 = vadd.f32 0.0, %v1639
      %v1641 = vpop.f32.mrb[0].mxu0
      %v1642 = vpop.f32.mrb[0].mxu0
      %v1643 = vadd.f32 0.0, %v1642
      %v1644 = vpop.f32.mrb[0].mxu0
      %1645 = vdwg.mxu0
      %1646 = vmatprep.subr.bf16.mxu0 0
      %1647 = vmatpush1.bf16.msra.mxu0 %v1557
      %1648 = vmatprep.subr.bf16.mxu0 0
      %1649 = vmatpush1.bf16.msra.mxu0 %v1558
      %1650 = vmatprep.subr.bf16.mxu0 0
      %1651 = vmatpush1.bf16.msra.mxu0 %v1559
      %1652 = vmatprep.subr.bf16.mxu0 0
      %1653 = vmatpush1.bf16.msra.mxu0 %v1560
      %1654 = vmatprep.subr.bf16.mxu0 0
      %1655 = vmatpush1.bf16.msra.mxu0 %v1561
      %1656 = vmatprep.subr.bf16.mxu0 0
      %1657 = vmatpush1.bf16.msra.mxu0 %v1562
      %1658 = vmatprep.subr.bf16.mxu0 0
      %1659 = vmatpush1.bf16.msra.mxu0 %v1563
      %1660 = vmatprep.subr.bf16.mxu0 0
      %1661 = vmatpush1.bf16.msra.mxu0 %v1564
      %1662 = vmatprep.subr.bf16.mxu0 0
      %1663 = vmatpush1.bf16.msra.mxu0 %v1565
      %1664 = vmatprep.subr.bf16.mxu0 0
      %1665 = vmatpush1.bf16.msra.mxu0 %v1566
      %1666 = vmatprep.subr.bf16.mxu0 0
      %1667 = vmatpush1.bf16.msra.mxu0 %v1567
      %1668 = vmatprep.subr.bf16.mxu0 0
      %1669 = vmatpush1.bf16.msra.mxu0 %v1568
      %1670 = vmatprep.subr.bf16.mxu0 0
      %1671 = vmatpush1.bf16.msra.mxu0 %v1569
      %1672 = vmatprep.subr.bf16.mxu0 0
      %1673 = vmatpush1.bf16.msra.mxu0 %v1570
      %1674 = vmatprep.subr.bf16.mxu0 0
      %1675 = vmatpush1.bf16.msra.mxu0 %v1571
      %1676 = vmatprep.subr.bf16.mxu0 0
      %1677 = vmatpush1.bf16.msra.mxu0 %v1572
      %1678 = vmatprep.mubr.bf16.mxu0 %v1408
      %1679 = vmatmul.mubr.bf16.gmra.mrb[0].mxu0 %v1407
      %v1680 = vpop.f32.mrb[0].mxu0
      %v1681 = vadd.f32 %v1640, %v1680
      %v1682 = vpop.f32.mrb[0].mxu0
      %v1683 = vpop.f32.mrb[0].mxu0
      %v1684 = vadd.f32 %v1643, %v1683
      %v1685 = vpop.f32.mrb[0].mxu0
      %1686 = vdwg.mxu0
      %v1687 = vadd.f32 %v1225, %v1681
      %v1688 = vadd.f32 %v1228, %v1684
      %v1689 = vld [vmem:[%s1231] sm:$0x77]
      %v1690 = vld [vmem:[%s1231 + $0x8] sm:$0x77]
      %v1691 = vld [vmem:[%s1231 + $0x10] sm:$0x77]
      %v1692 = vld [vmem:[%s1231 + $0x18] sm:$0x77]
      %v1693 = vld [vmem:[%s1231 + $0x20] sm:$0x77]
      %v1694 = vld [vmem:[%s1231 + $0x28] sm:$0x77]
      %v1695 = vld [vmem:[%s1231 + $0x30] sm:$0x77]
      %v1696 = vld [vmem:[%s1231 + $0x38] sm:$0x77]
      %v1706 = vunpack.c.l.s4 1983009808
      %v1707 = vunpack.c.0.s8 %v1706
      %v1708 = vlaneseq
      %v1709 = vshrl.u32 %v1708, 7
      %v1710 = vsub.s32 %v1707, %v1709
      %v1711 = vrot.slane %v1689, %v1710
      %v1713 = vunpack.c.l.s4 1983009808
      %v1714 = vunpack.c.0.s8 %v1713
      %v1715 = vlaneseq
      %v1716 = vshrl.u32 %v1715, 7
      %v1717 = vsub.s32 %v1714, %v1716
      %v1718 = vrot.slane %v1690, %v1717
      %v1719 = vcombine.low %v1711, %v1718
      %v1720 = vcombine.high %v1711, %v1718
      %v1722 = vunpack.c.l.s4 1983009808
      %v1723 = vunpack.c.0.s8 %v1722
      %v1724 = vlaneseq
      %v1725 = vshrl.u32 %v1724, 7
      %v1726 = vsub.s32 %v1723, %v1725
      %v1727 = vrot.slane %v1691, %v1726
      %v1729 = vunpack.c.l.s4 1983009808
      %v1730 = vunpack.c.0.s8 %v1729
      %v1731 = vlaneseq
      %v1732 = vshrl.u32 %v1731, 7
      %v1733 = vsub.s32 %v1730, %v1732
      %v1734 = vrot.slane %v1692, %v1733
      %v1735 = vcombine.low %v1727, %v1734
      %v1736 = vcombine.high %v1727, %v1734
      %v1738 = vunpack.c.l.s4 1983009808
      %v1739 = vunpack.c.0.s8 %v1738
      %v1740 = vlaneseq
      %v1741 = vshrl.u32 %v1740, 7
      %v1742 = vsub.s32 %v1739, %v1741
      %v1743 = vrot.slane %v1693, %v1742
      %v1745 = vunpack.c.l.s4 1983009808
      %v1746 = vunpack.c.0.s8 %v1745
      %v1747 = vlaneseq
      %v1748 = vshrl.u32 %v1747, 7
      %v1749 = vsub.s32 %v1746, %v1748
      %v1750 = vrot.slane %v1694, %v1749
      %v1751 = vcombine.low %v1743, %v1750
      %v1752 = vcombine.high %v1743, %v1750
      %v1754 = vunpack.c.l.s4 1983009808
      %v1755 = vunpack.c.0.s8 %v1754
      %v1756 = vlaneseq
      %v1757 = vshrl.u32 %v1756, 7
      %v1758 = vsub.s32 %v1755, %v1757
      %v1759 = vrot.slane %v1695, %v1758
      %v1761 = vunpack.c.l.s4 1983009808
      %v1762 = vunpack.c.0.s8 %v1761
      %v1763 = vlaneseq
      %v1764 = vshrl.u32 %v1763, 7
      %v1765 = vsub.s32 %v1762, %v1764
      %v1766 = vrot.slane %v1696, %v1765
      %v1767 = vcombine.low %v1759, %v1766
      %v1768 = vcombine.high %v1759, %v1766
      %v1770 = vshrl.u32 %v1719, 16
      %v1772 = vrot.slane %v1770, 6
      %v1773 = vshll.u32 %v1719, 16
      %v1775 = vrot.slane %v1773, 7
      %v1776 = vor.u32 %v1772, %v1775
      %v1777 = vrot.slane %v1776, 2
      %v1779 = vshll.u32 %v1720, 16
      %v1781 = vrot.slane %v1779, 7
      %v1782 = vsel %vm481, %v1777, %v1781
      %v1784 = vshrl.u32 %v1735, 16
      %v1786 = vrot.slane %v1784, 6
      %v1787 = vshll.u32 %v1735, 16
      %v1789 = vrot.slane %v1787, 7
      %v1790 = vor.u32 %v1786, %v1789
      %v1791 = vrot.slane %v1790, 2
      %v1793 = vshll.u32 %v1736, 16
      %v1795 = vrot.slane %v1793, 7
      %v1796 = vsel %vm481, %v1791, %v1795
      %v1798 = vshrl.u32 %v1751, 16
      %v1800 = vrot.slane %v1798, 6
      %v1801 = vshll.u32 %v1751, 16
      %v1803 = vrot.slane %v1801, 7
      %v1804 = vor.u32 %v1800, %v1803
      %v1805 = vrot.slane %v1804, 2
      %v1807 = vshll.u32 %v1752, 16
      %v1809 = vrot.slane %v1807, 7
      %v1810 = vsel %vm481, %v1805, %v1809
      %v1812 = vshrl.u32 %v1767, 16
      %v1814 = vrot.slane %v1812, 6
      %v1815 = vshll.u32 %v1767, 16
      %v1817 = vrot.slane %v1815, 7
      %v1818 = vor.u32 %v1814, %v1817
      %v1819 = vrot.slane %v1818, 2
      %v1821 = vshll.u32 %v1768, 16
      %v1823 = vrot.slane %v1821, 7
      %v1824 = vsel %vm481, %v1819, %v1823
      %s1825 = scalar_lea.vmem %s1, 768
      %v1826 = vld [vmem:[%s1825] sm:$0xf]
      %v1827 = vld [vmem:[%s1825 + $0x4] sm:$0xf]
      %v1828 = vld [vmem:[%s1825 + $0x8] sm:$0xf]
      %v1829 = vld [vmem:[%s1825 + $0xc] sm:$0xf]
      %v1830 = vld [vmem:[%s1825 + $0x10] sm:$0xf]
      %v1831 = vld [vmem:[%s1825 + $0x14] sm:$0xf]
      %v1832 = vld [vmem:[%s1825 + $0x18] sm:$0xf]
      %v1833 = vld [vmem:[%s1825 + $0x1c] sm:$0xf]
      %v1834 = vld [vmem:[%s1825 + $0x20] sm:$0xf]
      %v1835 = vld [vmem:[%s1825 + $0x24] sm:$0xf]
      %v1836 = vld [vmem:[%s1825 + $0x28] sm:$0xf]
      %v1837 = vld [vmem:[%s1825 + $0x2c] sm:$0xf]
      %v1838 = vld [vmem:[%s1825 + $0x30] sm:$0xf]
      %v1839 = vld [vmem:[%s1825 + $0x34] sm:$0xf]
      %v1840 = vld [vmem:[%s1825 + $0x38] sm:$0xf]
      %v1841 = vld [vmem:[%s1825 + $0x3c] sm:$0xf]
      %v1842 = vld [vmem:[%s1825 + $0x40] sm:$0xf]
      %v1843 = vld [vmem:[%s1825 + $0x44] sm:$0xf]
      %v1844 = vld [vmem:[%s1825 + $0x48] sm:$0xf]
      %v1845 = vld [vmem:[%s1825 + $0x4c] sm:$0xf]
      %v1846 = vld [vmem:[%s1825 + $0x50] sm:$0xf]
      %v1847 = vld [vmem:[%s1825 + $0x54] sm:$0xf]
      %v1848 = vld [vmem:[%s1825 + $0x58] sm:$0xf]
      %v1849 = vld [vmem:[%s1825 + $0x5c] sm:$0xf]
      %v1850 = vld [vmem:[%s1825 + $0x60] sm:$0xf]
      %v1851 = vld [vmem:[%s1825 + $0x64] sm:$0xf]
      %v1852 = vld [vmem:[%s1825 + $0x68] sm:$0xf]
      %v1853 = vld [vmem:[%s1825 + $0x6c] sm:$0xf]
      %v1854 = vld [vmem:[%s1825 + $0x70] sm:$0xf]
      %v1855 = vld [vmem:[%s1825 + $0x74] sm:$0xf]
      %v1856 = vld [vmem:[%s1825 + $0x78] sm:$0xf]
      %v1857 = vld [vmem:[%s1825 + $0x7c] sm:$0xf]
      %v1858 = vld [vmem:[%s1825 + $0x80] sm:$0xf]
      %v1859 = vld [vmem:[%s1825 + $0x84] sm:$0xf]
      %v1860 = vld [vmem:[%s1825 + $0x88] sm:$0xf]
      %v1861 = vld [vmem:[%s1825 + $0x8c] sm:$0xf]
      %v1862 = vld [vmem:[%s1825 + $0x90] sm:$0xf]
      %v1863 = vld [vmem:[%s1825 + $0x94] sm:$0xf]
      %v1864 = vld [vmem:[%s1825 + $0x98] sm:$0xf]
      %v1865 = vld [vmem:[%s1825 + $0x9c] sm:$0xf]
      %v1866 = vld [vmem:[%s1825 + $0xa0] sm:$0xf]
      %v1867 = vld [vmem:[%s1825 + $0xa4] sm:$0xf]
      %v1868 = vld [vmem:[%s1825 + $0xa8] sm:$0xf]
      %v1869 = vld [vmem:[%s1825 + $0xac] sm:$0xf]
      %v1870 = vld [vmem:[%s1825 + $0xb0] sm:$0xf]
      %v1871 = vld [vmem:[%s1825 + $0xb4] sm:$0xf]
      %v1872 = vld [vmem:[%s1825 + $0xb8] sm:$0xf]
      %v1873 = vld [vmem:[%s1825 + $0xbc] sm:$0xf]
      %v1874 = vld [vmem:[%s1825 + $0xc0] sm:$0xf]
      %v1875 = vld [vmem:[%s1825 + $0xc4] sm:$0xf]
      %v1876 = vld [vmem:[%s1825 + $0xc8] sm:$0xf]
      %v1877 = vld [vmem:[%s1825 + $0xcc] sm:$0xf]
      %v1878 = vld [vmem:[%s1825 + $0xd0] sm:$0xf]
      %v1879 = vld [vmem:[%s1825 + $0xd4] sm:$0xf]
      %v1880 = vld [vmem:[%s1825 + $0xd8] sm:$0xf]
      %v1881 = vld [vmem:[%s1825 + $0xdc] sm:$0xf]
      %v1882 = vld [vmem:[%s1825 + $0xe0] sm:$0xf]
      %v1883 = vld [vmem:[%s1825 + $0xe4] sm:$0xf]
      %v1884 = vld [vmem:[%s1825 + $0xe8] sm:$0xf]
      %v1885 = vld [vmem:[%s1825 + $0xec] sm:$0xf]
      %v1886 = vld [vmem:[%s1825 + $0xf0] sm:$0xf]
      %v1887 = vld [vmem:[%s1825 + $0xf4] sm:$0xf]
      %v1888 = vld [vmem:[%s1825 + $0xf8] sm:$0xf]
      %v1889 = vld [vmem:[%s1825 + $0xfc] sm:$0xf]
      %v1890 = vcombine.low %v1782, %v1796
      %v1891 = vcombine.high %v1782, %v1796
      %v1892 = vcombine.low %v1810, %v1824
      %v1893 = vcombine.high %v1810, %v1824
      %v1895 = vunpack.c.l.s4 1983009808
      %v1896 = vunpack.c.0.s8 %v1895
      %v1897 = vlaneseq
      %v1898 = vshrl.u32 %v1897, 7
      %v1899 = vsub.s32 %v1896, %v1898
      %v1900 = vrot.slane %v1890, %v1899
      %v1902 = vunpack.c.l.s4 1983009808
      %v1903 = vunpack.c.0.s8 %v1902
      %v1904 = vlaneseq
      %v1905 = vshrl.u32 %v1904, 7
      %v1906 = vsub.s32 %v1903, %v1905
      %v1907 = vrot.slane %v1891, %v1906
      %v1909 = vunpack.c.l.s4 1983009808
      %v1910 = vunpack.c.0.s8 %v1909
      %v1911 = vlaneseq
      %v1912 = vshrl.u32 %v1911, 7
      %v1913 = vsub.s32 %v1910, %v1912
      %v1914 = vrot.slane %v1892, %v1913
      %v1916 = vunpack.c.l.s4 1983009808
      %v1917 = vunpack.c.0.s8 %v1916
      %v1918 = vlaneseq
      %v1919 = vshrl.u32 %v1918, 7
      %v1920 = vsub.s32 %v1917, %v1919
      %v1921 = vrot.slane %v1893, %v1920
      %v1922 = vcombine.low %v1900, %v1914
      %v1923 = vcombine.high %v1900, %v1914
      %v1924 = vcombine.low %v1907, %v1921
      %v1925 = vcombine.high %v1907, %v1921
      %v1994 = vunpack.c.l.b16 %v1826
      %v1995 = vunpack.c.l.b16 %v1827
      %v1996 = vunpack.c.l.b16 %v1828
      %v1997 = vunpack.c.l.b16 %v1829
      %v1998 = vunpack.c.l.b16 %v1830
      %v1999 = vunpack.c.l.b16 %v1831
      %v2000 = vunpack.c.l.b16 %v1832
      %v2001 = vunpack.c.l.b16 %v1833
      %v2002 = vunpack.c.l.b16 %v1834
      %v2003 = vunpack.c.l.b16 %v1835
      %v2004 = vunpack.c.l.b16 %v1836
      %v2005 = vunpack.c.l.b16 %v1837
      %v2006 = vunpack.c.l.b16 %v1838
      %v2007 = vunpack.c.l.b16 %v1839
      %v2008 = vunpack.c.l.b16 %v1840
      %v2009 = vunpack.c.l.b16 %v1841
      %v2010 = vunpack.c.l.b16 %v1842
      %v2011 = vunpack.c.l.b16 %v1843
      %v2012 = vunpack.c.l.b16 %v1844
      %v2013 = vunpack.c.l.b16 %v1845
      %v2014 = vunpack.c.l.b16 %v1846
      %v2015 = vunpack.c.l.b16 %v1847
      %v2016 = vunpack.c.l.b16 %v1848
      %v2017 = vunpack.c.l.b16 %v1849
      %v2018 = vunpack.c.l.b16 %v1850
      %v2019 = vunpack.c.l.b16 %v1851
      %v2020 = vunpack.c.l.b16 %v1852
      %v2021 = vunpack.c.l.b16 %v1853
      %v2022 = vunpack.c.l.b16 %v1854
      %v2023 = vunpack.c.l.b16 %v1855
      %v2024 = vunpack.c.l.b16 %v1856
      %v2025 = vunpack.c.l.b16 %v1857
      %v2026 = vunpack.c.l.b16 %v1858
      %v2027 = vunpack.c.l.b16 %v1859
      %v2028 = vunpack.c.l.b16 %v1860
      %v2029 = vunpack.c.l.b16 %v1861
      %v2030 = vunpack.c.l.b16 %v1862
      %v2031 = vunpack.c.l.b16 %v1863
      %v2032 = vunpack.c.l.b16 %v1864
      %v2033 = vunpack.c.l.b16 %v1865
      %v2034 = vunpack.c.l.b16 %v1866
      %v2035 = vunpack.c.l.b16 %v1867
      %v2036 = vunpack.c.l.b16 %v1868
      %v2037 = vunpack.c.l.b16 %v1869
      %v2038 = vunpack.c.l.b16 %v1870
      %v2039 = vunpack.c.l.b16 %v1871
      %v2040 = vunpack.c.l.b16 %v1872
      %v2041 = vunpack.c.l.b16 %v1873
      %v2042 = vunpack.c.l.b16 %v1874
      %v2043 = vunpack.c.l.b16 %v1875
      %v2044 = vunpack.c.l.b16 %v1876
      %v2045 = vunpack.c.l.b16 %v1877
      %v2046 = vunpack.c.l.b16 %v1878
      %v2047 = vunpack.c.l.b16 %v1879
      %v2048 = vunpack.c.l.b16 %v1880
      %v2049 = vunpack.c.l.b16 %v1881
      %v2050 = vunpack.c.l.b16 %v1882
      %v2051 = vunpack.c.l.b16 %v1883
      %v2052 = vunpack.c.l.b16 %v1884
      %v2053 = vunpack.c.l.b16 %v1885
      %v2054 = vunpack.c.l.b16 %v1886
      %v2055 = vunpack.c.l.b16 %v1887
      %v2056 = vunpack.c.l.b16 %v1888
      %v2057 = vunpack.c.l.b16 %v1889
      %v2058 = vpack.c.b16 %v1995, %v1994
      %v2059 = vpack.c.b16 %v1997, %v1996
      %v2060 = vpack.c.b16 %v1999, %v1998
      %v2061 = vpack.c.b16 %v2001, %v2000
      %v2062 = vpack.c.b16 %v2003, %v2002
      %v2063 = vpack.c.b16 %v2005, %v2004
      %v2064 = vpack.c.b16 %v2007, %v2006
      %v2065 = vpack.c.b16 %v2009, %v2008
      %v2066 = vpack.c.b16 %v2011, %v2010
      %v2067 = vpack.c.b16 %v2013, %v2012
      %v2068 = vpack.c.b16 %v2015, %v2014
      %v2069 = vpack.c.b16 %v2017, %v2016
      %v2070 = vpack.c.b16 %v2019, %v2018
      %v2071 = vpack.c.b16 %v2021, %v2020
      %v2072 = vpack.c.b16 %v2023, %v2022
      %v2073 = vpack.c.b16 %v2025, %v2024
      %v2074 = vpack.c.b16 %v2027, %v2026
      %v2075 = vpack.c.b16 %v2029, %v2028
      %v2076 = vpack.c.b16 %v2031, %v2030
      %v2077 = vpack.c.b16 %v2033, %v2032
      %v2078 = vpack.c.b16 %v2035, %v2034
      %v2079 = vpack.c.b16 %v2037, %v2036
      %v2080 = vpack.c.b16 %v2039, %v2038
      %v2081 = vpack.c.b16 %v2041, %v2040
      %v2082 = vpack.c.b16 %v2043, %v2042
      %v2083 = vpack.c.b16 %v2045, %v2044
      %v2084 = vpack.c.b16 %v2047, %v2046
      %v2085 = vpack.c.b16 %v2049, %v2048
      %v2086 = vpack.c.b16 %v2051, %v2050
      %v2087 = vpack.c.b16 %v2053, %v2052
      %v2088 = vpack.c.b16 %v2055, %v2054
      %v2089 = vpack.c.b16 %v2057, %v2056
      %2122 = vmatprep.subr.bf16.mxu0 0
      %2123 = vmatpush1.bf16.msra.mxu0 %v2058
      %2124 = vmatprep.subr.bf16.mxu0 0
      %2125 = vmatpush1.bf16.msra.mxu0 %v2059
      %2126 = vmatprep.subr.bf16.mxu0 0
      %2127 = vmatpush1.bf16.msra.mxu0 %v2060
      %2128 = vmatprep.subr.bf16.mxu0 0
      %2129 = vmatpush1.bf16.msra.mxu0 %v2061
      %2130 = vmatprep.subr.bf16.mxu0 0
      %2131 = vmatpush1.bf16.msra.mxu0 %v2062
      %2132 = vmatprep.subr.bf16.mxu0 0
      %2133 = vmatpush1.bf16.msra.mxu0 %v2063
      %2134 = vmatprep.subr.bf16.mxu0 0
      %2135 = vmatpush1.bf16.msra.mxu0 %v2064
      %2136 = vmatprep.subr.bf16.mxu0 0
      %2137 = vmatpush1.bf16.msra.mxu0 %v2065
      %2138 = vmatprep.subr.bf16.mxu0 0
      %2139 = vmatpush1.bf16.msra.mxu0 %v2066
      %2140 = vmatprep.subr.bf16.mxu0 0
      %2141 = vmatpush1.bf16.msra.mxu0 %v2067
      %2142 = vmatprep.subr.bf16.mxu0 0
      %2143 = vmatpush1.bf16.msra.mxu0 %v2068
      %2144 = vmatprep.subr.bf16.mxu0 0
      %2145 = vmatpush1.bf16.msra.mxu0 %v2069
      %2146 = vmatprep.subr.bf16.mxu0 0
      %2147 = vmatpush1.bf16.msra.mxu0 %v2070
      %2148 = vmatprep.subr.bf16.mxu0 0
      %2149 = vmatpush1.bf16.msra.mxu0 %v2071
      %2150 = vmatprep.subr.bf16.mxu0 0
      %2151 = vmatpush1.bf16.msra.mxu0 %v2072
      %2152 = vmatprep.subr.bf16.mxu0 0
      %2153 = vmatpush1.bf16.msra.mxu0 %v2073
      %2154 = vmatprep.mubr.bf16.mxu0 %v1923
      %2155 = vmatmul.mubr.bf16.gmra.mrb[0].mxu0 %v1922
      %v2156 = vpop.f32.mrb[0].mxu0
      %v2157 = vadd.f32 0.0, %v2156
      %v2158 = vpop.f32.mrb[0].mxu0
      %v2159 = vpop.f32.mrb[0].mxu0
      %v2160 = vadd.f32 0.0, %v2159
      %v2161 = vpop.f32.mrb[0].mxu0
      %2162 = vdwg.mxu0
      %2163 = vmatprep.subr.bf16.mxu0 0
      %2164 = vmatpush1.bf16.msra.mxu0 %v2074
      %2165 = vmatprep.subr.bf16.mxu0 0
      %2166 = vmatpush1.bf16.msra.mxu0 %v2075
      %2167 = vmatprep.subr.bf16.mxu0 0
      %2168 = vmatpush1.bf16.msra.mxu0 %v2076
      %2169 = vmatprep.subr.bf16.mxu0 0
      %2170 = vmatpush1.bf16.msra.mxu0 %v2077
      %2171 = vmatprep.subr.bf16.mxu0 0
      %2172 = vmatpush1.bf16.msra.mxu0 %v2078
      %2173 = vmatprep.subr.bf16.mxu0 0
      %2174 = vmatpush1.bf16.msra.mxu0 %v2079
      %2175 = vmatprep.subr.bf16.mxu0 0
      %2176 = vmatpush1.bf16.msra.mxu0 %v2080
      %2177 = vmatprep.subr.bf16.mxu0 0
      %2178 = vmatpush1.bf16.msra.mxu0 %v2081
      %2179 = vmatprep.subr.bf16.mxu0 0
      %2180 = vmatpush1.bf16.msra.mxu0 %v2082
      %2181 = vmatprep.subr.bf16.mxu0 0
      %2182 = vmatpush1.bf16.msra.mxu0 %v2083
      %2183 = vmatprep.subr.bf16.mxu0 0
      %2184 = vmatpush1.bf16.msra.mxu0 %v2084
      %2185 = vmatprep.subr.bf16.mxu0 0
      %2186 = vmatpush1.bf16.msra.mxu0 %v2085
      %2187 = vmatprep.subr.bf16.mxu0 0
      %2188 = vmatpush1.bf16.msra.mxu0 %v2086
      %2189 = vmatprep.subr.bf16.mxu0 0
      %2190 = vmatpush1.bf16.msra.mxu0 %v2087
      %2191 = vmatprep.subr.bf16.mxu0 0
      %2192 = vmatpush1.bf16.msra.mxu0 %v2088
      %2193 = vmatprep.subr.bf16.mxu0 0
      %2194 = vmatpush1.bf16.msra.mxu0 %v2089
      %2195 = vmatprep.mubr.bf16.mxu0 %v1925
      %2196 = vmatmul.mubr.bf16.gmra.mrb[0].mxu0 %v1924
      %v2197 = vpop.f32.mrb[0].mxu0
      %v2198 = vadd.f32 %v2157, %v2197
      %v2199 = vpop.f32.mrb[0].mxu0
      %v2200 = vpop.f32.mrb[0].mxu0
      %v2201 = vadd.f32 %v2160, %v2200
      %v2202 = vpop.f32.mrb[0].mxu0
      %2203 = vdwg.mxu0
      %v2204 = vadd.f32 %v1687, %v2198
      %v2205 = vadd.f32 %v1688, %v2201
      %v2206 = vld [vmem:[%s2] sm:$0x1]
      %v2208 = vlaneseq
      %v2209 = vshrl.u32 %v2208, 7
      %v2210 = vsub.s32 0, %v2209
      %v2211 = vrot.slane %v2206, %v2210
      %v2213 = vadd.f32 %v2204, %v2211
      %v2214 = vadd.f32 %v2205, %v2211
      %v2215 = vadd.f32 %v2213, %v2214
      %v2216 = vrot.slane %v2215, 4
      %v2217 = vadd.f32 %v2215, %v2216
      %v2218 = vrot.slane %v2217, 2
      %v2219 = vadd.f32 %v2217, %v2218
      %v2220 = vrot.slane %v2219, 1
      %v2221 = vadd.f32 %v2219, %v2220
      %v2222 = vmul.f32 %v2213, %v2213
      %v2223 = vmul.f32 %v2214, %v2214
      %v2224 = vadd.f32 %v2222, %v2223
      %v2225 = vrot.slane %v2224, 4
      %v2226 = vadd.f32 %v2224, %v2225
      %v2227 = vrot.slane %v2226, 2
      %v2228 = vadd.f32 %v2226, %v2227
      %v2229 = vrot.slane %v2228, 1
      %v2230 = vadd.f32 %v2228, %v2229
      %vm2231 = vcmask 1040384
      %v2232 = vsel %vm2231, %v2221, %v2230
      %2233 = vst [vmem:[%s253] sm:$0x3] %v2232
      %v2234 = vpack.c.bf16 %v2214, %v2213
      %v2236 = vunpack.c.l.b16 %v2234
      %v2237 = vunpack.c.h.b16 %v2234
      %v2238 = vpack.c.b16 %v2236, %v2236
      %v2239 = vpack.c.b16 %v2237, %v2237
      %2242 = vst [vmem:[%s245] sm:$0xf] %v2238
      %2243 = vst [vmem:[%s245 + $0x4] sm:$0xf] %v2239
      %s2244 = smul.u32 2, %s21
      %p2245 = scmp.lt.s32.totalorder %s20, 1
      %s2246 = scalar_select %p2245, %s20, 1
      %p2247 = scmp.lt.s32.totalorder %s2244, 1
      %s2248 = scalar_select %p2247, %s2244, 1
      %s2249 = smul.addr %s2246, 2
      %s2250 = sadd.s32 %s2248, %s2249
      %s2251 = smul.addr %s2250, 4
      %s2252 = scalar_lea.vmem %s3, %s2251
      %p2253 = scmp.lt.s32.totalorder %s20, 1
      %s2254 = scalar_select %p2253, %s20, 1
      %p2255 = scmp.lt.s32.totalorder %s21, 0
      %s2256 = scalar_select %p2255, %s21, 0
      %s2257 = sadd.s32 %s2256, %s2254
      %s2258 = smul.addr %s2257, 2
      %s2259 = scalar_lea.vmem %s4, %s2258
      // Predicated region
      $region33: #{pathgan_forward.6} parent=31 // pred_check
        %p2260 = pneg %p118
      $region34: #{pathgan_forward.6} parent=31 // pred_check_branch
        %2262 = sbr.rel (%p2260) target = $region36
      $region35: #{pathgan_forward.6} parent=31 // pred_region
        %s2263 = smul.u32 2, %s21
      $region36: #{pathgan_forward.6} parent=31 // pred_fallthru
        _
      // Predicated region
      $region37: #{pathgan_forward.6} parent=31 // pred_check
        %p2264 = pneg %p146
      $region38: #{pathgan_forward.6} parent=31 // pred_check_branch
        %2266 = sbr.rel (%p2264) target = $region40
      $region39: #{pathgan_forward.6} parent=31 // pred_region
        _
      $region40: #{pathgan_forward.6} parent=31 // pred_fallthru
        _
    $region32: #{pathgan_forward.6} parent=5 // pred_fallthru
      _
    %p2267 = scmp.le.s32.totalorder 2, %s11
    // Predicated region
    $region41: #{pathgan_forward.6} parent=5 // pred_check
      %p2268 = pneg %p2267
    $region42: #{pathgan_forward.6} parent=5 // pred_check_branch
      %2270 = sbr.rel (%p2268) target = $region44
    $region43: #{pathgan_forward.6} parent=5 // pred_region
      %s2271 = ssub.s32 %s11, 2
      // Predicated region
      $region45: #{pathgan_forward.6} parent=43 // pred_check
        %p2272 = pneg %p124
      $region46: #{pathgan_forward.6} parent=43 // pred_check_branch
        %2274 = sbr.rel (%p2272) target = $region48
      $region47: #{pathgan_forward.6} parent=43 // pred_region
        %s2275 = smul.u32 2, %s23
        %p2276 = scmp.lt.s32.totalorder %s22, 1
        %s2277 = scalar_select %p2276, %s22, 1
        %p2278 = scmp.lt.s32.totalorder %s2275, 1
        %s2279 = scalar_select %p2278, %s2275, 1
        %s2280 = smul.addr %s2277, 2
        %s2281 = sadd.s32 %s2279, %s2280
        %s2282 = smul.addr %s2281, 4
        %s2283 = scalar_lea.vmem %s3, %s2282
      $region48: #{pathgan_forward.6} parent=43 // pred_fallthru
        _
      // Predicated region
      $region49: #{pathgan_forward.6} parent=43 // pred_check
        %p2284 = pneg %p152
      $region50: #{pathgan_forward.6} parent=43 // pred_check_branch
        %2286 = sbr.rel (%p2284) target = $region52
      $region51: #{pathgan_forward.6} parent=43 // pred_region
        %p2287 = scmp.lt.s32.totalorder %s22, 1
        %s2288 = scalar_select %p2287, %s22, 1
        %p2289 = scmp.lt.s32.totalorder %s23, 0
        %s2290 = scalar_select %p2289, %s23, 0
        %s2291 = sadd.s32 %s2290, %s2288
        %s2292 = smul.addr %s2291, 2
        %s2293 = scalar_lea.vmem %s4, %s2292
      $region52: #{pathgan_forward.6} parent=43 // pred_fallthru
        _
    $region44: #{pathgan_forward.6} parent=5 // pred_fallthru
      _
  $region6: #{pathgan_forward.6} parent=0 // loop_footer
    %s15 = sadd.s32 1, %s11
  $region7: #{pathgan_forward.6} parent=0 // loop_footer_branch
    %10 = sbr.rel target = $region3
  $region8: #{pathgan_forward.6} parent=0 // loop_exit
    _

// kernel: pathgan_forward.7
$region0: #{pathgan_forward.7}
  #allocation0 [shape = 'u32[]', space=smem, size = 0x4, offset = 0x4, fixed_abs, tag = 'smem constant byte address 0x4 - core index']
  #allocation1 [shape = 'u32[144,128]{1,0:T(1,128)}', space=vmem, size = 0x12000, scoped, tag = 'internal scratch']
  %s0 = inlined_call_operand.vmem [shape: bf16[2,1,3,3,512], index: 0, kind: input, shape index: {}]
  %s1 = inlined_call_operand.vmem [shape: bf16[4,512,256], index: 1, kind: input, shape index: {}]
  %s2 = inlined_call_operand.vmem [shape: f32[1,256], index: 2, kind: input, shape index: {}]
  %s3 = inlined_call_operand.vmem [shape: bf16[2,4,256], index: 3, kind: output, shape index: {0}]
  %s4 = inlined_call_operand.vmem [shape: f32[2,1,2,256], index: 4, kind: output, shape index: {1}]
  %5 = xla_tuple %s3, %s4
  %s6 = sld [smem:[#allocation0]]
  $region53: #{pathgan_forward.7} parent=0
    _
  %s8 = ssub.s32 1, %s6
  %s9 = scalar_select 0, %s8, %s6
  loop: start=0, step=1, limit=4
  $region2: #{pathgan_forward.7} parent=0 // loop_pre_header
    _
  $region3: #{pathgan_forward.7} parent=0 // loop_header
    %s11 = sphi 0, %s15
    %p12 = scmp.ge.s32.totalorder %s11, 4
    %s18 = sphi 0, %s30
    %s19 = sphi 0, %s26
    %s20 = sphi 0, %s18
    %s21 = sphi 0, %s19
    %s22 = sphi 0, %s20
    %s23 = sphi 0, %s21
    %s35 = sphi 0, %s37
    %s38 = sphi 0, %s35
    %s39 = sphi 0, %s38
    %s55 = sphi 0, %s39
    %s59 = sphi 0, %s59
    %s61 = sphi 0, %s59
    %s62 = sphi 0, %s61
    %s76 = sphi 0, %s62
    %s80 = sphi 0, %s80
    %s82 = sphi 0, %s80
    %s83 = sphi 0, %s82
    %s97 = sphi 0, %s83
    %s105 = sphi 0, %s107
    %s108 = sphi 0, %s105
    %s109 = sphi 0, %s108
    %s125 = sphi 0, %s109
    %s133 = sphi 0, %s135
    %s136 = sphi 0, %s133
    %s137 = sphi 0, %s136
    %s153 = sphi 0, %s137
  $region4: #{pathgan_forward.7} parent=0 // loop_header_branch
    %14 = sbr.rel (%p12) target = $region8
  $region5: #{pathgan_forward.7} parent=0 // loop_body
    %s16 = ssub.s32 %s11, 1
    %s17 = ssub.s32 %s11, 2
    %s24 = sadd.s32 1, %s19
    %p25 = scmp.ge.s32.totalorder %s24, 1
    %s26 = scalar_select %p25, 0, %s24
    %s27 = sadd.s32 1, %s18
    %s28 = scalar_select %p25, %s27, %s18
    %p29 = scmp.ge.s32.totalorder %s28, 2
    %s30 = scalar_select %p29, 0, %s28
    %s31 = ssub.s32 %s18, %s30
    %s32 = ssub.s32 %s19, %s26
    %s33 = sor.u32 %s31, %s32
    %p34 = scmp.eq.s32.totalorder %s33, 0
    %s36 = sadd.s32 %s35, 1
    %s37 = scalar_select %p34, %s35, %s36
    %p40 = pneg %p34
    %p41 = scmp.eq.s32.totalorder %s11, 1
    %p42 = por %p40, %p41
    %p43 = scmp.ne.s32.totalorder %s35, %s38
    %p44 = scmp.eq.s32.totalorder %s11, 0
    %p45 = por %p43, %p44
    %p46 = scmp.ne.s32.totalorder %s35, %s38
    %p47 = scmp.eq.s32.totalorder %s16, 1
    %p48 = por %p46, %p47
    %p49 = scmp.ne.s32.totalorder %s38, %s39
    %p50 = scmp.eq.s32.totalorder %s16, 0
    %p51 = por %p49, %p50
    %p52 = scmp.ne.s32.totalorder %s38, %s39
    %p53 = scmp.eq.s32.totalorder %s17, 1
    %p54 = por %p52, %p53
    %p56 = scmp.ne.s32.totalorder %s39, %s55
    %p57 = scmp.eq.s32.totalorder %s17, 0
    %p58 = por %p56, %p57
    %s60 = sadd.s32 %s59, 1
    %p63 = scmp.eq.s32.totalorder %s11, 1
    %p64 = scmp.ne.s32.totalorder %s59, %s61
    %p65 = scmp.eq.s32.totalorder %s11, 0
    %p66 = por %p64, %p65
    %p67 = scmp.ne.s32.totalorder %s59, %s61
    %p68 = scmp.eq.s32.totalorder %s16, 1
    %p69 = por %p67, %p68
    %p70 = scmp.ne.s32.totalorder %s61, %s62
    %p71 = scmp.eq.s32.totalorder %s16, 0
    %p72 = por %p70, %p71
    %p73 = scmp.ne.s32.totalorder %s61, %s62
    %p74 = scmp.eq.s32.totalorder %s17, 1
    %p75 = por %p73, %p74
    %p77 = scmp.ne.s32.totalorder %s62, %s76
    %p78 = scmp.eq.s32.totalorder %s17, 0
    %p79 = por %p77, %p78
    %s81 = sadd.s32 %s80, 1
    %p84 = scmp.eq.s32.totalorder %s11, 1
    %p85 = scmp.ne.s32.totalorder %s80, %s82
    %p86 = scmp.eq.s32.totalorder %s11, 0
    %p87 = por %p85, %p86
    %p88 = scmp.ne.s32.totalorder %s80, %s82
    %p89 = scmp.eq.s32.totalorder %s16, 1
    %p90 = por %p88, %p89
    %p91 = scmp.ne.s32.totalorder %s82, %s83
    %p92 = scmp.eq.s32.totalorder %s16, 0
    %p93 = por %p91, %p92
    %p94 = scmp.ne.s32.totalorder %s82, %s83
    %p95 = scmp.eq.s32.totalorder %s17, 1
    %p96 = por %p94, %p95
    %p98 = scmp.ne.s32.totalorder %s83, %s97
    %p99 = scmp.eq.s32.totalorder %s17, 0
    %p100 = por %p98, %p99
    %s101 = ssub.s32 %s18, %s30
    %s102 = ssub.s32 %s19, %s26
    %s103 = sor.u32 %s101, %s102
    %p104 = scmp.eq.s32.totalorder %s103, 0
    %s106 = sadd.s32 %s105, 1
    %s107 = scalar_select %p104, %s105, %s106
    %p110 = pneg %p104
    %p111 = scmp.eq.s32.totalorder %s11, 1
    %p112 = por %p110, %p111
    %p113 = scmp.ne.s32.totalorder %s105, %s108
    %p114 = scmp.eq.s32.totalorder %s11, 0
    %p115 = por %p113, %p114
    %p116 = scmp.ne.s32.totalorder %s105, %s108
    %p117 = scmp.eq.s32.totalorder %s16, 1
    %p118 = por %p116, %p117
    %p119 = scmp.ne.s32.totalorder %s108, %s109
    %p120 = scmp.eq.s32.totalorder %s16, 0
    %p121 = por %p119, %p120
    %p122 = scmp.ne.s32.totalorder %s108, %s109
    %p123 = scmp.eq.s32.totalorder %s17, 1
    %p124 = por %p122, %p123
    %p126 = scmp.ne.s32.totalorder %s109, %s125
    %p127 = scmp.eq.s32.totalorder %s17, 0
    %p128 = por %p126, %p127
    %s129 = ssub.s32 %s18, %s30
    %s130 = ssub.s32 %s19, %s26
    %s131 = sor.u32 %s129, %s130
    %p132 = scmp.eq.s32.totalorder %s131, 0
    %s134 = sadd.s32 %s133, 1
    %s135 = scalar_select %p132, %s133, %s134
    %p138 = pneg %p132
    %p139 = scmp.eq.s32.totalorder %s11, 1
    %p140 = por %p138, %p139
    %p141 = scmp.ne.s32.totalorder %s133, %s136
    %p142 = scmp.eq.s32.totalorder %s11, 0
    %p143 = por %p141, %p142
    %p144 = scmp.ne.s32.totalorder %s133, %s136
    %p145 = scmp.eq.s32.totalorder %s16, 1
    %p146 = por %p144, %p145
    %p147 = scmp.ne.s32.totalorder %s136, %s137
    %p148 = scmp.eq.s32.totalorder %s16, 0
    %p149 = por %p147, %p148
    %p150 = scmp.ne.s32.totalorder %s136, %s137
    %p151 = scmp.eq.s32.totalorder %s17, 1
    %p152 = por %p150, %p151
    %p154 = scmp.ne.s32.totalorder %s137, %s153
    %p155 = scmp.eq.s32.totalorder %s17, 0
    %p156 = por %p154, %p155
    %p157 = scmp.le.s32.totalorder 1, %s11
    %p158 = scmp.lt.s32.totalorder %s11, 3
    %p159 = pnand %p157, %p158
    %p160 = pneg %p159
    // Predicated region
    $region9: #{pathgan_forward.7} parent=5 // pred_check
      _
    $region10: #{pathgan_forward.7} parent=5 // pred_check_branch
      %162 = sbr.rel (%p159) target = $region12
    $region11: #{pathgan_forward.7} parent=5 // pred_region
      %s163 = ssub.s32 %s11, 1
      // Predicated region
      $region13: #{pathgan_forward.7} parent=11 // pred_check
        %p164 = pneg %p72
      $region14: #{pathgan_forward.7} parent=11 // pred_check_branch
        %166 = sbr.rel (%p164) target = $region16
      $region15: #{pathgan_forward.7} parent=11 // pred_region
        _
      $region16: #{pathgan_forward.7} parent=11 // pred_fallthru
        _
      // Predicated region
      $region17: #{pathgan_forward.7} parent=11 // pred_check
        %p167 = pneg %p93
      $region18: #{pathgan_forward.7} parent=11 // pred_check_branch
        %169 = sbr.rel (%p167) target = $region20
      $region19: #{pathgan_forward.7} parent=11 // pred_region
        _
      $region20: #{pathgan_forward.7} parent=11 // pred_fallthru
        _
    $region12: #{pathgan_forward.7} parent=5 // pred_fallthru
      _
    %p170 = scmp.lt.s32.totalorder %s11, 2
    // Predicated region
    $region21: #{pathgan_forward.7} parent=5 // pred_check
      %p171 = pneg %p170
    $region22: #{pathgan_forward.7} parent=5 // pred_check_branch
      %173 = sbr.rel (%p171) target = $region24
    $region23: #{pathgan_forward.7} parent=5 // pred_region
      // Predicated region
      $region25: #{pathgan_forward.7} parent=23 // pred_check
        %p174 = pneg %p45
      $region26: #{pathgan_forward.7} parent=23 // pred_check_branch
        %176 = sbr.rel (%p174) target = $region28
      $region27: #{pathgan_forward.7} parent=23 // pred_region
        %p177 = scmp.lt.s32.totalorder %s18, 1
        %s178 = scalar_select %p177, %s18, 1
        %p179 = scmp.lt.s32.totalorder %s19, 0
        %s180 = scalar_select %p179, %s19, 0
        %s181 = smul.addr %s180, 12
        %s182 = smul.addr %s178, 12
        %s183 = sadd.s32 %s181, %s182
        %s184 = smul.addr %s183, 2
        %s185 = scalar_lea.vmem %s0, %s184
      $region28: #{pathgan_forward.7} parent=23 // pred_fallthru
        _
    $region24: #{pathgan_forward.7} parent=5 // pred_fallthru
      _
    %p186 = scmp.le.s32.totalorder 1, %s11
    %p187 = scmp.lt.s32.totalorder %s11, 3
    %p188 = pnand %p186, %p187
    %p189 = pneg %p188
    // Predicated region
    $region29: #{pathgan_forward.7} parent=5 // pred_check
      _
    $region30: #{pathgan_forward.7} parent=5 // pred_check_branch
      %191 = sbr.rel (%p188) target = $region32
    $region31: #{pathgan_forward.7} parent=5 // pred_region
      %s192 = ssub.s32 %s11, 1
      %p193 = scmp.lt.s32.totalorder %s20, 1
      %s194 = scalar_select %p193, %s20, 1
      %p195 = scmp.lt.s32.totalorder %s21, 0
      %s196 = scalar_select %p195, %s21, 0
      %s197 = smul.addr %s196, 12
      %s198 = smul.addr %s194, 12
      %s199 = sadd.s32 %s197, %s198
      %s200 = smul.addr %s199, 2
      %s201 = scalar_lea.vmem %s0, %s200
      %p202 = pneg %p51
      %p203 = pneg %p48
      %p204 = pneg %p72
      %p205 = pneg %p69
      %p206 = pneg %p93
      %p207 = pneg %p90
      %p208 = pneg %p121
      %p209 = pneg %p118
      %p210 = scmp.lt.s32.totalorder %s20, 1
      %s211 = scalar_select %p210, %s20, 1
      %p212 = scmp.lt.s32.totalorder %s21, 0
      %s213 = scalar_select %p212, %s21, 0
      %s214 = smul.addr %s213, 2
      %s215 = smul.addr %s211, 2
      %s216 = sadd.s32 %s214, %s215
      %s217 = smul.addr %s216, 2
      %s218 = scalar_lea.vmem %s3, %s217
      %p219 = pneg %p149
      %p220 = pneg %p146
      %p221 = scmp.lt.s32.totalorder %s20, 1
      %s222 = scalar_select %p221, %s20, 1
      %p223 = scmp.lt.s32.totalorder %s21, 0
      %s224 = scalar_select %p223, %s21, 0
      %s225 = smul.addr %s224, 2
      %s226 = smul.addr %s222, 2
      %s227 = sadd.s32 %s225, %s226
      %s228 = smul.addr %s227, 2
      %s229 = scalar_lea.vmem %s4, %s228
      %p230 = scmp.lt.s32.totalorder %s20, 1
      %s231 = scalar_select %p230, %s20, 1
      %p232 = scmp.lt.s32.totalorder %s21, 0
      %s233 = scalar_select %p232, %s21, 0
      %s234 = smul.addr %s233, 12
      %s235 = smul.addr %s231, 12
      %s236 = sadd.s32 %s234, %s235
      %s237 = smul.addr %s236, 2
      %s238 = scalar_lea.vmem %s0, %s237
      %p239 = scmp.lt.s32.totalorder %s20, 1
      %s240 = scalar_select %p239, %s20, 1
      %p241 = scmp.lt.s32.totalorder %s21, 0
      %s242 = scalar_select %p241, %s21, 0
      %s243 = smul.addr %s242, 2
      %s244 = smul.addr %s240, 2
      %s245 = sadd.s32 %s243, %s244
      %s246 = smul.addr %s245, 2
      %s247 = scalar_lea.vmem %s3, %s246
      %p248 = scmp.lt.s32.totalorder %s20, 1
      %s249 = scalar_select %p248, %s20, 1
      %p250 = scmp.lt.s32.totalorder %s21, 0
      %s251 = scalar_select %p250, %s21, 0
      %s252 = smul.addr %s251, 2
      %s253 = smul.addr %s249, 2
      %s254 = sadd.s32 %s252, %s253
      %s255 = smul.addr %s254, 2
      %s256 = scalar_lea.vmem %s4, %s255
      %v257 = vld [vmem:[%s238] sm:$0x55]
      %v258 = vld [vmem:[%s238 + $0x8] sm:$0x55]
      %v262 = vunpack.c.l.s4 1966171168
      %v263 = vunpack.c.0.s8 %v262
      %v264 = vlaneseq
      %v265 = vshrl.u32 %v264, 7
      %v266 = vsub.s32 %v263, %v265
      %v267 = vrot.slane %v257, %v266
      %v269 = vunpack.c.l.s4 1966171168
      %v270 = vunpack.c.0.s8 %v269
      %v271 = vlaneseq
      %v272 = vshrl.u32 %v271, 7
      %v273 = vsub.s32 %v270, %v272
      %v274 = vrot.slane %v258, %v273
      %v275 = vld [vmem:[%s1] sm:$0xff]
      %v276 = vld [vmem:[%s1 + $0x8] sm:$0xff]
      %v277 = vld [vmem:[%s1 + $0x10] sm:$0xff]
      %v278 = vld [vmem:[%s1 + $0x18] sm:$0xff]
      %v279 = vld [vmem:[%s1 + $0x20] sm:$0xff]
      %v280 = vld [vmem:[%s1 + $0x28] sm:$0xff]
      %v281 = vld [vmem:[%s1 + $0x30] sm:$0xff]
      %v282 = vld [vmem:[%s1 + $0x38] sm:$0xff]
      %v283 = vld [vmem:[%s1 + $0x40] sm:$0xff]
      %v284 = vld [vmem:[%s1 + $0x48] sm:$0xff]
      %v285 = vld [vmem:[%s1 + $0x50] sm:$0xff]
      %v286 = vld [vmem:[%s1 + $0x58] sm:$0xff]
      %v287 = vld [vmem:[%s1 + $0x60] sm:$0xff]
      %v288 = vld [vmem:[%s1 + $0x68] sm:$0xff]
      %v289 = vld [vmem:[%s1 + $0x70] sm:$0xff]
      %v290 = vld [vmem:[%s1 + $0x78] sm:$0xff]
      %v291 = vld [vmem:[%s1 + $0x80] sm:$0xff]
      %v292 = vld [vmem:[%s1 + $0x88] sm:$0xff]
      %v293 = vld [vmem:[%s1 + $0x90] sm:$0xff]
      %v294 = vld [vmem:[%s1 + $0x98] sm:$0xff]
      %v295 = vld [vmem:[%s1 + $0xa0] sm:$0xff]
      %v296 = vld [vmem:[%s1 + $0xa8] sm:$0xff]
      %v297 = vld [vmem:[%s1 + $0xb0] sm:$0xff]
      %v298 = vld [vmem:[%s1 + $0xb8] sm:$0xff]
      %v299 = vld [vmem:[%s1 + $0xc0] sm:$0xff]
      %v300 = vld [vmem:[%s1 + $0xc8] sm:$0xff]
      %v301 = vld [vmem:[%s1 + $0xd0] sm:$0xff]
      %v302 = vld [vmem:[%s1 + $0xd8] sm:$0xff]
      %v303 = vld [vmem:[%s1 + $0xe0] sm:$0xff]
      %v304 = vld [vmem:[%s1 + $0xe8] sm:$0xff]
      %v305 = vld [vmem:[%s1 + $0xf0] sm:$0xff]
      %v306 = vld [vmem:[%s1 + $0xf8] sm:$0xff]
      %v307 = vld [vmem:[%s1 + $0x100] sm:$0xff]
      %v308 = vld [vmem:[%s1 + $0x108] sm:$0xff]
      %v309 = vld [vmem:[%s1 + $0x110] sm:$0xff]
      %v310 = vld [vmem:[%s1 + $0x118] sm:$0xff]
      %v311 = vld [vmem:[%s1 + $0x120] sm:$0xff]
      %v312 = vld [vmem:[%s1 + $0x128] sm:$0xff]
      %v313 = vld [vmem:[%s1 + $0x130] sm:$0xff]
      %v314 = vld [vmem:[%s1 + $0x138] sm:$0xff]
      %v315 = vld [vmem:[%s1 + $0x140] sm:$0xff]
      %v316 = vld [vmem:[%s1 + $0x148] sm:$0xff]
      %v317 = vld [vmem:[%s1 + $0x150] sm:$0xff]
      %v318 = vld [vmem:[%s1 + $0x158] sm:$0xff]
      %v319 = vld [vmem:[%s1 + $0x160] sm:$0xff]
      %v320 = vld [vmem:[%s1 + $0x168] sm:$0xff]
      %v321 = vld [vmem:[%s1 + $0x170] sm:$0xff]
      %v322 = vld [vmem:[%s1 + $0x178] sm:$0xff]
      %v323 = vld [vmem:[%s1 + $0x180] sm:$0xff]
      %v324 = vld [vmem:[%s1 + $0x188] sm:$0xff]
      %v325 = vld [vmem:[%s1 + $0x190] sm:$0xff]
      %v326 = vld [vmem:[%s1 + $0x198] sm:$0xff]
      %v327 = vld [vmem:[%s1 + $0x1a0] sm:$0xff]
      %v328 = vld [vmem:[%s1 + $0x1a8] sm:$0xff]
      %v329 = vld [vmem:[%s1 + $0x1b0] sm:$0xff]
      %v330 = vld [vmem:[%s1 + $0x1b8] sm:$0xff]
      %v331 = vld [vmem:[%s1 + $0x1c0] sm:$0xff]
      %v332 = vld [vmem:[%s1 + $0x1c8] sm:$0xff]
      %v333 = vld [vmem:[%s1 + $0x1d0] sm:$0xff]
      %v334 = vld [vmem:[%s1 + $0x1d8] sm:$0xff]
      %v335 = vld [vmem:[%s1 + $0x1e0] sm:$0xff]
      %v336 = vld [vmem:[%s1 + $0x1e8] sm:$0xff]
      %v337 = vld [vmem:[%s1 + $0x1f0] sm:$0xff]
      %v338 = vld [vmem:[%s1 + $0x1f8] sm:$0xff]
      %v339 = vld [vmem:[%s238] sm:$0xff]
      %v340 = vld [vmem:[%s238 + $0x8] sm:$0xff]
      %v344 = vunpack.c.l.s4 1966171168
      %v345 = vunpack.c.0.s8 %v344
      %v346 = vlaneseq
      %v347 = vshrl.u32 %v346, 7
      %v348 = vsub.s32 %v345, %v347
      %v349 = vrot.slane %v339, %v348
      %v350 = vcombine.high %v349, %v349
      %v352 = vunpack.c.l.s4 1966171168
      %v353 = vunpack.c.0.s8 %v352
      %v354 = vlaneseq
      %v355 = vshrl.u32 %v354, 7
      %v356 = vsub.s32 %v353, %v355
      %v357 = vrot.slane %v340, %v356
      %v358 = vcombine.high %v357, %v357
      %vm359 = vsmask.f32 256
      %vm360 = vsmask.f32 1284
      %vm361 = vmor %vm359, %vm360
      %vm362 = vsmask.f32 2312
      %vm363 = vmor %vm361, %vm362
      %vm364 = vsmask.f32 3340
      %vm365 = vmor %vm363, %vm364
      %vm366 = vsmask.f32 4368
      %vm367 = vmor %vm365, %vm366
      %vm368 = vsmask.f32 5396
      %vm369 = vmor %vm367, %vm368
      %vm370 = vsmask.f32 6424
      %vm371 = vmor %vm369, %vm370
      %vm372 = vsmask.f32 7452
      %vm373 = vmor %vm371, %vm372
      %v375 = vshrl.u32 %v349, 16
      %v377 = vrot.slane %v375, 7
      %v378 = vrot.slane %v377, 1
      %v380 = vshll.u32 %v350, 16
      %v382 = vsel %vm373, %v378, %v380
      %v384 = vshrl.u32 %v357, 16
      %v386 = vrot.slane %v384, 7
      %v387 = vrot.slane %v386, 1
      %v389 = vshll.u32 %v358, 16
      %v391 = vsel %vm373, %v387, %v389
      %s392 = scalar_lea.vmem %s1, 512
      %v393 = vld [vmem:[%s392] sm:$0xff]
      %v394 = vld [vmem:[%s392 + $0x8] sm:$0xff]
      %v395 = vld [vmem:[%s392 + $0x10] sm:$0xff]
      %v396 = vld [vmem:[%s392 + $0x18] sm:$0xff]
      %v397 = vld [vmem:[%s392 + $0x20] sm:$0xff]
      %v398 = vld [vmem:[%s392 + $0x28] sm:$0xff]
      %v399 = vld [vmem:[%s392 + $0x30] sm:$0xff]
      %v400 = vld [vmem:[%s392 + $0x38] sm:$0xff]
      %v401 = vld [vmem:[%s392 + $0x40] sm:$0xff]
      %v402 = vld [vmem:[%s392 + $0x48] sm:$0xff]
      %v403 = vld [vmem:[%s392 + $0x50] sm:$0xff]
      %v404 = vld [vmem:[%s392 + $0x58] sm:$0xff]
      %v405 = vld [vmem:[%s392 + $0x60] sm:$0xff]
      %v406 = vld [vmem:[%s392 + $0x68] sm:$0xff]
      %v407 = vld [vmem:[%s392 + $0x70] sm:$0xff]
      %v408 = vld [vmem:[%s392 + $0x78] sm:$0xff]
      %v409 = vld [vmem:[%s392 + $0x80] sm:$0xff]
      %v410 = vld [vmem:[%s392 + $0x88] sm:$0xff]
      %v411 = vld [vmem:[%s392 + $0x90] sm:$0xff]
      %v412 = vld [vmem:[%s392 + $0x98] sm:$0xff]
      %v413 = vld [vmem:[%s392 + $0xa0] sm:$0xff]
      %v414 = vld [vmem:[%s392 + $0xa8] sm:$0xff]
      %v415 = vld [vmem:[%s392 + $0xb0] sm:$0xff]
      %v416 = vld [vmem:[%s392 + $0xb8] sm:$0xff]
      %v417 = vld [vmem:[%s392 + $0xc0] sm:$0xff]
      %v418 = vld [vmem:[%s392 + $0xc8] sm:$0xff]
      %v419 = vld [vmem:[%s392 + $0xd0] sm:$0xff]
      %v420 = vld [vmem:[%s392 + $0xd8] sm:$0xff]
      %v421 = vld [vmem:[%s392 + $0xe0] sm:$0xff]
      %v422 = vld [vmem:[%s392 + $0xe8] sm:$0xff]
      %v423 = vld [vmem:[%s392 + $0xf0] sm:$0xff]
      %v424 = vld [vmem:[%s392 + $0xf8] sm:$0xff]
      %v425 = vld [vmem:[%s392 + $0x100] sm:$0xff]
      %v426 = vld [vmem:[%s392 + $0x108] sm:$0xff]
      %v427 = vld [vmem:[%s392 + $0x110] sm:$0xff]
      %v428 = vld [vmem:[%s392 + $0x118] sm:$0xff]
      %v429 = vld [vmem:[%s392 + $0x120] sm:$0xff]
      %v430 = vld [vmem:[%s392 + $0x128] sm:$0xff]
      %v431 = vld [vmem:[%s392 + $0x130] sm:$0xff]
      %v432 = vld [vmem:[%s392 + $0x138] sm:$0xff]
      %v433 = vld [vmem:[%s392 + $0x140] sm:$0xff]
      %v434 = vld [vmem:[%s392 + $0x148] sm:$0xff]
      %v435 = vld [vmem:[%s392 + $0x150] sm:$0xff]
      %v436 = vld [vmem:[%s392 + $0x158] sm:$0xff]
      %v437 = vld [vmem:[%s392 + $0x160] sm:$0xff]
      %v438 = vld [vmem:[%s392 + $0x168] sm:$0xff]
      %v439 = vld [vmem:[%s392 + $0x170] sm:$0xff]
      %v440 = vld [vmem:[%s392 + $0x178] sm:$0xff]
      %v441 = vld [vmem:[%s392 + $0x180] sm:$0xff]
      %v442 = vld [vmem:[%s392 + $0x188] sm:$0xff]
      %v443 = vld [vmem:[%s392 + $0x190] sm:$0xff]
      %v444 = vld [vmem:[%s392 + $0x198] sm:$0xff]
      %v445 = vld [vmem:[%s392 + $0x1a0] sm:$0xff]
      %v446 = vld [vmem:[%s392 + $0x1a8] sm:$0xff]
      %v447 = vld [vmem:[%s392 + $0x1b0] sm:$0xff]
      %v448 = vld [vmem:[%s392 + $0x1b8] sm:$0xff]
      %v449 = vld [vmem:[%s392 + $0x1c0] sm:$0xff]
      %v450 = vld [vmem:[%s392 + $0x1c8] sm:$0xff]
      %v451 = vld [vmem:[%s392 + $0x1d0] sm:$0xff]
      %v452 = vld [vmem:[%s392 + $0x1d8] sm:$0xff]
      %v453 = vld [vmem:[%s392 + $0x1e0] sm:$0xff]
      %v454 = vld [vmem:[%s392 + $0x1e8] sm:$0xff]
      %v455 = vld [vmem:[%s392 + $0x1f0] sm:$0xff]
      %v456 = vld [vmem:[%s392 + $0x1f8] sm:$0xff]
      %v457 = vcombine.low %v382, %v391
      %v459 = vunpack.c.l.s4 1966171168
      %v460 = vunpack.c.0.s8 %v459
      %v461 = vlaneseq
      %v462 = vshrl.u32 %v461, 7
      %v463 = vsub.s32 %v460, %v462
      %v464 = vrot.slane %v457, %v463
      %v465 = vcombine.high %v464, %v464
      %v467 = vunpack.c.l.s4 1966171168
      %v468 = vunpack.c.0.s8 %v467
      %v469 = vlaneseq
      %v470 = vshrl.u32 %v469, 7
      %v471 = vsub.s32 %v468, %v470
      %v472 = vrot.slane %v464, %v471
      %v474 = vunpack.c.l.s4 1966171168
      %v475 = vunpack.c.0.s8 %v474
      %v476 = vlaneseq
      %v477 = vshrl.u32 %v476, 7
      %v478 = vsub.s32 %v475, %v477
      %v479 = vrot.slane %v465, %v478
      %v480 = vcombine.high %v472, %v472
      %v481 = vcombine.high %v479, %v479
      %v550 = vunpack.c.l.b16 %v393
      %v551 = vunpack.c.h.b16 %v393
      %v552 = vunpack.c.l.b16 %v394
      %v553 = vunpack.c.h.b16 %v394
      %v554 = vunpack.c.l.b16 %v395
      %v555 = vunpack.c.h.b16 %v395
      %v556 = vunpack.c.l.b16 %v396
      %v557 = vunpack.c.h.b16 %v396
      %v558 = vunpack.c.l.b16 %v397
      %v559 = vunpack.c.h.b16 %v397
      %v560 = vunpack.c.l.b16 %v398
      %v561 = vunpack.c.h.b16 %v398
      %v562 = vunpack.c.l.b16 %v399
      %v563 = vunpack.c.h.b16 %v399
      %v564 = vunpack.c.l.b16 %v400
      %v565 = vunpack.c.h.b16 %v400
      %v566 = vunpack.c.l.b16 %v401
      %v567 = vunpack.c.h.b16 %v401
      %v568 = vunpack.c.l.b16 %v402
      %v569 = vunpack.c.h.b16 %v402
      %v570 = vunpack.c.l.b16 %v403
      %v571 = vunpack.c.h.b16 %v403
      %v572 = vunpack.c.l.b16 %v404
      %v573 = vunpack.c.h.b16 %v404
      %v574 = vunpack.c.l.b16 %v405
      %v575 = vunpack.c.h.b16 %v405
      %v576 = vunpack.c.l.b16 %v406
      %v577 = vunpack.c.h.b16 %v406
      %v578 = vunpack.c.l.b16 %v407
      %v579 = vunpack.c.h.b16 %v407
      %v580 = vunpack.c.l.b16 %v408
      %v581 = vunpack.c.h.b16 %v408
      %v582 = vunpack.c.l.b16 %v409
      %v583 = vunpack.c.h.b16 %v409
      %v584 = vunpack.c.l.b16 %v410
      %v585 = vunpack.c.h.b16 %v410
      %v586 = vunpack.c.l.b16 %v411
      %v587 = vunpack.c.h.b16 %v411
      %v588 = vunpack.c.l.b16 %v412
      %v589 = vunpack.c.h.b16 %v412
      %v590 = vunpack.c.l.b16 %v413
      %v591 = vunpack.c.h.b16 %v413
      %v592 = vunpack.c.l.b16 %v414
      %v593 = vunpack.c.h.b16 %v414
      %v594 = vunpack.c.l.b16 %v415
      %v595 = vunpack.c.h.b16 %v415
      %v596 = vunpack.c.l.b16 %v416
      %v597 = vunpack.c.h.b16 %v416
      %v598 = vunpack.c.l.b16 %v417
      %v599 = vunpack.c.h.b16 %v417
      %v600 = vunpack.c.l.b16 %v418
      %v601 = vunpack.c.h.b16 %v418
      %v602 = vunpack.c.l.b16 %v419
      %v603 = vunpack.c.h.b16 %v419
      %v604 = vunpack.c.l.b16 %v420
      %v605 = vunpack.c.h.b16 %v420
      %v606 = vunpack.c.l.b16 %v421
      %v607 = vunpack.c.h.b16 %v421
      %v608 = vunpack.c.l.b16 %v422
      %v609 = vunpack.c.h.b16 %v422
      %v610 = vunpack.c.l.b16 %v423
      %v611 = vunpack.c.h.b16 %v423
      %v612 = vunpack.c.l.b16 %v424
      %v613 = vunpack.c.h.b16 %v424
      %v614 = vunpack.c.l.b16 %v425
      %v615 = vunpack.c.h.b16 %v425
      %v616 = vunpack.c.l.b16 %v426
      %v617 = vunpack.c.h.b16 %v426
      %v618 = vunpack.c.l.b16 %v427
      %v619 = vunpack.c.h.b16 %v427
      %v620 = vunpack.c.l.b16 %v428
      %v621 = vunpack.c.h.b16 %v428
      %v622 = vunpack.c.l.b16 %v429
      %v623 = vunpack.c.h.b16 %v429
      %v624 = vunpack.c.l.b16 %v430
      %v625 = vunpack.c.h.b16 %v430
      %v626 = vunpack.c.l.b16 %v431
      %v627 = vunpack.c.h.b16 %v431
      %v628 = vunpack.c.l.b16 %v432
      %v629 = vunpack.c.h.b16 %v432
      %v630 = vunpack.c.l.b16 %v433
      %v631 = vunpack.c.h.b16 %v433
      %v632 = vunpack.c.l.b16 %v434
      %v633 = vunpack.c.h.b16 %v434
      %v634 = vunpack.c.l.b16 %v435
      %v635 = vunpack.c.h.b16 %v435
      %v636 = vunpack.c.l.b16 %v436
      %v637 = vunpack.c.h.b16 %v436
      %v638 = vunpack.c.l.b16 %v437
      %v639 = vunpack.c.h.b16 %v437
      %v640 = vunpack.c.l.b16 %v438
      %v641 = vunpack.c.h.b16 %v438
      %v642 = vunpack.c.l.b16 %v439
      %v643 = vunpack.c.h.b16 %v439
      %v644 = vunpack.c.l.b16 %v440
      %v645 = vunpack.c.h.b16 %v440
      %v646 = vunpack.c.l.b16 %v441
      %v647 = vunpack.c.h.b16 %v441
      %v648 = vunpack.c.l.b16 %v442
      %v649 = vunpack.c.h.b16 %v442
      %v650 = vunpack.c.l.b16 %v443
      %v651 = vunpack.c.h.b16 %v443
      %v652 = vunpack.c.l.b16 %v444
      %v653 = vunpack.c.h.b16 %v444
      %v654 = vunpack.c.l.b16 %v445
      %v655 = vunpack.c.h.b16 %v445
      %v656 = vunpack.c.l.b16 %v446
      %v657 = vunpack.c.h.b16 %v446
      %v658 = vunpack.c.l.b16 %v447
      %v659 = vunpack.c.h.b16 %v447
      %v660 = vunpack.c.l.b16 %v448
      %v661 = vunpack.c.h.b16 %v448
      %v662 = vunpack.c.l.b16 %v449
      %v663 = vunpack.c.h.b16 %v449
      %v664 = vunpack.c.l.b16 %v450
      %v665 = vunpack.c.h.b16 %v450
      %v666 = vunpack.c.l.b16 %v451
      %v667 = vunpack.c.h.b16 %v451
      %v668 = vunpack.c.l.b16 %v452
      %v669 = vunpack.c.h.b16 %v452
      %v670 = vunpack.c.l.b16 %v453
      %v671 = vunpack.c.h.b16 %v453
      %v672 = vunpack.c.l.b16 %v454
      %v673 = vunpack.c.h.b16 %v454
      %v674 = vunpack.c.l.b16 %v455
      %v675 = vunpack.c.h.b16 %v455
      %v676 = vunpack.c.l.b16 %v456
      %v677 = vunpack.c.h.b16 %v456
      %v678 = vpack.c.b16 %v552, %v550
      %v679 = vpack.c.b16 %v553, %v551
      %v680 = vpack.c.b16 %v556, %v554
      %v681 = vpack.c.b16 %v557, %v555
      %v682 = vpack.c.b16 %v560, %v558
      %v683 = vpack.c.b16 %v561, %v559
      %v684 = vpack.c.b16 %v564, %v562
      %v685 = vpack.c.b16 %v565, %v563
      %v686 = vpack.c.b16 %v568, %v566
      %v687 = vpack.c.b16 %v569, %v567
      %v688 = vpack.c.b16 %v572, %v570
      %v689 = vpack.c.b16 %v573, %v571
      %v690 = vpack.c.b16 %v576, %v574
      %v691 = vpack.c.b16 %v577, %v575
      %v692 = vpack.c.b16 %v580, %v578
      %v693 = vpack.c.b16 %v581, %v579
      %v694 = vpack.c.b16 %v584, %v582
      %v695 = vpack.c.b16 %v585, %v583
      %v696 = vpack.c.b16 %v588, %v586
      %v697 = vpack.c.b16 %v589, %v587
      %v698 = vpack.c.b16 %v592, %v590
      %v699 = vpack.c.b16 %v593, %v591
      %v700 = vpack.c.b16 %v596, %v594
      %v701 = vpack.c.b16 %v597, %v595
      %v702 = vpack.c.b16 %v600, %v598
      %v703 = vpack.c.b16 %v601, %v599
      %v704 = vpack.c.b16 %v604, %v602
      %v705 = vpack.c.b16 %v605, %v603
      %v706 = vpack.c.b16 %v608, %v606
      %v707 = vpack.c.b16 %v609, %v607
      %v708 = vpack.c.b16 %v612, %v610
      %v709 = vpack.c.b16 %v613, %v611
      %v710 = vpack.c.b16 %v616, %v614
      %v711 = vpack.c.b16 %v617, %v615
      %v712 = vpack.c.b16 %v620, %v618
      %v713 = vpack.c.b16 %v621, %v619
      %v714 = vpack.c.b16 %v624, %v622
      %v715 = vpack.c.b16 %v625, %v623
      %v716 = vpack.c.b16 %v628, %v626
      %v717 = vpack.c.b16 %v629, %v627
      %v718 = vpack.c.b16 %v632, %v630
      %v719 = vpack.c.b16 %v633, %v631
      %v720 = vpack.c.b16 %v636, %v634
      %v721 = vpack.c.b16 %v637, %v635
      %v722 = vpack.c.b16 %v640, %v638
      %v723 = vpack.c.b16 %v641, %v639
      %v724 = vpack.c.b16 %v644, %v642
      %v725 = vpack.c.b16 %v645, %v643
      %v726 = vpack.c.b16 %v648, %v646
      %v727 = vpack.c.b16 %v649, %v647
      %v728 = vpack.c.b16 %v652, %v650
      %v729 = vpack.c.b16 %v653, %v651
      %v730 = vpack.c.b16 %v656, %v654
      %v731 = vpack.c.b16 %v657, %v655
      %v732 = vpack.c.b16 %v660, %v658
      %v733 = vpack.c.b16 %v661, %v659
      %v734 = vpack.c.b16 %v664, %v662
      %v735 = vpack.c.b16 %v665, %v663
      %v736 = vpack.c.b16 %v668, %v666
      %v737 = vpack.c.b16 %v669, %v667
      %v738 = vpack.c.b16 %v672, %v670
      %v739 = vpack.c.b16 %v673, %v671
      %v740 = vpack.c.b16 %v676, %v674
      %v741 = vpack.c.b16 %v677, %v675
      %806 = vmatprep.subr.bf16.mxu0 %v679
      %807 = vmatpush1.bf16.msra.mxu0 %v678
      %808 = vmatprep.subr.bf16.mxu0 %v681
      %809 = vmatpush1.bf16.msra.mxu0 %v680
      %810 = vmatprep.subr.bf16.mxu0 %v683
      %811 = vmatpush1.bf16.msra.mxu0 %v682
      %812 = vmatprep.subr.bf16.mxu0 %v685
      %813 = vmatpush1.bf16.msra.mxu0 %v684
      %814 = vmatprep.subr.bf16.mxu0 %v687
      %815 = vmatpush1.bf16.msra.mxu0 %v686
      %816 = vmatprep.subr.bf16.mxu0 %v689
      %817 = vmatpush1.bf16.msra.mxu0 %v688
      %818 = vmatprep.subr.bf16.mxu0 %v691
      %819 = vmatpush1.bf16.msra.mxu0 %v690
      %820 = vmatprep.subr.bf16.mxu0 %v693
      %821 = vmatpush1.bf16.msra.mxu0 %v692
      %822 = vmatprep.subr.bf16.mxu0 %v695
      %823 = vmatpush1.bf16.msra.mxu0 %v694
      %824 = vmatprep.subr.bf16.mxu0 %v697
      %825 = vmatpush1.bf16.msra.mxu0 %v696
      %826 = vmatprep.subr.bf16.mxu0 %v699
      %827 = vmatpush1.bf16.msra.mxu0 %v698
      %828 = vmatprep.subr.bf16.mxu0 %v701
      %829 = vmatpush1.bf16.msra.mxu0 %v700
      %830 = vmatprep.subr.bf16.mxu0 %v703
      %831 = vmatpush1.bf16.msra.mxu0 %v702
      %832 = vmatprep.subr.bf16.mxu0 %v705
      %833 = vmatpush1.bf16.msra.mxu0 %v704
      %834 = vmatprep.subr.bf16.mxu0 %v707
      %835 = vmatpush1.bf16.msra.mxu0 %v706
      %836 = vmatprep.subr.bf16.mxu0 %v709
      %837 = vmatpush1.bf16.msra.mxu0 %v708
      %838 = vmatprep.mubr.bf16.mxu0 %v479
      %839 = vmatmul.mubr.bf16.gmra.mrb[0].mxu0 %v472
      %v840 = vpop.f32.mrb[0].mxu0
      %v841 = vadd.f32 0.0, %v840
      %v842 = vpop.f32.mrb[0].mxu0
      %v843 = vadd.f32 0.0, %v842
      %v844 = vpop.f32.mrb[0].mxu0
      %v845 = vpop.f32.mrb[0].mxu0
      %846 = vdwg.mxu0
      %847 = vmatprep.subr.bf16.mxu0 %v711
      %848 = vmatpush1.bf16.msra.mxu0 %v710
      %849 = vmatprep.subr.bf16.mxu0 %v713
      %850 = vmatpush1.bf16.msra.mxu0 %v712
      %851 = vmatprep.subr.bf16.mxu0 %v715
      %852 = vmatpush1.bf16.msra.mxu0 %v714
      %853 = vmatprep.subr.bf16.mxu0 %v717
      %854 = vmatpush1.bf16.msra.mxu0 %v716
      %855 = vmatprep.subr.bf16.mxu0 %v719
      %856 = vmatpush1.bf16.msra.mxu0 %v718
      %857 = vmatprep.subr.bf16.mxu0 %v721
      %858 = vmatpush1.bf16.msra.mxu0 %v720
      %859 = vmatprep.subr.bf16.mxu0 %v723
      %860 = vmatpush1.bf16.msra.mxu0 %v722
      %861 = vmatprep.subr.bf16.mxu0 %v725
      %862 = vmatpush1.bf16.msra.mxu0 %v724
      %863 = vmatprep.subr.bf16.mxu0 %v727
      %864 = vmatpush1.bf16.msra.mxu0 %v726
      %865 = vmatprep.subr.bf16.mxu0 %v729
      %866 = vmatpush1.bf16.msra.mxu0 %v728
      %867 = vmatprep.subr.bf16.mxu0 %v731
      %868 = vmatpush1.bf16.msra.mxu0 %v730
      %869 = vmatprep.subr.bf16.mxu0 %v733
      %870 = vmatpush1.bf16.msra.mxu0 %v732
      %871 = vmatprep.subr.bf16.mxu0 %v735
      %872 = vmatpush1.bf16.msra.mxu0 %v734
      %873 = vmatprep.subr.bf16.mxu0 %v737
      %874 = vmatpush1.bf16.msra.mxu0 %v736
      %875 = vmatprep.subr.bf16.mxu0 %v739
      %876 = vmatpush1.bf16.msra.mxu0 %v738
      %877 = vmatprep.subr.bf16.mxu0 %v741
      %878 = vmatpush1.bf16.msra.mxu0 %v740
      %879 = vmatprep.mubr.bf16.mxu0 %v481
      %880 = vmatmul.mubr.bf16.gmra.mrb[0].mxu0 %v480
      %v881 = vpop.f32.mrb[0].mxu0
      %v882 = vadd.f32 %v841, %v881
      %v883 = vpop.f32.mrb[0].mxu0
      %v884 = vadd.f32 %v843, %v883
      %v885 = vpop.f32.mrb[0].mxu0
      %v886 = vpop.f32.mrb[0].mxu0
      %887 = vdwg.mxu0
      %v888 = vcombine.low %v267, %v274
      %v890 = vunpack.c.l.s4 1966171168
      %v891 = vunpack.c.0.s8 %v890
      %v892 = vlaneseq
      %v893 = vshrl.u32 %v892, 7
      %v894 = vsub.s32 %v891, %v893
      %v895 = vrot.slane %v888, %v894
      %v896 = vcombine.high %v895, %v895
      %v898 = vunpack.c.l.s4 1966171168
      %v899 = vunpack.c.0.s8 %v898
      %v900 = vlaneseq
      %v901 = vshrl.u32 %v900, 7
      %v902 = vsub.s32 %v899, %v901
      %v903 = vrot.slane %v895, %v902
      %v905 = vunpack.c.l.s4 1966171168
      %v906 = vunpack.c.0.s8 %v905
      %v907 = vlaneseq
      %v908 = vshrl.u32 %v907, 7
      %v909 = vsub.s32 %v906, %v908
      %v910 = vrot.slane %v896, %v909
      %v911 = vcombine.high %v903, %v903
      %v912 = vcombine.high %v910, %v910
      %v981 = vunpack.c.l.b16 %v275
      %v982 = vunpack.c.h.b16 %v275
      %v983 = vunpack.c.l.b16 %v276
      %v984 = vunpack.c.h.b16 %v276
      %v985 = vunpack.c.l.b16 %v277
      %v986 = vunpack.c.h.b16 %v277
      %v987 = vunpack.c.l.b16 %v278
      %v988 = vunpack.c.h.b16 %v278
      %v989 = vunpack.c.l.b16 %v279
      %v990 = vunpack.c.h.b16 %v279
      %v991 = vunpack.c.l.b16 %v280
      %v992 = vunpack.c.h.b16 %v280
      %v993 = vunpack.c.l.b16 %v281
      %v994 = vunpack.c.h.b16 %v281
      %v995 = vunpack.c.l.b16 %v282
      %v996 = vunpack.c.h.b16 %v282
      %v997 = vunpack.c.l.b16 %v283
      %v998 = vunpack.c.h.b16 %v283
      %v999 = vunpack.c.l.b16 %v284
      %v1000 = vunpack.c.h.b16 %v284
      %v1001 = vunpack.c.l.b16 %v285
      %v1002 = vunpack.c.h.b16 %v285
      %v1003 = vunpack.c.l.b16 %v286
      %v1004 = vunpack.c.h.b16 %v286
      %v1005 = vunpack.c.l.b16 %v287
      %v1006 = vunpack.c.h.b16 %v287
      %v1007 = vunpack.c.l.b16 %v288
      %v1008 = vunpack.c.h.b16 %v288
      %v1009 = vunpack.c.l.b16 %v289
      %v1010 = vunpack.c.h.b16 %v289
      %v1011 = vunpack.c.l.b16 %v290
      %v1012 = vunpack.c.h.b16 %v290
      %v1013 = vunpack.c.l.b16 %v291
      %v1014 = vunpack.c.h.b16 %v291
      %v1015 = vunpack.c.l.b16 %v292
      %v1016 = vunpack.c.h.b16 %v292
      %v1017 = vunpack.c.l.b16 %v293
      %v1018 = vunpack.c.h.b16 %v293
      %v1019 = vunpack.c.l.b16 %v294
      %v1020 = vunpack.c.h.b16 %v294
      %v1021 = vunpack.c.l.b16 %v295
      %v1022 = vunpack.c.h.b16 %v295
      %v1023 = vunpack.c.l.b16 %v296
      %v1024 = vunpack.c.h.b16 %v296
      %v1025 = vunpack.c.l.b16 %v297
      %v1026 = vunpack.c.h.b16 %v297
      %v1027 = vunpack.c.l.b16 %v298
      %v1028 = vunpack.c.h.b16 %v298
      %v1029 = vunpack.c.l.b16 %v299
      %v1030 = vunpack.c.h.b16 %v299
      %v1031 = vunpack.c.l.b16 %v300
      %v1032 = vunpack.c.h.b16 %v300
      %v1033 = vunpack.c.l.b16 %v301
      %v1034 = vunpack.c.h.b16 %v301
      %v1035 = vunpack.c.l.b16 %v302
      %v1036 = vunpack.c.h.b16 %v302
      %v1037 = vunpack.c.l.b16 %v303
      %v1038 = vunpack.c.h.b16 %v303
      %v1039 = vunpack.c.l.b16 %v304
      %v1040 = vunpack.c.h.b16 %v304
      %v1041 = vunpack.c.l.b16 %v305
      %v1042 = vunpack.c.h.b16 %v305
      %v1043 = vunpack.c.l.b16 %v306
      %v1044 = vunpack.c.h.b16 %v306
      %v1045 = vunpack.c.l.b16 %v307
      %v1046 = vunpack.c.h.b16 %v307
      %v1047 = vunpack.c.l.b16 %v308
      %v1048 = vunpack.c.h.b16 %v308
      %v1049 = vunpack.c.l.b16 %v309
      %v1050 = vunpack.c.h.b16 %v309
      %v1051 = vunpack.c.l.b16 %v310
      %v1052 = vunpack.c.h.b16 %v310
      %v1053 = vunpack.c.l.b16 %v311
      %v1054 = vunpack.c.h.b16 %v311
      %v1055 = vunpack.c.l.b16 %v312
      %v1056 = vunpack.c.h.b16 %v312
      %v1057 = vunpack.c.l.b16 %v313
      %v1058 = vunpack.c.h.b16 %v313
      %v1059 = vunpack.c.l.b16 %v314
      %v1060 = vunpack.c.h.b16 %v314
      %v1061 = vunpack.c.l.b16 %v315
      %v1062 = vunpack.c.h.b16 %v315
      %v1063 = vunpack.c.l.b16 %v316
      %v1064 = vunpack.c.h.b16 %v316
      %v1065 = vunpack.c.l.b16 %v317
      %v1066 = vunpack.c.h.b16 %v317
      %v1067 = vunpack.c.l.b16 %v318
      %v1068 = vunpack.c.h.b16 %v318
      %v1069 = vunpack.c.l.b16 %v319
      %v1070 = vunpack.c.h.b16 %v319
      %v1071 = vunpack.c.l.b16 %v320
      %v1072 = vunpack.c.h.b16 %v320
      %v1073 = vunpack.c.l.b16 %v321
      %v1074 = vunpack.c.h.b16 %v321
      %v1075 = vunpack.c.l.b16 %v322
      %v1076 = vunpack.c.h.b16 %v322
      %v1077 = vunpack.c.l.b16 %v323
      %v1078 = vunpack.c.h.b16 %v323
      %v1079 = vunpack.c.l.b16 %v324
      %v1080 = vunpack.c.h.b16 %v324
      %v1081 = vunpack.c.l.b16 %v325
      %v1082 = vunpack.c.h.b16 %v325
      %v1083 = vunpack.c.l.b16 %v326
      %v1084 = vunpack.c.h.b16 %v326
      %v1085 = vunpack.c.l.b16 %v327
      %v1086 = vunpack.c.h.b16 %v327
      %v1087 = vunpack.c.l.b16 %v328
      %v1088 = vunpack.c.h.b16 %v328
      %v1089 = vunpack.c.l.b16 %v329
      %v1090 = vunpack.c.h.b16 %v329
      %v1091 = vunpack.c.l.b16 %v330
      %v1092 = vunpack.c.h.b16 %v330
      %v1093 = vunpack.c.l.b16 %v331
      %v1094 = vunpack.c.h.b16 %v331
      %v1095 = vunpack.c.l.b16 %v332
      %v1096 = vunpack.c.h.b16 %v332
      %v1097 = vunpack.c.l.b16 %v333
      %v1098 = vunpack.c.h.b16 %v333
      %v1099 = vunpack.c.l.b16 %v334
      %v1100 = vunpack.c.h.b16 %v334
      %v1101 = vunpack.c.l.b16 %v335
      %v1102 = vunpack.c.h.b16 %v335
      %v1103 = vunpack.c.l.b16 %v336
      %v1104 = vunpack.c.h.b16 %v336
      %v1105 = vunpack.c.l.b16 %v337
      %v1106 = vunpack.c.h.b16 %v337
      %v1107 = vunpack.c.l.b16 %v338
      %v1108 = vunpack.c.h.b16 %v338
      %v1109 = vpack.c.b16 %v983, %v981
      %v1110 = vpack.c.b16 %v984, %v982
      %v1111 = vpack.c.b16 %v987, %v985
      %v1112 = vpack.c.b16 %v988, %v986
      %v1113 = vpack.c.b16 %v991, %v989
      %v1114 = vpack.c.b16 %v992, %v990
      %v1115 = vpack.c.b16 %v995, %v993
      %v1116 = vpack.c.b16 %v996, %v994
      %v1117 = vpack.c.b16 %v999, %v997
      %v1118 = vpack.c.b16 %v1000, %v998
      %v1119 = vpack.c.b16 %v1003, %v1001
      %v1120 = vpack.c.b16 %v1004, %v1002
      %v1121 = vpack.c.b16 %v1007, %v1005
      %v1122 = vpack.c.b16 %v1008, %v1006
      %v1123 = vpack.c.b16 %v1011, %v1009
      %v1124 = vpack.c.b16 %v1012, %v1010
      %v1125 = vpack.c.b16 %v1015, %v1013
      %v1126 = vpack.c.b16 %v1016, %v1014
      %v1127 = vpack.c.b16 %v1019, %v1017
      %v1128 = vpack.c.b16 %v1020, %v1018
      %v1129 = vpack.c.b16 %v1023, %v1021
      %v1130 = vpack.c.b16 %v1024, %v1022
      %v1131 = vpack.c.b16 %v1027, %v1025
      %v1132 = vpack.c.b16 %v1028, %v1026
      %v1133 = vpack.c.b16 %v1031, %v1029
      %v1134 = vpack.c.b16 %v1032, %v1030
      %v1135 = vpack.c.b16 %v1035, %v1033
      %v1136 = vpack.c.b16 %v1036, %v1034
      %v1137 = vpack.c.b16 %v1039, %v1037
      %v1138 = vpack.c.b16 %v1040, %v1038
      %v1139 = vpack.c.b16 %v1043, %v1041
      %v1140 = vpack.c.b16 %v1044, %v1042
      %v1141 = vpack.c.b16 %v1047, %v1045
      %v1142 = vpack.c.b16 %v1048, %v1046
      %v1143 = vpack.c.b16 %v1051, %v1049
      %v1144 = vpack.c.b16 %v1052, %v1050
      %v1145 = vpack.c.b16 %v1055, %v1053
      %v1146 = vpack.c.b16 %v1056, %v1054
      %v1147 = vpack.c.b16 %v1059, %v1057
      %v1148 = vpack.c.b16 %v1060, %v1058
      %v1149 = vpack.c.b16 %v1063, %v1061
      %v1150 = vpack.c.b16 %v1064, %v1062
      %v1151 = vpack.c.b16 %v1067, %v1065
      %v1152 = vpack.c.b16 %v1068, %v1066
      %v1153 = vpack.c.b16 %v1071, %v1069
      %v1154 = vpack.c.b16 %v1072, %v1070
      %v1155 = vpack.c.b16 %v1075, %v1073
      %v1156 = vpack.c.b16 %v1076, %v1074
      %v1157 = vpack.c.b16 %v1079, %v1077
      %v1158 = vpack.c.b16 %v1080, %v1078
      %v1159 = vpack.c.b16 %v1083, %v1081
      %v1160 = vpack.c.b16 %v1084, %v1082
      %v1161 = vpack.c.b16 %v1087, %v1085
      %v1162 = vpack.c.b16 %v1088, %v1086
      %v1163 = vpack.c.b16 %v1091, %v1089
      %v1164 = vpack.c.b16 %v1092, %v1090
      %v1165 = vpack.c.b16 %v1095, %v1093
      %v1166 = vpack.c.b16 %v1096, %v1094
      %v1167 = vpack.c.b16 %v1099, %v1097
      %v1168 = vpack.c.b16 %v1100, %v1098
      %v1169 = vpack.c.b16 %v1103, %v1101
      %v1170 = vpack.c.b16 %v1104, %v1102
      %v1171 = vpack.c.b16 %v1107, %v1105
      %v1172 = vpack.c.b16 %v1108, %v1106
      %1237 = vmatprep.subr.bf16.mxu0 %v1110
      %1238 = vmatpush1.bf16.msra.mxu0 %v1109
      %1239 = vmatprep.subr.bf16.mxu0 %v1112
      %1240 = vmatpush1.bf16.msra.mxu0 %v1111
      %1241 = vmatprep.subr.bf16.mxu0 %v1114
      %1242 = vmatpush1.bf16.msra.mxu0 %v1113
      %1243 = vmatprep.subr.bf16.mxu0 %v1116
      %1244 = vmatpush1.bf16.msra.mxu0 %v1115
      %1245 = vmatprep.subr.bf16.mxu0 %v1118
      %1246 = vmatpush1.bf16.msra.mxu0 %v1117
      %1247 = vmatprep.subr.bf16.mxu0 %v1120
      %1248 = vmatpush1.bf16.msra.mxu0 %v1119
      %1249 = vmatprep.subr.bf16.mxu0 %v1122
      %1250 = vmatpush1.bf16.msra.mxu0 %v1121
      %1251 = vmatprep.subr.bf16.mxu0 %v1124
      %1252 = vmatpush1.bf16.msra.mxu0 %v1123
      %1253 = vmatprep.subr.bf16.mxu0 %v1126
      %1254 = vmatpush1.bf16.msra.mxu0 %v1125
      %1255 = vmatprep.subr.bf16.mxu0 %v1128
      %1256 = vmatpush1.bf16.msra.mxu0 %v1127
      %1257 = vmatprep.subr.bf16.mxu0 %v1130
      %1258 = vmatpush1.bf16.msra.mxu0 %v1129
      %1259 = vmatprep.subr.bf16.mxu0 %v1132
      %1260 = vmatpush1.bf16.msra.mxu0 %v1131
      %1261 = vmatprep.subr.bf16.mxu0 %v1134
      %1262 = vmatpush1.bf16.msra.mxu0 %v1133
      %1263 = vmatprep.subr.bf16.mxu0 %v1136
      %1264 = vmatpush1.bf16.msra.mxu0 %v1135
      %1265 = vmatprep.subr.bf16.mxu0 %v1138
      %1266 = vmatpush1.bf16.msra.mxu0 %v1137
      %1267 = vmatprep.subr.bf16.mxu0 %v1140
      %1268 = vmatpush1.bf16.msra.mxu0 %v1139
      %1269 = vmatprep.mubr.bf16.mxu0 %v910
      %1270 = vmatmul.mubr.bf16.gmra.mrb[0].mxu0 %v903
      %v1271 = vpop.f32.mrb[0].mxu0
      %v1272 = vadd.f32 %v882, %v1271
      %v1273 = vpop.f32.mrb[0].mxu0
      %v1274 = vadd.f32 %v884, %v1273
      %v1275 = vpop.f32.mrb[0].mxu0
      %v1276 = vpop.f32.mrb[0].mxu0
      %1277 = vdwg.mxu0
      %1278 = vmatprep.subr.bf16.mxu0 %v1142
      %1279 = vmatpush1.bf16.msra.mxu0 %v1141
      %1280 = vmatprep.subr.bf16.mxu0 %v1144
      %1281 = vmatpush1.bf16.msra.mxu0 %v1143
      %1282 = vmatprep.subr.bf16.mxu0 %v1146
      %1283 = vmatpush1.bf16.msra.mxu0 %v1145
      %1284 = vmatprep.subr.bf16.mxu0 %v1148
      %1285 = vmatpush1.bf16.msra.mxu0 %v1147
      %1286 = vmatprep.subr.bf16.mxu0 %v1150
      %1287 = vmatpush1.bf16.msra.mxu0 %v1149
      %1288 = vmatprep.subr.bf16.mxu0 %v1152
      %1289 = vmatpush1.bf16.msra.mxu0 %v1151
      %1290 = vmatprep.subr.bf16.mxu0 %v1154
      %1291 = vmatpush1.bf16.msra.mxu0 %v1153
      %1292 = vmatprep.subr.bf16.mxu0 %v1156
      %1293 = vmatpush1.bf16.msra.mxu0 %v1155
      %1294 = vmatprep.subr.bf16.mxu0 %v1158
      %1295 = vmatpush1.bf16.msra.mxu0 %v1157
      %1296 = vmatprep.subr.bf16.mxu0 %v1160
      %1297 = vmatpush1.bf16.msra.mxu0 %v1159
      %1298 = vmatprep.subr.bf16.mxu0 %v1162
      %1299 = vmatpush1.bf16.msra.mxu0 %v1161
      %1300 = vmatprep.subr.bf16.mxu0 %v1164
      %1301 = vmatpush1.bf16.msra.mxu0 %v1163
      %1302 = vmatprep.subr.bf16.mxu0 %v1166
      %1303 = vmatpush1.bf16.msra.mxu0 %v1165
      %1304 = vmatprep.subr.bf16.mxu0 %v1168
      %1305 = vmatpush1.bf16.msra.mxu0 %v1167
      %1306 = vmatprep.subr.bf16.mxu0 %v1170
      %1307 = vmatpush1.bf16.msra.mxu0 %v1169
      %1308 = vmatprep.subr.bf16.mxu0 %v1172
      %1309 = vmatpush1.bf16.msra.mxu0 %v1171
      %1310 = vmatprep.mubr.bf16.mxu0 %v912
      %1311 = vmatmul.mubr.bf16.gmra.mrb[0].mxu0 %v911
      %v1312 = vpop.f32.mrb[0].mxu0
      %v1313 = vadd.f32 %v1272, %v1312
      %v1314 = vpop.f32.mrb[0].mxu0
      %v1315 = vadd.f32 %v1274, %v1314
      %v1316 = vpop.f32.mrb[0].mxu0
      %v1317 = vpop.f32.mrb[0].mxu0
      %1318 = vdwg.mxu0
      %s1319 = scalar_lea.vmem %s238, 8
      %v1320 = vld [vmem:[%s1319] sm:$0x55]
      %v1321 = vld [vmem:[%s1319 + $0x8] sm:$0x55]
      %v1325 = vunpack.c.l.s4 1966171168
      %v1326 = vunpack.c.0.s8 %v1325
      %v1327 = vlaneseq
      %v1328 = vshrl.u32 %v1327, 7
      %v1329 = vsub.s32 %v1326, %v1328
      %v1330 = vrot.slane %v1320, %v1329
      %v1332 = vunpack.c.l.s4 1966171168
      %v1333 = vunpack.c.0.s8 %v1332
      %v1334 = vlaneseq
      %v1335 = vshrl.u32 %v1334, 7
      %v1336 = vsub.s32 %v1333, %v1335
      %v1337 = vrot.slane %v1321, %v1336
      %s1338 = scalar_lea.vmem %s1, 1024
      %v1339 = vld [vmem:[%s1338] sm:$0xff]
      %v1340 = vld [vmem:[%s1338 + $0x8] sm:$0xff]
      %v1341 = vld [vmem:[%s1338 + $0x10] sm:$0xff]
      %v1342 = vld [vmem:[%s1338 + $0x18] sm:$0xff]
      %v1343 = vld [vmem:[%s1338 + $0x20] sm:$0xff]
      %v1344 = vld [vmem:[%s1338 + $0x28] sm:$0xff]
      %v1345 = vld [vmem:[%s1338 + $0x30] sm:$0xff]
      %v1346 = vld [vmem:[%s1338 + $0x38] sm:$0xff]
      %v1347 = vld [vmem:[%s1338 + $0x40] sm:$0xff]
      %v1348 = vld [vmem:[%s1338 + $0x48] sm:$0xff]
      %v1349 = vld [vmem:[%s1338 + $0x50] sm:$0xff]
      %v1350 = vld [vmem:[%s1338 + $0x58] sm:$0xff]
      %v1351 = vld [vmem:[%s1338 + $0x60] sm:$0xff]
      %v1352 = vld [vmem:[%s1338 + $0x68] sm:$0xff]
      %v1353 = vld [vmem:[%s1338 + $0x70] sm:$0xff]
      %v1354 = vld [vmem:[%s1338 + $0x78] sm:$0xff]
      %v1355 = vld [vmem:[%s1338 + $0x80] sm:$0xff]
      %v1356 = vld [vmem:[%s1338 + $0x88] sm:$0xff]
      %v1357 = vld [vmem:[%s1338 + $0x90] sm:$0xff]
      %v1358 = vld [vmem:[%s1338 + $0x98] sm:$0xff]
      %v1359 = vld [vmem:[%s1338 + $0xa0] sm:$0xff]
      %v1360 = vld [vmem:[%s1338 + $0xa8] sm:$0xff]
      %v1361 = vld [vmem:[%s1338 + $0xb0] sm:$0xff]
      %v1362 = vld [vmem:[%s1338 + $0xb8] sm:$0xff]
      %v1363 = vld [vmem:[%s1338 + $0xc0] sm:$0xff]
      %v1364 = vld [vmem:[%s1338 + $0xc8] sm:$0xff]
      %v1365 = vld [vmem:[%s1338 + $0xd0] sm:$0xff]
      %v1366 = vld [vmem:[%s1338 + $0xd8] sm:$0xff]
      %v1367 = vld [vmem:[%s1338 + $0xe0] sm:$0xff]
      %v1368 = vld [vmem:[%s1338 + $0xe8] sm:$0xff]
      %v1369 = vld [vmem:[%s1338 + $0xf0] sm:$0xff]
      %v1370 = vld [vmem:[%s1338 + $0xf8] sm:$0xff]
      %v1371 = vld [vmem:[%s1338 + $0x100] sm:$0xff]
      %v1372 = vld [vmem:[%s1338 + $0x108] sm:$0xff]
      %v1373 = vld [vmem:[%s1338 + $0x110] sm:$0xff]
      %v1374 = vld [vmem:[%s1338 + $0x118] sm:$0xff]
      %v1375 = vld [vmem:[%s1338 + $0x120] sm:$0xff]
      %v1376 = vld [vmem:[%s1338 + $0x128] sm:$0xff]
      %v1377 = vld [vmem:[%s1338 + $0x130] sm:$0xff]
      %v1378 = vld [vmem:[%s1338 + $0x138] sm:$0xff]
      %v1379 = vld [vmem:[%s1338 + $0x140] sm:$0xff]
      %v1380 = vld [vmem:[%s1338 + $0x148] sm:$0xff]
      %v1381 = vld [vmem:[%s1338 + $0x150] sm:$0xff]
      %v1382 = vld [vmem:[%s1338 + $0x158] sm:$0xff]
      %v1383 = vld [vmem:[%s1338 + $0x160] sm:$0xff]
      %v1384 = vld [vmem:[%s1338 + $0x168] sm:$0xff]
      %v1385 = vld [vmem:[%s1338 + $0x170] sm:$0xff]
      %v1386 = vld [vmem:[%s1338 + $0x178] sm:$0xff]
      %v1387 = vld [vmem:[%s1338 + $0x180] sm:$0xff]
      %v1388 = vld [vmem:[%s1338 + $0x188] sm:$0xff]
      %v1389 = vld [vmem:[%s1338 + $0x190] sm:$0xff]
      %v1390 = vld [vmem:[%s1338 + $0x198] sm:$0xff]
      %v1391 = vld [vmem:[%s1338 + $0x1a0] sm:$0xff]
      %v1392 = vld [vmem:[%s1338 + $0x1a8] sm:$0xff]
      %v1393 = vld [vmem:[%s1338 + $0x1b0] sm:$0xff]
      %v1394 = vld [vmem:[%s1338 + $0x1b8] sm:$0xff]
      %v1395 = vld [vmem:[%s1338 + $0x1c0] sm:$0xff]
      %v1396 = vld [vmem:[%s1338 + $0x1c8] sm:$0xff]
      %v1397 = vld [vmem:[%s1338 + $0x1d0] sm:$0xff]
      %v1398 = vld [vmem:[%s1338 + $0x1d8] sm:$0xff]
      %v1399 = vld [vmem:[%s1338 + $0x1e0] sm:$0xff]
      %v1400 = vld [vmem:[%s1338 + $0x1e8] sm:$0xff]
      %v1401 = vld [vmem:[%s1338 + $0x1f0] sm:$0xff]
      %v1402 = vld [vmem:[%s1338 + $0x1f8] sm:$0xff]
      %v1403 = vcombine.low %v1330, %v1337
      %v1405 = vunpack.c.l.s4 1966171168
      %v1406 = vunpack.c.0.s8 %v1405
      %v1407 = vlaneseq
      %v1408 = vshrl.u32 %v1407, 7
      %v1409 = vsub.s32 %v1406, %v1408
      %v1410 = vrot.slane %v1403, %v1409
      %v1411 = vcombine.high %v1410, %v1410
      %v1413 = vunpack.c.l.s4 1966171168
      %v1414 = vunpack.c.0.s8 %v1413
      %v1415 = vlaneseq
      %v1416 = vshrl.u32 %v1415, 7
      %v1417 = vsub.s32 %v1414, %v1416
      %v1418 = vrot.slane %v1410, %v1417
      %v1420 = vunpack.c.l.s4 1966171168
      %v1421 = vunpack.c.0.s8 %v1420
      %v1422 = vlaneseq
      %v1423 = vshrl.u32 %v1422, 7
      %v1424 = vsub.s32 %v1421, %v1423
      %v1425 = vrot.slane %v1411, %v1424
      %v1426 = vcombine.high %v1418, %v1418
      %v1427 = vcombine.high %v1425, %v1425
      %v1496 = vunpack.c.l.b16 %v1339
      %v1497 = vunpack.c.h.b16 %v1339
      %v1498 = vunpack.c.l.b16 %v1340
      %v1499 = vunpack.c.h.b16 %v1340
      %v1500 = vunpack.c.l.b16 %v1341
      %v1501 = vunpack.c.h.b16 %v1341
      %v1502 = vunpack.c.l.b16 %v1342
      %v1503 = vunpack.c.h.b16 %v1342
      %v1504 = vunpack.c.l.b16 %v1343
      %v1505 = vunpack.c.h.b16 %v1343
      %v1506 = vunpack.c.l.b16 %v1344
      %v1507 = vunpack.c.h.b16 %v1344
      %v1508 = vunpack.c.l.b16 %v1345
      %v1509 = vunpack.c.h.b16 %v1345
      %v1510 = vunpack.c.l.b16 %v1346
      %v1511 = vunpack.c.h.b16 %v1346
      %v1512 = vunpack.c.l.b16 %v1347
      %v1513 = vunpack.c.h.b16 %v1347
      %v1514 = vunpack.c.l.b16 %v1348
      %v1515 = vunpack.c.h.b16 %v1348
      %v1516 = vunpack.c.l.b16 %v1349
      %v1517 = vunpack.c.h.b16 %v1349
      %v1518 = vunpack.c.l.b16 %v1350
      %v1519 = vunpack.c.h.b16 %v1350
      %v1520 = vunpack.c.l.b16 %v1351
      %v1521 = vunpack.c.h.b16 %v1351
      %v1522 = vunpack.c.l.b16 %v1352
      %v1523 = vunpack.c.h.b16 %v1352
      %v1524 = vunpack.c.l.b16 %v1353
      %v1525 = vunpack.c.h.b16 %v1353
      %v1526 = vunpack.c.l.b16 %v1354
      %v1527 = vunpack.c.h.b16 %v1354
      %v1528 = vunpack.c.l.b16 %v1355
      %v1529 = vunpack.c.h.b16 %v1355
      %v1530 = vunpack.c.l.b16 %v1356
      %v1531 = vunpack.c.h.b16 %v1356
      %v1532 = vunpack.c.l.b16 %v1357
      %v1533 = vunpack.c.h.b16 %v1357
      %v1534 = vunpack.c.l.b16 %v1358
      %v1535 = vunpack.c.h.b16 %v1358
      %v1536 = vunpack.c.l.b16 %v1359
      %v1537 = vunpack.c.h.b16 %v1359
      %v1538 = vunpack.c.l.b16 %v1360
      %v1539 = vunpack.c.h.b16 %v1360
      %v1540 = vunpack.c.l.b16 %v1361
      %v1541 = vunpack.c.h.b16 %v1361
      %v1542 = vunpack.c.l.b16 %v1362
      %v1543 = vunpack.c.h.b16 %v1362
      %v1544 = vunpack.c.l.b16 %v1363
      %v1545 = vunpack.c.h.b16 %v1363
      %v1546 = vunpack.c.l.b16 %v1364
      %v1547 = vunpack.c.h.b16 %v1364
      %v1548 = vunpack.c.l.b16 %v1365
      %v1549 = vunpack.c.h.b16 %v1365
      %v1550 = vunpack.c.l.b16 %v1366
      %v1551 = vunpack.c.h.b16 %v1366
      %v1552 = vunpack.c.l.b16 %v1367
      %v1553 = vunpack.c.h.b16 %v1367
      %v1554 = vunpack.c.l.b16 %v1368
      %v1555 = vunpack.c.h.b16 %v1368
      %v1556 = vunpack.c.l.b16 %v1369
      %v1557 = vunpack.c.h.b16 %v1369
      %v1558 = vunpack.c.l.b16 %v1370
      %v1559 = vunpack.c.h.b16 %v1370
      %v1560 = vunpack.c.l.b16 %v1371
      %v1561 = vunpack.c.h.b16 %v1371
      %v1562 = vunpack.c.l.b16 %v1372
      %v1563 = vunpack.c.h.b16 %v1372
      %v1564 = vunpack.c.l.b16 %v1373
      %v1565 = vunpack.c.h.b16 %v1373
      %v1566 = vunpack.c.l.b16 %v1374
      %v1567 = vunpack.c.h.b16 %v1374
      %v1568 = vunpack.c.l.b16 %v1375
      %v1569 = vunpack.c.h.b16 %v1375
      %v1570 = vunpack.c.l.b16 %v1376
      %v1571 = vunpack.c.h.b16 %v1376
      %v1572 = vunpack.c.l.b16 %v1377
      %v1573 = vunpack.c.h.b16 %v1377
      %v1574 = vunpack.c.l.b16 %v1378
      %v1575 = vunpack.c.h.b16 %v1378
      %v1576 = vunpack.c.l.b16 %v1379
      %v1577 = vunpack.c.h.b16 %v1379
      %v1578 = vunpack.c.l.b16 %v1380
      %v1579 = vunpack.c.h.b16 %v1380
      %v1580 = vunpack.c.l.b16 %v1381
      %v1581 = vunpack.c.h.b16 %v1381
      %v1582 = vunpack.c.l.b16 %v1382
      %v1583 = vunpack.c.h.b16 %v1382
      %v1584 = vunpack.c.l.b16 %v1383
      %v1585 = vunpack.c.h.b16 %v1383
      %v1586 = vunpack.c.l.b16 %v1384
      %v1587 = vunpack.c.h.b16 %v1384
      %v1588 = vunpack.c.l.b16 %v1385
      %v1589 = vunpack.c.h.b16 %v1385
      %v1590 = vunpack.c.l.b16 %v1386
      %v1591 = vunpack.c.h.b16 %v1386
      %v1592 = vunpack.c.l.b16 %v1387
      %v1593 = vunpack.c.h.b16 %v1387
      %v1594 = vunpack.c.l.b16 %v1388
      %v1595 = vunpack.c.h.b16 %v1388
      %v1596 = vunpack.c.l.b16 %v1389
      %v1597 = vunpack.c.h.b16 %v1389
      %v1598 = vunpack.c.l.b16 %v1390
      %v1599 = vunpack.c.h.b16 %v1390
      %v1600 = vunpack.c.l.b16 %v1391
      %v1601 = vunpack.c.h.b16 %v1391
      %v1602 = vunpack.c.l.b16 %v1392
      %v1603 = vunpack.c.h.b16 %v1392
      %v1604 = vunpack.c.l.b16 %v1393
      %v1605 = vunpack.c.h.b16 %v1393
      %v1606 = vunpack.c.l.b16 %v1394
      %v1607 = vunpack.c.h.b16 %v1394
      %v1608 = vunpack.c.l.b16 %v1395
      %v1609 = vunpack.c.h.b16 %v1395
      %v1610 = vunpack.c.l.b16 %v1396
      %v1611 = vunpack.c.h.b16 %v1396
      %v1612 = vunpack.c.l.b16 %v1397
      %v1613 = vunpack.c.h.b16 %v1397
      %v1614 = vunpack.c.l.b16 %v1398
      %v1615 = vunpack.c.h.b16 %v1398
      %v1616 = vunpack.c.l.b16 %v1399
      %v1617 = vunpack.c.h.b16 %v1399
      %v1618 = vunpack.c.l.b16 %v1400
      %v1619 = vunpack.c.h.b16 %v1400
      %v1620 = vunpack.c.l.b16 %v1401
      %v1621 = vunpack.c.h.b16 %v1401
      %v1622 = vunpack.c.l.b16 %v1402
      %v1623 = vunpack.c.h.b16 %v1402
      %v1624 = vpack.c.b16 %v1498, %v1496
      %v1625 = vpack.c.b16 %v1499, %v1497
      %v1626 = vpack.c.b16 %v1502, %v1500
      %v1627 = vpack.c.b16 %v1503, %v1501
      %v1628 = vpack.c.b16 %v1506, %v1504
      %v1629 = vpack.c.b16 %v1507, %v1505
      %v1630 = vpack.c.b16 %v1510, %v1508
      %v1631 = vpack.c.b16 %v1511, %v1509
      %v1632 = vpack.c.b16 %v1514, %v1512
      %v1633 = vpack.c.b16 %v1515, %v1513
      %v1634 = vpack.c.b16 %v1518, %v1516
      %v1635 = vpack.c.b16 %v1519, %v1517
      %v1636 = vpack.c.b16 %v1522, %v1520
      %v1637 = vpack.c.b16 %v1523, %v1521
      %v1638 = vpack.c.b16 %v1526, %v1524
      %v1639 = vpack.c.b16 %v1527, %v1525
      %v1640 = vpack.c.b16 %v1530, %v1528
      %v1641 = vpack.c.b16 %v1531, %v1529
      %v1642 = vpack.c.b16 %v1534, %v1532
      %v1643 = vpack.c.b16 %v1535, %v1533
      %v1644 = vpack.c.b16 %v1538, %v1536
      %v1645 = vpack.c.b16 %v1539, %v1537
      %v1646 = vpack.c.b16 %v1542, %v1540
      %v1647 = vpack.c.b16 %v1543, %v1541
      %v1648 = vpack.c.b16 %v1546, %v1544
      %v1649 = vpack.c.b16 %v1547, %v1545
      %v1650 = vpack.c.b16 %v1550, %v1548
      %v1651 = vpack.c.b16 %v1551, %v1549
      %v1652 = vpack.c.b16 %v1554, %v1552
      %v1653 = vpack.c.b16 %v1555, %v1553
      %v1654 = vpack.c.b16 %v1558, %v1556
      %v1655 = vpack.c.b16 %v1559, %v1557
      %v1656 = vpack.c.b16 %v1562, %v1560
      %v1657 = vpack.c.b16 %v1563, %v1561
      %v1658 = vpack.c.b16 %v1566, %v1564
      %v1659 = vpack.c.b16 %v1567, %v1565
      %v1660 = vpack.c.b16 %v1570, %v1568
      %v1661 = vpack.c.b16 %v1571, %v1569
      %v1662 = vpack.c.b16 %v1574, %v1572
      %v1663 = vpack.c.b16 %v1575, %v1573
      %v1664 = vpack.c.b16 %v1578, %v1576
      %v1665 = vpack.c.b16 %v1579, %v1577
      %v1666 = vpack.c.b16 %v1582, %v1580
      %v1667 = vpack.c.b16 %v1583, %v1581
      %v1668 = vpack.c.b16 %v1586, %v1584
      %v1669 = vpack.c.b16 %v1587, %v1585
      %v1670 = vpack.c.b16 %v1590, %v1588
      %v1671 = vpack.c.b16 %v1591, %v1589
      %v1672 = vpack.c.b16 %v1594, %v1592
      %v1673 = vpack.c.b16 %v1595, %v1593
      %v1674 = vpack.c.b16 %v1598, %v1596
      %v1675 = vpack.c.b16 %v1599, %v1597
      %v1676 = vpack.c.b16 %v1602, %v1600
      %v1677 = vpack.c.b16 %v1603, %v1601
      %v1678 = vpack.c.b16 %v1606, %v1604
      %v1679 = vpack.c.b16 %v1607, %v1605
      %v1680 = vpack.c.b16 %v1610, %v1608
      %v1681 = vpack.c.b16 %v1611, %v1609
      %v1682 = vpack.c.b16 %v1614, %v1612
      %v1683 = vpack.c.b16 %v1615, %v1613
      %v1684 = vpack.c.b16 %v1618, %v1616
      %v1685 = vpack.c.b16 %v1619, %v1617
      %v1686 = vpack.c.b16 %v1622, %v1620
      %v1687 = vpack.c.b16 %v1623, %v1621
      %1752 = vmatprep.subr.bf16.mxu0 %v1625
      %1753 = vmatpush1.bf16.msra.mxu0 %v1624
      %1754 = vmatprep.subr.bf16.mxu0 %v1627
      %1755 = vmatpush1.bf16.msra.mxu0 %v1626
      %1756 = vmatprep.subr.bf16.mxu0 %v1629
      %1757 = vmatpush1.bf16.msra.mxu0 %v1628
      %1758 = vmatprep.subr.bf16.mxu0 %v1631
      %1759 = vmatpush1.bf16.msra.mxu0 %v1630
      %1760 = vmatprep.subr.bf16.mxu0 %v1633
      %1761 = vmatpush1.bf16.msra.mxu0 %v1632
      %1762 = vmatprep.subr.bf16.mxu0 %v1635
      %1763 = vmatpush1.bf16.msra.mxu0 %v1634
      %1764 = vmatprep.subr.bf16.mxu0 %v1637
      %1765 = vmatpush1.bf16.msra.mxu0 %v1636
      %1766 = vmatprep.subr.bf16.mxu0 %v1639
      %1767 = vmatpush1.bf16.msra.mxu0 %v1638
      %1768 = vmatprep.subr.bf16.mxu0 %v1641
      %1769 = vmatpush1.bf16.msra.mxu0 %v1640
      %1770 = vmatprep.subr.bf16.mxu0 %v1643
      %1771 = vmatpush1.bf16.msra.mxu0 %v1642
      %1772 = vmatprep.subr.bf16.mxu0 %v1645
      %1773 = vmatpush1.bf16.msra.mxu0 %v1644
      %1774 = vmatprep.subr.bf16.mxu0 %v1647
      %1775 = vmatpush1.bf16.msra.mxu0 %v1646
      %1776 = vmatprep.subr.bf16.mxu0 %v1649
      %1777 = vmatpush1.bf16.msra.mxu0 %v1648
      %1778 = vmatprep.subr.bf16.mxu0 %v1651
      %1779 = vmatpush1.bf16.msra.mxu0 %v1650
      %1780 = vmatprep.subr.bf16.mxu0 %v1653
      %1781 = vmatpush1.bf16.msra.mxu0 %v1652
      %1782 = vmatprep.subr.bf16.mxu0 %v1655
      %1783 = vmatpush1.bf16.msra.mxu0 %v1654
      %1784 = vmatprep.mubr.bf16.mxu0 %v1425
      %1785 = vmatmul.mubr.bf16.gmra.mrb[0].mxu0 %v1418
      %v1786 = vpop.f32.mrb[0].mxu0
      %v1787 = vadd.f32 0.0, %v1786
      %v1788 = vpop.f32.mrb[0].mxu0
      %v1789 = vadd.f32 0.0, %v1788
      %v1790 = vpop.f32.mrb[0].mxu0
      %v1791 = vpop.f32.mrb[0].mxu0
      %1792 = vdwg.mxu0
      %1793 = vmatprep.subr.bf16.mxu0 %v1657
      %1794 = vmatpush1.bf16.msra.mxu0 %v1656
      %1795 = vmatprep.subr.bf16.mxu0 %v1659
      %1796 = vmatpush1.bf16.msra.mxu0 %v1658
      %1797 = vmatprep.subr.bf16.mxu0 %v1661
      %1798 = vmatpush1.bf16.msra.mxu0 %v1660
      %1799 = vmatprep.subr.bf16.mxu0 %v1663
      %1800 = vmatpush1.bf16.msra.mxu0 %v1662
      %1801 = vmatprep.subr.bf16.mxu0 %v1665
      %1802 = vmatpush1.bf16.msra.mxu0 %v1664
      %1803 = vmatprep.subr.bf16.mxu0 %v1667
      %1804 = vmatpush1.bf16.msra.mxu0 %v1666
      %1805 = vmatprep.subr.bf16.mxu0 %v1669
      %1806 = vmatpush1.bf16.msra.mxu0 %v1668
      %1807 = vmatprep.subr.bf16.mxu0 %v1671
      %1808 = vmatpush1.bf16.msra.mxu0 %v1670
      %1809 = vmatprep.subr.bf16.mxu0 %v1673
      %1810 = vmatpush1.bf16.msra.mxu0 %v1672
      %1811 = vmatprep.subr.bf16.mxu0 %v1675
      %1812 = vmatpush1.bf16.msra.mxu0 %v1674
      %1813 = vmatprep.subr.bf16.mxu0 %v1677
      %1814 = vmatpush1.bf16.msra.mxu0 %v1676
      %1815 = vmatprep.subr.bf16.mxu0 %v1679
      %1816 = vmatpush1.bf16.msra.mxu0 %v1678
      %1817 = vmatprep.subr.bf16.mxu0 %v1681
      %1818 = vmatpush1.bf16.msra.mxu0 %v1680
      %1819 = vmatprep.subr.bf16.mxu0 %v1683
      %1820 = vmatpush1.bf16.msra.mxu0 %v1682
      %1821 = vmatprep.subr.bf16.mxu0 %v1685
      %1822 = vmatpush1.bf16.msra.mxu0 %v1684
      %1823 = vmatprep.subr.bf16.mxu0 %v1687
      %1824 = vmatpush1.bf16.msra.mxu0 %v1686
      %1825 = vmatprep.mubr.bf16.mxu0 %v1427
      %1826 = vmatmul.mubr.bf16.gmra.mrb[0].mxu0 %v1426
      %v1827 = vpop.f32.mrb[0].mxu0
      %v1828 = vadd.f32 %v1787, %v1827
      %v1829 = vpop.f32.mrb[0].mxu0
      %v1830 = vadd.f32 %v1789, %v1829
      %v1831 = vpop.f32.mrb[0].mxu0
      %v1832 = vpop.f32.mrb[0].mxu0
      %1833 = vdwg.mxu0
      %v1834 = vadd.f32 %v1313, %v1828
      %v1835 = vadd.f32 %v1315, %v1830
      %v1836 = vld [vmem:[%s1319] sm:$0xff]
      %v1837 = vld [vmem:[%s1319 + $0x8] sm:$0xff]
      %v1841 = vunpack.c.l.s4 1966171168
      %v1842 = vunpack.c.0.s8 %v1841
      %v1843 = vlaneseq
      %v1844 = vshrl.u32 %v1843, 7
      %v1845 = vsub.s32 %v1842, %v1844
      %v1846 = vrot.slane %v1836, %v1845
      %v1847 = vcombine.high %v1846, %v1846
      %v1849 = vunpack.c.l.s4 1966171168
      %v1850 = vunpack.c.0.s8 %v1849
      %v1851 = vlaneseq
      %v1852 = vshrl.u32 %v1851, 7
      %v1853 = vsub.s32 %v1850, %v1852
      %v1854 = vrot.slane %v1837, %v1853
      %v1855 = vcombine.high %v1854, %v1854
      %v1857 = vshrl.u32 %v1846, 16
      %v1859 = vrot.slane %v1857, 7
      %v1860 = vrot.slane %v1859, 1
      %v1862 = vshll.u32 %v1847, 16
      %v1864 = vsel %vm373, %v1860, %v1862
      %v1866 = vshrl.u32 %v1854, 16
      %v1868 = vrot.slane %v1866, 7
      %v1869 = vrot.slane %v1868, 1
      %v1871 = vshll.u32 %v1855, 16
      %v1873 = vsel %vm373, %v1869, %v1871
      %s1874 = scalar_lea.vmem %s1, 1536
      %v1875 = vld [vmem:[%s1874] sm:$0xff]
      %v1876 = vld [vmem:[%s1874 + $0x8] sm:$0xff]
      %v1877 = vld [vmem:[%s1874 + $0x10] sm:$0xff]
      %v1878 = vld [vmem:[%s1874 + $0x18] sm:$0xff]
      %v1879 = vld [vmem:[%s1874 + $0x20] sm:$0xff]
      %v1880 = vld [vmem:[%s1874 + $0x28] sm:$0xff]
      %v1881 = vld [vmem:[%s1874 + $0x30] sm:$0xff]
      %v1882 = vld [vmem:[%s1874 + $0x38] sm:$0xff]
      %v1883 = vld [vmem:[%s1874 + $0x40] sm:$0xff]
      %v1884 = vld [vmem:[%s1874 + $0x48] sm:$0xff]
      %v1885 = vld [vmem:[%s1874 + $0x50] sm:$0xff]
      %v1886 = vld [vmem:[%s1874 + $0x58] sm:$0xff]
      %v1887 = vld [vmem:[%s1874 + $0x60] sm:$0xff]
      %v1888 = vld [vmem:[%s1874 + $0x68] sm:$0xff]
      %v1889 = vld [vmem:[%s1874 + $0x70] sm:$0xff]
      %v1890 = vld [vmem:[%s1874 + $0x78] sm:$0xff]
      %v1891 = vld [vmem:[%s1874 + $0x80] sm:$0xff]
      %v1892 = vld [vmem:[%s1874 + $0x88] sm:$0xff]
      %v1893 = vld [vmem:[%s1874 + $0x90] sm:$0xff]
      %v1894 = vld [vmem:[%s1874 + $0x98] sm:$0xff]
      %v1895 = vld [vmem:[%s1874 + $0xa0] sm:$0xff]
      %v1896 = vld [vmem:[%s1874 + $0xa8] sm:$0xff]
      %v1897 = vld [vmem:[%s1874 + $0xb0] sm:$0xff]
      %v1898 = vld [vmem:[%s1874 + $0xb8] sm:$0xff]
      %v1899 = vld [vmem:[%s1874 + $0xc0] sm:$0xff]
      %v1900 = vld [vmem:[%s1874 + $0xc8] sm:$0xff]
      %v1901 = vld [vmem:[%s1874 + $0xd0] sm:$0xff]
      %v1902 = vld [vmem:[%s1874 + $0xd8] sm:$0xff]
      %v1903 = vld [vmem:[%s1874 + $0xe0] sm:$0xff]
      %v1904 = vld [vmem:[%s1874 + $0xe8] sm:$0xff]
      %v1905 = vld [vmem:[%s1874 + $0xf0] sm:$0xff]
      %v1906 = vld [vmem:[%s1874 + $0xf8] sm:$0xff]
      %v1907 = vld [vmem:[%s1874 + $0x100] sm:$0xff]
      %v1908 = vld [vmem:[%s1874 + $0x108] sm:$0xff]
      %v1909 = vld [vmem:[%s1874 + $0x110] sm:$0xff]
      %v1910 = vld [vmem:[%s1874 + $0x118] sm:$0xff]
      %v1911 = vld [vmem:[%s1874 + $0x120] sm:$0xff]
      %v1912 = vld [vmem:[%s1874 + $0x128] sm:$0xff]
      %v1913 = vld [vmem:[%s1874 + $0x130] sm:$0xff]
      %v1914 = vld [vmem:[%s1874 + $0x138] sm:$0xff]
      %v1915 = vld [vmem:[%s1874 + $0x140] sm:$0xff]
      %v1916 = vld [vmem:[%s1874 + $0x148] sm:$0xff]
      %v1917 = vld [vmem:[%s1874 + $0x150] sm:$0xff]
      %v1918 = vld [vmem:[%s1874 + $0x158] sm:$0xff]
      %v1919 = vld [vmem:[%s1874 + $0x160] sm:$0xff]
      %v1920 = vld [vmem:[%s1874 + $0x168] sm:$0xff]
      %v1921 = vld [vmem:[%s1874 + $0x170] sm:$0xff]
      %v1922 = vld [vmem:[%s1874 + $0x178] sm:$0xff]
      %v1923 = vld [vmem:[%s1874 + $0x180] sm:$0xff]
      %v1924 = vld [vmem:[%s1874 + $0x188] sm:$0xff]
      %v1925 = vld [vmem:[%s1874 + $0x190] sm:$0xff]
      %v1926 = vld [vmem:[%s1874 + $0x198] sm:$0xff]
      %v1927 = vld [vmem:[%s1874 + $0x1a0] sm:$0xff]
      %v1928 = vld [vmem:[%s1874 + $0x1a8] sm:$0xff]
      %v1929 = vld [vmem:[%s1874 + $0x1b0] sm:$0xff]
      %v1930 = vld [vmem:[%s1874 + $0x1b8] sm:$0xff]
      %v1931 = vld [vmem:[%s1874 + $0x1c0] sm:$0xff]
      %v1932 = vld [vmem:[%s1874 + $0x1c8] sm:$0xff]
      %v1933 = vld [vmem:[%s1874 + $0x1d0] sm:$0xff]
      %v1934 = vld [vmem:[%s1874 + $0x1d8] sm:$0xff]
      %v1935 = vld [vmem:[%s1874 + $0x1e0] sm:$0xff]
      %v1936 = vld [vmem:[%s1874 + $0x1e8] sm:$0xff]
      %v1937 = vld [vmem:[%s1874 + $0x1f0] sm:$0xff]
      %v1938 = vld [vmem:[%s1874 + $0x1f8] sm:$0xff]
      %v1939 = vcombine.low %v1864, %v1873
      %v1941 = vunpack.c.l.s4 1966171168
      %v1942 = vunpack.c.0.s8 %v1941
      %v1943 = vlaneseq
      %v1944 = vshrl.u32 %v1943, 7
      %v1945 = vsub.s32 %v1942, %v1944
      %v1946 = vrot.slane %v1939, %v1945
      %v1947 = vcombine.high %v1946, %v1946
      %v1949 = vunpack.c.l.s4 1966171168
      %v1950 = vunpack.c.0.s8 %v1949
      %v1951 = vlaneseq
      %v1952 = vshrl.u32 %v1951, 7
      %v1953 = vsub.s32 %v1950, %v1952
      %v1954 = vrot.slane %v1946, %v1953
      %v1956 = vunpack.c.l.s4 1966171168
      %v1957 = vunpack.c.0.s8 %v1956
      %v1958 = vlaneseq
      %v1959 = vshrl.u32 %v1958, 7
      %v1960 = vsub.s32 %v1957, %v1959
      %v1961 = vrot.slane %v1947, %v1960
      %v1962 = vcombine.high %v1954, %v1954
      %v1963 = vcombine.high %v1961, %v1961
      %v2032 = vunpack.c.l.b16 %v1875
      %v2033 = vunpack.c.h.b16 %v1875
      %v2034 = vunpack.c.l.b16 %v1876
      %v2035 = vunpack.c.h.b16 %v1876
      %v2036 = vunpack.c.l.b16 %v1877
      %v2037 = vunpack.c.h.b16 %v1877
      %v2038 = vunpack.c.l.b16 %v1878
      %v2039 = vunpack.c.h.b16 %v1878
      %v2040 = vunpack.c.l.b16 %v1879
      %v2041 = vunpack.c.h.b16 %v1879
      %v2042 = vunpack.c.l.b16 %v1880
      %v2043 = vunpack.c.h.b16 %v1880
      %v2044 = vunpack.c.l.b16 %v1881
      %v2045 = vunpack.c.h.b16 %v1881
      %v2046 = vunpack.c.l.b16 %v1882
      %v2047 = vunpack.c.h.b16 %v1882
      %v2048 = vunpack.c.l.b16 %v1883
      %v2049 = vunpack.c.h.b16 %v1883
      %v2050 = vunpack.c.l.b16 %v1884
      %v2051 = vunpack.c.h.b16 %v1884
      %v2052 = vunpack.c.l.b16 %v1885
      %v2053 = vunpack.c.h.b16 %v1885
      %v2054 = vunpack.c.l.b16 %v1886
      %v2055 = vunpack.c.h.b16 %v1886
      %v2056 = vunpack.c.l.b16 %v1887
      %v2057 = vunpack.c.h.b16 %v1887
      %v2058 = vunpack.c.l.b16 %v1888
      %v2059 = vunpack.c.h.b16 %v1888
      %v2060 = vunpack.c.l.b16 %v1889
      %v2061 = vunpack.c.h.b16 %v1889
      %v2062 = vunpack.c.l.b16 %v1890
      %v2063 = vunpack.c.h.b16 %v1890
      %v2064 = vunpack.c.l.b16 %v1891
      %v2065 = vunpack.c.h.b16 %v1891
      %v2066 = vunpack.c.l.b16 %v1892
      %v2067 = vunpack.c.h.b16 %v1892
      %v2068 = vunpack.c.l.b16 %v1893
      %v2069 = vunpack.c.h.b16 %v1893
      %v2070 = vunpack.c.l.b16 %v1894
      %v2071 = vunpack.c.h.b16 %v1894
      %v2072 = vunpack.c.l.b16 %v1895
      %v2073 = vunpack.c.h.b16 %v1895
      %v2074 = vunpack.c.l.b16 %v1896
      %v2075 = vunpack.c.h.b16 %v1896
      %v2076 = vunpack.c.l.b16 %v1897
      %v2077 = vunpack.c.h.b16 %v1897
      %v2078 = vunpack.c.l.b16 %v1898
      %v2079 = vunpack.c.h.b16 %v1898
      %v2080 = vunpack.c.l.b16 %v1899
      %v2081 = vunpack.c.h.b16 %v1899
      %v2082 = vunpack.c.l.b16 %v1900
      %v2083 = vunpack.c.h.b16 %v1900
      %v2084 = vunpack.c.l.b16 %v1901
      %v2085 = vunpack.c.h.b16 %v1901
      %v2086 = vunpack.c.l.b16 %v1902
      %v2087 = vunpack.c.h.b16 %v1902
      %v2088 = vunpack.c.l.b16 %v1903
      %v2089 = vunpack.c.h.b16 %v1903
      %v2090 = vunpack.c.l.b16 %v1904
      %v2091 = vunpack.c.h.b16 %v1904
      %v2092 = vunpack.c.l.b16 %v1905
      %v2093 = vunpack.c.h.b16 %v1905
      %v2094 = vunpack.c.l.b16 %v1906
      %v2095 = vunpack.c.h.b16 %v1906
      %v2096 = vunpack.c.l.b16 %v1907
      %v2097 = vunpack.c.h.b16 %v1907
      %v2098 = vunpack.c.l.b16 %v1908
      %v2099 = vunpack.c.h.b16 %v1908
      %v2100 = vunpack.c.l.b16 %v1909
      %v2101 = vunpack.c.h.b16 %v1909
      %v2102 = vunpack.c.l.b16 %v1910
      %v2103 = vunpack.c.h.b16 %v1910
      %v2104 = vunpack.c.l.b16 %v1911
      %v2105 = vunpack.c.h.b16 %v1911
      %v2106 = vunpack.c.l.b16 %v1912
      %v2107 = vunpack.c.h.b16 %v1912
      %v2108 = vunpack.c.l.b16 %v1913
      %v2109 = vunpack.c.h.b16 %v1913
      %v2110 = vunpack.c.l.b16 %v1914
      %v2111 = vunpack.c.h.b16 %v1914
      %v2112 = vunpack.c.l.b16 %v1915
      %v2113 = vunpack.c.h.b16 %v1915
      %v2114 = vunpack.c.l.b16 %v1916
      %v2115 = vunpack.c.h.b16 %v1916
      %v2116 = vunpack.c.l.b16 %v1917
      %v2117 = vunpack.c.h.b16 %v1917
      %v2118 = vunpack.c.l.b16 %v1918
      %v2119 = vunpack.c.h.b16 %v1918
      %v2120 = vunpack.c.l.b16 %v1919
      %v2121 = vunpack.c.h.b16 %v1919
      %v2122 = vunpack.c.l.b16 %v1920
      %v2123 = vunpack.c.h.b16 %v1920
      %v2124 = vunpack.c.l.b16 %v1921
      %v2125 = vunpack.c.h.b16 %v1921
      %v2126 = vunpack.c.l.b16 %v1922
      %v2127 = vunpack.c.h.b16 %v1922
      %v2128 = vunpack.c.l.b16 %v1923
      %v2129 = vunpack.c.h.b16 %v1923
      %v2130 = vunpack.c.l.b16 %v1924
      %v2131 = vunpack.c.h.b16 %v1924
      %v2132 = vunpack.c.l.b16 %v1925
      %v2133 = vunpack.c.h.b16 %v1925
      %v2134 = vunpack.c.l.b16 %v1926
      %v2135 = vunpack.c.h.b16 %v1926
      %v2136 = vunpack.c.l.b16 %v1927
      %v2137 = vunpack.c.h.b16 %v1927
      %v2138 = vunpack.c.l.b16 %v1928
      %v2139 = vunpack.c.h.b16 %v1928
      %v2140 = vunpack.c.l.b16 %v1929
      %v2141 = vunpack.c.h.b16 %v1929
      %v2142 = vunpack.c.l.b16 %v1930
      %v2143 = vunpack.c.h.b16 %v1930
      %v2144 = vunpack.c.l.b16 %v1931
      %v2145 = vunpack.c.h.b16 %v1931
      %v2146 = vunpack.c.l.b16 %v1932
      %v2147 = vunpack.c.h.b16 %v1932
      %v2148 = vunpack.c.l.b16 %v1933
      %v2149 = vunpack.c.h.b16 %v1933
      %v2150 = vunpack.c.l.b16 %v1934
      %v2151 = vunpack.c.h.b16 %v1934
      %v2152 = vunpack.c.l.b16 %v1935
      %v2153 = vunpack.c.h.b16 %v1935
      %v2154 = vunpack.c.l.b16 %v1936
      %v2155 = vunpack.c.h.b16 %v1936
      %v2156 = vunpack.c.l.b16 %v1937
      %v2157 = vunpack.c.h.b16 %v1937
      %v2158 = vunpack.c.l.b16 %v1938
      %v2159 = vunpack.c.h.b16 %v1938
      %v2160 = vpack.c.b16 %v2034, %v2032
      %v2161 = vpack.c.b16 %v2035, %v2033
      %v2162 = vpack.c.b16 %v2038, %v2036
      %v2163 = vpack.c.b16 %v2039, %v2037
      %v2164 = vpack.c.b16 %v2042, %v2040
      %v2165 = vpack.c.b16 %v2043, %v2041
      %v2166 = vpack.c.b16 %v2046, %v2044
      %v2167 = vpack.c.b16 %v2047, %v2045
      %v2168 = vpack.c.b16 %v2050, %v2048
      %v2169 = vpack.c.b16 %v2051, %v2049
      %v2170 = vpack.c.b16 %v2054, %v2052
      %v2171 = vpack.c.b16 %v2055, %v2053
      %v2172 = vpack.c.b16 %v2058, %v2056
      %v2173 = vpack.c.b16 %v2059, %v2057
      %v2174 = vpack.c.b16 %v2062, %v2060
      %v2175 = vpack.c.b16 %v2063, %v2061
      %v2176 = vpack.c.b16 %v2066, %v2064
      %v2177 = vpack.c.b16 %v2067, %v2065
      %v2178 = vpack.c.b16 %v2070, %v2068
      %v2179 = vpack.c.b16 %v2071, %v2069
      %v2180 = vpack.c.b16 %v2074, %v2072
      %v2181 = vpack.c.b16 %v2075, %v2073
      %v2182 = vpack.c.b16 %v2078, %v2076
      %v2183 = vpack.c.b16 %v2079, %v2077
      %v2184 = vpack.c.b16 %v2082, %v2080
      %v2185 = vpack.c.b16 %v2083, %v2081
      %v2186 = vpack.c.b16 %v2086, %v2084
      %v2187 = vpack.c.b16 %v2087, %v2085
      %v2188 = vpack.c.b16 %v2090, %v2088
      %v2189 = vpack.c.b16 %v2091, %v2089
      %v2190 = vpack.c.b16 %v2094, %v2092
      %v2191 = vpack.c.b16 %v2095, %v2093
      %v2192 = vpack.c.b16 %v2098, %v2096
      %v2193 = vpack.c.b16 %v2099, %v2097
      %v2194 = vpack.c.b16 %v2102, %v2100
      %v2195 = vpack.c.b16 %v2103, %v2101
      %v2196 = vpack.c.b16 %v2106, %v2104
      %v2197 = vpack.c.b16 %v2107, %v2105
      %v2198 = vpack.c.b16 %v2110, %v2108
      %v2199 = vpack.c.b16 %v2111, %v2109
      %v2200 = vpack.c.b16 %v2114, %v2112
      %v2201 = vpack.c.b16 %v2115, %v2113
      %v2202 = vpack.c.b16 %v2118, %v2116
      %v2203 = vpack.c.b16 %v2119, %v2117
      %v2204 = vpack.c.b16 %v2122, %v2120
      %v2205 = vpack.c.b16 %v2123, %v2121
      %v2206 = vpack.c.b16 %v2126, %v2124
      %v2207 = vpack.c.b16 %v2127, %v2125
      %v2208 = vpack.c.b16 %v2130, %v2128
      %v2209 = vpack.c.b16 %v2131, %v2129
      %v2210 = vpack.c.b16 %v2134, %v2132
      %v2211 = vpack.c.b16 %v2135, %v2133
      %v2212 = vpack.c.b16 %v2138, %v2136
      %v2213 = vpack.c.b16 %v2139, %v2137
      %v2214 = vpack.c.b16 %v2142, %v2140
      %v2215 = vpack.c.b16 %v2143, %v2141
      %v2216 = vpack.c.b16 %v2146, %v2144
      %v2217 = vpack.c.b16 %v2147, %v2145
      %v2218 = vpack.c.b16 %v2150, %v2148
      %v2219 = vpack.c.b16 %v2151, %v2149
      %v2220 = vpack.c.b16 %v2154, %v2152
      %v2221 = vpack.c.b16 %v2155, %v2153
      %v2222 = vpack.c.b16 %v2158, %v2156
      %v2223 = vpack.c.b16 %v2159, %v2157
      %2288 = vmatprep.subr.bf16.mxu0 %v2161
      %2289 = vmatpush1.bf16.msra.mxu0 %v2160
      %2290 = vmatprep.subr.bf16.mxu0 %v2163
      %2291 = vmatpush1.bf16.msra.mxu0 %v2162
      %2292 = vmatprep.subr.bf16.mxu0 %v2165
      %2293 = vmatpush1.bf16.msra.mxu0 %v2164
      %2294 = vmatprep.subr.bf16.mxu0 %v2167
      %2295 = vmatpush1.bf16.msra.mxu0 %v2166
      %2296 = vmatprep.subr.bf16.mxu0 %v2169
      %2297 = vmatpush1.bf16.msra.mxu0 %v2168
      %2298 = vmatprep.subr.bf16.mxu0 %v2171
      %2299 = vmatpush1.bf16.msra.mxu0 %v2170
      %2300 = vmatprep.subr.bf16.mxu0 %v2173
      %2301 = vmatpush1.bf16.msra.mxu0 %v2172
      %2302 = vmatprep.subr.bf16.mxu0 %v2175
      %2303 = vmatpush1.bf16.msra.mxu0 %v2174
      %2304 = vmatprep.subr.bf16.mxu0 %v2177
      %2305 = vmatpush1.bf16.msra.mxu0 %v2176
      %2306 = vmatprep.subr.bf16.mxu0 %v2179
      %2307 = vmatpush1.bf16.msra.mxu0 %v2178
      %2308 = vmatprep.subr.bf16.mxu0 %v2181
      %2309 = vmatpush1.bf16.msra.mxu0 %v2180
      %2310 = vmatprep.subr.bf16.mxu0 %v2183
      %2311 = vmatpush1.bf16.msra.mxu0 %v2182
      %2312 = vmatprep.subr.bf16.mxu0 %v2185
      %2313 = vmatpush1.bf16.msra.mxu0 %v2184
      %2314 = vmatprep.subr.bf16.mxu0 %v2187
      %2315 = vmatpush1.bf16.msra.mxu0 %v2186
      %2316 = vmatprep.subr.bf16.mxu0 %v2189
      %2317 = vmatpush1.bf16.msra.mxu0 %v2188
      %2318 = vmatprep.subr.bf16.mxu0 %v2191
      %2319 = vmatpush1.bf16.msra.mxu0 %v2190
      %2320 = vmatprep.mubr.bf16.mxu0 %v1961
      %2321 = vmatmul.mubr.bf16.gmra.mrb[0].mxu0 %v1954
      %v2322 = vpop.f32.mrb[0].mxu0
      %v2323 = vadd.f32 0.0, %v2322
      %v2324 = vpop.f32.mrb[0].mxu0
      %v2325 = vadd.f32 0.0, %v2324
      %v2326 = vpop.f32.mrb[0].mxu0
      %v2327 = vpop.f32.mrb[0].mxu0
      %2328 = vdwg.mxu0
      %2329 = vmatprep.subr.bf16.mxu0 %v2193
      %2330 = vmatpush1.bf16.msra.mxu0 %v2192
      %2331 = vmatprep.subr.bf16.mxu0 %v2195
      %2332 = vmatpush1.bf16.msra.mxu0 %v2194
      %2333 = vmatprep.subr.bf16.mxu0 %v2197
      %2334 = vmatpush1.bf16.msra.mxu0 %v2196
      %2335 = vmatprep.subr.bf16.mxu0 %v2199
      %2336 = vmatpush1.bf16.msra.mxu0 %v2198
      %2337 = vmatprep.subr.bf16.mxu0 %v2201
      %2338 = vmatpush1.bf16.msra.mxu0 %v2200
      %2339 = vmatprep.subr.bf16.mxu0 %v2203
      %2340 = vmatpush1.bf16.msra.mxu0 %v2202
      %2341 = vmatprep.subr.bf16.mxu0 %v2205
      %2342 = vmatpush1.bf16.msra.mxu0 %v2204
      %2343 = vmatprep.subr.bf16.mxu0 %v2207
      %2344 = vmatpush1.bf16.msra.mxu0 %v2206
      %2345 = vmatprep.subr.bf16.mxu0 %v2209
      %2346 = vmatpush1.bf16.msra.mxu0 %v2208
      %2347 = vmatprep.subr.bf16.mxu0 %v2211
      %2348 = vmatpush1.bf16.msra.mxu0 %v2210
      %2349 = vmatprep.subr.bf16.mxu0 %v2213
      %2350 = vmatpush1.bf16.msra.mxu0 %v2212
      %2351 = vmatprep.subr.bf16.mxu0 %v2215
      %2352 = vmatpush1.bf16.msra.mxu0 %v2214
      %2353 = vmatprep.subr.bf16.mxu0 %v2217
      %2354 = vmatpush1.bf16.msra.mxu0 %v2216
      %2355 = vmatprep.subr.bf16.mxu0 %v2219
      %2356 = vmatpush1.bf16.msra.mxu0 %v2218
      %2357 = vmatprep.subr.bf16.mxu0 %v2221
      %2358 = vmatpush1.bf16.msra.mxu0 %v2220
      %2359 = vmatprep.subr.bf16.mxu0 %v2223
      %2360 = vmatpush1.bf16.msra.mxu0 %v2222
      %2361 = vmatprep.mubr.bf16.mxu0 %v1963
      %2362 = vmatmul.mubr.bf16.gmra.mrb[0].mxu0 %v1962
      %v2363 = vpop.f32.mrb[0].mxu0
      %v2364 = vadd.f32 %v2323, %v2363
      %v2365 = vpop.f32.mrb[0].mxu0
      %v2366 = vadd.f32 %v2325, %v2365
      %v2367 = vpop.f32.mrb[0].mxu0
      %v2368 = vpop.f32.mrb[0].mxu0
      %2369 = vdwg.mxu0
      %v2370 = vadd.f32 %v1834, %v2364
      %v2371 = vadd.f32 %v1835, %v2366
      %v2372 = vld [vmem:[%s2] sm:$0x3]
      %v2374 = vlaneseq
      %v2375 = vshrl.u32 %v2374, 7
      %v2376 = vsub.s32 0, %v2375
      %v2377 = vrot.slane %v2372, %v2376
      %v2378 = vlaneseq
      %v2379 = vshrl.u32 %v2378, 7
      %v2380 = vsub.s32 1, %v2379
      %v2381 = vrot.slane %v2372, %v2380
      %v2384 = vadd.f32 %v2370, %v2377
      %v2385 = vadd.f32 %v2371, %v2381
      %vm2386 = vcmask 1043456
      %v2387 = vsel %vm2386, %v2384, 0.0
      %v2388 = vrot.slane %v2387, 4
      %v2389 = vadd.f32 %v2387, %v2388
      %v2390 = vrot.slane %v2389, 2
      %v2391 = vadd.f32 %v2389, %v2390
      %v2392 = vrot.slane %v2391, 1
      %v2393 = vadd.f32 %v2391, %v2392
      %v2394 = vsel %vm2386, %v2385, 0.0
      %v2395 = vrot.slane %v2394, 4
      %v2396 = vadd.f32 %v2394, %v2395
      %v2397 = vrot.slane %v2396, 2
      %v2398 = vadd.f32 %v2396, %v2397
      %v2399 = vrot.slane %v2398, 1
      %v2400 = vadd.f32 %v2398, %v2399
      %v2401 = vmul.f32 %v2384, %v2384
      %v2402 = vmul.f32 %v2385, %v2385
      %v2403 = vsel %vm2386, %v2401, 0.0
      %v2404 = vrot.slane %v2403, 4
      %v2405 = vadd.f32 %v2403, %v2404
      %v2406 = vrot.slane %v2405, 2
      %v2407 = vadd.f32 %v2405, %v2406
      %v2408 = vrot.slane %v2407, 1
      %v2409 = vadd.f32 %v2407, %v2408
      %v2410 = vsel %vm2386, %v2402, 0.0
      %v2411 = vrot.slane %v2410, 4
      %v2412 = vadd.f32 %v2410, %v2411
      %v2413 = vrot.slane %v2412, 2
      %v2414 = vadd.f32 %v2412, %v2413
      %v2415 = vrot.slane %v2414, 1
      %v2416 = vadd.f32 %v2414, %v2415
      %vm2417 = vcmask 1040384
      %v2418 = vsel %vm2417, %v2393, %v2409
      %v2419 = vsel %vm2417, %v2400, %v2416
      %v2422 = vcombine.low %v2418, %v2419
      %v2424 = vunpack.c.l.s4 1983009808
      %v2425 = vunpack.c.0.s8 %v2424
      %v2426 = vlaneseq
      %v2427 = vshrl.u32 %v2426, 7
      %v2428 = vsub.s32 %v2425, %v2427
      %v2429 = vrot.slane %v2422, %v2428
      %2431 = vst [vmem:[%s256] sm:$0xf] %v2429
      %v2432 = vpack.c.bf16 %v2384, %v2384
      %v2433 = vpack.c.bf16 %v2385, %v2385
      %v2436 = vcombine.low %v2432, %v2433
      %v2438 = vunpack.c.l.s4 1983009808
      %v2439 = vunpack.c.0.s8 %v2438
      %v2440 = vlaneseq
      %v2441 = vshrl.u32 %v2440, 7
      %v2442 = vsub.s32 %v2439, %v2441
      %v2443 = vrot.slane %v2436, %v2442
      %2445 = vst [vmem:[%s247] sm:$0xf] %v2443
      %p2446 = scmp.lt.s32.totalorder %s20, 1
      %s2447 = scalar_select %p2446, %s20, 1
      %p2448 = scmp.lt.s32.totalorder %s21, 0
      %s2449 = scalar_select %p2448, %s21, 0
      %s2450 = smul.addr %s2449, 2
      %s2451 = smul.addr %s2447, 2
      %s2452 = sadd.s32 %s2450, %s2451
      %s2453 = smul.addr %s2452, 2
      %s2454 = scalar_lea.vmem %s3, %s2453
      %p2455 = scmp.lt.s32.totalorder %s20, 1
      %s2456 = scalar_select %p2455, %s20, 1
      %p2457 = scmp.lt.s32.totalorder %s21, 0
      %s2458 = scalar_select %p2457, %s21, 0
      %s2459 = smul.addr %s2458, 2
      %s2460 = smul.addr %s2456, 2
      %s2461 = sadd.s32 %s2459, %s2460
      %s2462 = smul.addr %s2461, 2
      %s2463 = scalar_lea.vmem %s4, %s2462
      // Predicated region
      $region33: #{pathgan_forward.7} parent=31 // pred_check
        %p2464 = pneg %p118
      $region34: #{pathgan_forward.7} parent=31 // pred_check_branch
        %2466 = sbr.rel (%p2464) target = $region36
      $region35: #{pathgan_forward.7} parent=31 // pred_region
        _
      $region36: #{pathgan_forward.7} parent=31 // pred_fallthru
        _
      // Predicated region
      $region37: #{pathgan_forward.7} parent=31 // pred_check
        %p2467 = pneg %p146
      $region38: #{pathgan_forward.7} parent=31 // pred_check_branch
        %2469 = sbr.rel (%p2467) target = $region40
      $region39: #{pathgan_forward.7} parent=31 // pred_region
        _
      $region40: #{pathgan_forward.7} parent=31 // pred_fallthru
        _
    $region32: #{pathgan_forward.7} parent=5 // pred_fallthru
      _
    %p2470 = scmp.le.s32.totalorder 2, %s11
    // Predicated region
    $region41: #{pathgan_forward.7} parent=5 // pred_check
      %p2471 = pneg %p2470
    $region42: #{pathgan_forward.7} parent=5 // pred_check_branch
      %2473 = sbr.rel (%p2471) target = $region44
    $region43: #{pathgan_forward.7} parent=5 // pred_region
      %s2474 = ssub.s32 %s11, 2
      // Predicated region
      $region45: #{pathgan_forward.7} parent=43 // pred_check
        %p2475 = pneg %p124
      $region46: #{pathgan_forward.7} parent=43 // pred_check_branch
        %2477 = sbr.rel (%p2475) target = $region48
      $region47: #{pathgan_forward.7} parent=43 // pred_region
        %p2478 = scmp.lt.s32.totalorder %s22, 1
        %s2479 = scalar_select %p2478, %s22, 1
        %p2480 = scmp.lt.s32.totalorder %s23, 0
        %s2481 = scalar_select %p2480, %s23, 0
        %s2482 = smul.addr %s2481, 2
        %s2483 = smul.addr %s2479, 2
        %s2484 = sadd.s32 %s2482, %s2483
        %s2485 = smul.addr %s2484, 2
        %s2486 = scalar_lea.vmem %s3, %s2485
      $region48: #{pathgan_forward.7} parent=43 // pred_fallthru
        _
      // Predicated region
      $region49: #{pathgan_forward.7} parent=43 // pred_check
        %p2487 = pneg %p152
      $region50: #{pathgan_forward.7} parent=43 // pred_check_branch
        %2489 = sbr.rel (%p2487) target = $region52
      $region51: #{pathgan_forward.7} parent=43 // pred_region
        %p2490 = scmp.lt.s32.totalorder %s22, 1
        %s2491 = scalar_select %p2490, %s22, 1
        %p2492 = scmp.lt.s32.totalorder %s23, 0
        %s2493 = scalar_select %p2492, %s23, 0
        %s2494 = smul.addr %s2493, 2
        %s2495 = smul.addr %s2491, 2
        %s2496 = sadd.s32 %s2494, %s2495
        %s2497 = smul.addr %s2496, 2
        %s2498 = scalar_lea.vmem %s4, %s2497
      $region52: #{pathgan_forward.7} parent=43 // pred_fallthru
        _
    $region44: #{pathgan_forward.7} parent=5 // pred_fallthru
      _
  $region6: #{pathgan_forward.7} parent=0 // loop_footer
    %s15 = sadd.s32 1, %s11
  $region7: #{pathgan_forward.7} parent=0 // loop_footer_branch
    %10 = sbr.rel target = $region3
  $region8: #{pathgan_forward.7} parent=0 // loop_exit
    _

// kernel: pathgan_forward.9
$region0: #{pathgan_forward.9}
  #allocation0 [shape = 'u32[]', space=smem, size = 0x4, offset = 0x4, fixed_abs, tag = 'smem constant byte address 0x4 - core index']
  #allocation1 [shape = 'u32[144,128]{1,0:T(1,128)}', space=vmem, size = 0x12000, scoped, tag = 'internal scratch']
  #allocation2 [shape = 'f32[1,1]{1,0:T(1,128)S(1)}', space=vmem, size = 0x200, scoped, tag = 'scoped memory for pathgan_forward.9']
  %s0 = inlined_call_operand.vmem [shape: f32[2,512], index: 0, kind: input, shape index: {}]
  %s1 = inlined_call_operand.vmem [shape: f32[1,512], index: 1, kind: input, shape index: {}]
  %s2 = inlined_call_operand.vmem [shape: f32[1,512], index: 2, kind: input, shape index: {}]
  %s3 = inlined_call_operand.vmem [shape: f32[1,512], index: 3, kind: input, shape index: {}]
  %s4 = inlined_call_operand.<no memory space> [shape: f32[1,1], index: 4, kind: input, shape index: {}]
  %s5 = inlined_call_operand.vmem [shape: f32[2,1], index: 5, kind: output, shape index: {}]
  %s6 = sld [smem:[#allocation0]]
  $region30: #{pathgan_forward.9} parent=0
    _
  %s8 = ssub.s32 1, %s6
  %s9 = scalar_select 0, %s8, %s6
  %v10 = vstv %s4
  %11 = vst [vmem:[#allocation2] sm:$0x1] %v10
  // Predicated region
  $region2: #{pathgan_forward.9} parent=0 // pred_check
    _
  $region3: #{pathgan_forward.9} parent=0 // pred_check_branch
    %13 = sbr.rel (0) target = $region5
  $region4: #{pathgan_forward.9} parent=0 // pred_region
    _
  $region5: #{pathgan_forward.9} parent=0 // pred_fallthru
    _
  // Predicated region
  $region6: #{pathgan_forward.9} parent=0 // pred_check
    _
  $region7: #{pathgan_forward.9} parent=0 // pred_check_branch
    %15 = sbr.rel (0) target = $region9
  $region8: #{pathgan_forward.9} parent=0 // pred_region
    _
  $region9: #{pathgan_forward.9} parent=0 // pred_fallthru
    _
  // Predicated region
  $region10: #{pathgan_forward.9} parent=0 // pred_check
    _
  $region11: #{pathgan_forward.9} parent=0 // pred_check_branch
    %17 = sbr.rel (0) target = $region13
  $region12: #{pathgan_forward.9} parent=0 // pred_region
    _
  $region13: #{pathgan_forward.9} parent=0 // pred_fallthru
    _
  // Predicated region
  $region14: #{pathgan_forward.9} parent=0 // pred_check
    _
  $region15: #{pathgan_forward.9} parent=0 // pred_check_branch
    %19 = sbr.rel (0) target = $region17
  $region16: #{pathgan_forward.9} parent=0 // pred_region
    _
  $region17: #{pathgan_forward.9} parent=0 // pred_fallthru
    _
  // Predicated region
  $region18: #{pathgan_forward.9} parent=0 // pred_check
    _
  $region19: #{pathgan_forward.9} parent=0 // pred_check_branch
    %21 = sbr.rel (0) target = $region21
  $region20: #{pathgan_forward.9} parent=0 // pred_region
    _
  $region21: #{pathgan_forward.9} parent=0 // pred_fallthru
    _
  %v22 = vld [vmem:[%s0] sm:$0xff]
  %v23 = vld [vmem:[%s1] sm:$0xf]
  %v25 = vlaneseq
  %v26 = vshrl.u32 %v25, 7
  %v27 = vsub.s32 0, %v26
  %v28 = vrot.slane %v23, %v27
  %v29 = vlaneseq
  %v30 = vshrl.u32 %v29, 7
  %v31 = vsub.s32 1, %v30
  %v32 = vrot.slane %v23, %v31
  %v33 = vlaneseq
  %v34 = vshrl.u32 %v33, 7
  %v35 = vsub.s32 2, %v34
  %v36 = vrot.slane %v23, %v35
  %v37 = vlaneseq
  %v38 = vshrl.u32 %v37, 7
  %v39 = vsub.s32 3, %v38
  %v40 = vrot.slane %v23, %v39
  %v41 = vcombine.low %v28, %v32
  %v42 = vcombine.low %v36, %v40
  %v44 = vunpack.c.l.s4 1983009808
  %v45 = vunpack.c.0.s8 %v44
  %v46 = vlaneseq
  %v47 = vshrl.u32 %v46, 7
  %v48 = vsub.s32 %v45, %v47
  %v49 = vrot.slane %v41, %v48
  %v51 = vunpack.c.l.s4 1983009808
  %v52 = vunpack.c.0.s8 %v51
  %v53 = vlaneseq
  %v54 = vshrl.u32 %v53, 7
  %v55 = vsub.s32 %v52, %v54
  %v56 = vrot.slane %v42, %v55
  %v57 = vcombine.low %v49, %v56
  %v59 = vmul.f32 %v22, %v57
  %v60 = vld [vmem:[%s2] sm:$0xf]
  %v62 = vlaneseq
  %v63 = vshrl.u32 %v62, 7
  %v64 = vsub.s32 0, %v63
  %v65 = vrot.slane %v60, %v64
  %v66 = vlaneseq
  %v67 = vshrl.u32 %v66, 7
  %v68 = vsub.s32 1, %v67
  %v69 = vrot.slane %v60, %v68
  %v70 = vlaneseq
  %v71 = vshrl.u32 %v70, 7
  %v72 = vsub.s32 2, %v71
  %v73 = vrot.slane %v60, %v72
  %v74 = vlaneseq
  %v75 = vshrl.u32 %v74, 7
  %v76 = vsub.s32 3, %v75
  %v77 = vrot.slane %v60, %v76
  %v78 = vcombine.low %v65, %v69
  %v79 = vcombine.low %v73, %v77
  %v81 = vunpack.c.l.s4 1983009808
  %v82 = vunpack.c.0.s8 %v81
  %v83 = vlaneseq
  %v84 = vshrl.u32 %v83, 7
  %v85 = vsub.s32 %v82, %v84
  %v86 = vrot.slane %v78, %v85
  %v88 = vunpack.c.l.s4 1983009808
  %v89 = vunpack.c.0.s8 %v88
  %v90 = vlaneseq
  %v91 = vshrl.u32 %v90, 7
  %v92 = vsub.s32 %v89, %v91
  %v93 = vrot.slane %v79, %v92
  %v94 = vcombine.low %v86, %v93
  %v96 = vadd.f32 %v59, %v94
  %vm97 = vcmp.gt.f32.partialorder %v96, 0.0
  %v98 = vmul.f32 %v96, 0.2
  %v99 = vsel %vm97, %v96, %v98
  %v100 = vld [vmem:[%s3] sm:$0xf]
  %v102 = vlaneseq
  %v103 = vshrl.u32 %v102, 7
  %v104 = vsub.s32 0, %v103
  %v105 = vrot.slane %v100, %v104
  %v106 = vlaneseq
  %v107 = vshrl.u32 %v106, 7
  %v108 = vsub.s32 1, %v107
  %v109 = vrot.slane %v100, %v108
  %v110 = vlaneseq
  %v111 = vshrl.u32 %v110, 7
  %v112 = vsub.s32 2, %v111
  %v113 = vrot.slane %v100, %v112
  %v114 = vlaneseq
  %v115 = vshrl.u32 %v114, 7
  %v116 = vsub.s32 3, %v115
  %v117 = vrot.slane %v100, %v116
  %v118 = vcombine.low %v105, %v109
  %v119 = vcombine.low %v113, %v117
  %v121 = vunpack.c.l.s4 1983009808
  %v122 = vunpack.c.0.s8 %v121
  %v123 = vlaneseq
  %v124 = vshrl.u32 %v123, 7
  %v125 = vsub.s32 %v122, %v124
  %v126 = vrot.slane %v118, %v125
  %v128 = vunpack.c.l.s4 1983009808
  %v129 = vunpack.c.0.s8 %v128
  %v130 = vlaneseq
  %v131 = vshrl.u32 %v130, 7
  %v132 = vsub.s32 %v129, %v131
  %v133 = vrot.slane %v119, %v132
  %v134 = vcombine.low %v126, %v133
  %v136 = vmul.f32 %v99, %v134
  %v138 = vcombine.high %v136, %v136
  %v140 = vunpack.c.l.s4 1983009808
  %v141 = vunpack.c.0.s8 %v140
  %v142 = vlaneseq
  %v143 = vshrl.u32 %v142, 7
  %v144 = vsub.s32 %v141, %v143
  %v145 = vrot.slane %v136, %v144
  %v147 = vunpack.c.l.s4 1983009808
  %v148 = vunpack.c.0.s8 %v147
  %v149 = vlaneseq
  %v150 = vshrl.u32 %v149, 7
  %v151 = vsub.s32 %v148, %v150
  %v152 = vrot.slane %v138, %v151
  %v153 = vcombine.high %v145, %v145
  %v154 = vcombine.high %v152, %v152
  %vm159 = vcmask 1041408
  %v160 = vsel %vm159, %v145, 0.0
  %v161 = vsel %vm159, %v153, 0.0
  %v162 = vadd.f32 %v160, %v161
  %v163 = vsel %vm159, %v152, 0.0
  %v164 = vadd.f32 %v162, %v163
  %v165 = vsel %vm159, %v154, 0.0
  %v166 = vadd.f32 %v164, %v165
  %167 = vadd.xlane.f32.xlu0 %v166
  %v168 = vpop.xlane.xlu0 %167
  %v169 = vld [vmem:[#allocation2] sm:$0x1]
  %v171 = vlaneseq
  %v172 = vshrl.u32 %v171, 7
  %v173 = vsub.s32 0, %v172
  %v174 = vrot.slane %v169, %v173
  %v176 = vadd.f32 %v168, %v174
  %v177 = vsub.f32 0.0, %v176
  %v178 = vmul.f32 %v177, 1.442695
  %v179 = vpow.pop %v178
  %v180 = vadd.f32 %v179, 1.0
  %v181 = vrcp.pop %v180
  %v182 = vmul.f32 1.0, %v181
  %vm183 = vcmask 1024
  %184 = vst.msk [vmem:[%s5] sm:$0x3] %vm183, %v182
  // Predicated region
  $region22: #{pathgan_forward.9} parent=0 // pred_check
    _
  $region23: #{pathgan_forward.9} parent=0 // pred_check_branch
    %186 = sbr.rel (0) target = $region25
  $region24: #{pathgan_forward.9} parent=0 // pred_region
    _
  $region25: #{pathgan_forward.9} parent=0 // pred_fallthru
    _
  // Predicated region
  $region26: #{pathgan_forward.9} parent=0 // pred_check
    _
  $region27: #{pathgan_forward.9} parent=0 // pred_check_branch
    %188 = sbr.rel (0) target = $region29
  $region28: #{pathgan_forward.9} parent=0 // pred_region
    _
  $region29: #{pathgan_forward.9} parent=0 // pred_fallthru
    _

// kernel: pathgan_forward.8
$region0: #{pathgan_forward.8}
  #allocation0 [shape = 'u32[]', space=smem, size = 0x4, offset = 0x4, fixed_abs, tag = 'smem constant byte address 0x4 - core index']
  #allocation1 [shape = 'u32[144,128]{1,0:T(1,128)}', space=vmem, size = 0x12000, scoped, tag = 'internal scratch']
  %s0 = inlined_call_operand.vmem [shape: bf16[2,1,2,2,1024], index: 0, kind: input, shape index: {}]
  %s1 = inlined_call_operand.vmem [shape: bf16[4,1024,512], index: 1, kind: input, shape index: {}]
  %s2 = inlined_call_operand.vmem [shape: f32[1,512], index: 2, kind: input, shape index: {}]
  %s3 = inlined_call_operand.vmem [shape: f32[2,1,512], index: 3, kind: output, shape index: {0}]
  %s4 = inlined_call_operand.vmem [shape: f32[2,1,2,512], index: 4, kind: output, shape index: {1}]
  %5 = xla_tuple %s3, %s4
  %s6 = sld [smem:[#allocation0]]
  $region53: #{pathgan_forward.8} parent=0
    _
  %s8 = ssub.s32 1, %s6
  %s9 = scalar_select 0, %s8, %s6
  loop: start=0, step=1, limit=4
  $region2: #{pathgan_forward.8} parent=0 // loop_pre_header
    _
  $region3: #{pathgan_forward.8} parent=0 // loop_header
    %s11 = sphi 0, %s15
    %p12 = scmp.ge.s32.totalorder %s11, 4
    %s18 = sphi 0, %s30
    %s19 = sphi 0, %s26
    %s20 = sphi 0, %s18
    %s21 = sphi 0, %s19
    %s22 = sphi 0, %s20
    %s23 = sphi 0, %s21
    %s35 = sphi 0, %s37
    %s38 = sphi 0, %s35
    %s39 = sphi 0, %s38
    %s55 = sphi 0, %s39
    %s59 = sphi 0, %s59
    %s61 = sphi 0, %s59
    %s62 = sphi 0, %s61
    %s76 = sphi 0, %s62
    %s80 = sphi 0, %s80
    %s82 = sphi 0, %s80
    %s83 = sphi 0, %s82
    %s97 = sphi 0, %s83
    %s105 = sphi 0, %s107
    %s108 = sphi 0, %s105
    %s109 = sphi 0, %s108
    %s125 = sphi 0, %s109
    %s133 = sphi 0, %s135
    %s136 = sphi 0, %s133
    %s137 = sphi 0, %s136
    %s153 = sphi 0, %s137
  $region4: #{pathgan_forward.8} parent=0 // loop_header_branch
    %14 = sbr.rel (%p12) target = $region8
  $region5: #{pathgan_forward.8} parent=0 // loop_body
    %s16 = ssub.s32 %s11, 1
    %s17 = ssub.s32 %s11, 2
    %s24 = sadd.s32 1, %s19
    %p25 = scmp.ge.s32.totalorder %s24, 1
    %s26 = scalar_select %p25, 0, %s24
    %s27 = sadd.s32 1, %s18
    %s28 = scalar_select %p25, %s27, %s18
    %p29 = scmp.ge.s32.totalorder %s28, 2
    %s30 = scalar_select %p29, 0, %s28
    %s31 = ssub.s32 %s18, %s30
    %s32 = ssub.s32 %s19, %s26
    %s33 = sor.u32 %s31, %s32
    %p34 = scmp.eq.s32.totalorder %s33, 0
    %s36 = sadd.s32 %s35, 1
    %s37 = scalar_select %p34, %s35, %s36
    %p40 = pneg %p34
    %p41 = scmp.eq.s32.totalorder %s11, 1
    %p42 = por %p40, %p41
    %p43 = scmp.ne.s32.totalorder %s35, %s38
    %p44 = scmp.eq.s32.totalorder %s11, 0
    %p45 = por %p43, %p44
    %p46 = scmp.ne.s32.totalorder %s35, %s38
    %p47 = scmp.eq.s32.totalorder %s16, 1
    %p48 = por %p46, %p47
    %p49 = scmp.ne.s32.totalorder %s38, %s39
    %p50 = scmp.eq.s32.totalorder %s16, 0
    %p51 = por %p49, %p50
    %p52 = scmp.ne.s32.totalorder %s38, %s39
    %p53 = scmp.eq.s32.totalorder %s17, 1
    %p54 = por %p52, %p53
    %p56 = scmp.ne.s32.totalorder %s39, %s55
    %p57 = scmp.eq.s32.totalorder %s17, 0
    %p58 = por %p56, %p57
    %s60 = sadd.s32 %s59, 1
    %p63 = scmp.eq.s32.totalorder %s11, 1
    %p64 = scmp.ne.s32.totalorder %s59, %s61
    %p65 = scmp.eq.s32.totalorder %s11, 0
    %p66 = por %p64, %p65
    %p67 = scmp.ne.s32.totalorder %s59, %s61
    %p68 = scmp.eq.s32.totalorder %s16, 1
    %p69 = por %p67, %p68
    %p70 = scmp.ne.s32.totalorder %s61, %s62
    %p71 = scmp.eq.s32.totalorder %s16, 0
    %p72 = por %p70, %p71
    %p73 = scmp.ne.s32.totalorder %s61, %s62
    %p74 = scmp.eq.s32.totalorder %s17, 1
    %p75 = por %p73, %p74
    %p77 = scmp.ne.s32.totalorder %s62, %s76
    %p78 = scmp.eq.s32.totalorder %s17, 0
    %p79 = por %p77, %p78
    %s81 = sadd.s32 %s80, 1
    %p84 = scmp.eq.s32.totalorder %s11, 1
    %p85 = scmp.ne.s32.totalorder %s80, %s82
    %p86 = scmp.eq.s32.totalorder %s11, 0
    %p87 = por %p85, %p86
    %p88 = scmp.ne.s32.totalorder %s80, %s82
    %p89 = scmp.eq.s32.totalorder %s16, 1
    %p90 = por %p88, %p89
    %p91 = scmp.ne.s32.totalorder %s82, %s83
    %p92 = scmp.eq.s32.totalorder %s16, 0
    %p93 = por %p91, %p92
    %p94 = scmp.ne.s32.totalorder %s82, %s83
    %p95 = scmp.eq.s32.totalorder %s17, 1
    %p96 = por %p94, %p95
    %p98 = scmp.ne.s32.totalorder %s83, %s97
    %p99 = scmp.eq.s32.totalorder %s17, 0
    %p100 = por %p98, %p99
    %s101 = ssub.s32 %s18, %s30
    %s102 = ssub.s32 %s19, %s26
    %s103 = sor.u32 %s101, %s102
    %p104 = scmp.eq.s32.totalorder %s103, 0
    %s106 = sadd.s32 %s105, 1
    %s107 = scalar_select %p104, %s105, %s106
    %p110 = pneg %p104
    %p111 = scmp.eq.s32.totalorder %s11, 1
    %p112 = por %p110, %p111
    %p113 = scmp.ne.s32.totalorder %s105, %s108
    %p114 = scmp.eq.s32.totalorder %s11, 0
    %p115 = por %p113, %p114
    %p116 = scmp.ne.s32.totalorder %s105, %s108
    %p117 = scmp.eq.s32.totalorder %s16, 1
    %p118 = por %p116, %p117
    %p119 = scmp.ne.s32.totalorder %s108, %s109
    %p120 = scmp.eq.s32.totalorder %s16, 0
    %p121 = por %p119, %p120
    %p122 = scmp.ne.s32.totalorder %s108, %s109
    %p123 = scmp.eq.s32.totalorder %s17, 1
    %p124 = por %p122, %p123
    %p126 = scmp.ne.s32.totalorder %s109, %s125
    %p127 = scmp.eq.s32.totalorder %s17, 0
    %p128 = por %p126, %p127
    %s129 = ssub.s32 %s18, %s30
    %s130 = ssub.s32 %s19, %s26
    %s131 = sor.u32 %s129, %s130
    %p132 = scmp.eq.s32.totalorder %s131, 0
    %s134 = sadd.s32 %s133, 1
    %s135 = scalar_select %p132, %s133, %s134
    %p138 = pneg %p132
    %p139 = scmp.eq.s32.totalorder %s11, 1
    %p140 = por %p138, %p139
    %p141 = scmp.ne.s32.totalorder %s133, %s136
    %p142 = scmp.eq.s32.totalorder %s11, 0
    %p143 = por %p141, %p142
    %p144 = scmp.ne.s32.totalorder %s133, %s136
    %p145 = scmp.eq.s32.totalorder %s16, 1
    %p146 = por %p144, %p145
    %p147 = scmp.ne.s32.totalorder %s136, %s137
    %p148 = scmp.eq.s32.totalorder %s16, 0
    %p149 = por %p147, %p148
    %p150 = scmp.ne.s32.totalorder %s136, %s137
    %p151 = scmp.eq.s32.totalorder %s17, 1
    %p152 = por %p150, %p151
    %p154 = scmp.ne.s32.totalorder %s137, %s153
    %p155 = scmp.eq.s32.totalorder %s17, 0
    %p156 = por %p154, %p155
    %p157 = scmp.le.s32.totalorder 1, %s11
    %p158 = scmp.lt.s32.totalorder %s11, 3
    %p159 = pnand %p157, %p158
    %p160 = pneg %p159
    // Predicated region
    $region9: #{pathgan_forward.8} parent=5 // pred_check
      _
    $region10: #{pathgan_forward.8} parent=5 // pred_check_branch
      %162 = sbr.rel (%p159) target = $region12
    $region11: #{pathgan_forward.8} parent=5 // pred_region
      %s163 = ssub.s32 %s11, 1
      // Predicated region
      $region13: #{pathgan_forward.8} parent=11 // pred_check
        %p164 = pneg %p72
      $region14: #{pathgan_forward.8} parent=11 // pred_check_branch
        %166 = sbr.rel (%p164) target = $region16
      $region15: #{pathgan_forward.8} parent=11 // pred_region
        _
      $region16: #{pathgan_forward.8} parent=11 // pred_fallthru
        _
      // Predicated region
      $region17: #{pathgan_forward.8} parent=11 // pred_check
        %p167 = pneg %p93
      $region18: #{pathgan_forward.8} parent=11 // pred_check_branch
        %169 = sbr.rel (%p167) target = $region20
      $region19: #{pathgan_forward.8} parent=11 // pred_region
        _
      $region20: #{pathgan_forward.8} parent=11 // pred_fallthru
        _
    $region12: #{pathgan_forward.8} parent=5 // pred_fallthru
      _
    %p170 = scmp.lt.s32.totalorder %s11, 2
    // Predicated region
    $region21: #{pathgan_forward.8} parent=5 // pred_check
      %p171 = pneg %p170
    $region22: #{pathgan_forward.8} parent=5 // pred_check_branch
      %173 = sbr.rel (%p171) target = $region24
    $region23: #{pathgan_forward.8} parent=5 // pred_region
      // Predicated region
      $region25: #{pathgan_forward.8} parent=23 // pred_check
        %p174 = pneg %p45
      $region26: #{pathgan_forward.8} parent=23 // pred_check_branch
        %176 = sbr.rel (%p174) target = $region28
      $region27: #{pathgan_forward.8} parent=23 // pred_region
        %p177 = scmp.lt.s32.totalorder %s18, 1
        %s178 = scalar_select %p177, %s18, 1
        %p179 = scmp.lt.s32.totalorder %s19, 0
        %s180 = scalar_select %p179, %s19, 0
        %s181 = smul.addr %s180, 16
        %s182 = smul.addr %s178, 16
        %s183 = sadd.s32 %s181, %s182
        %s184 = scalar_lea.vmem %s0, %s183
      $region28: #{pathgan_forward.8} parent=23 // pred_fallthru
        _
    $region24: #{pathgan_forward.8} parent=5 // pred_fallthru
      _
    %p185 = scmp.le.s32.totalorder 1, %s11
    %p186 = scmp.lt.s32.totalorder %s11, 3
    %p187 = pnand %p185, %p186
    %p188 = pneg %p187
    // Predicated region
    $region29: #{pathgan_forward.8} parent=5 // pred_check
      _
    $region30: #{pathgan_forward.8} parent=5 // pred_check_branch
      %190 = sbr.rel (%p187) target = $region32
    $region31: #{pathgan_forward.8} parent=5 // pred_region
      %s191 = ssub.s32 %s11, 1
      %p192 = scmp.lt.s32.totalorder %s20, 1
      %s193 = scalar_select %p192, %s20, 1
      %p194 = scmp.lt.s32.totalorder %s21, 0
      %s195 = scalar_select %p194, %s21, 0
      %s196 = smul.addr %s195, 16
      %s197 = smul.addr %s193, 16
      %s198 = sadd.s32 %s196, %s197
      %s199 = scalar_lea.vmem %s0, %s198
      %p200 = pneg %p51
      %p201 = pneg %p48
      %p202 = pneg %p72
      %p203 = pneg %p69
      %p204 = pneg %p93
      %p205 = pneg %p90
      %p206 = pneg %p121
      %p207 = pneg %p118
      %p208 = scmp.lt.s32.totalorder %s20, 1
      %s209 = scalar_select %p208, %s20, 1
      %p210 = scmp.lt.s32.totalorder %s21, 0
      %s211 = scalar_select %p210, %s21, 0
      %s212 = smul.addr %s211, 4
      %s213 = smul.addr %s209, 4
      %s214 = sadd.s32 %s212, %s213
      %s215 = scalar_lea.vmem %s3, %s214
      %p216 = pneg %p149
      %p217 = pneg %p146
      %p218 = scmp.lt.s32.totalorder %s20, 1
      %s219 = scalar_select %p218, %s20, 1
      %p220 = scmp.lt.s32.totalorder %s21, 0
      %s221 = scalar_select %p220, %s21, 0
      %s222 = smul.addr %s221, 4
      %s223 = smul.addr %s219, 4
      %s224 = sadd.s32 %s222, %s223
      %s225 = smul.addr %s224, 2
      %s226 = scalar_lea.vmem %s4, %s225
      %p227 = scmp.lt.s32.totalorder %s20, 1
      %s228 = scalar_select %p227, %s20, 1
      %p229 = scmp.lt.s32.totalorder %s21, 0
      %s230 = scalar_select %p229, %s21, 0
      %s231 = smul.addr %s230, 16
      %s232 = smul.addr %s228, 16
      %s233 = sadd.s32 %s231, %s232
      %s234 = scalar_lea.vmem %s0, %s233
      %p235 = scmp.lt.s32.totalorder %s20, 1
      %s236 = scalar_select %p235, %s20, 1
      %p237 = scmp.lt.s32.totalorder %s21, 0
      %s238 = scalar_select %p237, %s21, 0
      %s239 = smul.addr %s238, 4
      %s240 = smul.addr %s236, 4
      %s241 = sadd.s32 %s239, %s240
      %s242 = scalar_lea.vmem %s3, %s241
      %p243 = scmp.lt.s32.totalorder %s20, 1
      %s244 = scalar_select %p243, %s20, 1
      %p245 = scmp.lt.s32.totalorder %s21, 0
      %s246 = scalar_select %p245, %s21, 0
      %s247 = smul.addr %s246, 4
      %s248 = smul.addr %s244, 4
      %s249 = sadd.s32 %s247, %s248
      %s250 = smul.addr %s249, 2
      %s251 = scalar_lea.vmem %s4, %s250
      %v252 = vld [vmem:[%s234] sm:$0xff]
      %v253 = vld [vmem:[%s1] sm:$0xff]
      %v254 = vld [vmem:[%s1 + $0x8] sm:$0xff]
      %v255 = vld [vmem:[%s1 + $0x10] sm:$0xff]
      %v256 = vld [vmem:[%s1 + $0x18] sm:$0xff]
      %v257 = vld [vmem:[%s1 + $0x20] sm:$0xff]
      %v258 = vld [vmem:[%s1 + $0x28] sm:$0xff]
      %v259 = vld [vmem:[%s1 + $0x30] sm:$0xff]
      %v260 = vld [vmem:[%s1 + $0x38] sm:$0xff]
      %v261 = vld [vmem:[%s1 + $0x40] sm:$0xff]
      %v262 = vld [vmem:[%s1 + $0x48] sm:$0xff]
      %v263 = vld [vmem:[%s1 + $0x50] sm:$0xff]
      %v264 = vld [vmem:[%s1 + $0x58] sm:$0xff]
      %v265 = vld [vmem:[%s1 + $0x60] sm:$0xff]
      %v266 = vld [vmem:[%s1 + $0x68] sm:$0xff]
      %v267 = vld [vmem:[%s1 + $0x70] sm:$0xff]
      %v268 = vld [vmem:[%s1 + $0x78] sm:$0xff]
      %v269 = vld [vmem:[%s1 + $0x80] sm:$0xff]
      %v270 = vld [vmem:[%s1 + $0x88] sm:$0xff]
      %v271 = vld [vmem:[%s1 + $0x90] sm:$0xff]
      %v272 = vld [vmem:[%s1 + $0x98] sm:$0xff]
      %v273 = vld [vmem:[%s1 + $0xa0] sm:$0xff]
      %v274 = vld [vmem:[%s1 + $0xa8] sm:$0xff]
      %v275 = vld [vmem:[%s1 + $0xb0] sm:$0xff]
      %v276 = vld [vmem:[%s1 + $0xb8] sm:$0xff]
      %v277 = vld [vmem:[%s1 + $0xc0] sm:$0xff]
      %v278 = vld [vmem:[%s1 + $0xc8] sm:$0xff]
      %v279 = vld [vmem:[%s1 + $0xd0] sm:$0xff]
      %v280 = vld [vmem:[%s1 + $0xd8] sm:$0xff]
      %v281 = vld [vmem:[%s1 + $0xe0] sm:$0xff]
      %v282 = vld [vmem:[%s1 + $0xe8] sm:$0xff]
      %v283 = vld [vmem:[%s1 + $0xf0] sm:$0xff]
      %v284 = vld [vmem:[%s1 + $0xf8] sm:$0xff]
      %v285 = vld [vmem:[%s1 + $0x100] sm:$0xff]
      %v286 = vld [vmem:[%s1 + $0x108] sm:$0xff]
      %v287 = vld [vmem:[%s1 + $0x110] sm:$0xff]
      %v288 = vld [vmem:[%s1 + $0x118] sm:$0xff]
      %v289 = vld [vmem:[%s1 + $0x120] sm:$0xff]
      %v290 = vld [vmem:[%s1 + $0x128] sm:$0xff]
      %v291 = vld [vmem:[%s1 + $0x130] sm:$0xff]
      %v292 = vld [vmem:[%s1 + $0x138] sm:$0xff]
      %v293 = vld [vmem:[%s1 + $0x140] sm:$0xff]
      %v294 = vld [vmem:[%s1 + $0x148] sm:$0xff]
      %v295 = vld [vmem:[%s1 + $0x150] sm:$0xff]
      %v296 = vld [vmem:[%s1 + $0x158] sm:$0xff]
      %v297 = vld [vmem:[%s1 + $0x160] sm:$0xff]
      %v298 = vld [vmem:[%s1 + $0x168] sm:$0xff]
      %v299 = vld [vmem:[%s1 + $0x170] sm:$0xff]
      %v300 = vld [vmem:[%s1 + $0x178] sm:$0xff]
      %v301 = vld [vmem:[%s1 + $0x180] sm:$0xff]
      %v302 = vld [vmem:[%s1 + $0x188] sm:$0xff]
      %v303 = vld [vmem:[%s1 + $0x190] sm:$0xff]
      %v304 = vld [vmem:[%s1 + $0x198] sm:$0xff]
      %v305 = vld [vmem:[%s1 + $0x1a0] sm:$0xff]
      %v306 = vld [vmem:[%s1 + $0x1a8] sm:$0xff]
      %v307 = vld [vmem:[%s1 + $0x1b0] sm:$0xff]
      %v308 = vld [vmem:[%s1 + $0x1b8] sm:$0xff]
      %v309 = vld [vmem:[%s1 + $0x1c0] sm:$0xff]
      %v310 = vld [vmem:[%s1 + $0x1c8] sm:$0xff]
      %v311 = vld [vmem:[%s1 + $0x1d0] sm:$0xff]
      %v312 = vld [vmem:[%s1 + $0x1d8] sm:$0xff]
      %v313 = vld [vmem:[%s1 + $0x1e0] sm:$0xff]
      %v314 = vld [vmem:[%s1 + $0x1e8] sm:$0xff]
      %v315 = vld [vmem:[%s1 + $0x1f0] sm:$0xff]
      %v316 = vld [vmem:[%s1 + $0x1f8] sm:$0xff]
      %v317 = vld [vmem:[%s1 + $0x200] sm:$0xff]
      %v318 = vld [vmem:[%s1 + $0x208] sm:$0xff]
      %v319 = vld [vmem:[%s1 + $0x210] sm:$0xff]
      %v320 = vld [vmem:[%s1 + $0x218] sm:$0xff]
      %v321 = vld [vmem:[%s1 + $0x220] sm:$0xff]
      %v322 = vld [vmem:[%s1 + $0x228] sm:$0xff]
      %v323 = vld [vmem:[%s1 + $0x230] sm:$0xff]
      %v324 = vld [vmem:[%s1 + $0x238] sm:$0xff]
      %v325 = vld [vmem:[%s1 + $0x240] sm:$0xff]
      %v326 = vld [vmem:[%s1 + $0x248] sm:$0xff]
      %v327 = vld [vmem:[%s1 + $0x250] sm:$0xff]
      %v328 = vld [vmem:[%s1 + $0x258] sm:$0xff]
      %v329 = vld [vmem:[%s1 + $0x260] sm:$0xff]
      %v330 = vld [vmem:[%s1 + $0x268] sm:$0xff]
      %v331 = vld [vmem:[%s1 + $0x270] sm:$0xff]
      %v332 = vld [vmem:[%s1 + $0x278] sm:$0xff]
      %v333 = vld [vmem:[%s1 + $0x280] sm:$0xff]
      %v334 = vld [vmem:[%s1 + $0x288] sm:$0xff]
      %v335 = vld [vmem:[%s1 + $0x290] sm:$0xff]
      %v336 = vld [vmem:[%s1 + $0x298] sm:$0xff]
      %v337 = vld [vmem:[%s1 + $0x2a0] sm:$0xff]
      %v338 = vld [vmem:[%s1 + $0x2a8] sm:$0xff]
      %v339 = vld [vmem:[%s1 + $0x2b0] sm:$0xff]
      %v340 = vld [vmem:[%s1 + $0x2b8] sm:$0xff]
      %v341 = vld [vmem:[%s1 + $0x2c0] sm:$0xff]
      %v342 = vld [vmem:[%s1 + $0x2c8] sm:$0xff]
      %v343 = vld [vmem:[%s1 + $0x2d0] sm:$0xff]
      %v344 = vld [vmem:[%s1 + $0x2d8] sm:$0xff]
      %v345 = vld [vmem:[%s1 + $0x2e0] sm:$0xff]
      %v346 = vld [vmem:[%s1 + $0x2e8] sm:$0xff]
      %v347 = vld [vmem:[%s1 + $0x2f0] sm:$0xff]
      %v348 = vld [vmem:[%s1 + $0x2f8] sm:$0xff]
      %v349 = vld [vmem:[%s1 + $0x300] sm:$0xff]
      %v350 = vld [vmem:[%s1 + $0x308] sm:$0xff]
      %v351 = vld [vmem:[%s1 + $0x310] sm:$0xff]
      %v352 = vld [vmem:[%s1 + $0x318] sm:$0xff]
      %v353 = vld [vmem:[%s1 + $0x320] sm:$0xff]
      %v354 = vld [vmem:[%s1 + $0x328] sm:$0xff]
      %v355 = vld [vmem:[%s1 + $0x330] sm:$0xff]
      %v356 = vld [vmem:[%s1 + $0x338] sm:$0xff]
      %v357 = vld [vmem:[%s1 + $0x340] sm:$0xff]
      %v358 = vld [vmem:[%s1 + $0x348] sm:$0xff]
      %v359 = vld [vmem:[%s1 + $0x350] sm:$0xff]
      %v360 = vld [vmem:[%s1 + $0x358] sm:$0xff]
      %v361 = vld [vmem:[%s1 + $0x360] sm:$0xff]
      %v362 = vld [vmem:[%s1 + $0x368] sm:$0xff]
      %v363 = vld [vmem:[%s1 + $0x370] sm:$0xff]
      %v364 = vld [vmem:[%s1 + $0x378] sm:$0xff]
      %v365 = vld [vmem:[%s1 + $0x380] sm:$0xff]
      %v366 = vld [vmem:[%s1 + $0x388] sm:$0xff]
      %v367 = vld [vmem:[%s1 + $0x390] sm:$0xff]
      %v368 = vld [vmem:[%s1 + $0x398] sm:$0xff]
      %v369 = vld [vmem:[%s1 + $0x3a0] sm:$0xff]
      %v370 = vld [vmem:[%s1 + $0x3a8] sm:$0xff]
      %v371 = vld [vmem:[%s1 + $0x3b0] sm:$0xff]
      %v372 = vld [vmem:[%s1 + $0x3b8] sm:$0xff]
      %v373 = vld [vmem:[%s1 + $0x3c0] sm:$0xff]
      %v374 = vld [vmem:[%s1 + $0x3c8] sm:$0xff]
      %v375 = vld [vmem:[%s1 + $0x3d0] sm:$0xff]
      %v376 = vld [vmem:[%s1 + $0x3d8] sm:$0xff]
      %v377 = vld [vmem:[%s1 + $0x3e0] sm:$0xff]
      %v378 = vld [vmem:[%s1 + $0x3e8] sm:$0xff]
      %v379 = vld [vmem:[%s1 + $0x3f0] sm:$0xff]
      %v380 = vld [vmem:[%s1 + $0x3f8] sm:$0xff]
      %v381 = vld [vmem:[%s1 + $0x400] sm:$0xff]
      %v382 = vld [vmem:[%s1 + $0x408] sm:$0xff]
      %v383 = vld [vmem:[%s1 + $0x410] sm:$0xff]
      %v384 = vld [vmem:[%s1 + $0x418] sm:$0xff]
      %v385 = vld [vmem:[%s1 + $0x420] sm:$0xff]
      %v386 = vld [vmem:[%s1 + $0x428] sm:$0xff]
      %v387 = vld [vmem:[%s1 + $0x430] sm:$0xff]
      %v388 = vld [vmem:[%s1 + $0x438] sm:$0xff]
      %v389 = vld [vmem:[%s1 + $0x440] sm:$0xff]
      %v390 = vld [vmem:[%s1 + $0x448] sm:$0xff]
      %v391 = vld [vmem:[%s1 + $0x450] sm:$0xff]
      %v392 = vld [vmem:[%s1 + $0x458] sm:$0xff]
      %v393 = vld [vmem:[%s1 + $0x460] sm:$0xff]
      %v394 = vld [vmem:[%s1 + $0x468] sm:$0xff]
      %v395 = vld [vmem:[%s1 + $0x470] sm:$0xff]
      %v396 = vld [vmem:[%s1 + $0x478] sm:$0xff]
      %v397 = vld [vmem:[%s1 + $0x480] sm:$0xff]
      %v398 = vld [vmem:[%s1 + $0x488] sm:$0xff]
      %v399 = vld [vmem:[%s1 + $0x490] sm:$0xff]
      %v400 = vld [vmem:[%s1 + $0x498] sm:$0xff]
      %v401 = vld [vmem:[%s1 + $0x4a0] sm:$0xff]
      %v402 = vld [vmem:[%s1 + $0x4a8] sm:$0xff]
      %v403 = vld [vmem:[%s1 + $0x4b0] sm:$0xff]
      %v404 = vld [vmem:[%s1 + $0x4b8] sm:$0xff]
      %v405 = vld [vmem:[%s1 + $0x4c0] sm:$0xff]
      %v406 = vld [vmem:[%s1 + $0x4c8] sm:$0xff]
      %v407 = vld [vmem:[%s1 + $0x4d0] sm:$0xff]
      %v408 = vld [vmem:[%s1 + $0x4d8] sm:$0xff]
      %v409 = vld [vmem:[%s1 + $0x4e0] sm:$0xff]
      %v410 = vld [vmem:[%s1 + $0x4e8] sm:$0xff]
      %v411 = vld [vmem:[%s1 + $0x4f0] sm:$0xff]
      %v412 = vld [vmem:[%s1 + $0x4f8] sm:$0xff]
      %v413 = vld [vmem:[%s1 + $0x500] sm:$0xff]
      %v414 = vld [vmem:[%s1 + $0x508] sm:$0xff]
      %v415 = vld [vmem:[%s1 + $0x510] sm:$0xff]
      %v416 = vld [vmem:[%s1 + $0x518] sm:$0xff]
      %v417 = vld [vmem:[%s1 + $0x520] sm:$0xff]
      %v418 = vld [vmem:[%s1 + $0x528] sm:$0xff]
      %v419 = vld [vmem:[%s1 + $0x530] sm:$0xff]
      %v420 = vld [vmem:[%s1 + $0x538] sm:$0xff]
      %v421 = vld [vmem:[%s1 + $0x540] sm:$0xff]
      %v422 = vld [vmem:[%s1 + $0x548] sm:$0xff]
      %v423 = vld [vmem:[%s1 + $0x550] sm:$0xff]
      %v424 = vld [vmem:[%s1 + $0x558] sm:$0xff]
      %v425 = vld [vmem:[%s1 + $0x560] sm:$0xff]
      %v426 = vld [vmem:[%s1 + $0x568] sm:$0xff]
      %v427 = vld [vmem:[%s1 + $0x570] sm:$0xff]
      %v428 = vld [vmem:[%s1 + $0x578] sm:$0xff]
      %v429 = vld [vmem:[%s1 + $0x580] sm:$0xff]
      %v430 = vld [vmem:[%s1 + $0x588] sm:$0xff]
      %v431 = vld [vmem:[%s1 + $0x590] sm:$0xff]
      %v432 = vld [vmem:[%s1 + $0x598] sm:$0xff]
      %v433 = vld [vmem:[%s1 + $0x5a0] sm:$0xff]
      %v434 = vld [vmem:[%s1 + $0x5a8] sm:$0xff]
      %v435 = vld [vmem:[%s1 + $0x5b0] sm:$0xff]
      %v436 = vld [vmem:[%s1 + $0x5b8] sm:$0xff]
      %v437 = vld [vmem:[%s1 + $0x5c0] sm:$0xff]
      %v438 = vld [vmem:[%s1 + $0x5c8] sm:$0xff]
      %v439 = vld [vmem:[%s1 + $0x5d0] sm:$0xff]
      %v440 = vld [vmem:[%s1 + $0x5d8] sm:$0xff]
      %v441 = vld [vmem:[%s1 + $0x5e0] sm:$0xff]
      %v442 = vld [vmem:[%s1 + $0x5e8] sm:$0xff]
      %v443 = vld [vmem:[%s1 + $0x5f0] sm:$0xff]
      %v444 = vld [vmem:[%s1 + $0x5f8] sm:$0xff]
      %v445 = vld [vmem:[%s1 + $0x600] sm:$0xff]
      %v446 = vld [vmem:[%s1 + $0x608] sm:$0xff]
      %v447 = vld [vmem:[%s1 + $0x610] sm:$0xff]
      %v448 = vld [vmem:[%s1 + $0x618] sm:$0xff]
      %v449 = vld [vmem:[%s1 + $0x620] sm:$0xff]
      %v450 = vld [vmem:[%s1 + $0x628] sm:$0xff]
      %v451 = vld [vmem:[%s1 + $0x630] sm:$0xff]
      %v452 = vld [vmem:[%s1 + $0x638] sm:$0xff]
      %v453 = vld [vmem:[%s1 + $0x640] sm:$0xff]
      %v454 = vld [vmem:[%s1 + $0x648] sm:$0xff]
      %v455 = vld [vmem:[%s1 + $0x650] sm:$0xff]
      %v456 = vld [vmem:[%s1 + $0x658] sm:$0xff]
      %v457 = vld [vmem:[%s1 + $0x660] sm:$0xff]
      %v458 = vld [vmem:[%s1 + $0x668] sm:$0xff]
      %v459 = vld [vmem:[%s1 + $0x670] sm:$0xff]
      %v460 = vld [vmem:[%s1 + $0x678] sm:$0xff]
      %v461 = vld [vmem:[%s1 + $0x680] sm:$0xff]
      %v462 = vld [vmem:[%s1 + $0x688] sm:$0xff]
      %v463 = vld [vmem:[%s1 + $0x690] sm:$0xff]
      %v464 = vld [vmem:[%s1 + $0x698] sm:$0xff]
      %v465 = vld [vmem:[%s1 + $0x6a0] sm:$0xff]
      %v466 = vld [vmem:[%s1 + $0x6a8] sm:$0xff]
      %v467 = vld [vmem:[%s1 + $0x6b0] sm:$0xff]
      %v468 = vld [vmem:[%s1 + $0x6b8] sm:$0xff]
      %v469 = vld [vmem:[%s1 + $0x6c0] sm:$0xff]
      %v470 = vld [vmem:[%s1 + $0x6c8] sm:$0xff]
      %v471 = vld [vmem:[%s1 + $0x6d0] sm:$0xff]
      %v472 = vld [vmem:[%s1 + $0x6d8] sm:$0xff]
      %v473 = vld [vmem:[%s1 + $0x6e0] sm:$0xff]
      %v474 = vld [vmem:[%s1 + $0x6e8] sm:$0xff]
      %v475 = vld [vmem:[%s1 + $0x6f0] sm:$0xff]
      %v476 = vld [vmem:[%s1 + $0x6f8] sm:$0xff]
      %v477 = vld [vmem:[%s1 + $0x700] sm:$0xff]
      %v478 = vld [vmem:[%s1 + $0x708] sm:$0xff]
      %v479 = vld [vmem:[%s1 + $0x710] sm:$0xff]
      %v480 = vld [vmem:[%s1 + $0x718] sm:$0xff]
      %v481 = vld [vmem:[%s1 + $0x720] sm:$0xff]
      %v482 = vld [vmem:[%s1 + $0x728] sm:$0xff]
      %v483 = vld [vmem:[%s1 + $0x730] sm:$0xff]
      %v484 = vld [vmem:[%s1 + $0x738] sm:$0xff]
      %v485 = vld [vmem:[%s1 + $0x740] sm:$0xff]
      %v486 = vld [vmem:[%s1 + $0x748] sm:$0xff]
      %v487 = vld [vmem:[%s1 + $0x750] sm:$0xff]
      %v488 = vld [vmem:[%s1 + $0x758] sm:$0xff]
      %v489 = vld [vmem:[%s1 + $0x760] sm:$0xff]
      %v490 = vld [vmem:[%s1 + $0x768] sm:$0xff]
      %v491 = vld [vmem:[%s1 + $0x770] sm:$0xff]
      %v492 = vld [vmem:[%s1 + $0x778] sm:$0xff]
      %v493 = vld [vmem:[%s1 + $0x780] sm:$0xff]
      %v494 = vld [vmem:[%s1 + $0x788] sm:$0xff]
      %v495 = vld [vmem:[%s1 + $0x790] sm:$0xff]
      %v496 = vld [vmem:[%s1 + $0x798] sm:$0xff]
      %v497 = vld [vmem:[%s1 + $0x7a0] sm:$0xff]
      %v498 = vld [vmem:[%s1 + $0x7a8] sm:$0xff]
      %v499 = vld [vmem:[%s1 + $0x7b0] sm:$0xff]
      %v500 = vld [vmem:[%s1 + $0x7b8] sm:$0xff]
      %v501 = vld [vmem:[%s1 + $0x7c0] sm:$0xff]
      %v502 = vld [vmem:[%s1 + $0x7c8] sm:$0xff]
      %v503 = vld [vmem:[%s1 + $0x7d0] sm:$0xff]
      %v504 = vld [vmem:[%s1 + $0x7d8] sm:$0xff]
      %v505 = vld [vmem:[%s1 + $0x7e0] sm:$0xff]
      %v506 = vld [vmem:[%s1 + $0x7e8] sm:$0xff]
      %v507 = vld [vmem:[%s1 + $0x7f0] sm:$0xff]
      %v508 = vld [vmem:[%s1 + $0x7f8] sm:$0xff]
      %s509 = scalar_lea.vmem %s1, 2048
      %v510 = vld [vmem:[%s509] sm:$0xff]
      %v511 = vld [vmem:[%s509 + $0x8] sm:$0xff]
      %v512 = vld [vmem:[%s509 + $0x10] sm:$0xff]
      %v513 = vld [vmem:[%s509 + $0x18] sm:$0xff]
      %v514 = vld [vmem:[%s509 + $0x20] sm:$0xff]
      %v515 = vld [vmem:[%s509 + $0x28] sm:$0xff]
      %v516 = vld [vmem:[%s509 + $0x30] sm:$0xff]
      %v517 = vld [vmem:[%s509 + $0x38] sm:$0xff]
      %v518 = vld [vmem:[%s509 + $0x40] sm:$0xff]
      %v519 = vld [vmem:[%s509 + $0x48] sm:$0xff]
      %v520 = vld [vmem:[%s509 + $0x50] sm:$0xff]
      %v521 = vld [vmem:[%s509 + $0x58] sm:$0xff]
      %v522 = vld [vmem:[%s509 + $0x60] sm:$0xff]
      %v523 = vld [vmem:[%s509 + $0x68] sm:$0xff]
      %v524 = vld [vmem:[%s509 + $0x70] sm:$0xff]
      %v525 = vld [vmem:[%s509 + $0x78] sm:$0xff]
      %v526 = vld [vmem:[%s509 + $0x80] sm:$0xff]
      %v527 = vld [vmem:[%s509 + $0x88] sm:$0xff]
      %v528 = vld [vmem:[%s509 + $0x90] sm:$0xff]
      %v529 = vld [vmem:[%s509 + $0x98] sm:$0xff]
      %v530 = vld [vmem:[%s509 + $0xa0] sm:$0xff]
      %v531 = vld [vmem:[%s509 + $0xa8] sm:$0xff]
      %v532 = vld [vmem:[%s509 + $0xb0] sm:$0xff]
      %v533 = vld [vmem:[%s509 + $0xb8] sm:$0xff]
      %v534 = vld [vmem:[%s509 + $0xc0] sm:$0xff]
      %v535 = vld [vmem:[%s509 + $0xc8] sm:$0xff]
      %v536 = vld [vmem:[%s509 + $0xd0] sm:$0xff]
      %v537 = vld [vmem:[%s509 + $0xd8] sm:$0xff]
      %v538 = vld [vmem:[%s509 + $0xe0] sm:$0xff]
      %v539 = vld [vmem:[%s509 + $0xe8] sm:$0xff]
      %v540 = vld [vmem:[%s509 + $0xf0] sm:$0xff]
      %v541 = vld [vmem:[%s509 + $0xf8] sm:$0xff]
      %v542 = vld [vmem:[%s509 + $0x100] sm:$0xff]
      %v543 = vld [vmem:[%s509 + $0x108] sm:$0xff]
      %v544 = vld [vmem:[%s509 + $0x110] sm:$0xff]
      %v545 = vld [vmem:[%s509 + $0x118] sm:$0xff]
      %v546 = vld [vmem:[%s509 + $0x120] sm:$0xff]
      %v547 = vld [vmem:[%s509 + $0x128] sm:$0xff]
      %v548 = vld [vmem:[%s509 + $0x130] sm:$0xff]
      %v549 = vld [vmem:[%s509 + $0x138] sm:$0xff]
      %v550 = vld [vmem:[%s509 + $0x140] sm:$0xff]
      %v551 = vld [vmem:[%s509 + $0x148] sm:$0xff]
      %v552 = vld [vmem:[%s509 + $0x150] sm:$0xff]
      %v553 = vld [vmem:[%s509 + $0x158] sm:$0xff]
      %v554 = vld [vmem:[%s509 + $0x160] sm:$0xff]
      %v555 = vld [vmem:[%s509 + $0x168] sm:$0xff]
      %v556 = vld [vmem:[%s509 + $0x170] sm:$0xff]
      %v557 = vld [vmem:[%s509 + $0x178] sm:$0xff]
      %v558 = vld [vmem:[%s509 + $0x180] sm:$0xff]
      %v559 = vld [vmem:[%s509 + $0x188] sm:$0xff]
      %v560 = vld [vmem:[%s509 + $0x190] sm:$0xff]
      %v561 = vld [vmem:[%s509 + $0x198] sm:$0xff]
      %v562 = vld [vmem:[%s509 + $0x1a0] sm:$0xff]
      %v563 = vld [vmem:[%s509 + $0x1a8] sm:$0xff]
      %v564 = vld [vmem:[%s509 + $0x1b0] sm:$0xff]
      %v565 = vld [vmem:[%s509 + $0x1b8] sm:$0xff]
      %v566 = vld [vmem:[%s509 + $0x1c0] sm:$0xff]
      %v567 = vld [vmem:[%s509 + $0x1c8] sm:$0xff]
      %v568 = vld [vmem:[%s509 + $0x1d0] sm:$0xff]
      %v569 = vld [vmem:[%s509 + $0x1d8] sm:$0xff]
      %v570 = vld [vmem:[%s509 + $0x1e0] sm:$0xff]
      %v571 = vld [vmem:[%s509 + $0x1e8] sm:$0xff]
      %v572 = vld [vmem:[%s509 + $0x1f0] sm:$0xff]
      %v573 = vld [vmem:[%s509 + $0x1f8] sm:$0xff]
      %v574 = vld [vmem:[%s509 + $0x200] sm:$0xff]
      %v575 = vld [vmem:[%s509 + $0x208] sm:$0xff]
      %v576 = vld [vmem:[%s509 + $0x210] sm:$0xff]
      %v577 = vld [vmem:[%s509 + $0x218] sm:$0xff]
      %v578 = vld [vmem:[%s509 + $0x220] sm:$0xff]
      %v579 = vld [vmem:[%s509 + $0x228] sm:$0xff]
      %v580 = vld [vmem:[%s509 + $0x230] sm:$0xff]
      %v581 = vld [vmem:[%s509 + $0x238] sm:$0xff]
      %v582 = vld [vmem:[%s509 + $0x240] sm:$0xff]
      %v583 = vld [vmem:[%s509 + $0x248] sm:$0xff]
      %v584 = vld [vmem:[%s509 + $0x250] sm:$0xff]
      %v585 = vld [vmem:[%s509 + $0x258] sm:$0xff]
      %v586 = vld [vmem:[%s509 + $0x260] sm:$0xff]
      %v587 = vld [vmem:[%s509 + $0x268] sm:$0xff]
      %v588 = vld [vmem:[%s509 + $0x270] sm:$0xff]
      %v589 = vld [vmem:[%s509 + $0x278] sm:$0xff]
      %v590 = vld [vmem:[%s509 + $0x280] sm:$0xff]
      %v591 = vld [vmem:[%s509 + $0x288] sm:$0xff]
      %v592 = vld [vmem:[%s509 + $0x290] sm:$0xff]
      %v593 = vld [vmem:[%s509 + $0x298] sm:$0xff]
      %v594 = vld [vmem:[%s509 + $0x2a0] sm:$0xff]
      %v595 = vld [vmem:[%s509 + $0x2a8] sm:$0xff]
      %v596 = vld [vmem:[%s509 + $0x2b0] sm:$0xff]
      %v597 = vld [vmem:[%s509 + $0x2b8] sm:$0xff]
      %v598 = vld [vmem:[%s509 + $0x2c0] sm:$0xff]
      %v599 = vld [vmem:[%s509 + $0x2c8] sm:$0xff]
      %v600 = vld [vmem:[%s509 + $0x2d0] sm:$0xff]
      %v601 = vld [vmem:[%s509 + $0x2d8] sm:$0xff]
      %v602 = vld [vmem:[%s509 + $0x2e0] sm:$0xff]
      %v603 = vld [vmem:[%s509 + $0x2e8] sm:$0xff]
      %v604 = vld [vmem:[%s509 + $0x2f0] sm:$0xff]
      %v605 = vld [vmem:[%s509 + $0x2f8] sm:$0xff]
      %v606 = vld [vmem:[%s509 + $0x300] sm:$0xff]
      %v607 = vld [vmem:[%s509 + $0x308] sm:$0xff]
      %v608 = vld [vmem:[%s509 + $0x310] sm:$0xff]
      %v609 = vld [vmem:[%s509 + $0x318] sm:$0xff]
      %v610 = vld [vmem:[%s509 + $0x320] sm:$0xff]
      %v611 = vld [vmem:[%s509 + $0x328] sm:$0xff]
      %v612 = vld [vmem:[%s509 + $0x330] sm:$0xff]
      %v613 = vld [vmem:[%s509 + $0x338] sm:$0xff]
      %v614 = vld [vmem:[%s509 + $0x340] sm:$0xff]
      %v615 = vld [vmem:[%s509 + $0x348] sm:$0xff]
      %v616 = vld [vmem:[%s509 + $0x350] sm:$0xff]
      %v617 = vld [vmem:[%s509 + $0x358] sm:$0xff]
      %v618 = vld [vmem:[%s509 + $0x360] sm:$0xff]
      %v619 = vld [vmem:[%s509 + $0x368] sm:$0xff]
      %v620 = vld [vmem:[%s509 + $0x370] sm:$0xff]
      %v621 = vld [vmem:[%s509 + $0x378] sm:$0xff]
      %v622 = vld [vmem:[%s509 + $0x380] sm:$0xff]
      %v623 = vld [vmem:[%s509 + $0x388] sm:$0xff]
      %v624 = vld [vmem:[%s509 + $0x390] sm:$0xff]
      %v625 = vld [vmem:[%s509 + $0x398] sm:$0xff]
      %v626 = vld [vmem:[%s509 + $0x3a0] sm:$0xff]
      %v627 = vld [vmem:[%s509 + $0x3a8] sm:$0xff]
      %v628 = vld [vmem:[%s509 + $0x3b0] sm:$0xff]
      %v629 = vld [vmem:[%s509 + $0x3b8] sm:$0xff]
      %v630 = vld [vmem:[%s509 + $0x3c0] sm:$0xff]
      %v631 = vld [vmem:[%s509 + $0x3c8] sm:$0xff]
      %v632 = vld [vmem:[%s509 + $0x3d0] sm:$0xff]
      %v633 = vld [vmem:[%s509 + $0x3d8] sm:$0xff]
      %v634 = vld [vmem:[%s509 + $0x3e0] sm:$0xff]
      %v635 = vld [vmem:[%s509 + $0x3e8] sm:$0xff]
      %v636 = vld [vmem:[%s509 + $0x3f0] sm:$0xff]
      %v637 = vld [vmem:[%s509 + $0x3f8] sm:$0xff]
      %v638 = vld [vmem:[%s509 + $0x400] sm:$0xff]
      %v639 = vld [vmem:[%s509 + $0x408] sm:$0xff]
      %v640 = vld [vmem:[%s509 + $0x410] sm:$0xff]
      %v641 = vld [vmem:[%s509 + $0x418] sm:$0xff]
      %v642 = vld [vmem:[%s509 + $0x420] sm:$0xff]
      %v643 = vld [vmem:[%s509 + $0x428] sm:$0xff]
      %v644 = vld [vmem:[%s509 + $0x430] sm:$0xff]
      %v645 = vld [vmem:[%s509 + $0x438] sm:$0xff]
      %v646 = vld [vmem:[%s509 + $0x440] sm:$0xff]
      %v647 = vld [vmem:[%s509 + $0x448] sm:$0xff]
      %v648 = vld [vmem:[%s509 + $0x450] sm:$0xff]
      %v649 = vld [vmem:[%s509 + $0x458] sm:$0xff]
      %v650 = vld [vmem:[%s509 + $0x460] sm:$0xff]
      %v651 = vld [vmem:[%s509 + $0x468] sm:$0xff]
      %v652 = vld [vmem:[%s509 + $0x470] sm:$0xff]
      %v653 = vld [vmem:[%s509 + $0x478] sm:$0xff]
      %v654 = vld [vmem:[%s509 + $0x480] sm:$0xff]
      %v655 = vld [vmem:[%s509 + $0x488] sm:$0xff]
      %v656 = vld [vmem:[%s509 + $0x490] sm:$0xff]
      %v657 = vld [vmem:[%s509 + $0x498] sm:$0xff]
      %v658 = vld [vmem:[%s509 + $0x4a0] sm:$0xff]
      %v659 = vld [vmem:[%s509 + $0x4a8] sm:$0xff]
      %v660 = vld [vmem:[%s509 + $0x4b0] sm:$0xff]
      %v661 = vld [vmem:[%s509 + $0x4b8] sm:$0xff]
      %v662 = vld [vmem:[%s509 + $0x4c0] sm:$0xff]
      %v663 = vld [vmem:[%s509 + $0x4c8] sm:$0xff]
      %v664 = vld [vmem:[%s509 + $0x4d0] sm:$0xff]
      %v665 = vld [vmem:[%s509 + $0x4d8] sm:$0xff]
      %v666 = vld [vmem:[%s509 + $0x4e0] sm:$0xff]
      %v667 = vld [vmem:[%s509 + $0x4e8] sm:$0xff]
      %v668 = vld [vmem:[%s509 + $0x4f0] sm:$0xff]
      %v669 = vld [vmem:[%s509 + $0x4f8] sm:$0xff]
      %v670 = vld [vmem:[%s509 + $0x500] sm:$0xff]
      %v671 = vld [vmem:[%s509 + $0x508] sm:$0xff]
      %v672 = vld [vmem:[%s509 + $0x510] sm:$0xff]
      %v673 = vld [vmem:[%s509 + $0x518] sm:$0xff]
      %v674 = vld [vmem:[%s509 + $0x520] sm:$0xff]
      %v675 = vld [vmem:[%s509 + $0x528] sm:$0xff]
      %v676 = vld [vmem:[%s509 + $0x530] sm:$0xff]
      %v677 = vld [vmem:[%s509 + $0x538] sm:$0xff]
      %v678 = vld [vmem:[%s509 + $0x540] sm:$0xff]
      %v679 = vld [vmem:[%s509 + $0x548] sm:$0xff]
      %v680 = vld [vmem:[%s509 + $0x550] sm:$0xff]
      %v681 = vld [vmem:[%s509 + $0x558] sm:$0xff]
      %v682 = vld [vmem:[%s509 + $0x560] sm:$0xff]
      %v683 = vld [vmem:[%s509 + $0x568] sm:$0xff]
      %v684 = vld [vmem:[%s509 + $0x570] sm:$0xff]
      %v685 = vld [vmem:[%s509 + $0x578] sm:$0xff]
      %v686 = vld [vmem:[%s509 + $0x580] sm:$0xff]
      %v687 = vld [vmem:[%s509 + $0x588] sm:$0xff]
      %v688 = vld [vmem:[%s509 + $0x590] sm:$0xff]
      %v689 = vld [vmem:[%s509 + $0x598] sm:$0xff]
      %v690 = vld [vmem:[%s509 + $0x5a0] sm:$0xff]
      %v691 = vld [vmem:[%s509 + $0x5a8] sm:$0xff]
      %v692 = vld [vmem:[%s509 + $0x5b0] sm:$0xff]
      %v693 = vld [vmem:[%s509 + $0x5b8] sm:$0xff]
      %v694 = vld [vmem:[%s509 + $0x5c0] sm:$0xff]
      %v695 = vld [vmem:[%s509 + $0x5c8] sm:$0xff]
      %v696 = vld [vmem:[%s509 + $0x5d0] sm:$0xff]
      %v697 = vld [vmem:[%s509 + $0x5d8] sm:$0xff]
      %v698 = vld [vmem:[%s509 + $0x5e0] sm:$0xff]
      %v699 = vld [vmem:[%s509 + $0x5e8] sm:$0xff]
      %v700 = vld [vmem:[%s509 + $0x5f0] sm:$0xff]
      %v701 = vld [vmem:[%s509 + $0x5f8] sm:$0xff]
      %v702 = vld [vmem:[%s509 + $0x600] sm:$0xff]
      %v703 = vld [vmem:[%s509 + $0x608] sm:$0xff]
      %v704 = vld [vmem:[%s509 + $0x610] sm:$0xff]
      %v705 = vld [vmem:[%s509 + $0x618] sm:$0xff]
      %v706 = vld [vmem:[%s509 + $0x620] sm:$0xff]
      %v707 = vld [vmem:[%s509 + $0x628] sm:$0xff]
      %v708 = vld [vmem:[%s509 + $0x630] sm:$0xff]
      %v709 = vld [vmem:[%s509 + $0x638] sm:$0xff]
      %v710 = vld [vmem:[%s509 + $0x640] sm:$0xff]
      %v711 = vld [vmem:[%s509 + $0x648] sm:$0xff]
      %v712 = vld [vmem:[%s509 + $0x650] sm:$0xff]
      %v713 = vld [vmem:[%s509 + $0x658] sm:$0xff]
      %v714 = vld [vmem:[%s509 + $0x660] sm:$0xff]
      %v715 = vld [vmem:[%s509 + $0x668] sm:$0xff]
      %v716 = vld [vmem:[%s509 + $0x670] sm:$0xff]
      %v717 = vld [vmem:[%s509 + $0x678] sm:$0xff]
      %v718 = vld [vmem:[%s509 + $0x680] sm:$0xff]
      %v719 = vld [vmem:[%s509 + $0x688] sm:$0xff]
      %v720 = vld [vmem:[%s509 + $0x690] sm:$0xff]
      %v721 = vld [vmem:[%s509 + $0x698] sm:$0xff]
      %v722 = vld [vmem:[%s509 + $0x6a0] sm:$0xff]
      %v723 = vld [vmem:[%s509 + $0x6a8] sm:$0xff]
      %v724 = vld [vmem:[%s509 + $0x6b0] sm:$0xff]
      %v725 = vld [vmem:[%s509 + $0x6b8] sm:$0xff]
      %v726 = vld [vmem:[%s509 + $0x6c0] sm:$0xff]
      %v727 = vld [vmem:[%s509 + $0x6c8] sm:$0xff]
      %v728 = vld [vmem:[%s509 + $0x6d0] sm:$0xff]
      %v729 = vld [vmem:[%s509 + $0x6d8] sm:$0xff]
      %v730 = vld [vmem:[%s509 + $0x6e0] sm:$0xff]
      %v731 = vld [vmem:[%s509 + $0x6e8] sm:$0xff]
      %v732 = vld [vmem:[%s509 + $0x6f0] sm:$0xff]
      %v733 = vld [vmem:[%s509 + $0x6f8] sm:$0xff]
      %v734 = vld [vmem:[%s509 + $0x700] sm:$0xff]
      %v735 = vld [vmem:[%s509 + $0x708] sm:$0xff]
      %v736 = vld [vmem:[%s509 + $0x710] sm:$0xff]
      %v737 = vld [vmem:[%s509 + $0x718] sm:$0xff]
      %v738 = vld [vmem:[%s509 + $0x720] sm:$0xff]
      %v739 = vld [vmem:[%s509 + $0x728] sm:$0xff]
      %v740 = vld [vmem:[%s509 + $0x730] sm:$0xff]
      %v741 = vld [vmem:[%s509 + $0x738] sm:$0xff]
      %v742 = vld [vmem:[%s509 + $0x740] sm:$0xff]
      %v743 = vld [vmem:[%s509 + $0x748] sm:$0xff]
      %v744 = vld [vmem:[%s509 + $0x750] sm:$0xff]
      %v745 = vld [vmem:[%s509 + $0x758] sm:$0xff]
      %v746 = vld [vmem:[%s509 + $0x760] sm:$0xff]
      %v747 = vld [vmem:[%s509 + $0x768] sm:$0xff]
      %v748 = vld [vmem:[%s509 + $0x770] sm:$0xff]
      %v749 = vld [vmem:[%s509 + $0x778] sm:$0xff]
      %v750 = vld [vmem:[%s509 + $0x780] sm:$0xff]
      %v751 = vld [vmem:[%s509 + $0x788] sm:$0xff]
      %v752 = vld [vmem:[%s509 + $0x790] sm:$0xff]
      %v753 = vld [vmem:[%s509 + $0x798] sm:$0xff]
      %v754 = vld [vmem:[%s509 + $0x7a0] sm:$0xff]
      %v755 = vld [vmem:[%s509 + $0x7a8] sm:$0xff]
      %v756 = vld [vmem:[%s509 + $0x7b0] sm:$0xff]
      %v757 = vld [vmem:[%s509 + $0x7b8] sm:$0xff]
      %v758 = vld [vmem:[%s509 + $0x7c0] sm:$0xff]
      %v759 = vld [vmem:[%s509 + $0x7c8] sm:$0xff]
      %v760 = vld [vmem:[%s509 + $0x7d0] sm:$0xff]
      %v761 = vld [vmem:[%s509 + $0x7d8] sm:$0xff]
      %v762 = vld [vmem:[%s509 + $0x7e0] sm:$0xff]
      %v763 = vld [vmem:[%s509 + $0x7e8] sm:$0xff]
      %v764 = vld [vmem:[%s509 + $0x7f0] sm:$0xff]
      %v765 = vld [vmem:[%s509 + $0x7f8] sm:$0xff]
      %v767 = vcombine.high %v252, %v252
      %v769 = vunpack.c.l.s4 1966171168
      %v770 = vunpack.c.0.s8 %v769
      %v771 = vlaneseq
      %v772 = vshrl.u32 %v771, 7
      %v773 = vsub.s32 %v770, %v772
      %v774 = vrot.slane %v252, %v773
      %v776 = vunpack.c.l.s4 1966171168
      %v777 = vunpack.c.0.s8 %v776
      %v778 = vlaneseq
      %v779 = vshrl.u32 %v778, 7
      %v780 = vsub.s32 %v777, %v779
      %v781 = vrot.slane %v767, %v780
      %v782 = vcombine.high %v774, %v774
      %v783 = vcombine.high %v781, %v781
      %v785 = vunpack.c.l.s4 1966171168
      %v786 = vunpack.c.0.s8 %v785
      %v787 = vlaneseq
      %v788 = vshrl.u32 %v787, 7
      %v789 = vsub.s32 %v786, %v788
      %v790 = vrot.slane %v774, %v789
      %v792 = vunpack.c.l.s4 1966171168
      %v793 = vunpack.c.0.s8 %v792
      %v794 = vlaneseq
      %v795 = vshrl.u32 %v794, 7
      %v796 = vsub.s32 %v793, %v795
      %v797 = vrot.slane %v781, %v796
      %v799 = vunpack.c.l.s4 1966171168
      %v800 = vunpack.c.0.s8 %v799
      %v801 = vlaneseq
      %v802 = vshrl.u32 %v801, 7
      %v803 = vsub.s32 %v800, %v802
      %v804 = vrot.slane %v782, %v803
      %v806 = vunpack.c.l.s4 1966171168
      %v807 = vunpack.c.0.s8 %v806
      %v808 = vlaneseq
      %v809 = vshrl.u32 %v808, 7
      %v810 = vsub.s32 %v807, %v809
      %v811 = vrot.slane %v783, %v810
      %v812 = vcombine.high %v790, %v790
      %v813 = vcombine.high %v797, %v797
      %v814 = vcombine.high %v804, %v804
      %v815 = vcombine.high %v811, %v811
      %v817 = vshrl.u32 %v790, 16
      %v820 = vshrl.u32 %v804, 16
      %v823 = vshrl.u32 %v812, 16
      %v826 = vshrl.u32 %v814, 16
      %v829 = vshrl.u32 %v797, 16
      %v832 = vshrl.u32 %v811, 16
      %v835 = vshrl.u32 %v813, 16
      %v838 = vshrl.u32 %v815, 16
      %v1104 = vunpack.c.l.b16 %v510
      %v1105 = vunpack.c.h.b16 %v510
      %v1106 = vunpack.c.l.b16 %v511
      %v1107 = vunpack.c.h.b16 %v511
      %v1108 = vunpack.c.l.b16 %v512
      %v1109 = vunpack.c.h.b16 %v512
      %v1110 = vunpack.c.l.b16 %v513
      %v1111 = vunpack.c.h.b16 %v513
      %v1112 = vunpack.c.l.b16 %v514
      %v1113 = vunpack.c.h.b16 %v514
      %v1114 = vunpack.c.l.b16 %v515
      %v1115 = vunpack.c.h.b16 %v515
      %v1116 = vunpack.c.l.b16 %v516
      %v1117 = vunpack.c.h.b16 %v516
      %v1118 = vunpack.c.l.b16 %v517
      %v1119 = vunpack.c.h.b16 %v517
      %v1120 = vunpack.c.l.b16 %v518
      %v1121 = vunpack.c.h.b16 %v518
      %v1122 = vunpack.c.l.b16 %v519
      %v1123 = vunpack.c.h.b16 %v519
      %v1124 = vunpack.c.l.b16 %v520
      %v1125 = vunpack.c.h.b16 %v520
      %v1126 = vunpack.c.l.b16 %v521
      %v1127 = vunpack.c.h.b16 %v521
      %v1128 = vunpack.c.l.b16 %v522
      %v1129 = vunpack.c.h.b16 %v522
      %v1130 = vunpack.c.l.b16 %v523
      %v1131 = vunpack.c.h.b16 %v523
      %v1132 = vunpack.c.l.b16 %v524
      %v1133 = vunpack.c.h.b16 %v524
      %v1134 = vunpack.c.l.b16 %v525
      %v1135 = vunpack.c.h.b16 %v525
      %v1136 = vunpack.c.l.b16 %v526
      %v1137 = vunpack.c.h.b16 %v526
      %v1138 = vunpack.c.l.b16 %v527
      %v1139 = vunpack.c.h.b16 %v527
      %v1140 = vunpack.c.l.b16 %v528
      %v1141 = vunpack.c.h.b16 %v528
      %v1142 = vunpack.c.l.b16 %v529
      %v1143 = vunpack.c.h.b16 %v529
      %v1144 = vunpack.c.l.b16 %v530
      %v1145 = vunpack.c.h.b16 %v530
      %v1146 = vunpack.c.l.b16 %v531
      %v1147 = vunpack.c.h.b16 %v531
      %v1148 = vunpack.c.l.b16 %v532
      %v1149 = vunpack.c.h.b16 %v532
      %v1150 = vunpack.c.l.b16 %v533
      %v1151 = vunpack.c.h.b16 %v533
      %v1152 = vunpack.c.l.b16 %v534
      %v1153 = vunpack.c.h.b16 %v534
      %v1154 = vunpack.c.l.b16 %v535
      %v1155 = vunpack.c.h.b16 %v535
      %v1156 = vunpack.c.l.b16 %v536
      %v1157 = vunpack.c.h.b16 %v536
      %v1158 = vunpack.c.l.b16 %v537
      %v1159 = vunpack.c.h.b16 %v537
      %v1160 = vunpack.c.l.b16 %v538
      %v1161 = vunpack.c.h.b16 %v538
      %v1162 = vunpack.c.l.b16 %v539
      %v1163 = vunpack.c.h.b16 %v539
      %v1164 = vunpack.c.l.b16 %v540
      %v1165 = vunpack.c.h.b16 %v540
      %v1166 = vunpack.c.l.b16 %v541
      %v1167 = vunpack.c.h.b16 %v541
      %v1168 = vunpack.c.l.b16 %v542
      %v1169 = vunpack.c.h.b16 %v542
      %v1170 = vunpack.c.l.b16 %v543
      %v1171 = vunpack.c.h.b16 %v543
      %v1172 = vunpack.c.l.b16 %v544
      %v1173 = vunpack.c.h.b16 %v544
      %v1174 = vunpack.c.l.b16 %v545
      %v1175 = vunpack.c.h.b16 %v545
      %v1176 = vunpack.c.l.b16 %v546
      %v1177 = vunpack.c.h.b16 %v546
      %v1178 = vunpack.c.l.b16 %v547
      %v1179 = vunpack.c.h.b16 %v547
      %v1180 = vunpack.c.l.b16 %v548
      %v1181 = vunpack.c.h.b16 %v548
      %v1182 = vunpack.c.l.b16 %v549
      %v1183 = vunpack.c.h.b16 %v549
      %v1184 = vunpack.c.l.b16 %v550
      %v1185 = vunpack.c.h.b16 %v550
      %v1186 = vunpack.c.l.b16 %v551
      %v1187 = vunpack.c.h.b16 %v551
      %v1188 = vunpack.c.l.b16 %v552
      %v1189 = vunpack.c.h.b16 %v552
      %v1190 = vunpack.c.l.b16 %v553
      %v1191 = vunpack.c.h.b16 %v553
      %v1192 = vunpack.c.l.b16 %v554
      %v1193 = vunpack.c.h.b16 %v554
      %v1194 = vunpack.c.l.b16 %v555
      %v1195 = vunpack.c.h.b16 %v555
      %v1196 = vunpack.c.l.b16 %v556
      %v1197 = vunpack.c.h.b16 %v556
      %v1198 = vunpack.c.l.b16 %v557
      %v1199 = vunpack.c.h.b16 %v557
      %v1200 = vunpack.c.l.b16 %v558
      %v1201 = vunpack.c.h.b16 %v558
      %v1202 = vunpack.c.l.b16 %v559
      %v1203 = vunpack.c.h.b16 %v559
      %v1204 = vunpack.c.l.b16 %v560
      %v1205 = vunpack.c.h.b16 %v560
      %v1206 = vunpack.c.l.b16 %v561
      %v1207 = vunpack.c.h.b16 %v561
      %v1208 = vunpack.c.l.b16 %v562
      %v1209 = vunpack.c.h.b16 %v562
      %v1210 = vunpack.c.l.b16 %v563
      %v1211 = vunpack.c.h.b16 %v563
      %v1212 = vunpack.c.l.b16 %v564
      %v1213 = vunpack.c.h.b16 %v564
      %v1214 = vunpack.c.l.b16 %v565
      %v1215 = vunpack.c.h.b16 %v565
      %v1216 = vunpack.c.l.b16 %v566
      %v1217 = vunpack.c.h.b16 %v566
      %v1218 = vunpack.c.l.b16 %v567
      %v1219 = vunpack.c.h.b16 %v567
      %v1220 = vunpack.c.l.b16 %v568
      %v1221 = vunpack.c.h.b16 %v568
      %v1222 = vunpack.c.l.b16 %v569
      %v1223 = vunpack.c.h.b16 %v569
      %v1224 = vunpack.c.l.b16 %v570
      %v1225 = vunpack.c.h.b16 %v570
      %v1226 = vunpack.c.l.b16 %v571
      %v1227 = vunpack.c.h.b16 %v571
      %v1228 = vunpack.c.l.b16 %v572
      %v1229 = vunpack.c.h.b16 %v572
      %v1230 = vunpack.c.l.b16 %v573
      %v1231 = vunpack.c.h.b16 %v573
      %v1232 = vunpack.c.l.b16 %v574
      %v1233 = vunpack.c.h.b16 %v574
      %v1234 = vunpack.c.l.b16 %v575
      %v1235 = vunpack.c.h.b16 %v575
      %v1236 = vunpack.c.l.b16 %v576
      %v1237 = vunpack.c.h.b16 %v576
      %v1238 = vunpack.c.l.b16 %v577
      %v1239 = vunpack.c.h.b16 %v577
      %v1240 = vunpack.c.l.b16 %v578
      %v1241 = vunpack.c.h.b16 %v578
      %v1242 = vunpack.c.l.b16 %v579
      %v1243 = vunpack.c.h.b16 %v579
      %v1244 = vunpack.c.l.b16 %v580
      %v1245 = vunpack.c.h.b16 %v580
      %v1246 = vunpack.c.l.b16 %v581
      %v1247 = vunpack.c.h.b16 %v581
      %v1248 = vunpack.c.l.b16 %v582
      %v1249 = vunpack.c.h.b16 %v582
      %v1250 = vunpack.c.l.b16 %v583
      %v1251 = vunpack.c.h.b16 %v583
      %v1252 = vunpack.c.l.b16 %v584
      %v1253 = vunpack.c.h.b16 %v584
      %v1254 = vunpack.c.l.b16 %v585
      %v1255 = vunpack.c.h.b16 %v585
      %v1256 = vunpack.c.l.b16 %v586
      %v1257 = vunpack.c.h.b16 %v586
      %v1258 = vunpack.c.l.b16 %v587
      %v1259 = vunpack.c.h.b16 %v587
      %v1260 = vunpack.c.l.b16 %v588
      %v1261 = vunpack.c.h.b16 %v588
      %v1262 = vunpack.c.l.b16 %v589
      %v1263 = vunpack.c.h.b16 %v589
      %v1264 = vunpack.c.l.b16 %v590
      %v1265 = vunpack.c.h.b16 %v590
      %v1266 = vunpack.c.l.b16 %v591
      %v1267 = vunpack.c.h.b16 %v591
      %v1268 = vunpack.c.l.b16 %v592
      %v1269 = vunpack.c.h.b16 %v592
      %v1270 = vunpack.c.l.b16 %v593
      %v1271 = vunpack.c.h.b16 %v593
      %v1272 = vunpack.c.l.b16 %v594
      %v1273 = vunpack.c.h.b16 %v594
      %v1274 = vunpack.c.l.b16 %v595
      %v1275 = vunpack.c.h.b16 %v595
      %v1276 = vunpack.c.l.b16 %v596
      %v1277 = vunpack.c.h.b16 %v596
      %v1278 = vunpack.c.l.b16 %v597
      %v1279 = vunpack.c.h.b16 %v597
      %v1280 = vunpack.c.l.b16 %v598
      %v1281 = vunpack.c.h.b16 %v598
      %v1282 = vunpack.c.l.b16 %v599
      %v1283 = vunpack.c.h.b16 %v599
      %v1284 = vunpack.c.l.b16 %v600
      %v1285 = vunpack.c.h.b16 %v600
      %v1286 = vunpack.c.l.b16 %v601
      %v1287 = vunpack.c.h.b16 %v601
      %v1288 = vunpack.c.l.b16 %v602
      %v1289 = vunpack.c.h.b16 %v602
      %v1290 = vunpack.c.l.b16 %v603
      %v1291 = vunpack.c.h.b16 %v603
      %v1292 = vunpack.c.l.b16 %v604
      %v1293 = vunpack.c.h.b16 %v604
      %v1294 = vunpack.c.l.b16 %v605
      %v1295 = vunpack.c.h.b16 %v605
      %v1296 = vunpack.c.l.b16 %v606
      %v1297 = vunpack.c.h.b16 %v606
      %v1298 = vunpack.c.l.b16 %v607
      %v1299 = vunpack.c.h.b16 %v607
      %v1300 = vunpack.c.l.b16 %v608
      %v1301 = vunpack.c.h.b16 %v608
      %v1302 = vunpack.c.l.b16 %v609
      %v1303 = vunpack.c.h.b16 %v609
      %v1304 = vunpack.c.l.b16 %v610
      %v1305 = vunpack.c.h.b16 %v610
      %v1306 = vunpack.c.l.b16 %v611
      %v1307 = vunpack.c.h.b16 %v611
      %v1308 = vunpack.c.l.b16 %v612
      %v1309 = vunpack.c.h.b16 %v612
      %v1310 = vunpack.c.l.b16 %v613
      %v1311 = vunpack.c.h.b16 %v613
      %v1312 = vunpack.c.l.b16 %v614
      %v1313 = vunpack.c.h.b16 %v614
      %v1314 = vunpack.c.l.b16 %v615
      %v1315 = vunpack.c.h.b16 %v615
      %v1316 = vunpack.c.l.b16 %v616
      %v1317 = vunpack.c.h.b16 %v616
      %v1318 = vunpack.c.l.b16 %v617
      %v1319 = vunpack.c.h.b16 %v617
      %v1320 = vunpack.c.l.b16 %v618
      %v1321 = vunpack.c.h.b16 %v618
      %v1322 = vunpack.c.l.b16 %v619
      %v1323 = vunpack.c.h.b16 %v619
      %v1324 = vunpack.c.l.b16 %v620
      %v1325 = vunpack.c.h.b16 %v620
      %v1326 = vunpack.c.l.b16 %v621
      %v1327 = vunpack.c.h.b16 %v621
      %v1328 = vunpack.c.l.b16 %v622
      %v1329 = vunpack.c.h.b16 %v622
      %v1330 = vunpack.c.l.b16 %v623
      %v1331 = vunpack.c.h.b16 %v623
      %v1332 = vunpack.c.l.b16 %v624
      %v1333 = vunpack.c.h.b16 %v624
      %v1334 = vunpack.c.l.b16 %v625
      %v1335 = vunpack.c.h.b16 %v625
      %v1336 = vunpack.c.l.b16 %v626
      %v1337 = vunpack.c.h.b16 %v626
      %v1338 = vunpack.c.l.b16 %v627
      %v1339 = vunpack.c.h.b16 %v627
      %v1340 = vunpack.c.l.b16 %v628
      %v1341 = vunpack.c.h.b16 %v628
      %v1342 = vunpack.c.l.b16 %v629
      %v1343 = vunpack.c.h.b16 %v629
      %v1344 = vunpack.c.l.b16 %v630
      %v1345 = vunpack.c.h.b16 %v630
      %v1346 = vunpack.c.l.b16 %v631
      %v1347 = vunpack.c.h.b16 %v631
      %v1348 = vunpack.c.l.b16 %v632
      %v1349 = vunpack.c.h.b16 %v632
      %v1350 = vunpack.c.l.b16 %v633
      %v1351 = vunpack.c.h.b16 %v633
      %v1352 = vunpack.c.l.b16 %v634
      %v1353 = vunpack.c.h.b16 %v634
      %v1354 = vunpack.c.l.b16 %v635
      %v1355 = vunpack.c.h.b16 %v635
      %v1356 = vunpack.c.l.b16 %v636
      %v1357 = vunpack.c.h.b16 %v636
      %v1358 = vunpack.c.l.b16 %v637
      %v1359 = vunpack.c.h.b16 %v637
      %v1360 = vunpack.c.l.b16 %v638
      %v1361 = vunpack.c.h.b16 %v638
      %v1362 = vunpack.c.l.b16 %v639
      %v1363 = vunpack.c.h.b16 %v639
      %v1364 = vunpack.c.l.b16 %v640
      %v1365 = vunpack.c.h.b16 %v640
      %v1366 = vunpack.c.l.b16 %v641
      %v1367 = vunpack.c.h.b16 %v641
      %v1368 = vunpack.c.l.b16 %v642
      %v1369 = vunpack.c.h.b16 %v642
      %v1370 = vunpack.c.l.b16 %v643
      %v1371 = vunpack.c.h.b16 %v643
      %v1372 = vunpack.c.l.b16 %v644
      %v1373 = vunpack.c.h.b16 %v644
      %v1374 = vunpack.c.l.b16 %v645
      %v1375 = vunpack.c.h.b16 %v645
      %v1376 = vunpack.c.l.b16 %v646
      %v1377 = vunpack.c.h.b16 %v646
      %v1378 = vunpack.c.l.b16 %v647
      %v1379 = vunpack.c.h.b16 %v647
      %v1380 = vunpack.c.l.b16 %v648
      %v1381 = vunpack.c.h.b16 %v648
      %v1382 = vunpack.c.l.b16 %v649
      %v1383 = vunpack.c.h.b16 %v649
      %v1384 = vunpack.c.l.b16 %v650
      %v1385 = vunpack.c.h.b16 %v650
      %v1386 = vunpack.c.l.b16 %v651
      %v1387 = vunpack.c.h.b16 %v651
      %v1388 = vunpack.c.l.b16 %v652
      %v1389 = vunpack.c.h.b16 %v652
      %v1390 = vunpack.c.l.b16 %v653
      %v1391 = vunpack.c.h.b16 %v653
      %v1392 = vunpack.c.l.b16 %v654
      %v1393 = vunpack.c.h.b16 %v654
      %v1394 = vunpack.c.l.b16 %v655
      %v1395 = vunpack.c.h.b16 %v655
      %v1396 = vunpack.c.l.b16 %v656
      %v1397 = vunpack.c.h.b16 %v656
      %v1398 = vunpack.c.l.b16 %v657
      %v1399 = vunpack.c.h.b16 %v657
      %v1400 = vunpack.c.l.b16 %v658
      %v1401 = vunpack.c.h.b16 %v658
      %v1402 = vunpack.c.l.b16 %v659
      %v1403 = vunpack.c.h.b16 %v659
      %v1404 = vunpack.c.l.b16 %v660
      %v1405 = vunpack.c.h.b16 %v660
      %v1406 = vunpack.c.l.b16 %v661
      %v1407 = vunpack.c.h.b16 %v661
      %v1408 = vunpack.c.l.b16 %v662
      %v1409 = vunpack.c.h.b16 %v662
      %v1410 = vunpack.c.l.b16 %v663
      %v1411 = vunpack.c.h.b16 %v663
      %v1412 = vunpack.c.l.b16 %v664
      %v1413 = vunpack.c.h.b16 %v664
      %v1414 = vunpack.c.l.b16 %v665
      %v1415 = vunpack.c.h.b16 %v665
      %v1416 = vunpack.c.l.b16 %v666
      %v1417 = vunpack.c.h.b16 %v666
      %v1418 = vunpack.c.l.b16 %v667
      %v1419 = vunpack.c.h.b16 %v667
      %v1420 = vunpack.c.l.b16 %v668
      %v1421 = vunpack.c.h.b16 %v668
      %v1422 = vunpack.c.l.b16 %v669
      %v1423 = vunpack.c.h.b16 %v669
      %v1424 = vunpack.c.l.b16 %v670
      %v1425 = vunpack.c.h.b16 %v670
      %v1426 = vunpack.c.l.b16 %v671
      %v1427 = vunpack.c.h.b16 %v671
      %v1428 = vunpack.c.l.b16 %v672
      %v1429 = vunpack.c.h.b16 %v672
      %v1430 = vunpack.c.l.b16 %v673
      %v1431 = vunpack.c.h.b16 %v673
      %v1432 = vunpack.c.l.b16 %v674
      %v1433 = vunpack.c.h.b16 %v674
      %v1434 = vunpack.c.l.b16 %v675
      %v1435 = vunpack.c.h.b16 %v675
      %v1436 = vunpack.c.l.b16 %v676
      %v1437 = vunpack.c.h.b16 %v676
      %v1438 = vunpack.c.l.b16 %v677
      %v1439 = vunpack.c.h.b16 %v677
      %v1440 = vunpack.c.l.b16 %v678
      %v1441 = vunpack.c.h.b16 %v678
      %v1442 = vunpack.c.l.b16 %v679
      %v1443 = vunpack.c.h.b16 %v679
      %v1444 = vunpack.c.l.b16 %v680
      %v1445 = vunpack.c.h.b16 %v680
      %v1446 = vunpack.c.l.b16 %v681
      %v1447 = vunpack.c.h.b16 %v681
      %v1448 = vunpack.c.l.b16 %v682
      %v1449 = vunpack.c.h.b16 %v682
      %v1450 = vunpack.c.l.b16 %v683
      %v1451 = vunpack.c.h.b16 %v683
      %v1452 = vunpack.c.l.b16 %v684
      %v1453 = vunpack.c.h.b16 %v684
      %v1454 = vunpack.c.l.b16 %v685
      %v1455 = vunpack.c.h.b16 %v685
      %v1456 = vunpack.c.l.b16 %v686
      %v1457 = vunpack.c.h.b16 %v686
      %v1458 = vunpack.c.l.b16 %v687
      %v1459 = vunpack.c.h.b16 %v687
      %v1460 = vunpack.c.l.b16 %v688
      %v1461 = vunpack.c.h.b16 %v688
      %v1462 = vunpack.c.l.b16 %v689
      %v1463 = vunpack.c.h.b16 %v689
      %v1464 = vunpack.c.l.b16 %v690
      %v1465 = vunpack.c.h.b16 %v690
      %v1466 = vunpack.c.l.b16 %v691
      %v1467 = vunpack.c.h.b16 %v691
      %v1468 = vunpack.c.l.b16 %v692
      %v1469 = vunpack.c.h.b16 %v692
      %v1470 = vunpack.c.l.b16 %v693
      %v1471 = vunpack.c.h.b16 %v693
      %v1472 = vunpack.c.l.b16 %v694
      %v1473 = vunpack.c.h.b16 %v694
      %v1474 = vunpack.c.l.b16 %v695
      %v1475 = vunpack.c.h.b16 %v695
      %v1476 = vunpack.c.l.b16 %v696
      %v1477 = vunpack.c.h.b16 %v696
      %v1478 = vunpack.c.l.b16 %v697
      %v1479 = vunpack.c.h.b16 %v697
      %v1480 = vunpack.c.l.b16 %v698
      %v1481 = vunpack.c.h.b16 %v698
      %v1482 = vunpack.c.l.b16 %v699
      %v1483 = vunpack.c.h.b16 %v699
      %v1484 = vunpack.c.l.b16 %v700
      %v1485 = vunpack.c.h.b16 %v700
      %v1486 = vunpack.c.l.b16 %v701
      %v1487 = vunpack.c.h.b16 %v701
      %v1488 = vunpack.c.l.b16 %v702
      %v1489 = vunpack.c.h.b16 %v702
      %v1490 = vunpack.c.l.b16 %v703
      %v1491 = vunpack.c.h.b16 %v703
      %v1492 = vunpack.c.l.b16 %v704
      %v1493 = vunpack.c.h.b16 %v704
      %v1494 = vunpack.c.l.b16 %v705
      %v1495 = vunpack.c.h.b16 %v705
      %v1496 = vunpack.c.l.b16 %v706
      %v1497 = vunpack.c.h.b16 %v706
      %v1498 = vunpack.c.l.b16 %v707
      %v1499 = vunpack.c.h.b16 %v707
      %v1500 = vunpack.c.l.b16 %v708
      %v1501 = vunpack.c.h.b16 %v708
      %v1502 = vunpack.c.l.b16 %v709
      %v1503 = vunpack.c.h.b16 %v709
      %v1504 = vunpack.c.l.b16 %v710
      %v1505 = vunpack.c.h.b16 %v710
      %v1506 = vunpack.c.l.b16 %v711
      %v1507 = vunpack.c.h.b16 %v711
      %v1508 = vunpack.c.l.b16 %v712
      %v1509 = vunpack.c.h.b16 %v712
      %v1510 = vunpack.c.l.b16 %v713
      %v1511 = vunpack.c.h.b16 %v713
      %v1512 = vunpack.c.l.b16 %v714
      %v1513 = vunpack.c.h.b16 %v714
      %v1514 = vunpack.c.l.b16 %v715
      %v1515 = vunpack.c.h.b16 %v715
      %v1516 = vunpack.c.l.b16 %v716
      %v1517 = vunpack.c.h.b16 %v716
      %v1518 = vunpack.c.l.b16 %v717
      %v1519 = vunpack.c.h.b16 %v717
      %v1520 = vunpack.c.l.b16 %v718
      %v1521 = vunpack.c.h.b16 %v718
      %v1522 = vunpack.c.l.b16 %v719
      %v1523 = vunpack.c.h.b16 %v719
      %v1524 = vunpack.c.l.b16 %v720
      %v1525 = vunpack.c.h.b16 %v720
      %v1526 = vunpack.c.l.b16 %v721
      %v1527 = vunpack.c.h.b16 %v721
      %v1528 = vunpack.c.l.b16 %v722
      %v1529 = vunpack.c.h.b16 %v722
      %v1530 = vunpack.c.l.b16 %v723
      %v1531 = vunpack.c.h.b16 %v723
      %v1532 = vunpack.c.l.b16 %v724
      %v1533 = vunpack.c.h.b16 %v724
      %v1534 = vunpack.c.l.b16 %v725
      %v1535 = vunpack.c.h.b16 %v725
      %v1536 = vunpack.c.l.b16 %v726
      %v1537 = vunpack.c.h.b16 %v726
      %v1538 = vunpack.c.l.b16 %v727
      %v1539 = vunpack.c.h.b16 %v727
      %v1540 = vunpack.c.l.b16 %v728
      %v1541 = vunpack.c.h.b16 %v728
      %v1542 = vunpack.c.l.b16 %v729
      %v1543 = vunpack.c.h.b16 %v729
      %v1544 = vunpack.c.l.b16 %v730
      %v1545 = vunpack.c.h.b16 %v730
      %v1546 = vunpack.c.l.b16 %v731
      %v1547 = vunpack.c.h.b16 %v731
      %v1548 = vunpack.c.l.b16 %v732
      %v1549 = vunpack.c.h.b16 %v732
      %v1550 = vunpack.c.l.b16 %v733
      %v1551 = vunpack.c.h.b16 %v733
      %v1552 = vunpack.c.l.b16 %v734
      %v1553 = vunpack.c.h.b16 %v734
      %v1554 = vunpack.c.l.b16 %v735
      %v1555 = vunpack.c.h.b16 %v735
      %v1556 = vunpack.c.l.b16 %v736
      %v1557 = vunpack.c.h.b16 %v736
      %v1558 = vunpack.c.l.b16 %v737
      %v1559 = vunpack.c.h.b16 %v737
      %v1560 = vunpack.c.l.b16 %v738
      %v1561 = vunpack.c.h.b16 %v738
      %v1562 = vunpack.c.l.b16 %v739
      %v1563 = vunpack.c.h.b16 %v739
      %v1564 = vunpack.c.l.b16 %v740
      %v1565 = vunpack.c.h.b16 %v740
      %v1566 = vunpack.c.l.b16 %v741
      %v1567 = vunpack.c.h.b16 %v741
      %v1568 = vunpack.c.l.b16 %v742
      %v1569 = vunpack.c.h.b16 %v742
      %v1570 = vunpack.c.l.b16 %v743
      %v1571 = vunpack.c.h.b16 %v743
      %v1572 = vunpack.c.l.b16 %v744
      %v1573 = vunpack.c.h.b16 %v744
      %v1574 = vunpack.c.l.b16 %v745
      %v1575 = vunpack.c.h.b16 %v745
      %v1576 = vunpack.c.l.b16 %v746
      %v1577 = vunpack.c.h.b16 %v746
      %v1578 = vunpack.c.l.b16 %v747
      %v1579 = vunpack.c.h.b16 %v747
      %v1580 = vunpack.c.l.b16 %v748
      %v1581 = vunpack.c.h.b16 %v748
      %v1582 = vunpack.c.l.b16 %v749
      %v1583 = vunpack.c.h.b16 %v749
      %v1584 = vunpack.c.l.b16 %v750
      %v1585 = vunpack.c.h.b16 %v750
      %v1586 = vunpack.c.l.b16 %v751
      %v1587 = vunpack.c.h.b16 %v751
      %v1588 = vunpack.c.l.b16 %v752
      %v1589 = vunpack.c.h.b16 %v752
      %v1590 = vunpack.c.l.b16 %v753
      %v1591 = vunpack.c.h.b16 %v753
      %v1592 = vunpack.c.l.b16 %v754
      %v1593 = vunpack.c.h.b16 %v754
      %v1594 = vunpack.c.l.b16 %v755
      %v1595 = vunpack.c.h.b16 %v755
      %v1596 = vunpack.c.l.b16 %v756
      %v1597 = vunpack.c.h.b16 %v756
      %v1598 = vunpack.c.l.b16 %v757
      %v1599 = vunpack.c.h.b16 %v757
      %v1600 = vunpack.c.l.b16 %v758
      %v1601 = vunpack.c.h.b16 %v758
      %v1602 = vunpack.c.l.b16 %v759
      %v1603 = vunpack.c.h.b16 %v759
      %v1604 = vunpack.c.l.b16 %v760
      %v1605 = vunpack.c.h.b16 %v760
      %v1606 = vunpack.c.l.b16 %v761
      %v1607 = vunpack.c.h.b16 %v761
      %v1608 = vunpack.c.l.b16 %v762
      %v1609 = vunpack.c.h.b16 %v762
      %v1610 = vunpack.c.l.b16 %v763
      %v1611 = vunpack.c.h.b16 %v763
      %v1612 = vunpack.c.l.b16 %v764
      %v1613 = vunpack.c.h.b16 %v764
      %v1614 = vunpack.c.l.b16 %v765
      %v1615 = vunpack.c.h.b16 %v765
      %v1616 = vpack.c.b16 %v1108, %v1104
      %v1617 = vpack.c.b16 %v1109, %v1105
      %v1618 = vpack.c.b16 %v1110, %v1106
      %v1619 = vpack.c.b16 %v1111, %v1107
      %v1620 = vpack.c.b16 %v1116, %v1112
      %v1621 = vpack.c.b16 %v1117, %v1113
      %v1622 = vpack.c.b16 %v1118, %v1114
      %v1623 = vpack.c.b16 %v1119, %v1115
      %v1624 = vpack.c.b16 %v1124, %v1120
      %v1625 = vpack.c.b16 %v1125, %v1121
      %v1626 = vpack.c.b16 %v1126, %v1122
      %v1627 = vpack.c.b16 %v1127, %v1123
      %v1628 = vpack.c.b16 %v1132, %v1128
      %v1629 = vpack.c.b16 %v1133, %v1129
      %v1630 = vpack.c.b16 %v1134, %v1130
      %v1631 = vpack.c.b16 %v1135, %v1131
      %v1632 = vpack.c.b16 %v1140, %v1136
      %v1633 = vpack.c.b16 %v1141, %v1137
      %v1634 = vpack.c.b16 %v1142, %v1138
      %v1635 = vpack.c.b16 %v1143, %v1139
      %v1636 = vpack.c.b16 %v1148, %v1144
      %v1637 = vpack.c.b16 %v1149, %v1145
      %v1638 = vpack.c.b16 %v1150, %v1146
      %v1639 = vpack.c.b16 %v1151, %v1147
      %v1640 = vpack.c.b16 %v1156, %v1152
      %v1641 = vpack.c.b16 %v1157, %v1153
      %v1642 = vpack.c.b16 %v1158, %v1154
      %v1643 = vpack.c.b16 %v1159, %v1155
      %v1644 = vpack.c.b16 %v1164, %v1160
      %v1645 = vpack.c.b16 %v1165, %v1161
      %v1646 = vpack.c.b16 %v1166, %v1162
      %v1647 = vpack.c.b16 %v1167, %v1163
      %v1648 = vpack.c.b16 %v1172, %v1168
      %v1649 = vpack.c.b16 %v1173, %v1169
      %v1650 = vpack.c.b16 %v1174, %v1170
      %v1651 = vpack.c.b16 %v1175, %v1171
      %v1652 = vpack.c.b16 %v1180, %v1176
      %v1653 = vpack.c.b16 %v1181, %v1177
      %v1654 = vpack.c.b16 %v1182, %v1178
      %v1655 = vpack.c.b16 %v1183, %v1179
      %v1656 = vpack.c.b16 %v1188, %v1184
      %v1657 = vpack.c.b16 %v1189, %v1185
      %v1658 = vpack.c.b16 %v1190, %v1186
      %v1659 = vpack.c.b16 %v1191, %v1187
      %v1660 = vpack.c.b16 %v1196, %v1192
      %v1661 = vpack.c.b16 %v1197, %v1193
      %v1662 = vpack.c.b16 %v1198, %v1194
      %v1663 = vpack.c.b16 %v1199, %v1195
      %v1664 = vpack.c.b16 %v1204, %v1200
      %v1665 = vpack.c.b16 %v1205, %v1201
      %v1666 = vpack.c.b16 %v1206, %v1202
      %v1667 = vpack.c.b16 %v1207, %v1203
      %v1668 = vpack.c.b16 %v1212, %v1208
      %v1669 = vpack.c.b16 %v1213, %v1209
      %v1670 = vpack.c.b16 %v1214, %v1210
      %v1671 = vpack.c.b16 %v1215, %v1211
      %v1672 = vpack.c.b16 %v1220, %v1216
      %v1673 = vpack.c.b16 %v1221, %v1217
      %v1674 = vpack.c.b16 %v1222, %v1218
      %v1675 = vpack.c.b16 %v1223, %v1219
      %v1676 = vpack.c.b16 %v1228, %v1224
      %v1677 = vpack.c.b16 %v1229, %v1225
      %v1678 = vpack.c.b16 %v1230, %v1226
      %v1679 = vpack.c.b16 %v1231, %v1227
      %v1680 = vpack.c.b16 %v1236, %v1232
      %v1681 = vpack.c.b16 %v1237, %v1233
      %v1682 = vpack.c.b16 %v1238, %v1234
      %v1683 = vpack.c.b16 %v1239, %v1235
      %v1684 = vpack.c.b16 %v1244, %v1240
      %v1685 = vpack.c.b16 %v1245, %v1241
      %v1686 = vpack.c.b16 %v1246, %v1242
      %v1687 = vpack.c.b16 %v1247, %v1243
      %v1688 = vpack.c.b16 %v1252, %v1248
      %v1689 = vpack.c.b16 %v1253, %v1249
      %v1690 = vpack.c.b16 %v1254, %v1250
      %v1691 = vpack.c.b16 %v1255, %v1251
      %v1692 = vpack.c.b16 %v1260, %v1256
      %v1693 = vpack.c.b16 %v1261, %v1257
      %v1694 = vpack.c.b16 %v1262, %v1258
      %v1695 = vpack.c.b16 %v1263, %v1259
      %v1696 = vpack.c.b16 %v1268, %v1264
      %v1697 = vpack.c.b16 %v1269, %v1265
      %v1698 = vpack.c.b16 %v1270, %v1266
      %v1699 = vpack.c.b16 %v1271, %v1267
      %v1700 = vpack.c.b16 %v1276, %v1272
      %v1701 = vpack.c.b16 %v1277, %v1273
      %v1702 = vpack.c.b16 %v1278, %v1274
      %v1703 = vpack.c.b16 %v1279, %v1275
      %v1704 = vpack.c.b16 %v1284, %v1280
      %v1705 = vpack.c.b16 %v1285, %v1281
      %v1706 = vpack.c.b16 %v1286, %v1282
      %v1707 = vpack.c.b16 %v1287, %v1283
      %v1708 = vpack.c.b16 %v1292, %v1288
      %v1709 = vpack.c.b16 %v1293, %v1289
      %v1710 = vpack.c.b16 %v1294, %v1290
      %v1711 = vpack.c.b16 %v1295, %v1291
      %v1712 = vpack.c.b16 %v1300, %v1296
      %v1713 = vpack.c.b16 %v1301, %v1297
      %v1714 = vpack.c.b16 %v1302, %v1298
      %v1715 = vpack.c.b16 %v1303, %v1299
      %v1716 = vpack.c.b16 %v1308, %v1304
      %v1717 = vpack.c.b16 %v1309, %v1305
      %v1718 = vpack.c.b16 %v1310, %v1306
      %v1719 = vpack.c.b16 %v1311, %v1307
      %v1720 = vpack.c.b16 %v1316, %v1312
      %v1721 = vpack.c.b16 %v1317, %v1313
      %v1722 = vpack.c.b16 %v1318, %v1314
      %v1723 = vpack.c.b16 %v1319, %v1315
      %v1724 = vpack.c.b16 %v1324, %v1320
      %v1725 = vpack.c.b16 %v1325, %v1321
      %v1726 = vpack.c.b16 %v1326, %v1322
      %v1727 = vpack.c.b16 %v1327, %v1323
      %v1728 = vpack.c.b16 %v1332, %v1328
      %v1729 = vpack.c.b16 %v1333, %v1329
      %v1730 = vpack.c.b16 %v1334, %v1330
      %v1731 = vpack.c.b16 %v1335, %v1331
      %v1732 = vpack.c.b16 %v1340, %v1336
      %v1733 = vpack.c.b16 %v1341, %v1337
      %v1734 = vpack.c.b16 %v1342, %v1338
      %v1735 = vpack.c.b16 %v1343, %v1339
      %v1736 = vpack.c.b16 %v1348, %v1344
      %v1737 = vpack.c.b16 %v1349, %v1345
      %v1738 = vpack.c.b16 %v1350, %v1346
      %v1739 = vpack.c.b16 %v1351, %v1347
      %v1740 = vpack.c.b16 %v1356, %v1352
      %v1741 = vpack.c.b16 %v1357, %v1353
      %v1742 = vpack.c.b16 %v1358, %v1354
      %v1743 = vpack.c.b16 %v1359, %v1355
      %v1744 = vpack.c.b16 %v1364, %v1360
      %v1745 = vpack.c.b16 %v1365, %v1361
      %v1746 = vpack.c.b16 %v1366, %v1362
      %v1747 = vpack.c.b16 %v1367, %v1363
      %v1748 = vpack.c.b16 %v1372, %v1368
      %v1749 = vpack.c.b16 %v1373, %v1369
      %v1750 = vpack.c.b16 %v1374, %v1370
      %v1751 = vpack.c.b16 %v1375, %v1371
      %v1752 = vpack.c.b16 %v1380, %v1376
      %v1753 = vpack.c.b16 %v1381, %v1377
      %v1754 = vpack.c.b16 %v1382, %v1378
      %v1755 = vpack.c.b16 %v1383, %v1379
      %v1756 = vpack.c.b16 %v1388, %v1384
      %v1757 = vpack.c.b16 %v1389, %v1385
      %v1758 = vpack.c.b16 %v1390, %v1386
      %v1759 = vpack.c.b16 %v1391, %v1387
      %v1760 = vpack.c.b16 %v1396, %v1392
      %v1761 = vpack.c.b16 %v1397, %v1393
      %v1762 = vpack.c.b16 %v1398, %v1394
      %v1763 = vpack.c.b16 %v1399, %v1395
      %v1764 = vpack.c.b16 %v1404, %v1400
      %v1765 = vpack.c.b16 %v1405, %v1401
      %v1766 = vpack.c.b16 %v1406, %v1402
      %v1767 = vpack.c.b16 %v1407, %v1403
      %v1768 = vpack.c.b16 %v1412, %v1408
      %v1769 = vpack.c.b16 %v1413, %v1409
      %v1770 = vpack.c.b16 %v1414, %v1410
      %v1771 = vpack.c.b16 %v1415, %v1411
      %v1772 = vpack.c.b16 %v1420, %v1416
      %v1773 = vpack.c.b16 %v1421, %v1417
      %v1774 = vpack.c.b16 %v1422, %v1418
      %v1775 = vpack.c.b16 %v1423, %v1419
      %v1776 = vpack.c.b16 %v1428, %v1424
      %v1777 = vpack.c.b16 %v1429, %v1425
      %v1778 = vpack.c.b16 %v1430, %v1426
      %v1779 = vpack.c.b16 %v1431, %v1427
      %v1780 = vpack.c.b16 %v1436, %v1432
      %v1781 = vpack.c.b16 %v1437, %v1433
      %v1782 = vpack.c.b16 %v1438, %v1434
      %v1783 = vpack.c.b16 %v1439, %v1435
      %v1784 = vpack.c.b16 %v1444, %v1440
      %v1785 = vpack.c.b16 %v1445, %v1441
      %v1786 = vpack.c.b16 %v1446, %v1442
      %v1787 = vpack.c.b16 %v1447, %v1443
      %v1788 = vpack.c.b16 %v1452, %v1448
      %v1789 = vpack.c.b16 %v1453, %v1449
      %v1790 = vpack.c.b16 %v1454, %v1450
      %v1791 = vpack.c.b16 %v1455, %v1451
      %v1792 = vpack.c.b16 %v1460, %v1456
      %v1793 = vpack.c.b16 %v1461, %v1457
      %v1794 = vpack.c.b16 %v1462, %v1458
      %v1795 = vpack.c.b16 %v1463, %v1459
      %v1796 = vpack.c.b16 %v1468, %v1464
      %v1797 = vpack.c.b16 %v1469, %v1465
      %v1798 = vpack.c.b16 %v1470, %v1466
      %v1799 = vpack.c.b16 %v1471, %v1467
      %v1800 = vpack.c.b16 %v1476, %v1472
      %v1801 = vpack.c.b16 %v1477, %v1473
      %v1802 = vpack.c.b16 %v1478, %v1474
      %v1803 = vpack.c.b16 %v1479, %v1475
      %v1804 = vpack.c.b16 %v1484, %v1480
      %v1805 = vpack.c.b16 %v1485, %v1481
      %v1806 = vpack.c.b16 %v1486, %v1482
      %v1807 = vpack.c.b16 %v1487, %v1483
      %v1808 = vpack.c.b16 %v1492, %v1488
      %v1809 = vpack.c.b16 %v1493, %v1489
      %v1810 = vpack.c.b16 %v1494, %v1490
      %v1811 = vpack.c.b16 %v1495, %v1491
      %v1812 = vpack.c.b16 %v1500, %v1496
      %v1813 = vpack.c.b16 %v1501, %v1497
      %v1814 = vpack.c.b16 %v1502, %v1498
      %v1815 = vpack.c.b16 %v1503, %v1499
      %v1816 = vpack.c.b16 %v1508, %v1504
      %v1817 = vpack.c.b16 %v1509, %v1505
      %v1818 = vpack.c.b16 %v1510, %v1506
      %v1819 = vpack.c.b16 %v1511, %v1507
      %v1820 = vpack.c.b16 %v1516, %v1512
      %v1821 = vpack.c.b16 %v1517, %v1513
      %v1822 = vpack.c.b16 %v1518, %v1514
      %v1823 = vpack.c.b16 %v1519, %v1515
      %v1824 = vpack.c.b16 %v1524, %v1520
      %v1825 = vpack.c.b16 %v1525, %v1521
      %v1826 = vpack.c.b16 %v1526, %v1522
      %v1827 = vpack.c.b16 %v1527, %v1523
      %v1828 = vpack.c.b16 %v1532, %v1528
      %v1829 = vpack.c.b16 %v1533, %v1529
      %v1830 = vpack.c.b16 %v1534, %v1530
      %v1831 = vpack.c.b16 %v1535, %v1531
      %v1832 = vpack.c.b16 %v1540, %v1536
      %v1833 = vpack.c.b16 %v1541, %v1537
      %v1834 = vpack.c.b16 %v1542, %v1538
      %v1835 = vpack.c.b16 %v1543, %v1539
      %v1836 = vpack.c.b16 %v1548, %v1544
      %v1837 = vpack.c.b16 %v1549, %v1545
      %v1838 = vpack.c.b16 %v1550, %v1546
      %v1839 = vpack.c.b16 %v1551, %v1547
      %v1840 = vpack.c.b16 %v1556, %v1552
      %v1841 = vpack.c.b16 %v1557, %v1553
      %v1842 = vpack.c.b16 %v1558, %v1554
      %v1843 = vpack.c.b16 %v1559, %v1555
      %v1844 = vpack.c.b16 %v1564, %v1560
      %v1845 = vpack.c.b16 %v1565, %v1561
      %v1846 = vpack.c.b16 %v1566, %v1562
      %v1847 = vpack.c.b16 %v1567, %v1563
      %v1848 = vpack.c.b16 %v1572, %v1568
      %v1849 = vpack.c.b16 %v1573, %v1569
      %v1850 = vpack.c.b16 %v1574, %v1570
      %v1851 = vpack.c.b16 %v1575, %v1571
      %v1852 = vpack.c.b16 %v1580, %v1576
      %v1853 = vpack.c.b16 %v1581, %v1577
      %v1854 = vpack.c.b16 %v1582, %v1578
      %v1855 = vpack.c.b16 %v1583, %v1579
      %v1856 = vpack.c.b16 %v1588, %v1584
      %v1857 = vpack.c.b16 %v1589, %v1585
      %v1858 = vpack.c.b16 %v1590, %v1586
      %v1859 = vpack.c.b16 %v1591, %v1587
      %v1860 = vpack.c.b16 %v1596, %v1592
      %v1861 = vpack.c.b16 %v1597, %v1593
      %v1862 = vpack.c.b16 %v1598, %v1594
      %v1863 = vpack.c.b16 %v1599, %v1595
      %v1864 = vpack.c.b16 %v1604, %v1600
      %v1865 = vpack.c.b16 %v1605, %v1601
      %v1866 = vpack.c.b16 %v1606, %v1602
      %v1867 = vpack.c.b16 %v1607, %v1603
      %v1868 = vpack.c.b16 %v1612, %v1608
      %v1869 = vpack.c.b16 %v1613, %v1609
      %v1870 = vpack.c.b16 %v1614, %v1610
      %v1871 = vpack.c.b16 %v1615, %v1611
      %2128 = vmatprep.subr.bf16.mxu0 %v1617
      %2129 = vmatpush1.bf16.msra.mxu0 %v1616
      %2130 = vmatprep.subr.bf16.mxu0 %v1621
      %2131 = vmatpush1.bf16.msra.mxu0 %v1620
      %2132 = vmatprep.subr.bf16.mxu0 %v1625
      %2133 = vmatpush1.bf16.msra.mxu0 %v1624
      %2134 = vmatprep.subr.bf16.mxu0 %v1629
      %2135 = vmatpush1.bf16.msra.mxu0 %v1628
      %2136 = vmatprep.subr.bf16.mxu0 %v1633
      %2137 = vmatpush1.bf16.msra.mxu0 %v1632
      %2138 = vmatprep.subr.bf16.mxu0 %v1637
      %2139 = vmatpush1.bf16.msra.mxu0 %v1636
      %2140 = vmatprep.subr.bf16.mxu0 %v1641
      %2141 = vmatpush1.bf16.msra.mxu0 %v1640
      %2142 = vmatprep.subr.bf16.mxu0 %v1645
      %2143 = vmatpush1.bf16.msra.mxu0 %v1644
      %2144 = vmatprep.subr.bf16.mxu0 %v1649
      %2145 = vmatpush1.bf16.msra.mxu0 %v1648
      %2146 = vmatprep.subr.bf16.mxu0 %v1653
      %2147 = vmatpush1.bf16.msra.mxu0 %v1652
      %2148 = vmatprep.subr.bf16.mxu0 %v1657
      %2149 = vmatpush1.bf16.msra.mxu0 %v1656
      %2150 = vmatprep.subr.bf16.mxu0 %v1661
      %2151 = vmatpush1.bf16.msra.mxu0 %v1660
      %2152 = vmatprep.subr.bf16.mxu0 %v1665
      %2153 = vmatpush1.bf16.msra.mxu0 %v1664
      %2154 = vmatprep.subr.bf16.mxu0 %v1669
      %2155 = vmatpush1.bf16.msra.mxu0 %v1668
      %2156 = vmatprep.subr.bf16.mxu0 %v1673
      %2157 = vmatpush1.bf16.msra.mxu0 %v1672
      %2158 = vmatprep.subr.bf16.mxu0 %v1677
      %2159 = vmatpush1.bf16.msra.mxu0 %v1676
      %2160 = vmatprep.mubr.bf16.mxu0 %v820
      %2161 = vmatmul.mubr.bf16.gmra.mrb[0].mxu0 %v817
      %v2162 = vpop.f32.mrb[0].mxu0
      %v2163 = vadd.f32 0.0, %v2162
      %v2164 = vpop.f32.mrb[0].mxu0
      %v2165 = vadd.f32 0.0, %v2164
      %v2166 = vpop.f32.mrb[0].mxu0
      %v2167 = vpop.f32.mrb[0].mxu0
      %2168 = vdwg.mxu0
      %2169 = vmatprep.subr.bf16.mxu0 %v1681
      %2170 = vmatpush1.bf16.msra.mxu0 %v1680
      %2171 = vmatprep.subr.bf16.mxu0 %v1685
      %2172 = vmatpush1.bf16.msra.mxu0 %v1684
      %2173 = vmatprep.subr.bf16.mxu0 %v1689
      %2174 = vmatpush1.bf16.msra.mxu0 %v1688
      %2175 = vmatprep.subr.bf16.mxu0 %v1693
      %2176 = vmatpush1.bf16.msra.mxu0 %v1692
      %2177 = vmatprep.subr.bf16.mxu0 %v1697
      %2178 = vmatpush1.bf16.msra.mxu0 %v1696
      %2179 = vmatprep.subr.bf16.mxu0 %v1701
      %2180 = vmatpush1.bf16.msra.mxu0 %v1700
      %2181 = vmatprep.subr.bf16.mxu0 %v1705
      %2182 = vmatpush1.bf16.msra.mxu0 %v1704
      %2183 = vmatprep.subr.bf16.mxu0 %v1709
      %2184 = vmatpush1.bf16.msra.mxu0 %v1708
      %2185 = vmatprep.subr.bf16.mxu0 %v1713
      %2186 = vmatpush1.bf16.msra.mxu0 %v1712
      %2187 = vmatprep.subr.bf16.mxu0 %v1717
      %2188 = vmatpush1.bf16.msra.mxu0 %v1716
      %2189 = vmatprep.subr.bf16.mxu0 %v1721
      %2190 = vmatpush1.bf16.msra.mxu0 %v1720
      %2191 = vmatprep.subr.bf16.mxu0 %v1725
      %2192 = vmatpush1.bf16.msra.mxu0 %v1724
      %2193 = vmatprep.subr.bf16.mxu0 %v1729
      %2194 = vmatpush1.bf16.msra.mxu0 %v1728
      %2195 = vmatprep.subr.bf16.mxu0 %v1733
      %2196 = vmatpush1.bf16.msra.mxu0 %v1732
      %2197 = vmatprep.subr.bf16.mxu0 %v1737
      %2198 = vmatpush1.bf16.msra.mxu0 %v1736
      %2199 = vmatprep.subr.bf16.mxu0 %v1741
      %2200 = vmatpush1.bf16.msra.mxu0 %v1740
      %2201 = vmatprep.mubr.bf16.mxu0 %v826
      %2202 = vmatmul.mubr.bf16.gmra.mrb[0].mxu0 %v823
      %v2203 = vpop.f32.mrb[0].mxu0
      %v2204 = vadd.f32 %v2163, %v2203
      %v2205 = vpop.f32.mrb[0].mxu0
      %v2206 = vadd.f32 %v2165, %v2205
      %v2207 = vpop.f32.mrb[0].mxu0
      %v2208 = vpop.f32.mrb[0].mxu0
      %2209 = vdwg.mxu0
      %2210 = vmatprep.subr.bf16.mxu0 %v1745
      %2211 = vmatpush1.bf16.msra.mxu0 %v1744
      %2212 = vmatprep.subr.bf16.mxu0 %v1749
      %2213 = vmatpush1.bf16.msra.mxu0 %v1748
      %2214 = vmatprep.subr.bf16.mxu0 %v1753
      %2215 = vmatpush1.bf16.msra.mxu0 %v1752
      %2216 = vmatprep.subr.bf16.mxu0 %v1757
      %2217 = vmatpush1.bf16.msra.mxu0 %v1756
      %2218 = vmatprep.subr.bf16.mxu0 %v1761
      %2219 = vmatpush1.bf16.msra.mxu0 %v1760
      %2220 = vmatprep.subr.bf16.mxu0 %v1765
      %2221 = vmatpush1.bf16.msra.mxu0 %v1764
      %2222 = vmatprep.subr.bf16.mxu0 %v1769
      %2223 = vmatpush1.bf16.msra.mxu0 %v1768
      %2224 = vmatprep.subr.bf16.mxu0 %v1773
      %2225 = vmatpush1.bf16.msra.mxu0 %v1772
      %2226 = vmatprep.subr.bf16.mxu0 %v1777
      %2227 = vmatpush1.bf16.msra.mxu0 %v1776
      %2228 = vmatprep.subr.bf16.mxu0 %v1781
      %2229 = vmatpush1.bf16.msra.mxu0 %v1780
      %2230 = vmatprep.subr.bf16.mxu0 %v1785
      %2231 = vmatpush1.bf16.msra.mxu0 %v1784
      %2232 = vmatprep.subr.bf16.mxu0 %v1789
      %2233 = vmatpush1.bf16.msra.mxu0 %v1788
      %2234 = vmatprep.subr.bf16.mxu0 %v1793
      %2235 = vmatpush1.bf16.msra.mxu0 %v1792
      %2236 = vmatprep.subr.bf16.mxu0 %v1797
      %2237 = vmatpush1.bf16.msra.mxu0 %v1796
      %2238 = vmatprep.subr.bf16.mxu0 %v1801
      %2239 = vmatpush1.bf16.msra.mxu0 %v1800
      %2240 = vmatprep.subr.bf16.mxu0 %v1805
      %2241 = vmatpush1.bf16.msra.mxu0 %v1804
      %2242 = vmatprep.mubr.bf16.mxu0 %v832
      %2243 = vmatmul.mubr.bf16.gmra.mrb[0].mxu0 %v829
      %v2244 = vpop.f32.mrb[0].mxu0
      %v2245 = vadd.f32 %v2204, %v2244
      %v2246 = vpop.f32.mrb[0].mxu0
      %v2247 = vadd.f32 %v2206, %v2246
      %v2248 = vpop.f32.mrb[0].mxu0
      %v2249 = vpop.f32.mrb[0].mxu0
      %2250 = vdwg.mxu0
      %2251 = vmatprep.subr.bf16.mxu0 %v1809
      %2252 = vmatpush1.bf16.msra.mxu0 %v1808
      %2253 = vmatprep.subr.bf16.mxu0 %v1813
      %2254 = vmatpush1.bf16.msra.mxu0 %v1812
      %2255 = vmatprep.subr.bf16.mxu0 %v1817
      %2256 = vmatpush1.bf16.msra.mxu0 %v1816
      %2257 = vmatprep.subr.bf16.mxu0 %v1821
      %2258 = vmatpush1.bf16.msra.mxu0 %v1820
      %2259 = vmatprep.subr.bf16.mxu0 %v1825
      %2260 = vmatpush1.bf16.msra.mxu0 %v1824
      %2261 = vmatprep.subr.bf16.mxu0 %v1829
      %2262 = vmatpush1.bf16.msra.mxu0 %v1828
      %2263 = vmatprep.subr.bf16.mxu0 %v1833
      %2264 = vmatpush1.bf16.msra.mxu0 %v1832
      %2265 = vmatprep.subr.bf16.mxu0 %v1837
      %2266 = vmatpush1.bf16.msra.mxu0 %v1836
      %2267 = vmatprep.subr.bf16.mxu0 %v1841
      %2268 = vmatpush1.bf16.msra.mxu0 %v1840
      %2269 = vmatprep.subr.bf16.mxu0 %v1845
      %2270 = vmatpush1.bf16.msra.mxu0 %v1844
      %2271 = vmatprep.subr.bf16.mxu0 %v1849
      %2272 = vmatpush1.bf16.msra.mxu0 %v1848
      %2273 = vmatprep.subr.bf16.mxu0 %v1853
      %2274 = vmatpush1.bf16.msra.mxu0 %v1852
      %2275 = vmatprep.subr.bf16.mxu0 %v1857
      %2276 = vmatpush1.bf16.msra.mxu0 %v1856
      %2277 = vmatprep.subr.bf16.mxu0 %v1861
      %2278 = vmatpush1.bf16.msra.mxu0 %v1860
      %2279 = vmatprep.subr.bf16.mxu0 %v1865
      %2280 = vmatpush1.bf16.msra.mxu0 %v1864
      %2281 = vmatprep.subr.bf16.mxu0 %v1869
      %2282 = vmatpush1.bf16.msra.mxu0 %v1868
      %2283 = vmatprep.mubr.bf16.mxu0 %v838
      %2284 = vmatmul.mubr.bf16.gmra.mrb[0].mxu0 %v835
      %v2285 = vpop.f32.mrb[0].mxu0
      %v2286 = vadd.f32 %v2245, %v2285
      %v2287 = vpop.f32.mrb[0].mxu0
      %v2288 = vadd.f32 %v2247, %v2287
      %v2289 = vpop.f32.mrb[0].mxu0
      %v2290 = vpop.f32.mrb[0].mxu0
      %2291 = vdwg.mxu0
      %2292 = vmatprep.subr.bf16.mxu0 %v1619
      %2293 = vmatpush1.bf16.msra.mxu0 %v1618
      %2294 = vmatprep.subr.bf16.mxu0 %v1623
      %2295 = vmatpush1.bf16.msra.mxu0 %v1622
      %2296 = vmatprep.subr.bf16.mxu0 %v1627
      %2297 = vmatpush1.bf16.msra.mxu0 %v1626
      %2298 = vmatprep.subr.bf16.mxu0 %v1631
      %2299 = vmatpush1.bf16.msra.mxu0 %v1630
      %2300 = vmatprep.subr.bf16.mxu0 %v1635
      %2301 = vmatpush1.bf16.msra.mxu0 %v1634
      %2302 = vmatprep.subr.bf16.mxu0 %v1639
      %2303 = vmatpush1.bf16.msra.mxu0 %v1638
      %2304 = vmatprep.subr.bf16.mxu0 %v1643
      %2305 = vmatpush1.bf16.msra.mxu0 %v1642
      %2306 = vmatprep.subr.bf16.mxu0 %v1647
      %2307 = vmatpush1.bf16.msra.mxu0 %v1646
      %2308 = vmatprep.subr.bf16.mxu0 %v1651
      %2309 = vmatpush1.bf16.msra.mxu0 %v1650
      %2310 = vmatprep.subr.bf16.mxu0 %v1655
      %2311 = vmatpush1.bf16.msra.mxu0 %v1654
      %2312 = vmatprep.subr.bf16.mxu0 %v1659
      %2313 = vmatpush1.bf16.msra.mxu0 %v1658
      %2314 = vmatprep.subr.bf16.mxu0 %v1663
      %2315 = vmatpush1.bf16.msra.mxu0 %v1662
      %2316 = vmatprep.subr.bf16.mxu0 %v1667
      %2317 = vmatpush1.bf16.msra.mxu0 %v1666
      %2318 = vmatprep.subr.bf16.mxu0 %v1671
      %2319 = vmatpush1.bf16.msra.mxu0 %v1670
      %2320 = vmatprep.subr.bf16.mxu0 %v1675
      %2321 = vmatpush1.bf16.msra.mxu0 %v1674
      %2322 = vmatprep.subr.bf16.mxu0 %v1679
      %2323 = vmatpush1.bf16.msra.mxu0 %v1678
      %2324 = vmatprep.mubr.bf16.mxu0 %v820
      %2325 = vmatmul.mubr.bf16.gmra.mrb[0].mxu0 %v817
      %v2326 = vpop.f32.mrb[0].mxu0
      %v2327 = vadd.f32 0.0, %v2326
      %v2328 = vpop.f32.mrb[0].mxu0
      %v2329 = vadd.f32 0.0, %v2328
      %v2330 = vpop.f32.mrb[0].mxu0
      %v2331 = vpop.f32.mrb[0].mxu0
      %2332 = vdwg.mxu0
      %2333 = vmatprep.subr.bf16.mxu0 %v1683
      %2334 = vmatpush1.bf16.msra.mxu0 %v1682
      %2335 = vmatprep.subr.bf16.mxu0 %v1687
      %2336 = vmatpush1.bf16.msra.mxu0 %v1686
      %2337 = vmatprep.subr.bf16.mxu0 %v1691
      %2338 = vmatpush1.bf16.msra.mxu0 %v1690
      %2339 = vmatprep.subr.bf16.mxu0 %v1695
      %2340 = vmatpush1.bf16.msra.mxu0 %v1694
      %2341 = vmatprep.subr.bf16.mxu0 %v1699
      %2342 = vmatpush1.bf16.msra.mxu0 %v1698
      %2343 = vmatprep.subr.bf16.mxu0 %v1703
      %2344 = vmatpush1.bf16.msra.mxu0 %v1702
      %2345 = vmatprep.subr.bf16.mxu0 %v1707
      %2346 = vmatpush1.bf16.msra.mxu0 %v1706
      %2347 = vmatprep.subr.bf16.mxu0 %v1711
      %2348 = vmatpush1.bf16.msra.mxu0 %v1710
      %2349 = vmatprep.subr.bf16.mxu0 %v1715
      %2350 = vmatpush1.bf16.msra.mxu0 %v1714
      %2351 = vmatprep.subr.bf16.mxu0 %v1719
      %2352 = vmatpush1.bf16.msra.mxu0 %v1718
      %2353 = vmatprep.subr.bf16.mxu0 %v1723
      %2354 = vmatpush1.bf16.msra.mxu0 %v1722
      %2355 = vmatprep.subr.bf16.mxu0 %v1727
      %2356 = vmatpush1.bf16.msra.mxu0 %v1726
      %2357 = vmatprep.subr.bf16.mxu0 %v1731
      %2358 = vmatpush1.bf16.msra.mxu0 %v1730
      %2359 = vmatprep.subr.bf16.mxu0 %v1735
      %2360 = vmatpush1.bf16.msra.mxu0 %v1734
      %2361 = vmatprep.subr.bf16.mxu0 %v1739
      %2362 = vmatpush1.bf16.msra.mxu0 %v1738
      %2363 = vmatprep.subr.bf16.mxu0 %v1743
      %2364 = vmatpush1.bf16.msra.mxu0 %v1742
      %2365 = vmatprep.mubr.bf16.mxu0 %v826
      %2366 = vmatmul.mubr.bf16.gmra.mrb[0].mxu0 %v823
      %v2367 = vpop.f32.mrb[0].mxu0
      %v2368 = vadd.f32 %v2327, %v2367
      %v2369 = vpop.f32.mrb[0].mxu0
      %v2370 = vadd.f32 %v2329, %v2369
      %v2371 = vpop.f32.mrb[0].mxu0
      %v2372 = vpop.f32.mrb[0].mxu0
      %2373 = vdwg.mxu0
      %2374 = vmatprep.subr.bf16.mxu0 %v1747
      %2375 = vmatpush1.bf16.msra.mxu0 %v1746
      %2376 = vmatprep.subr.bf16.mxu0 %v1751
      %2377 = vmatpush1.bf16.msra.mxu0 %v1750
      %2378 = vmatprep.subr.bf16.mxu0 %v1755
      %2379 = vmatpush1.bf16.msra.mxu0 %v1754
      %2380 = vmatprep.subr.bf16.mxu0 %v1759
      %2381 = vmatpush1.bf16.msra.mxu0 %v1758
      %2382 = vmatprep.subr.bf16.mxu0 %v1763
      %2383 = vmatpush1.bf16.msra.mxu0 %v1762
      %2384 = vmatprep.subr.bf16.mxu0 %v1767
      %2385 = vmatpush1.bf16.msra.mxu0 %v1766
      %2386 = vmatprep.subr.bf16.mxu0 %v1771
      %2387 = vmatpush1.bf16.msra.mxu0 %v1770
      %2388 = vmatprep.subr.bf16.mxu0 %v1775
      %2389 = vmatpush1.bf16.msra.mxu0 %v1774
      %2390 = vmatprep.subr.bf16.mxu0 %v1779
      %2391 = vmatpush1.bf16.msra.mxu0 %v1778
      %2392 = vmatprep.subr.bf16.mxu0 %v1783
      %2393 = vmatpush1.bf16.msra.mxu0 %v1782
      %2394 = vmatprep.subr.bf16.mxu0 %v1787
      %2395 = vmatpush1.bf16.msra.mxu0 %v1786
      %2396 = vmatprep.subr.bf16.mxu0 %v1791
      %2397 = vmatpush1.bf16.msra.mxu0 %v1790
      %2398 = vmatprep.subr.bf16.mxu0 %v1795
      %2399 = vmatpush1.bf16.msra.mxu0 %v1794
      %2400 = vmatprep.subr.bf16.mxu0 %v1799
      %2401 = vmatpush1.bf16.msra.mxu0 %v1798
      %2402 = vmatprep.subr.bf16.mxu0 %v1803
      %2403 = vmatpush1.bf16.msra.mxu0 %v1802
      %2404 = vmatprep.subr.bf16.mxu0 %v1807
      %2405 = vmatpush1.bf16.msra.mxu0 %v1806
      %2406 = vmatprep.mubr.bf16.mxu0 %v832
      %2407 = vmatmul.mubr.bf16.gmra.mrb[0].mxu0 %v829
      %v2408 = vpop.f32.mrb[0].mxu0
      %v2409 = vadd.f32 %v2368, %v2408
      %v2410 = vpop.f32.mrb[0].mxu0
      %v2411 = vadd.f32 %v2370, %v2410
      %v2412 = vpop.f32.mrb[0].mxu0
      %v2413 = vpop.f32.mrb[0].mxu0
      %2414 = vdwg.mxu0
      %2415 = vmatprep.subr.bf16.mxu0 %v1811
      %2416 = vmatpush1.bf16.msra.mxu0 %v1810
      %2417 = vmatprep.subr.bf16.mxu0 %v1815
      %2418 = vmatpush1.bf16.msra.mxu0 %v1814
      %2419 = vmatprep.subr.bf16.mxu0 %v1819
      %2420 = vmatpush1.bf16.msra.mxu0 %v1818
      %2421 = vmatprep.subr.bf16.mxu0 %v1823
      %2422 = vmatpush1.bf16.msra.mxu0 %v1822
      %2423 = vmatprep.subr.bf16.mxu0 %v1827
      %2424 = vmatpush1.bf16.msra.mxu0 %v1826
      %2425 = vmatprep.subr.bf16.mxu0 %v1831
      %2426 = vmatpush1.bf16.msra.mxu0 %v1830
      %2427 = vmatprep.subr.bf16.mxu0 %v1835
      %2428 = vmatpush1.bf16.msra.mxu0 %v1834
      %2429 = vmatprep.subr.bf16.mxu0 %v1839
      %2430 = vmatpush1.bf16.msra.mxu0 %v1838
      %2431 = vmatprep.subr.bf16.mxu0 %v1843
      %2432 = vmatpush1.bf16.msra.mxu0 %v1842
      %2433 = vmatprep.subr.bf16.mxu0 %v1847
      %2434 = vmatpush1.bf16.msra.mxu0 %v1846
      %2435 = vmatprep.subr.bf16.mxu0 %v1851
      %2436 = vmatpush1.bf16.msra.mxu0 %v1850
      %2437 = vmatprep.subr.bf16.mxu0 %v1855
      %2438 = vmatpush1.bf16.msra.mxu0 %v1854
      %2439 = vmatprep.subr.bf16.mxu0 %v1859
      %2440 = vmatpush1.bf16.msra.mxu0 %v1858
      %2441 = vmatprep.subr.bf16.mxu0 %v1863
      %2442 = vmatpush1.bf16.msra.mxu0 %v1862
      %2443 = vmatprep.subr.bf16.mxu0 %v1867
      %2444 = vmatpush1.bf16.msra.mxu0 %v1866
      %2445 = vmatprep.subr.bf16.mxu0 %v1871
      %2446 = vmatpush1.bf16.msra.mxu0 %v1870
      %2447 = vmatprep.mubr.bf16.mxu0 %v838
      %2448 = vmatmul.mubr.bf16.gmra.mrb[0].mxu0 %v835
      %v2449 = vpop.f32.mrb[0].mxu0
      %v2450 = vadd.f32 %v2409, %v2449
      %v2451 = vpop.f32.mrb[0].mxu0
      %v2452 = vadd.f32 %v2411, %v2451
      %v2453 = vpop.f32.mrb[0].mxu0
      %v2454 = vpop.f32.mrb[0].mxu0
      %2455 = vdwg.mxu0
      %v2720 = vunpack.c.l.b16 %v253
      %v2721 = vunpack.c.h.b16 %v253
      %v2722 = vunpack.c.l.b16 %v254
      %v2723 = vunpack.c.h.b16 %v254
      %v2724 = vunpack.c.l.b16 %v255
      %v2725 = vunpack.c.h.b16 %v255
      %v2726 = vunpack.c.l.b16 %v256
      %v2727 = vunpack.c.h.b16 %v256
      %v2728 = vunpack.c.l.b16 %v257
      %v2729 = vunpack.c.h.b16 %v257
      %v2730 = vunpack.c.l.b16 %v258
      %v2731 = vunpack.c.h.b16 %v258
      %v2732 = vunpack.c.l.b16 %v259
      %v2733 = vunpack.c.h.b16 %v259
      %v2734 = vunpack.c.l.b16 %v260
      %v2735 = vunpack.c.h.b16 %v260
      %v2736 = vunpack.c.l.b16 %v261
      %v2737 = vunpack.c.h.b16 %v261
      %v2738 = vunpack.c.l.b16 %v262
      %v2739 = vunpack.c.h.b16 %v262
      %v2740 = vunpack.c.l.b16 %v263
      %v2741 = vunpack.c.h.b16 %v263
      %v2742 = vunpack.c.l.b16 %v264
      %v2743 = vunpack.c.h.b16 %v264
      %v2744 = vunpack.c.l.b16 %v265
      %v2745 = vunpack.c.h.b16 %v265
      %v2746 = vunpack.c.l.b16 %v266
      %v2747 = vunpack.c.h.b16 %v266
      %v2748 = vunpack.c.l.b16 %v267
      %v2749 = vunpack.c.h.b16 %v267
      %v2750 = vunpack.c.l.b16 %v268
      %v2751 = vunpack.c.h.b16 %v268
      %v2752 = vunpack.c.l.b16 %v269
      %v2753 = vunpack.c.h.b16 %v269
      %v2754 = vunpack.c.l.b16 %v270
      %v2755 = vunpack.c.h.b16 %v270
      %v2756 = vunpack.c.l.b16 %v271
      %v2757 = vunpack.c.h.b16 %v271
      %v2758 = vunpack.c.l.b16 %v272
      %v2759 = vunpack.c.h.b16 %v272
      %v2760 = vunpack.c.l.b16 %v273
      %v2761 = vunpack.c.h.b16 %v273
      %v2762 = vunpack.c.l.b16 %v274
      %v2763 = vunpack.c.h.b16 %v274
      %v2764 = vunpack.c.l.b16 %v275
      %v2765 = vunpack.c.h.b16 %v275
      %v2766 = vunpack.c.l.b16 %v276
      %v2767 = vunpack.c.h.b16 %v276
      %v2768 = vunpack.c.l.b16 %v277
      %v2769 = vunpack.c.h.b16 %v277
      %v2770 = vunpack.c.l.b16 %v278
      %v2771 = vunpack.c.h.b16 %v278
      %v2772 = vunpack.c.l.b16 %v279
      %v2773 = vunpack.c.h.b16 %v279
      %v2774 = vunpack.c.l.b16 %v280
      %v2775 = vunpack.c.h.b16 %v280
      %v2776 = vunpack.c.l.b16 %v281
      %v2777 = vunpack.c.h.b16 %v281
      %v2778 = vunpack.c.l.b16 %v282
      %v2779 = vunpack.c.h.b16 %v282
      %v2780 = vunpack.c.l.b16 %v283
      %v2781 = vunpack.c.h.b16 %v283
      %v2782 = vunpack.c.l.b16 %v284
      %v2783 = vunpack.c.h.b16 %v284
      %v2784 = vunpack.c.l.b16 %v285
      %v2785 = vunpack.c.h.b16 %v285
      %v2786 = vunpack.c.l.b16 %v286
      %v2787 = vunpack.c.h.b16 %v286
      %v2788 = vunpack.c.l.b16 %v287
      %v2789 = vunpack.c.h.b16 %v287
      %v2790 = vunpack.c.l.b16 %v288
      %v2791 = vunpack.c.h.b16 %v288
      %v2792 = vunpack.c.l.b16 %v289
      %v2793 = vunpack.c.h.b16 %v289
      %v2794 = vunpack.c.l.b16 %v290
      %v2795 = vunpack.c.h.b16 %v290
      %v2796 = vunpack.c.l.b16 %v291
      %v2797 = vunpack.c.h.b16 %v291
      %v2798 = vunpack.c.l.b16 %v292
      %v2799 = vunpack.c.h.b16 %v292
      %v2800 = vunpack.c.l.b16 %v293
      %v2801 = vunpack.c.h.b16 %v293
      %v2802 = vunpack.c.l.b16 %v294
      %v2803 = vunpack.c.h.b16 %v294
      %v2804 = vunpack.c.l.b16 %v295
      %v2805 = vunpack.c.h.b16 %v295
      %v2806 = vunpack.c.l.b16 %v296
      %v2807 = vunpack.c.h.b16 %v296
      %v2808 = vunpack.c.l.b16 %v297
      %v2809 = vunpack.c.h.b16 %v297
      %v2810 = vunpack.c.l.b16 %v298
      %v2811 = vunpack.c.h.b16 %v298
      %v2812 = vunpack.c.l.b16 %v299
      %v2813 = vunpack.c.h.b16 %v299
      %v2814 = vunpack.c.l.b16 %v300
      %v2815 = vunpack.c.h.b16 %v300
      %v2816 = vunpack.c.l.b16 %v301
      %v2817 = vunpack.c.h.b16 %v301
      %v2818 = vunpack.c.l.b16 %v302
      %v2819 = vunpack.c.h.b16 %v302
      %v2820 = vunpack.c.l.b16 %v303
      %v2821 = vunpack.c.h.b16 %v303
      %v2822 = vunpack.c.l.b16 %v304
      %v2823 = vunpack.c.h.b16 %v304
      %v2824 = vunpack.c.l.b16 %v305
      %v2825 = vunpack.c.h.b16 %v305
      %v2826 = vunpack.c.l.b16 %v306
      %v2827 = vunpack.c.h.b16 %v306
      %v2828 = vunpack.c.l.b16 %v307
      %v2829 = vunpack.c.h.b16 %v307
      %v2830 = vunpack.c.l.b16 %v308
      %v2831 = vunpack.c.h.b16 %v308
      %v2832 = vunpack.c.l.b16 %v309
      %v2833 = vunpack.c.h.b16 %v309
      %v2834 = vunpack.c.l.b16 %v310
      %v2835 = vunpack.c.h.b16 %v310
      %v2836 = vunpack.c.l.b16 %v311
      %v2837 = vunpack.c.h.b16 %v311
      %v2838 = vunpack.c.l.b16 %v312
      %v2839 = vunpack.c.h.b16 %v312
      %v2840 = vunpack.c.l.b16 %v313
      %v2841 = vunpack.c.h.b16 %v313
      %v2842 = vunpack.c.l.b16 %v314
      %v2843 = vunpack.c.h.b16 %v314
      %v2844 = vunpack.c.l.b16 %v315
      %v2845 = vunpack.c.h.b16 %v315
      %v2846 = vunpack.c.l.b16 %v316
      %v2847 = vunpack.c.h.b16 %v316
      %v2848 = vunpack.c.l.b16 %v317
      %v2849 = vunpack.c.h.b16 %v317
      %v2850 = vunpack.c.l.b16 %v318
      %v2851 = vunpack.c.h.b16 %v318
      %v2852 = vunpack.c.l.b16 %v319
      %v2853 = vunpack.c.h.b16 %v319
      %v2854 = vunpack.c.l.b16 %v320
      %v2855 = vunpack.c.h.b16 %v320
      %v2856 = vunpack.c.l.b16 %v321
      %v2857 = vunpack.c.h.b16 %v321
      %v2858 = vunpack.c.l.b16 %v322
      %v2859 = vunpack.c.h.b16 %v322
      %v2860 = vunpack.c.l.b16 %v323
      %v2861 = vunpack.c.h.b16 %v323
      %v2862 = vunpack.c.l.b16 %v324
      %v2863 = vunpack.c.h.b16 %v324
      %v2864 = vunpack.c.l.b16 %v325
      %v2865 = vunpack.c.h.b16 %v325
      %v2866 = vunpack.c.l.b16 %v326
      %v2867 = vunpack.c.h.b16 %v326
      %v2868 = vunpack.c.l.b16 %v327
      %v2869 = vunpack.c.h.b16 %v327
      %v2870 = vunpack.c.l.b16 %v328
      %v2871 = vunpack.c.h.b16 %v328
      %v2872 = vunpack.c.l.b16 %v329
      %v2873 = vunpack.c.h.b16 %v329
      %v2874 = vunpack.c.l.b16 %v330
      %v2875 = vunpack.c.h.b16 %v330
      %v2876 = vunpack.c.l.b16 %v331
      %v2877 = vunpack.c.h.b16 %v331
      %v2878 = vunpack.c.l.b16 %v332
      %v2879 = vunpack.c.h.b16 %v332
      %v2880 = vunpack.c.l.b16 %v333
      %v2881 = vunpack.c.h.b16 %v333
      %v2882 = vunpack.c.l.b16 %v334
      %v2883 = vunpack.c.h.b16 %v334
      %v2884 = vunpack.c.l.b16 %v335
      %v2885 = vunpack.c.h.b16 %v335
      %v2886 = vunpack.c.l.b16 %v336
      %v2887 = vunpack.c.h.b16 %v336
      %v2888 = vunpack.c.l.b16 %v337
      %v2889 = vunpack.c.h.b16 %v337
      %v2890 = vunpack.c.l.b16 %v338
      %v2891 = vunpack.c.h.b16 %v338
      %v2892 = vunpack.c.l.b16 %v339
      %v2893 = vunpack.c.h.b16 %v339
      %v2894 = vunpack.c.l.b16 %v340
      %v2895 = vunpack.c.h.b16 %v340
      %v2896 = vunpack.c.l.b16 %v341
      %v2897 = vunpack.c.h.b16 %v341
      %v2898 = vunpack.c.l.b16 %v342
      %v2899 = vunpack.c.h.b16 %v342
      %v2900 = vunpack.c.l.b16 %v343
      %v2901 = vunpack.c.h.b16 %v343
      %v2902 = vunpack.c.l.b16 %v344
      %v2903 = vunpack.c.h.b16 %v344
      %v2904 = vunpack.c.l.b16 %v345
      %v2905 = vunpack.c.h.b16 %v345
      %v2906 = vunpack.c.l.b16 %v346
      %v2907 = vunpack.c.h.b16 %v346
      %v2908 = vunpack.c.l.b16 %v347
      %v2909 = vunpack.c.h.b16 %v347
      %v2910 = vunpack.c.l.b16 %v348
      %v2911 = vunpack.c.h.b16 %v348
      %v2912 = vunpack.c.l.b16 %v349
      %v2913 = vunpack.c.h.b16 %v349
      %v2914 = vunpack.c.l.b16 %v350
      %v2915 = vunpack.c.h.b16 %v350
      %v2916 = vunpack.c.l.b16 %v351
      %v2917 = vunpack.c.h.b16 %v351
      %v2918 = vunpack.c.l.b16 %v352
      %v2919 = vunpack.c.h.b16 %v352
      %v2920 = vunpack.c.l.b16 %v353
      %v2921 = vunpack.c.h.b16 %v353
      %v2922 = vunpack.c.l.b16 %v354
      %v2923 = vunpack.c.h.b16 %v354
      %v2924 = vunpack.c.l.b16 %v355
      %v2925 = vunpack.c.h.b16 %v355
      %v2926 = vunpack.c.l.b16 %v356
      %v2927 = vunpack.c.h.b16 %v356
      %v2928 = vunpack.c.l.b16 %v357
      %v2929 = vunpack.c.h.b16 %v357
      %v2930 = vunpack.c.l.b16 %v358
      %v2931 = vunpack.c.h.b16 %v358
      %v2932 = vunpack.c.l.b16 %v359
      %v2933 = vunpack.c.h.b16 %v359
      %v2934 = vunpack.c.l.b16 %v360
      %v2935 = vunpack.c.h.b16 %v360
      %v2936 = vunpack.c.l.b16 %v361
      %v2937 = vunpack.c.h.b16 %v361
      %v2938 = vunpack.c.l.b16 %v362
      %v2939 = vunpack.c.h.b16 %v362
      %v2940 = vunpack.c.l.b16 %v363
      %v2941 = vunpack.c.h.b16 %v363
      %v2942 = vunpack.c.l.b16 %v364
      %v2943 = vunpack.c.h.b16 %v364
      %v2944 = vunpack.c.l.b16 %v365
      %v2945 = vunpack.c.h.b16 %v365
      %v2946 = vunpack.c.l.b16 %v366
      %v2947 = vunpack.c.h.b16 %v366
      %v2948 = vunpack.c.l.b16 %v367
      %v2949 = vunpack.c.h.b16 %v367
      %v2950 = vunpack.c.l.b16 %v368
      %v2951 = vunpack.c.h.b16 %v368
      %v2952 = vunpack.c.l.b16 %v369
      %v2953 = vunpack.c.h.b16 %v369
      %v2954 = vunpack.c.l.b16 %v370
      %v2955 = vunpack.c.h.b16 %v370
      %v2956 = vunpack.c.l.b16 %v371
      %v2957 = vunpack.c.h.b16 %v371
      %v2958 = vunpack.c.l.b16 %v372
      %v2959 = vunpack.c.h.b16 %v372
      %v2960 = vunpack.c.l.b16 %v373
      %v2961 = vunpack.c.h.b16 %v373
      %v2962 = vunpack.c.l.b16 %v374
      %v2963 = vunpack.c.h.b16 %v374
      %v2964 = vunpack.c.l.b16 %v375
      %v2965 = vunpack.c.h.b16 %v375
      %v2966 = vunpack.c.l.b16 %v376
      %v2967 = vunpack.c.h.b16 %v376
      %v2968 = vunpack.c.l.b16 %v377
      %v2969 = vunpack.c.h.b16 %v377
      %v2970 = vunpack.c.l.b16 %v378
      %v2971 = vunpack.c.h.b16 %v378
      %v2972 = vunpack.c.l.b16 %v379
      %v2973 = vunpack.c.h.b16 %v379
      %v2974 = vunpack.c.l.b16 %v380
      %v2975 = vunpack.c.h.b16 %v380
      %v2976 = vunpack.c.l.b16 %v381
      %v2977 = vunpack.c.h.b16 %v381
      %v2978 = vunpack.c.l.b16 %v382
      %v2979 = vunpack.c.h.b16 %v382
      %v2980 = vunpack.c.l.b16 %v383
      %v2981 = vunpack.c.h.b16 %v383
      %v2982 = vunpack.c.l.b16 %v384
      %v2983 = vunpack.c.h.b16 %v384
      %v2984 = vunpack.c.l.b16 %v385
      %v2985 = vunpack.c.h.b16 %v385
      %v2986 = vunpack.c.l.b16 %v386
      %v2987 = vunpack.c.h.b16 %v386
      %v2988 = vunpack.c.l.b16 %v387
      %v2989 = vunpack.c.h.b16 %v387
      %v2990 = vunpack.c.l.b16 %v388
      %v2991 = vunpack.c.h.b16 %v388
      %v2992 = vunpack.c.l.b16 %v389
      %v2993 = vunpack.c.h.b16 %v389
      %v2994 = vunpack.c.l.b16 %v390
      %v2995 = vunpack.c.h.b16 %v390
      %v2996 = vunpack.c.l.b16 %v391
      %v2997 = vunpack.c.h.b16 %v391
      %v2998 = vunpack.c.l.b16 %v392
      %v2999 = vunpack.c.h.b16 %v392
      %v3000 = vunpack.c.l.b16 %v393
      %v3001 = vunpack.c.h.b16 %v393
      %v3002 = vunpack.c.l.b16 %v394
      %v3003 = vunpack.c.h.b16 %v394
      %v3004 = vunpack.c.l.b16 %v395
      %v3005 = vunpack.c.h.b16 %v395
      %v3006 = vunpack.c.l.b16 %v396
      %v3007 = vunpack.c.h.b16 %v396
      %v3008 = vunpack.c.l.b16 %v397
      %v3009 = vunpack.c.h.b16 %v397
      %v3010 = vunpack.c.l.b16 %v398
      %v3011 = vunpack.c.h.b16 %v398
      %v3012 = vunpack.c.l.b16 %v399
      %v3013 = vunpack.c.h.b16 %v399
      %v3014 = vunpack.c.l.b16 %v400
      %v3015 = vunpack.c.h.b16 %v400
      %v3016 = vunpack.c.l.b16 %v401
      %v3017 = vunpack.c.h.b16 %v401
      %v3018 = vunpack.c.l.b16 %v402
      %v3019 = vunpack.c.h.b16 %v402
      %v3020 = vunpack.c.l.b16 %v403
      %v3021 = vunpack.c.h.b16 %v403
      %v3022 = vunpack.c.l.b16 %v404
      %v3023 = vunpack.c.h.b16 %v404
      %v3024 = vunpack.c.l.b16 %v405
      %v3025 = vunpack.c.h.b16 %v405
      %v3026 = vunpack.c.l.b16 %v406
      %v3027 = vunpack.c.h.b16 %v406
      %v3028 = vunpack.c.l.b16 %v407
      %v3029 = vunpack.c.h.b16 %v407
      %v3030 = vunpack.c.l.b16 %v408
      %v3031 = vunpack.c.h.b16 %v408
      %v3032 = vunpack.c.l.b16 %v409
      %v3033 = vunpack.c.h.b16 %v409
      %v3034 = vunpack.c.l.b16 %v410
      %v3035 = vunpack.c.h.b16 %v410
      %v3036 = vunpack.c.l.b16 %v411
      %v3037 = vunpack.c.h.b16 %v411
      %v3038 = vunpack.c.l.b16 %v412
      %v3039 = vunpack.c.h.b16 %v412
      %v3040 = vunpack.c.l.b16 %v413
      %v3041 = vunpack.c.h.b16 %v413
      %v3042 = vunpack.c.l.b16 %v414
      %v3043 = vunpack.c.h.b16 %v414
      %v3044 = vunpack.c.l.b16 %v415
      %v3045 = vunpack.c.h.b16 %v415
      %v3046 = vunpack.c.l.b16 %v416
      %v3047 = vunpack.c.h.b16 %v416
      %v3048 = vunpack.c.l.b16 %v417
      %v3049 = vunpack.c.h.b16 %v417
      %v3050 = vunpack.c.l.b16 %v418
      %v3051 = vunpack.c.h.b16 %v418
      %v3052 = vunpack.c.l.b16 %v419
      %v3053 = vunpack.c.h.b16 %v419
      %v3054 = vunpack.c.l.b16 %v420
      %v3055 = vunpack.c.h.b16 %v420
      %v3056 = vunpack.c.l.b16 %v421
      %v3057 = vunpack.c.h.b16 %v421
      %v3058 = vunpack.c.l.b16 %v422
      %v3059 = vunpack.c.h.b16 %v422
      %v3060 = vunpack.c.l.b16 %v423
      %v3061 = vunpack.c.h.b16 %v423
      %v3062 = vunpack.c.l.b16 %v424
      %v3063 = vunpack.c.h.b16 %v424
      %v3064 = vunpack.c.l.b16 %v425
      %v3065 = vunpack.c.h.b16 %v425
      %v3066 = vunpack.c.l.b16 %v426
      %v3067 = vunpack.c.h.b16 %v426
      %v3068 = vunpack.c.l.b16 %v427
      %v3069 = vunpack.c.h.b16 %v427
      %v3070 = vunpack.c.l.b16 %v428
      %v3071 = vunpack.c.h.b16 %v428
      %v3072 = vunpack.c.l.b16 %v429
      %v3073 = vunpack.c.h.b16 %v429
      %v3074 = vunpack.c.l.b16 %v430
      %v3075 = vunpack.c.h.b16 %v430
      %v3076 = vunpack.c.l.b16 %v431
      %v3077 = vunpack.c.h.b16 %v431
      %v3078 = vunpack.c.l.b16 %v432
      %v3079 = vunpack.c.h.b16 %v432
      %v3080 = vunpack.c.l.b16 %v433
      %v3081 = vunpack.c.h.b16 %v433
      %v3082 = vunpack.c.l.b16 %v434
      %v3083 = vunpack.c.h.b16 %v434
      %v3084 = vunpack.c.l.b16 %v435
      %v3085 = vunpack.c.h.b16 %v435
      %v3086 = vunpack.c.l.b16 %v436
      %v3087 = vunpack.c.h.b16 %v436
      %v3088 = vunpack.c.l.b16 %v437
      %v3089 = vunpack.c.h.b16 %v437
      %v3090 = vunpack.c.l.b16 %v438
      %v3091 = vunpack.c.h.b16 %v438
      %v3092 = vunpack.c.l.b16 %v439
      %v3093 = vunpack.c.h.b16 %v439
      %v3094 = vunpack.c.l.b16 %v440
      %v3095 = vunpack.c.h.b16 %v440
      %v3096 = vunpack.c.l.b16 %v441
      %v3097 = vunpack.c.h.b16 %v441
      %v3098 = vunpack.c.l.b16 %v442
      %v3099 = vunpack.c.h.b16 %v442
      %v3100 = vunpack.c.l.b16 %v443
      %v3101 = vunpack.c.h.b16 %v443
      %v3102 = vunpack.c.l.b16 %v444
      %v3103 = vunpack.c.h.b16 %v444
      %v3104 = vunpack.c.l.b16 %v445
      %v3105 = vunpack.c.h.b16 %v445
      %v3106 = vunpack.c.l.b16 %v446
      %v3107 = vunpack.c.h.b16 %v446
      %v3108 = vunpack.c.l.b16 %v447
      %v3109 = vunpack.c.h.b16 %v447
      %v3110 = vunpack.c.l.b16 %v448
      %v3111 = vunpack.c.h.b16 %v448
      %v3112 = vunpack.c.l.b16 %v449
      %v3113 = vunpack.c.h.b16 %v449
      %v3114 = vunpack.c.l.b16 %v450
      %v3115 = vunpack.c.h.b16 %v450
      %v3116 = vunpack.c.l.b16 %v451
      %v3117 = vunpack.c.h.b16 %v451
      %v3118 = vunpack.c.l.b16 %v452
      %v3119 = vunpack.c.h.b16 %v452
      %v3120 = vunpack.c.l.b16 %v453
      %v3121 = vunpack.c.h.b16 %v453
      %v3122 = vunpack.c.l.b16 %v454
      %v3123 = vunpack.c.h.b16 %v454
      %v3124 = vunpack.c.l.b16 %v455
      %v3125 = vunpack.c.h.b16 %v455
      %v3126 = vunpack.c.l.b16 %v456
      %v3127 = vunpack.c.h.b16 %v456
      %v3128 = vunpack.c.l.b16 %v457
      %v3129 = vunpack.c.h.b16 %v457
      %v3130 = vunpack.c.l.b16 %v458
      %v3131 = vunpack.c.h.b16 %v458
      %v3132 = vunpack.c.l.b16 %v459
      %v3133 = vunpack.c.h.b16 %v459
      %v3134 = vunpack.c.l.b16 %v460
      %v3135 = vunpack.c.h.b16 %v460
      %v3136 = vunpack.c.l.b16 %v461
      %v3137 = vunpack.c.h.b16 %v461
      %v3138 = vunpack.c.l.b16 %v462
      %v3139 = vunpack.c.h.b16 %v462
      %v3140 = vunpack.c.l.b16 %v463
      %v3141 = vunpack.c.h.b16 %v463
      %v3142 = vunpack.c.l.b16 %v464
      %v3143 = vunpack.c.h.b16 %v464
      %v3144 = vunpack.c.l.b16 %v465
      %v3145 = vunpack.c.h.b16 %v465
      %v3146 = vunpack.c.l.b16 %v466
      %v3147 = vunpack.c.h.b16 %v466
      %v3148 = vunpack.c.l.b16 %v467
      %v3149 = vunpack.c.h.b16 %v467
      %v3150 = vunpack.c.l.b16 %v468
      %v3151 = vunpack.c.h.b16 %v468
      %v3152 = vunpack.c.l.b16 %v469
      %v3153 = vunpack.c.h.b16 %v469
      %v3154 = vunpack.c.l.b16 %v470
      %v3155 = vunpack.c.h.b16 %v470
      %v3156 = vunpack.c.l.b16 %v471
      %v3157 = vunpack.c.h.b16 %v471
      %v3158 = vunpack.c.l.b16 %v472
      %v3159 = vunpack.c.h.b16 %v472
      %v3160 = vunpack.c.l.b16 %v473
      %v3161 = vunpack.c.h.b16 %v473
      %v3162 = vunpack.c.l.b16 %v474
      %v3163 = vunpack.c.h.b16 %v474
      %v3164 = vunpack.c.l.b16 %v475
      %v3165 = vunpack.c.h.b16 %v475
      %v3166 = vunpack.c.l.b16 %v476
      %v3167 = vunpack.c.h.b16 %v476
      %v3168 = vunpack.c.l.b16 %v477
      %v3169 = vunpack.c.h.b16 %v477
      %v3170 = vunpack.c.l.b16 %v478
      %v3171 = vunpack.c.h.b16 %v478
      %v3172 = vunpack.c.l.b16 %v479
      %v3173 = vunpack.c.h.b16 %v479
      %v3174 = vunpack.c.l.b16 %v480
      %v3175 = vunpack.c.h.b16 %v480
      %v3176 = vunpack.c.l.b16 %v481
      %v3177 = vunpack.c.h.b16 %v481
      %v3178 = vunpack.c.l.b16 %v482
      %v3179 = vunpack.c.h.b16 %v482
      %v3180 = vunpack.c.l.b16 %v483
      %v3181 = vunpack.c.h.b16 %v483
      %v3182 = vunpack.c.l.b16 %v484
      %v3183 = vunpack.c.h.b16 %v484
      %v3184 = vunpack.c.l.b16 %v485
      %v3185 = vunpack.c.h.b16 %v485
      %v3186 = vunpack.c.l.b16 %v486
      %v3187 = vunpack.c.h.b16 %v486
      %v3188 = vunpack.c.l.b16 %v487
      %v3189 = vunpack.c.h.b16 %v487
      %v3190 = vunpack.c.l.b16 %v488
      %v3191 = vunpack.c.h.b16 %v488
      %v3192 = vunpack.c.l.b16 %v489
      %v3193 = vunpack.c.h.b16 %v489
      %v3194 = vunpack.c.l.b16 %v490
      %v3195 = vunpack.c.h.b16 %v490
      %v3196 = vunpack.c.l.b16 %v491
      %v3197 = vunpack.c.h.b16 %v491
      %v3198 = vunpack.c.l.b16 %v492
      %v3199 = vunpack.c.h.b16 %v492
      %v3200 = vunpack.c.l.b16 %v493
      %v3201 = vunpack.c.h.b16 %v493
      %v3202 = vunpack.c.l.b16 %v494
      %v3203 = vunpack.c.h.b16 %v494
      %v3204 = vunpack.c.l.b16 %v495
      %v3205 = vunpack.c.h.b16 %v495
      %v3206 = vunpack.c.l.b16 %v496
      %v3207 = vunpack.c.h.b16 %v496
      %v3208 = vunpack.c.l.b16 %v497
      %v3209 = vunpack.c.h.b16 %v497
      %v3210 = vunpack.c.l.b16 %v498
      %v3211 = vunpack.c.h.b16 %v498
      %v3212 = vunpack.c.l.b16 %v499
      %v3213 = vunpack.c.h.b16 %v499
      %v3214 = vunpack.c.l.b16 %v500
      %v3215 = vunpack.c.h.b16 %v500
      %v3216 = vunpack.c.l.b16 %v501
      %v3217 = vunpack.c.h.b16 %v501
      %v3218 = vunpack.c.l.b16 %v502
      %v3219 = vunpack.c.h.b16 %v502
      %v3220 = vunpack.c.l.b16 %v503
      %v3221 = vunpack.c.h.b16 %v503
      %v3222 = vunpack.c.l.b16 %v504
      %v3223 = vunpack.c.h.b16 %v504
      %v3224 = vunpack.c.l.b16 %v505
      %v3225 = vunpack.c.h.b16 %v505
      %v3226 = vunpack.c.l.b16 %v506
      %v3227 = vunpack.c.h.b16 %v506
      %v3228 = vunpack.c.l.b16 %v507
      %v3229 = vunpack.c.h.b16 %v507
      %v3230 = vunpack.c.l.b16 %v508
      %v3231 = vunpack.c.h.b16 %v508
      %v3232 = vpack.c.b16 %v2724, %v2720
      %v3233 = vpack.c.b16 %v2725, %v2721
      %v3234 = vpack.c.b16 %v2726, %v2722
      %v3235 = vpack.c.b16 %v2727, %v2723
      %v3236 = vpack.c.b16 %v2732, %v2728
      %v3237 = vpack.c.b16 %v2733, %v2729
      %v3238 = vpack.c.b16 %v2734, %v2730
      %v3239 = vpack.c.b16 %v2735, %v2731
      %v3240 = vpack.c.b16 %v2740, %v2736
      %v3241 = vpack.c.b16 %v2741, %v2737
      %v3242 = vpack.c.b16 %v2742, %v2738
      %v3243 = vpack.c.b16 %v2743, %v2739
      %v3244 = vpack.c.b16 %v2748, %v2744
      %v3245 = vpack.c.b16 %v2749, %v2745
      %v3246 = vpack.c.b16 %v2750, %v2746
      %v3247 = vpack.c.b16 %v2751, %v2747
      %v3248 = vpack.c.b16 %v2756, %v2752
      %v3249 = vpack.c.b16 %v2757, %v2753
      %v3250 = vpack.c.b16 %v2758, %v2754
      %v3251 = vpack.c.b16 %v2759, %v2755
      %v3252 = vpack.c.b16 %v2764, %v2760
      %v3253 = vpack.c.b16 %v2765, %v2761
      %v3254 = vpack.c.b16 %v2766, %v2762
      %v3255 = vpack.c.b16 %v2767, %v2763
      %v3256 = vpack.c.b16 %v2772, %v2768
      %v3257 = vpack.c.b16 %v2773, %v2769
      %v3258 = vpack.c.b16 %v2774, %v2770
      %v3259 = vpack.c.b16 %v2775, %v2771
      %v3260 = vpack.c.b16 %v2780, %v2776
      %v3261 = vpack.c.b16 %v2781, %v2777
      %v3262 = vpack.c.b16 %v2782, %v2778
      %v3263 = vpack.c.b16 %v2783, %v2779
      %v3264 = vpack.c.b16 %v2788, %v2784
      %v3265 = vpack.c.b16 %v2789, %v2785
      %v3266 = vpack.c.b16 %v2790, %v2786
      %v3267 = vpack.c.b16 %v2791, %v2787
      %v3268 = vpack.c.b16 %v2796, %v2792
      %v3269 = vpack.c.b16 %v2797, %v2793
      %v3270 = vpack.c.b16 %v2798, %v2794
      %v3271 = vpack.c.b16 %v2799, %v2795
      %v3272 = vpack.c.b16 %v2804, %v2800
      %v3273 = vpack.c.b16 %v2805, %v2801
      %v3274 = vpack.c.b16 %v2806, %v2802
      %v3275 = vpack.c.b16 %v2807, %v2803
      %v3276 = vpack.c.b16 %v2812, %v2808
      %v3277 = vpack.c.b16 %v2813, %v2809
      %v3278 = vpack.c.b16 %v2814, %v2810
      %v3279 = vpack.c.b16 %v2815, %v2811
      %v3280 = vpack.c.b16 %v2820, %v2816
      %v3281 = vpack.c.b16 %v2821, %v2817
      %v3282 = vpack.c.b16 %v2822, %v2818
      %v3283 = vpack.c.b16 %v2823, %v2819
      %v3284 = vpack.c.b16 %v2828, %v2824
      %v3285 = vpack.c.b16 %v2829, %v2825
      %v3286 = vpack.c.b16 %v2830, %v2826
      %v3287 = vpack.c.b16 %v2831, %v2827
      %v3288 = vpack.c.b16 %v2836, %v2832
      %v3289 = vpack.c.b16 %v2837, %v2833
      %v3290 = vpack.c.b16 %v2838, %v2834
      %v3291 = vpack.c.b16 %v2839, %v2835
      %v3292 = vpack.c.b16 %v2844, %v2840
      %v3293 = vpack.c.b16 %v2845, %v2841
      %v3294 = vpack.c.b16 %v2846, %v2842
      %v3295 = vpack.c.b16 %v2847, %v2843
      %v3296 = vpack.c.b16 %v2852, %v2848
      %v3297 = vpack.c.b16 %v2853, %v2849
      %v3298 = vpack.c.b16 %v2854, %v2850
      %v3299 = vpack.c.b16 %v2855, %v2851
      %v3300 = vpack.c.b16 %v2860, %v2856
      %v3301 = vpack.c.b16 %v2861, %v2857
      %v3302 = vpack.c.b16 %v2862, %v2858
      %v3303 = vpack.c.b16 %v2863, %v2859
      %v3304 = vpack.c.b16 %v2868, %v2864
      %v3305 = vpack.c.b16 %v2869, %v2865
      %v3306 = vpack.c.b16 %v2870, %v2866
      %v3307 = vpack.c.b16 %v2871, %v2867
      %v3308 = vpack.c.b16 %v2876, %v2872
      %v3309 = vpack.c.b16 %v2877, %v2873
      %v3310 = vpack.c.b16 %v2878, %v2874
      %v3311 = vpack.c.b16 %v2879, %v2875
      %v3312 = vpack.c.b16 %v2884, %v2880
      %v3313 = vpack.c.b16 %v2885, %v2881
      %v3314 = vpack.c.b16 %v2886, %v2882
      %v3315 = vpack.c.b16 %v2887, %v2883
      %v3316 = vpack.c.b16 %v2892, %v2888
      %v3317 = vpack.c.b16 %v2893, %v2889
      %v3318 = vpack.c.b16 %v2894, %v2890
      %v3319 = vpack.c.b16 %v2895, %v2891
      %v3320 = vpack.c.b16 %v2900, %v2896
      %v3321 = vpack.c.b16 %v2901, %v2897
      %v3322 = vpack.c.b16 %v2902, %v2898
      %v3323 = vpack.c.b16 %v2903, %v2899
      %v3324 = vpack.c.b16 %v2908, %v2904
      %v3325 = vpack.c.b16 %v2909, %v2905
      %v3326 = vpack.c.b16 %v2910, %v2906
      %v3327 = vpack.c.b16 %v2911, %v2907
      %v3328 = vpack.c.b16 %v2916, %v2912
      %v3329 = vpack.c.b16 %v2917, %v2913
      %v3330 = vpack.c.b16 %v2918, %v2914
      %v3331 = vpack.c.b16 %v2919, %v2915
      %v3332 = vpack.c.b16 %v2924, %v2920
      %v3333 = vpack.c.b16 %v2925, %v2921
      %v3334 = vpack.c.b16 %v2926, %v2922
      %v3335 = vpack.c.b16 %v2927, %v2923
      %v3336 = vpack.c.b16 %v2932, %v2928
      %v3337 = vpack.c.b16 %v2933, %v2929
      %v3338 = vpack.c.b16 %v2934, %v2930
      %v3339 = vpack.c.b16 %v2935, %v2931
      %v3340 = vpack.c.b16 %v2940, %v2936
      %v3341 = vpack.c.b16 %v2941, %v2937
      %v3342 = vpack.c.b16 %v2942, %v2938
      %v3343 = vpack.c.b16 %v2943, %v2939
      %v3344 = vpack.c.b16 %v2948, %v2944
      %v3345 = vpack.c.b16 %v2949, %v2945
      %v3346 = vpack.c.b16 %v2950, %v2946
      %v3347 = vpack.c.b16 %v2951, %v2947
      %v3348 = vpack.c.b16 %v2956, %v2952
      %v3349 = vpack.c.b16 %v2957, %v2953
      %v3350 = vpack.c.b16 %v2958, %v2954
      %v3351 = vpack.c.b16 %v2959, %v2955
      %v3352 = vpack.c.b16 %v2964, %v2960
      %v3353 = vpack.c.b16 %v2965, %v2961
      %v3354 = vpack.c.b16 %v2966, %v2962
      %v3355 = vpack.c.b16 %v2967, %v2963
      %v3356 = vpack.c.b16 %v2972, %v2968
      %v3357 = vpack.c.b16 %v2973, %v2969
      %v3358 = vpack.c.b16 %v2974, %v2970
      %v3359 = vpack.c.b16 %v2975, %v2971
      %v3360 = vpack.c.b16 %v2980, %v2976
      %v3361 = vpack.c.b16 %v2981, %v2977
      %v3362 = vpack.c.b16 %v2982, %v2978
      %v3363 = vpack.c.b16 %v2983, %v2979
      %v3364 = vpack.c.b16 %v2988, %v2984
      %v3365 = vpack.c.b16 %v2989, %v2985
      %v3366 = vpack.c.b16 %v2990, %v2986
      %v3367 = vpack.c.b16 %v2991, %v2987
      %v3368 = vpack.c.b16 %v2996, %v2992
      %v3369 = vpack.c.b16 %v2997, %v2993
      %v3370 = vpack.c.b16 %v2998, %v2994
      %v3371 = vpack.c.b16 %v2999, %v2995
      %v3372 = vpack.c.b16 %v3004, %v3000
      %v3373 = vpack.c.b16 %v3005, %v3001
      %v3374 = vpack.c.b16 %v3006, %v3002
      %v3375 = vpack.c.b16 %v3007, %v3003
      %v3376 = vpack.c.b16 %v3012, %v3008
      %v3377 = vpack.c.b16 %v3013, %v3009
      %v3378 = vpack.c.b16 %v3014, %v3010
      %v3379 = vpack.c.b16 %v3015, %v3011
      %v3380 = vpack.c.b16 %v3020, %v3016
      %v3381 = vpack.c.b16 %v3021, %v3017
      %v3382 = vpack.c.b16 %v3022, %v3018
      %v3383 = vpack.c.b16 %v3023, %v3019
      %v3384 = vpack.c.b16 %v3028, %v3024
      %v3385 = vpack.c.b16 %v3029, %v3025
      %v3386 = vpack.c.b16 %v3030, %v3026
      %v3387 = vpack.c.b16 %v3031, %v3027
      %v3388 = vpack.c.b16 %v3036, %v3032
      %v3389 = vpack.c.b16 %v3037, %v3033
      %v3390 = vpack.c.b16 %v3038, %v3034
      %v3391 = vpack.c.b16 %v3039, %v3035
      %v3392 = vpack.c.b16 %v3044, %v3040
      %v3393 = vpack.c.b16 %v3045, %v3041
      %v3394 = vpack.c.b16 %v3046, %v3042
      %v3395 = vpack.c.b16 %v3047, %v3043
      %v3396 = vpack.c.b16 %v3052, %v3048
      %v3397 = vpack.c.b16 %v3053, %v3049
      %v3398 = vpack.c.b16 %v3054, %v3050
      %v3399 = vpack.c.b16 %v3055, %v3051
      %v3400 = vpack.c.b16 %v3060, %v3056
      %v3401 = vpack.c.b16 %v3061, %v3057
      %v3402 = vpack.c.b16 %v3062, %v3058
      %v3403 = vpack.c.b16 %v3063, %v3059
      %v3404 = vpack.c.b16 %v3068, %v3064
      %v3405 = vpack.c.b16 %v3069, %v3065
      %v3406 = vpack.c.b16 %v3070, %v3066
      %v3407 = vpack.c.b16 %v3071, %v3067
      %v3408 = vpack.c.b16 %v3076, %v3072
      %v3409 = vpack.c.b16 %v3077, %v3073
      %v3410 = vpack.c.b16 %v3078, %v3074
      %v3411 = vpack.c.b16 %v3079, %v3075
      %v3412 = vpack.c.b16 %v3084, %v3080
      %v3413 = vpack.c.b16 %v3085, %v3081
      %v3414 = vpack.c.b16 %v3086, %v3082
      %v3415 = vpack.c.b16 %v3087, %v3083
      %v3416 = vpack.c.b16 %v3092, %v3088
      %v3417 = vpack.c.b16 %v3093, %v3089
      %v3418 = vpack.c.b16 %v3094, %v3090
      %v3419 = vpack.c.b16 %v3095, %v3091
      %v3420 = vpack.c.b16 %v3100, %v3096
      %v3421 = vpack.c.b16 %v3101, %v3097
      %v3422 = vpack.c.b16 %v3102, %v3098
      %v3423 = vpack.c.b16 %v3103, %v3099
      %v3424 = vpack.c.b16 %v3108, %v3104
      %v3425 = vpack.c.b16 %v3109, %v3105
      %v3426 = vpack.c.b16 %v3110, %v3106
      %v3427 = vpack.c.b16 %v3111, %v3107
      %v3428 = vpack.c.b16 %v3116, %v3112
      %v3429 = vpack.c.b16 %v3117, %v3113
      %v3430 = vpack.c.b16 %v3118, %v3114
      %v3431 = vpack.c.b16 %v3119, %v3115
      %v3432 = vpack.c.b16 %v3124, %v3120
      %v3433 = vpack.c.b16 %v3125, %v3121
      %v3434 = vpack.c.b16 %v3126, %v3122
      %v3435 = vpack.c.b16 %v3127, %v3123
      %v3436 = vpack.c.b16 %v3132, %v3128
      %v3437 = vpack.c.b16 %v3133, %v3129
      %v3438 = vpack.c.b16 %v3134, %v3130
      %v3439 = vpack.c.b16 %v3135, %v3131
      %v3440 = vpack.c.b16 %v3140, %v3136
      %v3441 = vpack.c.b16 %v3141, %v3137
      %v3442 = vpack.c.b16 %v3142, %v3138
      %v3443 = vpack.c.b16 %v3143, %v3139
      %v3444 = vpack.c.b16 %v3148, %v3144
      %v3445 = vpack.c.b16 %v3149, %v3145
      %v3446 = vpack.c.b16 %v3150, %v3146
      %v3447 = vpack.c.b16 %v3151, %v3147
      %v3448 = vpack.c.b16 %v3156, %v3152
      %v3449 = vpack.c.b16 %v3157, %v3153
      %v3450 = vpack.c.b16 %v3158, %v3154
      %v3451 = vpack.c.b16 %v3159, %v3155
      %v3452 = vpack.c.b16 %v3164, %v3160
      %v3453 = vpack.c.b16 %v3165, %v3161
      %v3454 = vpack.c.b16 %v3166, %v3162
      %v3455 = vpack.c.b16 %v3167, %v3163
      %v3456 = vpack.c.b16 %v3172, %v3168
      %v3457 = vpack.c.b16 %v3173, %v3169
      %v3458 = vpack.c.b16 %v3174, %v3170
      %v3459 = vpack.c.b16 %v3175, %v3171
      %v3460 = vpack.c.b16 %v3180, %v3176
      %v3461 = vpack.c.b16 %v3181, %v3177
      %v3462 = vpack.c.b16 %v3182, %v3178
      %v3463 = vpack.c.b16 %v3183, %v3179
      %v3464 = vpack.c.b16 %v3188, %v3184
      %v3465 = vpack.c.b16 %v3189, %v3185
      %v3466 = vpack.c.b16 %v3190, %v3186
      %v3467 = vpack.c.b16 %v3191, %v3187
      %v3468 = vpack.c.b16 %v3196, %v3192
      %v3469 = vpack.c.b16 %v3197, %v3193
      %v3470 = vpack.c.b16 %v3198, %v3194
      %v3471 = vpack.c.b16 %v3199, %v3195
      %v3472 = vpack.c.b16 %v3204, %v3200
      %v3473 = vpack.c.b16 %v3205, %v3201
      %v3474 = vpack.c.b16 %v3206, %v3202
      %v3475 = vpack.c.b16 %v3207, %v3203
      %v3476 = vpack.c.b16 %v3212, %v3208
      %v3477 = vpack.c.b16 %v3213, %v3209
      %v3478 = vpack.c.b16 %v3214, %v3210
      %v3479 = vpack.c.b16 %v3215, %v3211
      %v3480 = vpack.c.b16 %v3220, %v3216
      %v3481 = vpack.c.b16 %v3221, %v3217
      %v3482 = vpack.c.b16 %v3222, %v3218
      %v3483 = vpack.c.b16 %v3223, %v3219
      %v3484 = vpack.c.b16 %v3228, %v3224
      %v3485 = vpack.c.b16 %v3229, %v3225
      %v3486 = vpack.c.b16 %v3230, %v3226
      %v3487 = vpack.c.b16 %v3231, %v3227
      %3744 = vmatprep.subr.bf16.mxu0 %v3233
      %3745 = vmatpush1.bf16.msra.mxu0 %v3232
      %3746 = vmatprep.subr.bf16.mxu0 %v3237
      %3747 = vmatpush1.bf16.msra.mxu0 %v3236
      %3748 = vmatprep.subr.bf16.mxu0 %v3241
      %3749 = vmatpush1.bf16.msra.mxu0 %v3240
      %3750 = vmatprep.subr.bf16.mxu0 %v3245
      %3751 = vmatpush1.bf16.msra.mxu0 %v3244
      %3752 = vmatprep.subr.bf16.mxu0 %v3249
      %3753 = vmatpush1.bf16.msra.mxu0 %v3248
      %3754 = vmatprep.subr.bf16.mxu0 %v3253
      %3755 = vmatpush1.bf16.msra.mxu0 %v3252
      %3756 = vmatprep.subr.bf16.mxu0 %v3257
      %3757 = vmatpush1.bf16.msra.mxu0 %v3256
      %3758 = vmatprep.subr.bf16.mxu0 %v3261
      %3759 = vmatpush1.bf16.msra.mxu0 %v3260
      %3760 = vmatprep.subr.bf16.mxu0 %v3265
      %3761 = vmatpush1.bf16.msra.mxu0 %v3264
      %3762 = vmatprep.subr.bf16.mxu0 %v3269
      %3763 = vmatpush1.bf16.msra.mxu0 %v3268
      %3764 = vmatprep.subr.bf16.mxu0 %v3273
      %3765 = vmatpush1.bf16.msra.mxu0 %v3272
      %3766 = vmatprep.subr.bf16.mxu0 %v3277
      %3767 = vmatpush1.bf16.msra.mxu0 %v3276
      %3768 = vmatprep.subr.bf16.mxu0 %v3281
      %3769 = vmatpush1.bf16.msra.mxu0 %v3280
      %3770 = vmatprep.subr.bf16.mxu0 %v3285
      %3771 = vmatpush1.bf16.msra.mxu0 %v3284
      %3772 = vmatprep.subr.bf16.mxu0 %v3289
      %3773 = vmatpush1.bf16.msra.mxu0 %v3288
      %3774 = vmatprep.subr.bf16.mxu0 %v3293
      %3775 = vmatpush1.bf16.msra.mxu0 %v3292
      %3776 = vmatprep.mubr.bf16.mxu0 %v804
      %3777 = vmatmul.mubr.bf16.gmra.mrb[0].mxu0 %v790
      %v3778 = vpop.f32.mrb[0].mxu0
      %v3779 = vadd.f32 %v2286, %v3778
      %v3780 = vpop.f32.mrb[0].mxu0
      %v3781 = vadd.f32 %v2288, %v3780
      %v3782 = vpop.f32.mrb[0].mxu0
      %v3783 = vpop.f32.mrb[0].mxu0
      %3784 = vdwg.mxu0
      %3785 = vmatprep.subr.bf16.mxu0 %v3297
      %3786 = vmatpush1.bf16.msra.mxu0 %v3296
      %3787 = vmatprep.subr.bf16.mxu0 %v3301
      %3788 = vmatpush1.bf16.msra.mxu0 %v3300
      %3789 = vmatprep.subr.bf16.mxu0 %v3305
      %3790 = vmatpush1.bf16.msra.mxu0 %v3304
      %3791 = vmatprep.subr.bf16.mxu0 %v3309
      %3792 = vmatpush1.bf16.msra.mxu0 %v3308
      %3793 = vmatprep.subr.bf16.mxu0 %v3313
      %3794 = vmatpush1.bf16.msra.mxu0 %v3312
      %3795 = vmatprep.subr.bf16.mxu0 %v3317
      %3796 = vmatpush1.bf16.msra.mxu0 %v3316
      %3797 = vmatprep.subr.bf16.mxu0 %v3321
      %3798 = vmatpush1.bf16.msra.mxu0 %v3320
      %3799 = vmatprep.subr.bf16.mxu0 %v3325
      %3800 = vmatpush1.bf16.msra.mxu0 %v3324
      %3801 = vmatprep.subr.bf16.mxu0 %v3329
      %3802 = vmatpush1.bf16.msra.mxu0 %v3328
      %3803 = vmatprep.subr.bf16.mxu0 %v3333
      %3804 = vmatpush1.bf16.msra.mxu0 %v3332
      %3805 = vmatprep.subr.bf16.mxu0 %v3337
      %3806 = vmatpush1.bf16.msra.mxu0 %v3336
      %3807 = vmatprep.subr.bf16.mxu0 %v3341
      %3808 = vmatpush1.bf16.msra.mxu0 %v3340
      %3809 = vmatprep.subr.bf16.mxu0 %v3345
      %3810 = vmatpush1.bf16.msra.mxu0 %v3344
      %3811 = vmatprep.subr.bf16.mxu0 %v3349
      %3812 = vmatpush1.bf16.msra.mxu0 %v3348
      %3813 = vmatprep.subr.bf16.mxu0 %v3353
      %3814 = vmatpush1.bf16.msra.mxu0 %v3352
      %3815 = vmatprep.subr.bf16.mxu0 %v3357
      %3816 = vmatpush1.bf16.msra.mxu0 %v3356
      %3817 = vmatprep.mubr.bf16.mxu0 %v814
      %3818 = vmatmul.mubr.bf16.gmra.mrb[0].mxu0 %v812
      %v3819 = vpop.f32.mrb[0].mxu0
      %v3820 = vadd.f32 %v3779, %v3819
      %v3821 = vpop.f32.mrb[0].mxu0
      %v3822 = vadd.f32 %v3781, %v3821
      %v3823 = vpop.f32.mrb[0].mxu0
      %v3824 = vpop.f32.mrb[0].mxu0
      %3825 = vdwg.mxu0
      %3826 = vmatprep.subr.bf16.mxu0 %v3361
      %3827 = vmatpush1.bf16.msra.mxu0 %v3360
      %3828 = vmatprep.subr.bf16.mxu0 %v3365
      %3829 = vmatpush1.bf16.msra.mxu0 %v3364
      %3830 = vmatprep.subr.bf16.mxu0 %v3369
      %3831 = vmatpush1.bf16.msra.mxu0 %v3368
      %3832 = vmatprep.subr.bf16.mxu0 %v3373
      %3833 = vmatpush1.bf16.msra.mxu0 %v3372
      %3834 = vmatprep.subr.bf16.mxu0 %v3377
      %3835 = vmatpush1.bf16.msra.mxu0 %v3376
      %3836 = vmatprep.subr.bf16.mxu0 %v3381
      %3837 = vmatpush1.bf16.msra.mxu0 %v3380
      %3838 = vmatprep.subr.bf16.mxu0 %v3385
      %3839 = vmatpush1.bf16.msra.mxu0 %v3384
      %3840 = vmatprep.subr.bf16.mxu0 %v3389
      %3841 = vmatpush1.bf16.msra.mxu0 %v3388
      %3842 = vmatprep.subr.bf16.mxu0 %v3393
      %3843 = vmatpush1.bf16.msra.mxu0 %v3392
      %3844 = vmatprep.subr.bf16.mxu0 %v3397
      %3845 = vmatpush1.bf16.msra.mxu0 %v3396
      %3846 = vmatprep.subr.bf16.mxu0 %v3401
      %3847 = vmatpush1.bf16.msra.mxu0 %v3400
      %3848 = vmatprep.subr.bf16.mxu0 %v3405
      %3849 = vmatpush1.bf16.msra.mxu0 %v3404
      %3850 = vmatprep.subr.bf16.mxu0 %v3409
      %3851 = vmatpush1.bf16.msra.mxu0 %v3408
      %3852 = vmatprep.subr.bf16.mxu0 %v3413
      %3853 = vmatpush1.bf16.msra.mxu0 %v3412
      %3854 = vmatprep.subr.bf16.mxu0 %v3417
      %3855 = vmatpush1.bf16.msra.mxu0 %v3416
      %3856 = vmatprep.subr.bf16.mxu0 %v3421
      %3857 = vmatpush1.bf16.msra.mxu0 %v3420
      %3858 = vmatprep.mubr.bf16.mxu0 %v811
      %3859 = vmatmul.mubr.bf16.gmra.mrb[0].mxu0 %v797
      %v3860 = vpop.f32.mrb[0].mxu0
      %v3861 = vadd.f32 %v3820, %v3860
      %v3862 = vpop.f32.mrb[0].mxu0
      %v3863 = vadd.f32 %v3822, %v3862
      %v3864 = vpop.f32.mrb[0].mxu0
      %v3865 = vpop.f32.mrb[0].mxu0
      %3866 = vdwg.mxu0
      %3867 = vmatprep.subr.bf16.mxu0 %v3425
      %3868 = vmatpush1.bf16.msra.mxu0 %v3424
      %3869 = vmatprep.subr.bf16.mxu0 %v3429
      %3870 = vmatpush1.bf16.msra.mxu0 %v3428
      %3871 = vmatprep.subr.bf16.mxu0 %v3433
      %3872 = vmatpush1.bf16.msra.mxu0 %v3432
      %3873 = vmatprep.subr.bf16.mxu0 %v3437
      %3874 = vmatpush1.bf16.msra.mxu0 %v3436
      %3875 = vmatprep.subr.bf16.mxu0 %v3441
      %3876 = vmatpush1.bf16.msra.mxu0 %v3440
      %3877 = vmatprep.subr.bf16.mxu0 %v3445
      %3878 = vmatpush1.bf16.msra.mxu0 %v3444
      %3879 = vmatprep.subr.bf16.mxu0 %v3449
      %3880 = vmatpush1.bf16.msra.mxu0 %v3448
      %3881 = vmatprep.subr.bf16.mxu0 %v3453
      %3882 = vmatpush1.bf16.msra.mxu0 %v3452
      %3883 = vmatprep.subr.bf16.mxu0 %v3457
      %3884 = vmatpush1.bf16.msra.mxu0 %v3456
      %3885 = vmatprep.subr.bf16.mxu0 %v3461
      %3886 = vmatpush1.bf16.msra.mxu0 %v3460
      %3887 = vmatprep.subr.bf16.mxu0 %v3465
      %3888 = vmatpush1.bf16.msra.mxu0 %v3464
      %3889 = vmatprep.subr.bf16.mxu0 %v3469
      %3890 = vmatpush1.bf16.msra.mxu0 %v3468
      %3891 = vmatprep.subr.bf16.mxu0 %v3473
      %3892 = vmatpush1.bf16.msra.mxu0 %v3472
      %3893 = vmatprep.subr.bf16.mxu0 %v3477
      %3894 = vmatpush1.bf16.msra.mxu0 %v3476
      %3895 = vmatprep.subr.bf16.mxu0 %v3481
      %3896 = vmatpush1.bf16.msra.mxu0 %v3480
      %3897 = vmatprep.subr.bf16.mxu0 %v3485
      %3898 = vmatpush1.bf16.msra.mxu0 %v3484
      %3899 = vmatprep.mubr.bf16.mxu0 %v815
      %3900 = vmatmul.mubr.bf16.gmra.mrb[0].mxu0 %v813
      %v3901 = vpop.f32.mrb[0].mxu0
      %v3902 = vadd.f32 %v3861, %v3901
      %v3903 = vpop.f32.mrb[0].mxu0
      %v3904 = vadd.f32 %v3863, %v3903
      %v3905 = vpop.f32.mrb[0].mxu0
      %v3906 = vpop.f32.mrb[0].mxu0
      %3907 = vdwg.mxu0
      %3908 = vmatprep.subr.bf16.mxu0 %v3235
      %3909 = vmatpush1.bf16.msra.mxu0 %v3234
      %3910 = vmatprep.subr.bf16.mxu0 %v3239
      %3911 = vmatpush1.bf16.msra.mxu0 %v3238
      %3912 = vmatprep.subr.bf16.mxu0 %v3243
      %3913 = vmatpush1.bf16.msra.mxu0 %v3242
      %3914 = vmatprep.subr.bf16.mxu0 %v3247
      %3915 = vmatpush1.bf16.msra.mxu0 %v3246
      %3916 = vmatprep.subr.bf16.mxu0 %v3251
      %3917 = vmatpush1.bf16.msra.mxu0 %v3250
      %3918 = vmatprep.subr.bf16.mxu0 %v3255
      %3919 = vmatpush1.bf16.msra.mxu0 %v3254
      %3920 = vmatprep.subr.bf16.mxu0 %v3259
      %3921 = vmatpush1.bf16.msra.mxu0 %v3258
      %3922 = vmatprep.subr.bf16.mxu0 %v3263
      %3923 = vmatpush1.bf16.msra.mxu0 %v3262
      %3924 = vmatprep.subr.bf16.mxu0 %v3267
      %3925 = vmatpush1.bf16.msra.mxu0 %v3266
      %3926 = vmatprep.subr.bf16.mxu0 %v3271
      %3927 = vmatpush1.bf16.msra.mxu0 %v3270
      %3928 = vmatprep.subr.bf16.mxu0 %v3275
      %3929 = vmatpush1.bf16.msra.mxu0 %v3274
      %3930 = vmatprep.subr.bf16.mxu0 %v3279
      %3931 = vmatpush1.bf16.msra.mxu0 %v3278
      %3932 = vmatprep.subr.bf16.mxu0 %v3283
      %3933 = vmatpush1.bf16.msra.mxu0 %v3282
      %3934 = vmatprep.subr.bf16.mxu0 %v3287
      %3935 = vmatpush1.bf16.msra.mxu0 %v3286
      %3936 = vmatprep.subr.bf16.mxu0 %v3291
      %3937 = vmatpush1.bf16.msra.mxu0 %v3290
      %3938 = vmatprep.subr.bf16.mxu0 %v3295
      %3939 = vmatpush1.bf16.msra.mxu0 %v3294
      %3940 = vmatprep.mubr.bf16.mxu0 %v804
      %3941 = vmatmul.mubr.bf16.gmra.mrb[0].mxu0 %v790
      %v3942 = vpop.f32.mrb[0].mxu0
      %v3943 = vadd.f32 %v2450, %v3942
      %v3944 = vpop.f32.mrb[0].mxu0
      %v3945 = vadd.f32 %v2452, %v3944
      %v3946 = vpop.f32.mrb[0].mxu0
      %v3947 = vpop.f32.mrb[0].mxu0
      %3948 = vdwg.mxu0
      %3949 = vmatprep.subr.bf16.mxu0 %v3299
      %3950 = vmatpush1.bf16.msra.mxu0 %v3298
      %3951 = vmatprep.subr.bf16.mxu0 %v3303
      %3952 = vmatpush1.bf16.msra.mxu0 %v3302
      %3953 = vmatprep.subr.bf16.mxu0 %v3307
      %3954 = vmatpush1.bf16.msra.mxu0 %v3306
      %3955 = vmatprep.subr.bf16.mxu0 %v3311
      %3956 = vmatpush1.bf16.msra.mxu0 %v3310
      %3957 = vmatprep.subr.bf16.mxu0 %v3315
      %3958 = vmatpush1.bf16.msra.mxu0 %v3314
      %3959 = vmatprep.subr.bf16.mxu0 %v3319
      %3960 = vmatpush1.bf16.msra.mxu0 %v3318
      %3961 = vmatprep.subr.bf16.mxu0 %v3323
      %3962 = vmatpush1.bf16.msra.mxu0 %v3322
      %3963 = vmatprep.subr.bf16.mxu0 %v3327
      %3964 = vmatpush1.bf16.msra.mxu0 %v3326
      %3965 = vmatprep.subr.bf16.mxu0 %v3331
      %3966 = vmatpush1.bf16.msra.mxu0 %v3330
      %3967 = vmatprep.subr.bf16.mxu0 %v3335
      %3968 = vmatpush1.bf16.msra.mxu0 %v3334
      %3969 = vmatprep.subr.bf16.mxu0 %v3339
      %3970 = vmatpush1.bf16.msra.mxu0 %v3338
      %3971 = vmatprep.subr.bf16.mxu0 %v3343
      %3972 = vmatpush1.bf16.msra.mxu0 %v3342
      %3973 = vmatprep.subr.bf16.mxu0 %v3347
      %3974 = vmatpush1.bf16.msra.mxu0 %v3346
      %3975 = vmatprep.subr.bf16.mxu0 %v3351
      %3976 = vmatpush1.bf16.msra.mxu0 %v3350
      %3977 = vmatprep.subr.bf16.mxu0 %v3355
      %3978 = vmatpush1.bf16.msra.mxu0 %v3354
      %3979 = vmatprep.subr.bf16.mxu0 %v3359
      %3980 = vmatpush1.bf16.msra.mxu0 %v3358
      %3981 = vmatprep.mubr.bf16.mxu0 %v814
      %3982 = vmatmul.mubr.bf16.gmra.mrb[0].mxu0 %v812
      %v3983 = vpop.f32.mrb[0].mxu0
      %v3984 = vadd.f32 %v3943, %v3983
      %v3985 = vpop.f32.mrb[0].mxu0
      %v3986 = vadd.f32 %v3945, %v3985
      %v3987 = vpop.f32.mrb[0].mxu0
      %v3988 = vpop.f32.mrb[0].mxu0
      %3989 = vdwg.mxu0
      %3990 = vmatprep.subr.bf16.mxu0 %v3363
      %3991 = vmatpush1.bf16.msra.mxu0 %v3362
      %3992 = vmatprep.subr.bf16.mxu0 %v3367
      %3993 = vmatpush1.bf16.msra.mxu0 %v3366
      %3994 = vmatprep.subr.bf16.mxu0 %v3371
      %3995 = vmatpush1.bf16.msra.mxu0 %v3370
      %3996 = vmatprep.subr.bf16.mxu0 %v3375
      %3997 = vmatpush1.bf16.msra.mxu0 %v3374
      %3998 = vmatprep.subr.bf16.mxu0 %v3379
      %3999 = vmatpush1.bf16.msra.mxu0 %v3378
      %4000 = vmatprep.subr.bf16.mxu0 %v3383
      %4001 = vmatpush1.bf16.msra.mxu0 %v3382
      %4002 = vmatprep.subr.bf16.mxu0 %v3387
      %4003 = vmatpush1.bf16.msra.mxu0 %v3386
      %4004 = vmatprep.subr.bf16.mxu0 %v3391
      %4005 = vmatpush1.bf16.msra.mxu0 %v3390
      %4006 = vmatprep.subr.bf16.mxu0 %v3395
      %4007 = vmatpush1.bf16.msra.mxu0 %v3394
      %4008 = vmatprep.subr.bf16.mxu0 %v3399
      %4009 = vmatpush1.bf16.msra.mxu0 %v3398
      %4010 = vmatprep.subr.bf16.mxu0 %v3403
      %4011 = vmatpush1.bf16.msra.mxu0 %v3402
      %4012 = vmatprep.subr.bf16.mxu0 %v3407
      %4013 = vmatpush1.bf16.msra.mxu0 %v3406
      %4014 = vmatprep.subr.bf16.mxu0 %v3411
      %4015 = vmatpush1.bf16.msra.mxu0 %v3410
      %4016 = vmatprep.subr.bf16.mxu0 %v3415
      %4017 = vmatpush1.bf16.msra.mxu0 %v3414
      %4018 = vmatprep.subr.bf16.mxu0 %v3419
      %4019 = vmatpush1.bf16.msra.mxu0 %v3418
      %4020 = vmatprep.subr.bf16.mxu0 %v3423
      %4021 = vmatpush1.bf16.msra.mxu0 %v3422
      %4022 = vmatprep.mubr.bf16.mxu0 %v811
      %4023 = vmatmul.mubr.bf16.gmra.mrb[0].mxu0 %v797
      %v4024 = vpop.f32.mrb[0].mxu0
      %v4025 = vadd.f32 %v3984, %v4024
      %v4026 = vpop.f32.mrb[0].mxu0
      %v4027 = vadd.f32 %v3986, %v4026
      %v4028 = vpop.f32.mrb[0].mxu0
      %v4029 = vpop.f32.mrb[0].mxu0
      %4030 = vdwg.mxu0
      %4031 = vmatprep.subr.bf16.mxu0 %v3427
      %4032 = vmatpush1.bf16.msra.mxu0 %v3426
      %4033 = vmatprep.subr.bf16.mxu0 %v3431
      %4034 = vmatpush1.bf16.msra.mxu0 %v3430
      %4035 = vmatprep.subr.bf16.mxu0 %v3435
      %4036 = vmatpush1.bf16.msra.mxu0 %v3434
      %4037 = vmatprep.subr.bf16.mxu0 %v3439
      %4038 = vmatpush1.bf16.msra.mxu0 %v3438
      %4039 = vmatprep.subr.bf16.mxu0 %v3443
      %4040 = vmatpush1.bf16.msra.mxu0 %v3442
      %4041 = vmatprep.subr.bf16.mxu0 %v3447
      %4042 = vmatpush1.bf16.msra.mxu0 %v3446
      %4043 = vmatprep.subr.bf16.mxu0 %v3451
      %4044 = vmatpush1.bf16.msra.mxu0 %v3450
      %4045 = vmatprep.subr.bf16.mxu0 %v3455
      %4046 = vmatpush1.bf16.msra.mxu0 %v3454
      %4047 = vmatprep.subr.bf16.mxu0 %v3459
      %4048 = vmatpush1.bf16.msra.mxu0 %v3458
      %4049 = vmatprep.subr.bf16.mxu0 %v3463
      %4050 = vmatpush1.bf16.msra.mxu0 %v3462
      %4051 = vmatprep.subr.bf16.mxu0 %v3467
      %4052 = vmatpush1.bf16.msra.mxu0 %v3466
      %4053 = vmatprep.subr.bf16.mxu0 %v3471
      %4054 = vmatpush1.bf16.msra.mxu0 %v3470
      %4055 = vmatprep.subr.bf16.mxu0 %v3475
      %4056 = vmatpush1.bf16.msra.mxu0 %v3474
      %4057 = vmatprep.subr.bf16.mxu0 %v3479
      %4058 = vmatpush1.bf16.msra.mxu0 %v3478
      %4059 = vmatprep.subr.bf16.mxu0 %v3483
      %4060 = vmatpush1.bf16.msra.mxu0 %v3482
      %4061 = vmatprep.subr.bf16.mxu0 %v3487
      %4062 = vmatpush1.bf16.msra.mxu0 %v3486
      %4063 = vmatprep.mubr.bf16.mxu0 %v815
      %4064 = vmatmul.mubr.bf16.gmra.mrb[0].mxu0 %v813
      %v4065 = vpop.f32.mrb[0].mxu0
      %v4066 = vadd.f32 %v4025, %v4065
      %v4067 = vpop.f32.mrb[0].mxu0
      %v4068 = vadd.f32 %v4027, %v4067
      %v4069 = vpop.f32.mrb[0].mxu0
      %v4070 = vpop.f32.mrb[0].mxu0
      %4071 = vdwg.mxu0
      %s4072 = scalar_lea.vmem %s234, 8
      %v4073 = vld [vmem:[%s4072] sm:$0xff]
      %s4074 = scalar_lea.vmem %s1, 4096
      %v4075 = vld [vmem:[%s4074] sm:$0xff]
      %v4076 = vld [vmem:[%s4074 + $0x8] sm:$0xff]
      %v4077 = vld [vmem:[%s4074 + $0x10] sm:$0xff]
      %v4078 = vld [vmem:[%s4074 + $0x18] sm:$0xff]
      %v4079 = vld [vmem:[%s4074 + $0x20] sm:$0xff]
      %v4080 = vld [vmem:[%s4074 + $0x28] sm:$0xff]
      %v4081 = vld [vmem:[%s4074 + $0x30] sm:$0xff]
      %v4082 = vld [vmem:[%s4074 + $0x38] sm:$0xff]
      %v4083 = vld [vmem:[%s4074 + $0x40] sm:$0xff]
      %v4084 = vld [vmem:[%s4074 + $0x48] sm:$0xff]
      %v4085 = vld [vmem:[%s4074 + $0x50] sm:$0xff]
      %v4086 = vld [vmem:[%s4074 + $0x58] sm:$0xff]
      %v4087 = vld [vmem:[%s4074 + $0x60] sm:$0xff]
      %v4088 = vld [vmem:[%s4074 + $0x68] sm:$0xff]
      %v4089 = vld [vmem:[%s4074 + $0x70] sm:$0xff]
      %v4090 = vld [vmem:[%s4074 + $0x78] sm:$0xff]
      %v4091 = vld [vmem:[%s4074 + $0x80] sm:$0xff]
      %v4092 = vld [vmem:[%s4074 + $0x88] sm:$0xff]
      %v4093 = vld [vmem:[%s4074 + $0x90] sm:$0xff]
      %v4094 = vld [vmem:[%s4074 + $0x98] sm:$0xff]
      %v4095 = vld [vmem:[%s4074 + $0xa0] sm:$0xff]
      %v4096 = vld [vmem:[%s4074 + $0xa8] sm:$0xff]
      %v4097 = vld [vmem:[%s4074 + $0xb0] sm:$0xff]
      %v4098 = vld [vmem:[%s4074 + $0xb8] sm:$0xff]
      %v4099 = vld [vmem:[%s4074 + $0xc0] sm:$0xff]
      %v4100 = vld [vmem:[%s4074 + $0xc8] sm:$0xff]
      %v4101 = vld [vmem:[%s4074 + $0xd0] sm:$0xff]
      %v4102 = vld [vmem:[%s4074 + $0xd8] sm:$0xff]
      %v4103 = vld [vmem:[%s4074 + $0xe0] sm:$0xff]
      %v4104 = vld [vmem:[%s4074 + $0xe8] sm:$0xff]
      %v4105 = vld [vmem:[%s4074 + $0xf0] sm:$0xff]
      %v4106 = vld [vmem:[%s4074 + $0xf8] sm:$0xff]
      %v4107 = vld [vmem:[%s4074 + $0x100] sm:$0xff]
      %v4108 = vld [vmem:[%s4074 + $0x108] sm:$0xff]
      %v4109 = vld [vmem:[%s4074 + $0x110] sm:$0xff]
      %v4110 = vld [vmem:[%s4074 + $0x118] sm:$0xff]
      %v4111 = vld [vmem:[%s4074 + $0x120] sm:$0xff]
      %v4112 = vld [vmem:[%s4074 + $0x128] sm:$0xff]
      %v4113 = vld [vmem:[%s4074 + $0x130] sm:$0xff]
      %v4114 = vld [vmem:[%s4074 + $0x138] sm:$0xff]
      %v4115 = vld [vmem:[%s4074 + $0x140] sm:$0xff]
      %v4116 = vld [vmem:[%s4074 + $0x148] sm:$0xff]
      %v4117 = vld [vmem:[%s4074 + $0x150] sm:$0xff]
      %v4118 = vld [vmem:[%s4074 + $0x158] sm:$0xff]
      %v4119 = vld [vmem:[%s4074 + $0x160] sm:$0xff]
      %v4120 = vld [vmem:[%s4074 + $0x168] sm:$0xff]
      %v4121 = vld [vmem:[%s4074 + $0x170] sm:$0xff]
      %v4122 = vld [vmem:[%s4074 + $0x178] sm:$0xff]
      %v4123 = vld [vmem:[%s4074 + $0x180] sm:$0xff]
      %v4124 = vld [vmem:[%s4074 + $0x188] sm:$0xff]
      %v4125 = vld [vmem:[%s4074 + $0x190] sm:$0xff]
      %v4126 = vld [vmem:[%s4074 + $0x198] sm:$0xff]
      %v4127 = vld [vmem:[%s4074 + $0x1a0] sm:$0xff]
      %v4128 = vld [vmem:[%s4074 + $0x1a8] sm:$0xff]
      %v4129 = vld [vmem:[%s4074 + $0x1b0] sm:$0xff]
      %v4130 = vld [vmem:[%s4074 + $0x1b8] sm:$0xff]
      %v4131 = vld [vmem:[%s4074 + $0x1c0] sm:$0xff]
      %v4132 = vld [vmem:[%s4074 + $0x1c8] sm:$0xff]
      %v4133 = vld [vmem:[%s4074 + $0x1d0] sm:$0xff]
      %v4134 = vld [vmem:[%s4074 + $0x1d8] sm:$0xff]
      %v4135 = vld [vmem:[%s4074 + $0x1e0] sm:$0xff]
      %v4136 = vld [vmem:[%s4074 + $0x1e8] sm:$0xff]
      %v4137 = vld [vmem:[%s4074 + $0x1f0] sm:$0xff]
      %v4138 = vld [vmem:[%s4074 + $0x1f8] sm:$0xff]
      %v4139 = vld [vmem:[%s4074 + $0x200] sm:$0xff]
      %v4140 = vld [vmem:[%s4074 + $0x208] sm:$0xff]
      %v4141 = vld [vmem:[%s4074 + $0x210] sm:$0xff]
      %v4142 = vld [vmem:[%s4074 + $0x218] sm:$0xff]
      %v4143 = vld [vmem:[%s4074 + $0x220] sm:$0xff]
      %v4144 = vld [vmem:[%s4074 + $0x228] sm:$0xff]
      %v4145 = vld [vmem:[%s4074 + $0x230] sm:$0xff]
      %v4146 = vld [vmem:[%s4074 + $0x238] sm:$0xff]
      %v4147 = vld [vmem:[%s4074 + $0x240] sm:$0xff]
      %v4148 = vld [vmem:[%s4074 + $0x248] sm:$0xff]
      %v4149 = vld [vmem:[%s4074 + $0x250] sm:$0xff]
      %v4150 = vld [vmem:[%s4074 + $0x258] sm:$0xff]
      %v4151 = vld [vmem:[%s4074 + $0x260] sm:$0xff]
      %v4152 = vld [vmem:[%s4074 + $0x268] sm:$0xff]
      %v4153 = vld [vmem:[%s4074 + $0x270] sm:$0xff]
      %v4154 = vld [vmem:[%s4074 + $0x278] sm:$0xff]
      %v4155 = vld [vmem:[%s4074 + $0x280] sm:$0xff]
      %v4156 = vld [vmem:[%s4074 + $0x288] sm:$0xff]
      %v4157 = vld [vmem:[%s4074 + $0x290] sm:$0xff]
      %v4158 = vld [vmem:[%s4074 + $0x298] sm:$0xff]
      %v4159 = vld [vmem:[%s4074 + $0x2a0] sm:$0xff]
      %v4160 = vld [vmem:[%s4074 + $0x2a8] sm:$0xff]
      %v4161 = vld [vmem:[%s4074 + $0x2b0] sm:$0xff]
      %v4162 = vld [vmem:[%s4074 + $0x2b8] sm:$0xff]
      %v4163 = vld [vmem:[%s4074 + $0x2c0] sm:$0xff]
      %v4164 = vld [vmem:[%s4074 + $0x2c8] sm:$0xff]
      %v4165 = vld [vmem:[%s4074 + $0x2d0] sm:$0xff]
      %v4166 = vld [vmem:[%s4074 + $0x2d8] sm:$0xff]
      %v4167 = vld [vmem:[%s4074 + $0x2e0] sm:$0xff]
      %v4168 = vld [vmem:[%s4074 + $0x2e8] sm:$0xff]
      %v4169 = vld [vmem:[%s4074 + $0x2f0] sm:$0xff]
      %v4170 = vld [vmem:[%s4074 + $0x2f8] sm:$0xff]
      %v4171 = vld [vmem:[%s4074 + $0x300] sm:$0xff]
      %v4172 = vld [vmem:[%s4074 + $0x308] sm:$0xff]
      %v4173 = vld [vmem:[%s4074 + $0x310] sm:$0xff]
      %v4174 = vld [vmem:[%s4074 + $0x318] sm:$0xff]
      %v4175 = vld [vmem:[%s4074 + $0x320] sm:$0xff]
      %v4176 = vld [vmem:[%s4074 + $0x328] sm:$0xff]
      %v4177 = vld [vmem:[%s4074 + $0x330] sm:$0xff]
      %v4178 = vld [vmem:[%s4074 + $0x338] sm:$0xff]
      %v4179 = vld [vmem:[%s4074 + $0x340] sm:$0xff]
      %v4180 = vld [vmem:[%s4074 + $0x348] sm:$0xff]
      %v4181 = vld [vmem:[%s4074 + $0x350] sm:$0xff]
      %v4182 = vld [vmem:[%s4074 + $0x358] sm:$0xff]
      %v4183 = vld [vmem:[%s4074 + $0x360] sm:$0xff]
      %v4184 = vld [vmem:[%s4074 + $0x368] sm:$0xff]
      %v4185 = vld [vmem:[%s4074 + $0x370] sm:$0xff]
      %v4186 = vld [vmem:[%s4074 + $0x378] sm:$0xff]
      %v4187 = vld [vmem:[%s4074 + $0x380] sm:$0xff]
      %v4188 = vld [vmem:[%s4074 + $0x388] sm:$0xff]
      %v4189 = vld [vmem:[%s4074 + $0x390] sm:$0xff]
      %v4190 = vld [vmem:[%s4074 + $0x398] sm:$0xff]
      %v4191 = vld [vmem:[%s4074 + $0x3a0] sm:$0xff]
      %v4192 = vld [vmem:[%s4074 + $0x3a8] sm:$0xff]
      %v4193 = vld [vmem:[%s4074 + $0x3b0] sm:$0xff]
      %v4194 = vld [vmem:[%s4074 + $0x3b8] sm:$0xff]
      %v4195 = vld [vmem:[%s4074 + $0x3c0] sm:$0xff]
      %v4196 = vld [vmem:[%s4074 + $0x3c8] sm:$0xff]
      %v4197 = vld [vmem:[%s4074 + $0x3d0] sm:$0xff]
      %v4198 = vld [vmem:[%s4074 + $0x3d8] sm:$0xff]
      %v4199 = vld [vmem:[%s4074 + $0x3e0] sm:$0xff]
      %v4200 = vld [vmem:[%s4074 + $0x3e8] sm:$0xff]
      %v4201 = vld [vmem:[%s4074 + $0x3f0] sm:$0xff]
      %v4202 = vld [vmem:[%s4074 + $0x3f8] sm:$0xff]
      %v4203 = vld [vmem:[%s4074 + $0x400] sm:$0xff]
      %v4204 = vld [vmem:[%s4074 + $0x408] sm:$0xff]
      %v4205 = vld [vmem:[%s4074 + $0x410] sm:$0xff]
      %v4206 = vld [vmem:[%s4074 + $0x418] sm:$0xff]
      %v4207 = vld [vmem:[%s4074 + $0x420] sm:$0xff]
      %v4208 = vld [vmem:[%s4074 + $0x428] sm:$0xff]
      %v4209 = vld [vmem:[%s4074 + $0x430] sm:$0xff]
      %v4210 = vld [vmem:[%s4074 + $0x438] sm:$0xff]
      %v4211 = vld [vmem:[%s4074 + $0x440] sm:$0xff]
      %v4212 = vld [vmem:[%s4074 + $0x448] sm:$0xff]
      %v4213 = vld [vmem:[%s4074 + $0x450] sm:$0xff]
      %v4214 = vld [vmem:[%s4074 + $0x458] sm:$0xff]
      %v4215 = vld [vmem:[%s4074 + $0x460] sm:$0xff]
      %v4216 = vld [vmem:[%s4074 + $0x468] sm:$0xff]
      %v4217 = vld [vmem:[%s4074 + $0x470] sm:$0xff]
      %v4218 = vld [vmem:[%s4074 + $0x478] sm:$0xff]
      %v4219 = vld [vmem:[%s4074 + $0x480] sm:$0xff]
      %v4220 = vld [vmem:[%s4074 + $0x488] sm:$0xff]
      %v4221 = vld [vmem:[%s4074 + $0x490] sm:$0xff]
      %v4222 = vld [vmem:[%s4074 + $0x498] sm:$0xff]
      %v4223 = vld [vmem:[%s4074 + $0x4a0] sm:$0xff]
      %v4224 = vld [vmem:[%s4074 + $0x4a8] sm:$0xff]
      %v4225 = vld [vmem:[%s4074 + $0x4b0] sm:$0xff]
      %v4226 = vld [vmem:[%s4074 + $0x4b8] sm:$0xff]
      %v4227 = vld [vmem:[%s4074 + $0x4c0] sm:$0xff]
      %v4228 = vld [vmem:[%s4074 + $0x4c8] sm:$0xff]
      %v4229 = vld [vmem:[%s4074 + $0x4d0] sm:$0xff]
      %v4230 = vld [vmem:[%s4074 + $0x4d8] sm:$0xff]
      %v4231 = vld [vmem:[%s4074 + $0x4e0] sm:$0xff]
      %v4232 = vld [vmem:[%s4074 + $0x4e8] sm:$0xff]
      %v4233 = vld [vmem:[%s4074 + $0x4f0] sm:$0xff]
      %v4234 = vld [vmem:[%s4074 + $0x4f8] sm:$0xff]
      %v4235 = vld [vmem:[%s4074 + $0x500] sm:$0xff]
      %v4236 = vld [vmem:[%s4074 + $0x508] sm:$0xff]
      %v4237 = vld [vmem:[%s4074 + $0x510] sm:$0xff]
      %v4238 = vld [vmem:[%s4074 + $0x518] sm:$0xff]
      %v4239 = vld [vmem:[%s4074 + $0x520] sm:$0xff]
      %v4240 = vld [vmem:[%s4074 + $0x528] sm:$0xff]
      %v4241 = vld [vmem:[%s4074 + $0x530] sm:$0xff]
      %v4242 = vld [vmem:[%s4074 + $0x538] sm:$0xff]
      %v4243 = vld [vmem:[%s4074 + $0x540] sm:$0xff]
      %v4244 = vld [vmem:[%s4074 + $0x548] sm:$0xff]
      %v4245 = vld [vmem:[%s4074 + $0x550] sm:$0xff]
      %v4246 = vld [vmem:[%s4074 + $0x558] sm:$0xff]
      %v4247 = vld [vmem:[%s4074 + $0x560] sm:$0xff]
      %v4248 = vld [vmem:[%s4074 + $0x568] sm:$0xff]
      %v4249 = vld [vmem:[%s4074 + $0x570] sm:$0xff]
      %v4250 = vld [vmem:[%s4074 + $0x578] sm:$0xff]
      %v4251 = vld [vmem:[%s4074 + $0x580] sm:$0xff]
      %v4252 = vld [vmem:[%s4074 + $0x588] sm:$0xff]
      %v4253 = vld [vmem:[%s4074 + $0x590] sm:$0xff]
      %v4254 = vld [vmem:[%s4074 + $0x598] sm:$0xff]
      %v4255 = vld [vmem:[%s4074 + $0x5a0] sm:$0xff]
      %v4256 = vld [vmem:[%s4074 + $0x5a8] sm:$0xff]
      %v4257 = vld [vmem:[%s4074 + $0x5b0] sm:$0xff]
      %v4258 = vld [vmem:[%s4074 + $0x5b8] sm:$0xff]
      %v4259 = vld [vmem:[%s4074 + $0x5c0] sm:$0xff]
      %v4260 = vld [vmem:[%s4074 + $0x5c8] sm:$0xff]
      %v4261 = vld [vmem:[%s4074 + $0x5d0] sm:$0xff]
      %v4262 = vld [vmem:[%s4074 + $0x5d8] sm:$0xff]
      %v4263 = vld [vmem:[%s4074 + $0x5e0] sm:$0xff]
      %v4264 = vld [vmem:[%s4074 + $0x5e8] sm:$0xff]
      %v4265 = vld [vmem:[%s4074 + $0x5f0] sm:$0xff]
      %v4266 = vld [vmem:[%s4074 + $0x5f8] sm:$0xff]
      %v4267 = vld [vmem:[%s4074 + $0x600] sm:$0xff]
      %v4268 = vld [vmem:[%s4074 + $0x608] sm:$0xff]
      %v4269 = vld [vmem:[%s4074 + $0x610] sm:$0xff]
      %v4270 = vld [vmem:[%s4074 + $0x618] sm:$0xff]
      %v4271 = vld [vmem:[%s4074 + $0x620] sm:$0xff]
      %v4272 = vld [vmem:[%s4074 + $0x628] sm:$0xff]
      %v4273 = vld [vmem:[%s4074 + $0x630] sm:$0xff]
      %v4274 = vld [vmem:[%s4074 + $0x638] sm:$0xff]
      %v4275 = vld [vmem:[%s4074 + $0x640] sm:$0xff]
      %v4276 = vld [vmem:[%s4074 + $0x648] sm:$0xff]
      %v4277 = vld [vmem:[%s4074 + $0x650] sm:$0xff]
      %v4278 = vld [vmem:[%s4074 + $0x658] sm:$0xff]
      %v4279 = vld [vmem:[%s4074 + $0x660] sm:$0xff]
      %v4280 = vld [vmem:[%s4074 + $0x668] sm:$0xff]
      %v4281 = vld [vmem:[%s4074 + $0x670] sm:$0xff]
      %v4282 = vld [vmem:[%s4074 + $0x678] sm:$0xff]
      %v4283 = vld [vmem:[%s4074 + $0x680] sm:$0xff]
      %v4284 = vld [vmem:[%s4074 + $0x688] sm:$0xff]
      %v4285 = vld [vmem:[%s4074 + $0x690] sm:$0xff]
      %v4286 = vld [vmem:[%s4074 + $0x698] sm:$0xff]
      %v4287 = vld [vmem:[%s4074 + $0x6a0] sm:$0xff]
      %v4288 = vld [vmem:[%s4074 + $0x6a8] sm:$0xff]
      %v4289 = vld [vmem:[%s4074 + $0x6b0] sm:$0xff]
      %v4290 = vld [vmem:[%s4074 + $0x6b8] sm:$0xff]
      %v4291 = vld [vmem:[%s4074 + $0x6c0] sm:$0xff]
      %v4292 = vld [vmem:[%s4074 + $0x6c8] sm:$0xff]
      %v4293 = vld [vmem:[%s4074 + $0x6d0] sm:$0xff]
      %v4294 = vld [vmem:[%s4074 + $0x6d8] sm:$0xff]
      %v4295 = vld [vmem:[%s4074 + $0x6e0] sm:$0xff]
      %v4296 = vld [vmem:[%s4074 + $0x6e8] sm:$0xff]
      %v4297 = vld [vmem:[%s4074 + $0x6f0] sm:$0xff]
      %v4298 = vld [vmem:[%s4074 + $0x6f8] sm:$0xff]
      %v4299 = vld [vmem:[%s4074 + $0x700] sm:$0xff]
      %v4300 = vld [vmem:[%s4074 + $0x708] sm:$0xff]
      %v4301 = vld [vmem:[%s4074 + $0x710] sm:$0xff]
      %v4302 = vld [vmem:[%s4074 + $0x718] sm:$0xff]
      %v4303 = vld [vmem:[%s4074 + $0x720] sm:$0xff]
      %v4304 = vld [vmem:[%s4074 + $0x728] sm:$0xff]
      %v4305 = vld [vmem:[%s4074 + $0x730] sm:$0xff]
      %v4306 = vld [vmem:[%s4074 + $0x738] sm:$0xff]
      %v4307 = vld [vmem:[%s4074 + $0x740] sm:$0xff]
      %v4308 = vld [vmem:[%s4074 + $0x748] sm:$0xff]
      %v4309 = vld [vmem:[%s4074 + $0x750] sm:$0xff]
      %v4310 = vld [vmem:[%s4074 + $0x758] sm:$0xff]
      %v4311 = vld [vmem:[%s4074 + $0x760] sm:$0xff]
      %v4312 = vld [vmem:[%s4074 + $0x768] sm:$0xff]
      %v4313 = vld [vmem:[%s4074 + $0x770] sm:$0xff]
      %v4314 = vld [vmem:[%s4074 + $0x778] sm:$0xff]
      %v4315 = vld [vmem:[%s4074 + $0x780] sm:$0xff]
      %v4316 = vld [vmem:[%s4074 + $0x788] sm:$0xff]
      %v4317 = vld [vmem:[%s4074 + $0x790] sm:$0xff]
      %v4318 = vld [vmem:[%s4074 + $0x798] sm:$0xff]
      %v4319 = vld [vmem:[%s4074 + $0x7a0] sm:$0xff]
      %v4320 = vld [vmem:[%s4074 + $0x7a8] sm:$0xff]
      %v4321 = vld [vmem:[%s4074 + $0x7b0] sm:$0xff]
      %v4322 = vld [vmem:[%s4074 + $0x7b8] sm:$0xff]
      %v4323 = vld [vmem:[%s4074 + $0x7c0] sm:$0xff]
      %v4324 = vld [vmem:[%s4074 + $0x7c8] sm:$0xff]
      %v4325 = vld [vmem:[%s4074 + $0x7d0] sm:$0xff]
      %v4326 = vld [vmem:[%s4074 + $0x7d8] sm:$0xff]
      %v4327 = vld [vmem:[%s4074 + $0x7e0] sm:$0xff]
      %v4328 = vld [vmem:[%s4074 + $0x7e8] sm:$0xff]
      %v4329 = vld [vmem:[%s4074 + $0x7f0] sm:$0xff]
      %v4330 = vld [vmem:[%s4074 + $0x7f8] sm:$0xff]
      %v4332 = vcombine.high %v4073, %v4073
      %v4334 = vunpack.c.l.s4 1966171168
      %v4335 = vunpack.c.0.s8 %v4334
      %v4336 = vlaneseq
      %v4337 = vshrl.u32 %v4336, 7
      %v4338 = vsub.s32 %v4335, %v4337
      %v4339 = vrot.slane %v4073, %v4338
      %v4341 = vunpack.c.l.s4 1966171168
      %v4342 = vunpack.c.0.s8 %v4341
      %v4343 = vlaneseq
      %v4344 = vshrl.u32 %v4343, 7
      %v4345 = vsub.s32 %v4342, %v4344
      %v4346 = vrot.slane %v4332, %v4345
      %v4347 = vcombine.high %v4339, %v4339
      %v4348 = vcombine.high %v4346, %v4346
      %v4350 = vunpack.c.l.s4 1966171168
      %v4351 = vunpack.c.0.s8 %v4350
      %v4352 = vlaneseq
      %v4353 = vshrl.u32 %v4352, 7
      %v4354 = vsub.s32 %v4351, %v4353
      %v4355 = vrot.slane %v4339, %v4354
      %v4357 = vunpack.c.l.s4 1966171168
      %v4358 = vunpack.c.0.s8 %v4357
      %v4359 = vlaneseq
      %v4360 = vshrl.u32 %v4359, 7
      %v4361 = vsub.s32 %v4358, %v4360
      %v4362 = vrot.slane %v4346, %v4361
      %v4364 = vunpack.c.l.s4 1966171168
      %v4365 = vunpack.c.0.s8 %v4364
      %v4366 = vlaneseq
      %v4367 = vshrl.u32 %v4366, 7
      %v4368 = vsub.s32 %v4365, %v4367
      %v4369 = vrot.slane %v4347, %v4368
      %v4371 = vunpack.c.l.s4 1966171168
      %v4372 = vunpack.c.0.s8 %v4371
      %v4373 = vlaneseq
      %v4374 = vshrl.u32 %v4373, 7
      %v4375 = vsub.s32 %v4372, %v4374
      %v4376 = vrot.slane %v4348, %v4375
      %v4377 = vcombine.high %v4355, %v4355
      %v4378 = vcombine.high %v4362, %v4362
      %v4379 = vcombine.high %v4369, %v4369
      %v4380 = vcombine.high %v4376, %v4376
      %v4645 = vunpack.c.l.b16 %v4075
      %v4646 = vunpack.c.h.b16 %v4075
      %v4647 = vunpack.c.l.b16 %v4076
      %v4648 = vunpack.c.h.b16 %v4076
      %v4649 = vunpack.c.l.b16 %v4077
      %v4650 = vunpack.c.h.b16 %v4077
      %v4651 = vunpack.c.l.b16 %v4078
      %v4652 = vunpack.c.h.b16 %v4078
      %v4653 = vunpack.c.l.b16 %v4079
      %v4654 = vunpack.c.h.b16 %v4079
      %v4655 = vunpack.c.l.b16 %v4080
      %v4656 = vunpack.c.h.b16 %v4080
      %v4657 = vunpack.c.l.b16 %v4081
      %v4658 = vunpack.c.h.b16 %v4081
      %v4659 = vunpack.c.l.b16 %v4082
      %v4660 = vunpack.c.h.b16 %v4082
      %v4661 = vunpack.c.l.b16 %v4083
      %v4662 = vunpack.c.h.b16 %v4083
      %v4663 = vunpack.c.l.b16 %v4084
      %v4664 = vunpack.c.h.b16 %v4084
      %v4665 = vunpack.c.l.b16 %v4085
      %v4666 = vunpack.c.h.b16 %v4085
      %v4667 = vunpack.c.l.b16 %v4086
      %v4668 = vunpack.c.h.b16 %v4086
      %v4669 = vunpack.c.l.b16 %v4087
      %v4670 = vunpack.c.h.b16 %v4087
      %v4671 = vunpack.c.l.b16 %v4088
      %v4672 = vunpack.c.h.b16 %v4088
      %v4673 = vunpack.c.l.b16 %v4089
      %v4674 = vunpack.c.h.b16 %v4089
      %v4675 = vunpack.c.l.b16 %v4090
      %v4676 = vunpack.c.h.b16 %v4090
      %v4677 = vunpack.c.l.b16 %v4091
      %v4678 = vunpack.c.h.b16 %v4091
      %v4679 = vunpack.c.l.b16 %v4092
      %v4680 = vunpack.c.h.b16 %v4092
      %v4681 = vunpack.c.l.b16 %v4093
      %v4682 = vunpack.c.h.b16 %v4093
      %v4683 = vunpack.c.l.b16 %v4094
      %v4684 = vunpack.c.h.b16 %v4094
      %v4685 = vunpack.c.l.b16 %v4095
      %v4686 = vunpack.c.h.b16 %v4095
      %v4687 = vunpack.c.l.b16 %v4096
      %v4688 = vunpack.c.h.b16 %v4096
      %v4689 = vunpack.c.l.b16 %v4097
      %v4690 = vunpack.c.h.b16 %v4097
      %v4691 = vunpack.c.l.b16 %v4098
      %v4692 = vunpack.c.h.b16 %v4098
      %v4693 = vunpack.c.l.b16 %v4099
      %v4694 = vunpack.c.h.b16 %v4099
      %v4695 = vunpack.c.l.b16 %v4100
      %v4696 = vunpack.c.h.b16 %v4100
      %v4697 = vunpack.c.l.b16 %v4101
      %v4698 = vunpack.c.h.b16 %v4101
      %v4699 = vunpack.c.l.b16 %v4102
      %v4700 = vunpack.c.h.b16 %v4102
      %v4701 = vunpack.c.l.b16 %v4103
      %v4702 = vunpack.c.h.b16 %v4103
      %v4703 = vunpack.c.l.b16 %v4104
      %v4704 = vunpack.c.h.b16 %v4104
      %v4705 = vunpack.c.l.b16 %v4105
      %v4706 = vunpack.c.h.b16 %v4105
      %v4707 = vunpack.c.l.b16 %v4106
      %v4708 = vunpack.c.h.b16 %v4106
      %v4709 = vunpack.c.l.b16 %v4107
      %v4710 = vunpack.c.h.b16 %v4107
      %v4711 = vunpack.c.l.b16 %v4108
      %v4712 = vunpack.c.h.b16 %v4108
      %v4713 = vunpack.c.l.b16 %v4109
      %v4714 = vunpack.c.h.b16 %v4109
      %v4715 = vunpack.c.l.b16 %v4110
      %v4716 = vunpack.c.h.b16 %v4110
      %v4717 = vunpack.c.l.b16 %v4111
      %v4718 = vunpack.c.h.b16 %v4111
      %v4719 = vunpack.c.l.b16 %v4112
      %v4720 = vunpack.c.h.b16 %v4112
      %v4721 = vunpack.c.l.b16 %v4113
      %v4722 = vunpack.c.h.b16 %v4113
      %v4723 = vunpack.c.l.b16 %v4114
      %v4724 = vunpack.c.h.b16 %v4114
      %v4725 = vunpack.c.l.b16 %v4115
      %v4726 = vunpack.c.h.b16 %v4115
      %v4727 = vunpack.c.l.b16 %v4116
      %v4728 = vunpack.c.h.b16 %v4116
      %v4729 = vunpack.c.l.b16 %v4117
      %v4730 = vunpack.c.h.b16 %v4117
      %v4731 = vunpack.c.l.b16 %v4118
      %v4732 = vunpack.c.h.b16 %v4118
      %v4733 = vunpack.c.l.b16 %v4119
      %v4734 = vunpack.c.h.b16 %v4119
      %v4735 = vunpack.c.l.b16 %v4120
      %v4736 = vunpack.c.h.b16 %v4120
      %v4737 = vunpack.c.l.b16 %v4121
      %v4738 = vunpack.c.h.b16 %v4121
      %v4739 = vunpack.c.l.b16 %v4122
      %v4740 = vunpack.c.h.b16 %v4122
      %v4741 = vunpack.c.l.b16 %v4123
      %v4742 = vunpack.c.h.b16 %v4123
      %v4743 = vunpack.c.l.b16 %v4124
      %v4744 = vunpack.c.h.b16 %v4124
      %v4745 = vunpack.c.l.b16 %v4125
      %v4746 = vunpack.c.h.b16 %v4125
      %v4747 = vunpack.c.l.b16 %v4126
      %v4748 = vunpack.c.h.b16 %v4126
      %v4749 = vunpack.c.l.b16 %v4127
      %v4750 = vunpack.c.h.b16 %v4127
      %v4751 = vunpack.c.l.b16 %v4128
      %v4752 = vunpack.c.h.b16 %v4128
      %v4753 = vunpack.c.l.b16 %v4129
      %v4754 = vunpack.c.h.b16 %v4129
      %v4755 = vunpack.c.l.b16 %v4130
      %v4756 = vunpack.c.h.b16 %v4130
      %v4757 = vunpack.c.l.b16 %v4131
      %v4758 = vunpack.c.h.b16 %v4131
      %v4759 = vunpack.c.l.b16 %v4132
      %v4760 = vunpack.c.h.b16 %v4132
      %v4761 = vunpack.c.l.b16 %v4133
      %v4762 = vunpack.c.h.b16 %v4133
      %v4763 = vunpack.c.l.b16 %v4134
      %v4764 = vunpack.c.h.b16 %v4134
      %v4765 = vunpack.c.l.b16 %v4135
      %v4766 = vunpack.c.h.b16 %v4135
      %v4767 = vunpack.c.l.b16 %v4136
      %v4768 = vunpack.c.h.b16 %v4136
      %v4769 = vunpack.c.l.b16 %v4137
      %v4770 = vunpack.c.h.b16 %v4137
      %v4771 = vunpack.c.l.b16 %v4138
      %v4772 = vunpack.c.h.b16 %v4138
      %v4773 = vunpack.c.l.b16 %v4139
      %v4774 = vunpack.c.h.b16 %v4139
      %v4775 = vunpack.c.l.b16 %v4140
      %v4776 = vunpack.c.h.b16 %v4140
      %v4777 = vunpack.c.l.b16 %v4141
      %v4778 = vunpack.c.h.b16 %v4141
      %v4779 = vunpack.c.l.b16 %v4142
      %v4780 = vunpack.c.h.b16 %v4142
      %v4781 = vunpack.c.l.b16 %v4143
      %v4782 = vunpack.c.h.b16 %v4143
      %v4783 = vunpack.c.l.b16 %v4144
      %v4784 = vunpack.c.h.b16 %v4144
      %v4785 = vunpack.c.l.b16 %v4145
      %v4786 = vunpack.c.h.b16 %v4145
      %v4787 = vunpack.c.l.b16 %v4146
      %v4788 = vunpack.c.h.b16 %v4146
      %v4789 = vunpack.c.l.b16 %v4147
      %v4790 = vunpack.c.h.b16 %v4147
      %v4791 = vunpack.c.l.b16 %v4148
      %v4792 = vunpack.c.h.b16 %v4148
      %v4793 = vunpack.c.l.b16 %v4149
      %v4794 = vunpack.c.h.b16 %v4149
      %v4795 = vunpack.c.l.b16 %v4150
      %v4796 = vunpack.c.h.b16 %v4150
      %v4797 = vunpack.c.l.b16 %v4151
      %v4798 = vunpack.c.h.b16 %v4151
      %v4799 = vunpack.c.l.b16 %v4152
      %v4800 = vunpack.c.h.b16 %v4152
      %v4801 = vunpack.c.l.b16 %v4153
      %v4802 = vunpack.c.h.b16 %v4153
      %v4803 = vunpack.c.l.b16 %v4154
      %v4804 = vunpack.c.h.b16 %v4154
      %v4805 = vunpack.c.l.b16 %v4155
      %v4806 = vunpack.c.h.b16 %v4155
      %v4807 = vunpack.c.l.b16 %v4156
      %v4808 = vunpack.c.h.b16 %v4156
      %v4809 = vunpack.c.l.b16 %v4157
      %v4810 = vunpack.c.h.b16 %v4157
      %v4811 = vunpack.c.l.b16 %v4158
      %v4812 = vunpack.c.h.b16 %v4158
      %v4813 = vunpack.c.l.b16 %v4159
      %v4814 = vunpack.c.h.b16 %v4159
      %v4815 = vunpack.c.l.b16 %v4160
      %v4816 = vunpack.c.h.b16 %v4160
      %v4817 = vunpack.c.l.b16 %v4161
      %v4818 = vunpack.c.h.b16 %v4161
      %v4819 = vunpack.c.l.b16 %v4162
      %v4820 = vunpack.c.h.b16 %v4162
      %v4821 = vunpack.c.l.b16 %v4163
      %v4822 = vunpack.c.h.b16 %v4163
      %v4823 = vunpack.c.l.b16 %v4164
      %v4824 = vunpack.c.h.b16 %v4164
      %v4825 = vunpack.c.l.b16 %v4165
      %v4826 = vunpack.c.h.b16 %v4165
      %v4827 = vunpack.c.l.b16 %v4166
      %v4828 = vunpack.c.h.b16 %v4166
      %v4829 = vunpack.c.l.b16 %v4167
      %v4830 = vunpack.c.h.b16 %v4167
      %v4831 = vunpack.c.l.b16 %v4168
      %v4832 = vunpack.c.h.b16 %v4168
      %v4833 = vunpack.c.l.b16 %v4169
      %v4834 = vunpack.c.h.b16 %v4169
      %v4835 = vunpack.c.l.b16 %v4170
      %v4836 = vunpack.c.h.b16 %v4170
      %v4837 = vunpack.c.l.b16 %v4171
      %v4838 = vunpack.c.h.b16 %v4171
      %v4839 = vunpack.c.l.b16 %v4172
      %v4840 = vunpack.c.h.b16 %v4172
      %v4841 = vunpack.c.l.b16 %v4173
      %v4842 = vunpack.c.h.b16 %v4173
      %v4843 = vunpack.c.l.b16 %v4174
      %v4844 = vunpack.c.h.b16 %v4174
      %v4845 = vunpack.c.l.b16 %v4175
      %v4846 = vunpack.c.h.b16 %v4175
      %v4847 = vunpack.c.l.b16 %v4176
      %v4848 = vunpack.c.h.b16 %v4176
      %v4849 = vunpack.c.l.b16 %v4177
      %v4850 = vunpack.c.h.b16 %v4177
      %v4851 = vunpack.c.l.b16 %v4178
      %v4852 = vunpack.c.h.b16 %v4178
      %v4853 = vunpack.c.l.b16 %v4179
      %v4854 = vunpack.c.h.b16 %v4179
      %v4855 = vunpack.c.l.b16 %v4180
      %v4856 = vunpack.c.h.b16 %v4180
      %v4857 = vunpack.c.l.b16 %v4181
      %v4858 = vunpack.c.h.b16 %v4181
      %v4859 = vunpack.c.l.b16 %v4182
      %v4860 = vunpack.c.h.b16 %v4182
      %v4861 = vunpack.c.l.b16 %v4183
      %v4862 = vunpack.c.h.b16 %v4183
      %v4863 = vunpack.c.l.b16 %v4184
      %v4864 = vunpack.c.h.b16 %v4184
      %v4865 = vunpack.c.l.b16 %v4185
      %v4866 = vunpack.c.h.b16 %v4185
      %v4867 = vunpack.c.l.b16 %v4186
      %v4868 = vunpack.c.h.b16 %v4186
      %v4869 = vunpack.c.l.b16 %v4187
      %v4870 = vunpack.c.h.b16 %v4187
      %v4871 = vunpack.c.l.b16 %v4188
      %v4872 = vunpack.c.h.b16 %v4188
      %v4873 = vunpack.c.l.b16 %v4189
      %v4874 = vunpack.c.h.b16 %v4189
      %v4875 = vunpack.c.l.b16 %v4190
      %v4876 = vunpack.c.h.b16 %v4190
      %v4877 = vunpack.c.l.b16 %v4191
      %v4878 = vunpack.c.h.b16 %v4191
      %v4879 = vunpack.c.l.b16 %v4192
      %v4880 = vunpack.c.h.b16 %v4192
      %v4881 = vunpack.c.l.b16 %v4193
      %v4882 = vunpack.c.h.b16 %v4193
      %v4883 = vunpack.c.l.b16 %v4194
      %v4884 = vunpack.c.h.b16 %v4194
      %v4885 = vunpack.c.l.b16 %v4195
      %v4886 = vunpack.c.h.b16 %v4195
      %v4887 = vunpack.c.l.b16 %v4196
      %v4888 = vunpack.c.h.b16 %v4196
      %v4889 = vunpack.c.l.b16 %v4197
      %v4890 = vunpack.c.h.b16 %v4197
      %v4891 = vunpack.c.l.b16 %v4198
      %v4892 = vunpack.c.h.b16 %v4198
      %v4893 = vunpack.c.l.b16 %v4199
      %v4894 = vunpack.c.h.b16 %v4199
      %v4895 = vunpack.c.l.b16 %v4200
      %v4896 = vunpack.c.h.b16 %v4200
      %v4897 = vunpack.c.l.b16 %v4201
      %v4898 = vunpack.c.h.b16 %v4201
      %v4899 = vunpack.c.l.b16 %v4202
      %v4900 = vunpack.c.h.b16 %v4202
      %v4901 = vunpack.c.l.b16 %v4203
      %v4902 = vunpack.c.h.b16 %v4203
      %v4903 = vunpack.c.l.b16 %v4204
      %v4904 = vunpack.c.h.b16 %v4204
      %v4905 = vunpack.c.l.b16 %v4205
      %v4906 = vunpack.c.h.b16 %v4205
      %v4907 = vunpack.c.l.b16 %v4206
      %v4908 = vunpack.c.h.b16 %v4206
      %v4909 = vunpack.c.l.b16 %v4207
      %v4910 = vunpack.c.h.b16 %v4207
      %v4911 = vunpack.c.l.b16 %v4208
      %v4912 = vunpack.c.h.b16 %v4208
      %v4913 = vunpack.c.l.b16 %v4209
      %v4914 = vunpack.c.h.b16 %v4209
      %v4915 = vunpack.c.l.b16 %v4210
      %v4916 = vunpack.c.h.b16 %v4210
      %v4917 = vunpack.c.l.b16 %v4211
      %v4918 = vunpack.c.h.b16 %v4211
      %v4919 = vunpack.c.l.b16 %v4212
      %v4920 = vunpack.c.h.b16 %v4212
      %v4921 = vunpack.c.l.b16 %v4213
      %v4922 = vunpack.c.h.b16 %v4213
      %v4923 = vunpack.c.l.b16 %v4214
      %v4924 = vunpack.c.h.b16 %v4214
      %v4925 = vunpack.c.l.b16 %v4215
      %v4926 = vunpack.c.h.b16 %v4215
      %v4927 = vunpack.c.l.b16 %v4216
      %v4928 = vunpack.c.h.b16 %v4216
      %v4929 = vunpack.c.l.b16 %v4217
      %v4930 = vunpack.c.h.b16 %v4217
      %v4931 = vunpack.c.l.b16 %v4218
      %v4932 = vunpack.c.h.b16 %v4218
      %v4933 = vunpack.c.l.b16 %v4219
      %v4934 = vunpack.c.h.b16 %v4219
      %v4935 = vunpack.c.l.b16 %v4220
      %v4936 = vunpack.c.h.b16 %v4220
      %v4937 = vunpack.c.l.b16 %v4221
      %v4938 = vunpack.c.h.b16 %v4221
      %v4939 = vunpack.c.l.b16 %v4222
      %v4940 = vunpack.c.h.b16 %v4222
      %v4941 = vunpack.c.l.b16 %v4223
      %v4942 = vunpack.c.h.b16 %v4223
      %v4943 = vunpack.c.l.b16 %v4224
      %v4944 = vunpack.c.h.b16 %v4224
      %v4945 = vunpack.c.l.b16 %v4225
      %v4946 = vunpack.c.h.b16 %v4225
      %v4947 = vunpack.c.l.b16 %v4226
      %v4948 = vunpack.c.h.b16 %v4226
      %v4949 = vunpack.c.l.b16 %v4227
      %v4950 = vunpack.c.h.b16 %v4227
      %v4951 = vunpack.c.l.b16 %v4228
      %v4952 = vunpack.c.h.b16 %v4228
      %v4953 = vunpack.c.l.b16 %v4229
      %v4954 = vunpack.c.h.b16 %v4229
      %v4955 = vunpack.c.l.b16 %v4230
      %v4956 = vunpack.c.h.b16 %v4230
      %v4957 = vunpack.c.l.b16 %v4231
      %v4958 = vunpack.c.h.b16 %v4231
      %v4959 = vunpack.c.l.b16 %v4232
      %v4960 = vunpack.c.h.b16 %v4232
      %v4961 = vunpack.c.l.b16 %v4233
      %v4962 = vunpack.c.h.b16 %v4233
      %v4963 = vunpack.c.l.b16 %v4234
      %v4964 = vunpack.c.h.b16 %v4234
      %v4965 = vunpack.c.l.b16 %v4235
      %v4966 = vunpack.c.h.b16 %v4235
      %v4967 = vunpack.c.l.b16 %v4236
      %v4968 = vunpack.c.h.b16 %v4236
      %v4969 = vunpack.c.l.b16 %v4237
      %v4970 = vunpack.c.h.b16 %v4237
      %v4971 = vunpack.c.l.b16 %v4238
      %v4972 = vunpack.c.h.b16 %v4238
      %v4973 = vunpack.c.l.b16 %v4239
      %v4974 = vunpack.c.h.b16 %v4239
      %v4975 = vunpack.c.l.b16 %v4240
      %v4976 = vunpack.c.h.b16 %v4240
      %v4977 = vunpack.c.l.b16 %v4241
      %v4978 = vunpack.c.h.b16 %v4241
      %v4979 = vunpack.c.l.b16 %v4242
      %v4980 = vunpack.c.h.b16 %v4242
      %v4981 = vunpack.c.l.b16 %v4243
      %v4982 = vunpack.c.h.b16 %v4243
      %v4983 = vunpack.c.l.b16 %v4244
      %v4984 = vunpack.c.h.b16 %v4244
      %v4985 = vunpack.c.l.b16 %v4245
      %v4986 = vunpack.c.h.b16 %v4245
      %v4987 = vunpack.c.l.b16 %v4246
      %v4988 = vunpack.c.h.b16 %v4246
      %v4989 = vunpack.c.l.b16 %v4247
      %v4990 = vunpack.c.h.b16 %v4247
      %v4991 = vunpack.c.l.b16 %v4248
      %v4992 = vunpack.c.h.b16 %v4248
      %v4993 = vunpack.c.l.b16 %v4249
      %v4994 = vunpack.c.h.b16 %v4249
      %v4995 = vunpack.c.l.b16 %v4250
      %v4996 = vunpack.c.h.b16 %v4250
      %v4997 = vunpack.c.l.b16 %v4251
      %v4998 = vunpack.c.h.b16 %v4251
      %v4999 = vunpack.c.l.b16 %v4252
      %v5000 = vunpack.c.h.b16 %v4252
      %v5001 = vunpack.c.l.b16 %v4253
      %v5002 = vunpack.c.h.b16 %v4253
      %v5003 = vunpack.c.l.b16 %v4254
      %v5004 = vunpack.c.h.b16 %v4254
      %v5005 = vunpack.c.l.b16 %v4255
      %v5006 = vunpack.c.h.b16 %v4255
      %v5007 = vunpack.c.l.b16 %v4256
      %v5008 = vunpack.c.h.b16 %v4256
      %v5009 = vunpack.c.l.b16 %v4257
      %v5010 = vunpack.c.h.b16 %v4257
      %v5011 = vunpack.c.l.b16 %v4258
      %v5012 = vunpack.c.h.b16 %v4258
      %v5013 = vunpack.c.l.b16 %v4259
      %v5014 = vunpack.c.h.b16 %v4259
      %v5015 = vunpack.c.l.b16 %v4260
      %v5016 = vunpack.c.h.b16 %v4260
      %v5017 = vunpack.c.l.b16 %v4261
      %v5018 = vunpack.c.h.b16 %v4261
      %v5019 = vunpack.c.l.b16 %v4262
      %v5020 = vunpack.c.h.b16 %v4262
      %v5021 = vunpack.c.l.b16 %v4263
      %v5022 = vunpack.c.h.b16 %v4263
      %v5023 = vunpack.c.l.b16 %v4264
      %v5024 = vunpack.c.h.b16 %v4264
      %v5025 = vunpack.c.l.b16 %v4265
      %v5026 = vunpack.c.h.b16 %v4265
      %v5027 = vunpack.c.l.b16 %v4266
      %v5028 = vunpack.c.h.b16 %v4266
      %v5029 = vunpack.c.l.b16 %v4267
      %v5030 = vunpack.c.h.b16 %v4267
      %v5031 = vunpack.c.l.b16 %v4268
      %v5032 = vunpack.c.h.b16 %v4268
      %v5033 = vunpack.c.l.b16 %v4269
      %v5034 = vunpack.c.h.b16 %v4269
      %v5035 = vunpack.c.l.b16 %v4270
      %v5036 = vunpack.c.h.b16 %v4270
      %v5037 = vunpack.c.l.b16 %v4271
      %v5038 = vunpack.c.h.b16 %v4271
      %v5039 = vunpack.c.l.b16 %v4272
      %v5040 = vunpack.c.h.b16 %v4272
      %v5041 = vunpack.c.l.b16 %v4273
      %v5042 = vunpack.c.h.b16 %v4273
      %v5043 = vunpack.c.l.b16 %v4274
      %v5044 = vunpack.c.h.b16 %v4274
      %v5045 = vunpack.c.l.b16 %v4275
      %v5046 = vunpack.c.h.b16 %v4275
      %v5047 = vunpack.c.l.b16 %v4276
      %v5048 = vunpack.c.h.b16 %v4276
      %v5049 = vunpack.c.l.b16 %v4277
      %v5050 = vunpack.c.h.b16 %v4277
      %v5051 = vunpack.c.l.b16 %v4278
      %v5052 = vunpack.c.h.b16 %v4278
      %v5053 = vunpack.c.l.b16 %v4279
      %v5054 = vunpack.c.h.b16 %v4279
      %v5055 = vunpack.c.l.b16 %v4280
      %v5056 = vunpack.c.h.b16 %v4280
      %v5057 = vunpack.c.l.b16 %v4281
      %v5058 = vunpack.c.h.b16 %v4281
      %v5059 = vunpack.c.l.b16 %v4282
      %v5060 = vunpack.c.h.b16 %v4282
      %v5061 = vunpack.c.l.b16 %v4283
      %v5062 = vunpack.c.h.b16 %v4283
      %v5063 = vunpack.c.l.b16 %v4284
      %v5064 = vunpack.c.h.b16 %v4284
      %v5065 = vunpack.c.l.b16 %v4285
      %v5066 = vunpack.c.h.b16 %v4285
      %v5067 = vunpack.c.l.b16 %v4286
      %v5068 = vunpack.c.h.b16 %v4286
      %v5069 = vunpack.c.l.b16 %v4287
      %v5070 = vunpack.c.h.b16 %v4287
      %v5071 = vunpack.c.l.b16 %v4288
      %v5072 = vunpack.c.h.b16 %v4288
      %v5073 = vunpack.c.l.b16 %v4289
      %v5074 = vunpack.c.h.b16 %v4289
      %v5075 = vunpack.c.l.b16 %v4290
      %v5076 = vunpack.c.h.b16 %v4290
      %v5077 = vunpack.c.l.b16 %v4291
      %v5078 = vunpack.c.h.b16 %v4291
      %v5079 = vunpack.c.l.b16 %v4292
      %v5080 = vunpack.c.h.b16 %v4292
      %v5081 = vunpack.c.l.b16 %v4293
      %v5082 = vunpack.c.h.b16 %v4293
      %v5083 = vunpack.c.l.b16 %v4294
      %v5084 = vunpack.c.h.b16 %v4294
      %v5085 = vunpack.c.l.b16 %v4295
      %v5086 = vunpack.c.h.b16 %v4295
      %v5087 = vunpack.c.l.b16 %v4296
      %v5088 = vunpack.c.h.b16 %v4296
      %v5089 = vunpack.c.l.b16 %v4297
      %v5090 = vunpack.c.h.b16 %v4297
      %v5091 = vunpack.c.l.b16 %v4298
      %v5092 = vunpack.c.h.b16 %v4298
      %v5093 = vunpack.c.l.b16 %v4299
      %v5094 = vunpack.c.h.b16 %v4299
      %v5095 = vunpack.c.l.b16 %v4300
      %v5096 = vunpack.c.h.b16 %v4300
      %v5097 = vunpack.c.l.b16 %v4301
      %v5098 = vunpack.c.h.b16 %v4301
      %v5099 = vunpack.c.l.b16 %v4302
      %v5100 = vunpack.c.h.b16 %v4302
      %v5101 = vunpack.c.l.b16 %v4303
      %v5102 = vunpack.c.h.b16 %v4303
      %v5103 = vunpack.c.l.b16 %v4304
      %v5104 = vunpack.c.h.b16 %v4304
      %v5105 = vunpack.c.l.b16 %v4305
      %v5106 = vunpack.c.h.b16 %v4305
      %v5107 = vunpack.c.l.b16 %v4306
      %v5108 = vunpack.c.h.b16 %v4306
      %v5109 = vunpack.c.l.b16 %v4307
      %v5110 = vunpack.c.h.b16 %v4307
      %v5111 = vunpack.c.l.b16 %v4308
      %v5112 = vunpack.c.h.b16 %v4308
      %v5113 = vunpack.c.l.b16 %v4309
      %v5114 = vunpack.c.h.b16 %v4309
      %v5115 = vunpack.c.l.b16 %v4310
      %v5116 = vunpack.c.h.b16 %v4310
      %v5117 = vunpack.c.l.b16 %v4311
      %v5118 = vunpack.c.h.b16 %v4311
      %v5119 = vunpack.c.l.b16 %v4312
      %v5120 = vunpack.c.h.b16 %v4312
      %v5121 = vunpack.c.l.b16 %v4313
      %v5122 = vunpack.c.h.b16 %v4313
      %v5123 = vunpack.c.l.b16 %v4314
      %v5124 = vunpack.c.h.b16 %v4314
      %v5125 = vunpack.c.l.b16 %v4315
      %v5126 = vunpack.c.h.b16 %v4315
      %v5127 = vunpack.c.l.b16 %v4316
      %v5128 = vunpack.c.h.b16 %v4316
      %v5129 = vunpack.c.l.b16 %v4317
      %v5130 = vunpack.c.h.b16 %v4317
      %v5131 = vunpack.c.l.b16 %v4318
      %v5132 = vunpack.c.h.b16 %v4318
      %v5133 = vunpack.c.l.b16 %v4319
      %v5134 = vunpack.c.h.b16 %v4319
      %v5135 = vunpack.c.l.b16 %v4320
      %v5136 = vunpack.c.h.b16 %v4320
      %v5137 = vunpack.c.l.b16 %v4321
      %v5138 = vunpack.c.h.b16 %v4321
      %v5139 = vunpack.c.l.b16 %v4322
      %v5140 = vunpack.c.h.b16 %v4322
      %v5141 = vunpack.c.l.b16 %v4323
      %v5142 = vunpack.c.h.b16 %v4323
      %v5143 = vunpack.c.l.b16 %v4324
      %v5144 = vunpack.c.h.b16 %v4324
      %v5145 = vunpack.c.l.b16 %v4325
      %v5146 = vunpack.c.h.b16 %v4325
      %v5147 = vunpack.c.l.b16 %v4326
      %v5148 = vunpack.c.h.b16 %v4326
      %v5149 = vunpack.c.l.b16 %v4327
      %v5150 = vunpack.c.h.b16 %v4327
      %v5151 = vunpack.c.l.b16 %v4328
      %v5152 = vunpack.c.h.b16 %v4328
      %v5153 = vunpack.c.l.b16 %v4329
      %v5154 = vunpack.c.h.b16 %v4329
      %v5155 = vunpack.c.l.b16 %v4330
      %v5156 = vunpack.c.h.b16 %v4330
      %v5157 = vpack.c.b16 %v4649, %v4645
      %v5158 = vpack.c.b16 %v4650, %v4646
      %v5159 = vpack.c.b16 %v4651, %v4647
      %v5160 = vpack.c.b16 %v4652, %v4648
      %v5161 = vpack.c.b16 %v4657, %v4653
      %v5162 = vpack.c.b16 %v4658, %v4654
      %v5163 = vpack.c.b16 %v4659, %v4655
      %v5164 = vpack.c.b16 %v4660, %v4656
      %v5165 = vpack.c.b16 %v4665, %v4661
      %v5166 = vpack.c.b16 %v4666, %v4662
      %v5167 = vpack.c.b16 %v4667, %v4663
      %v5168 = vpack.c.b16 %v4668, %v4664
      %v5169 = vpack.c.b16 %v4673, %v4669
      %v5170 = vpack.c.b16 %v4674, %v4670
      %v5171 = vpack.c.b16 %v4675, %v4671
      %v5172 = vpack.c.b16 %v4676, %v4672
      %v5173 = vpack.c.b16 %v4681, %v4677
      %v5174 = vpack.c.b16 %v4682, %v4678
      %v5175 = vpack.c.b16 %v4683, %v4679
      %v5176 = vpack.c.b16 %v4684, %v4680
      %v5177 = vpack.c.b16 %v4689, %v4685
      %v5178 = vpack.c.b16 %v4690, %v4686
      %v5179 = vpack.c.b16 %v4691, %v4687
      %v5180 = vpack.c.b16 %v4692, %v4688
      %v5181 = vpack.c.b16 %v4697, %v4693
      %v5182 = vpack.c.b16 %v4698, %v4694
      %v5183 = vpack.c.b16 %v4699, %v4695
      %v5184 = vpack.c.b16 %v4700, %v4696
      %v5185 = vpack.c.b16 %v4705, %v4701
      %v5186 = vpack.c.b16 %v4706, %v4702
      %v5187 = vpack.c.b16 %v4707, %v4703
      %v5188 = vpack.c.b16 %v4708, %v4704
      %v5189 = vpack.c.b16 %v4713, %v4709
      %v5190 = vpack.c.b16 %v4714, %v4710
      %v5191 = vpack.c.b16 %v4715, %v4711
      %v5192 = vpack.c.b16 %v4716, %v4712
      %v5193 = vpack.c.b16 %v4721, %v4717
      %v5194 = vpack.c.b16 %v4722, %v4718
      %v5195 = vpack.c.b16 %v4723, %v4719
      %v5196 = vpack.c.b16 %v4724, %v4720
      %v5197 = vpack.c.b16 %v4729, %v4725
      %v5198 = vpack.c.b16 %v4730, %v4726
      %v5199 = vpack.c.b16 %v4731, %v4727
      %v5200 = vpack.c.b16 %v4732, %v4728
      %v5201 = vpack.c.b16 %v4737, %v4733
      %v5202 = vpack.c.b16 %v4738, %v4734
      %v5203 = vpack.c.b16 %v4739, %v4735
      %v5204 = vpack.c.b16 %v4740, %v4736
      %v5205 = vpack.c.b16 %v4745, %v4741
      %v5206 = vpack.c.b16 %v4746, %v4742
      %v5207 = vpack.c.b16 %v4747, %v4743
      %v5208 = vpack.c.b16 %v4748, %v4744
      %v5209 = vpack.c.b16 %v4753, %v4749
      %v5210 = vpack.c.b16 %v4754, %v4750
      %v5211 = vpack.c.b16 %v4755, %v4751
      %v5212 = vpack.c.b16 %v4756, %v4752
      %v5213 = vpack.c.b16 %v4761, %v4757
      %v5214 = vpack.c.b16 %v4762, %v4758
      %v5215 = vpack.c.b16 %v4763, %v4759
      %v5216 = vpack.c.b16 %v4764, %v4760
      %v5217 = vpack.c.b16 %v4769, %v4765
      %v5218 = vpack.c.b16 %v4770, %v4766
      %v5219 = vpack.c.b16 %v4771, %v4767
      %v5220 = vpack.c.b16 %v4772, %v4768
      %v5221 = vpack.c.b16 %v4777, %v4773
      %v5222 = vpack.c.b16 %v4778, %v4774
      %v5223 = vpack.c.b16 %v4779, %v4775
      %v5224 = vpack.c.b16 %v4780, %v4776
      %v5225 = vpack.c.b16 %v4785, %v4781
      %v5226 = vpack.c.b16 %v4786, %v4782
      %v5227 = vpack.c.b16 %v4787, %v4783
      %v5228 = vpack.c.b16 %v4788, %v4784
      %v5229 = vpack.c.b16 %v4793, %v4789
      %v5230 = vpack.c.b16 %v4794, %v4790
      %v5231 = vpack.c.b16 %v4795, %v4791
      %v5232 = vpack.c.b16 %v4796, %v4792
      %v5233 = vpack.c.b16 %v4801, %v4797
      %v5234 = vpack.c.b16 %v4802, %v4798
      %v5235 = vpack.c.b16 %v4803, %v4799
      %v5236 = vpack.c.b16 %v4804, %v4800
      %v5237 = vpack.c.b16 %v4809, %v4805
      %v5238 = vpack.c.b16 %v4810, %v4806
      %v5239 = vpack.c.b16 %v4811, %v4807
      %v5240 = vpack.c.b16 %v4812, %v4808
      %v5241 = vpack.c.b16 %v4817, %v4813
      %v5242 = vpack.c.b16 %v4818, %v4814
      %v5243 = vpack.c.b16 %v4819, %v4815
      %v5244 = vpack.c.b16 %v4820, %v4816
      %v5245 = vpack.c.b16 %v4825, %v4821
      %v5246 = vpack.c.b16 %v4826, %v4822
      %v5247 = vpack.c.b16 %v4827, %v4823
      %v5248 = vpack.c.b16 %v4828, %v4824
      %v5249 = vpack.c.b16 %v4833, %v4829
      %v5250 = vpack.c.b16 %v4834, %v4830
      %v5251 = vpack.c.b16 %v4835, %v4831
      %v5252 = vpack.c.b16 %v4836, %v4832
      %v5253 = vpack.c.b16 %v4841, %v4837
      %v5254 = vpack.c.b16 %v4842, %v4838
      %v5255 = vpack.c.b16 %v4843, %v4839
      %v5256 = vpack.c.b16 %v4844, %v4840
      %v5257 = vpack.c.b16 %v4849, %v4845
      %v5258 = vpack.c.b16 %v4850, %v4846
      %v5259 = vpack.c.b16 %v4851, %v4847
      %v5260 = vpack.c.b16 %v4852, %v4848
      %v5261 = vpack.c.b16 %v4857, %v4853
      %v5262 = vpack.c.b16 %v4858, %v4854
      %v5263 = vpack.c.b16 %v4859, %v4855
      %v5264 = vpack.c.b16 %v4860, %v4856
      %v5265 = vpack.c.b16 %v4865, %v4861
      %v5266 = vpack.c.b16 %v4866, %v4862
      %v5267 = vpack.c.b16 %v4867, %v4863
      %v5268 = vpack.c.b16 %v4868, %v4864
      %v5269 = vpack.c.b16 %v4873, %v4869
      %v5270 = vpack.c.b16 %v4874, %v4870
      %v5271 = vpack.c.b16 %v4875, %v4871
      %v5272 = vpack.c.b16 %v4876, %v4872
      %v5273 = vpack.c.b16 %v4881, %v4877
      %v5274 = vpack.c.b16 %v4882, %v4878
      %v5275 = vpack.c.b16 %v4883, %v4879
      %v5276 = vpack.c.b16 %v4884, %v4880
      %v5277 = vpack.c.b16 %v4889, %v4885
      %v5278 = vpack.c.b16 %v4890, %v4886
      %v5279 = vpack.c.b16 %v4891, %v4887
      %v5280 = vpack.c.b16 %v4892, %v4888
      %v5281 = vpack.c.b16 %v4897, %v4893
      %v5282 = vpack.c.b16 %v4898, %v4894
      %v5283 = vpack.c.b16 %v4899, %v4895
      %v5284 = vpack.c.b16 %v4900, %v4896
      %v5285 = vpack.c.b16 %v4905, %v4901
      %v5286 = vpack.c.b16 %v4906, %v4902
      %v5287 = vpack.c.b16 %v4907, %v4903
      %v5288 = vpack.c.b16 %v4908, %v4904
      %v5289 = vpack.c.b16 %v4913, %v4909
      %v5290 = vpack.c.b16 %v4914, %v4910
      %v5291 = vpack.c.b16 %v4915, %v4911
      %v5292 = vpack.c.b16 %v4916, %v4912
      %v5293 = vpack.c.b16 %v4921, %v4917
      %v5294 = vpack.c.b16 %v4922, %v4918
      %v5295 = vpack.c.b16 %v4923, %v4919
      %v5296 = vpack.c.b16 %v4924, %v4920
      %v5297 = vpack.c.b16 %v4929, %v4925
      %v5298 = vpack.c.b16 %v4930, %v4926
      %v5299 = vpack.c.b16 %v4931, %v4927
      %v5300 = vpack.c.b16 %v4932, %v4928
      %v5301 = vpack.c.b16 %v4937, %v4933
      %v5302 = vpack.c.b16 %v4938, %v4934
      %v5303 = vpack.c.b16 %v4939, %v4935
      %v5304 = vpack.c.b16 %v4940, %v4936
      %v5305 = vpack.c.b16 %v4945, %v4941
      %v5306 = vpack.c.b16 %v4946, %v4942
      %v5307 = vpack.c.b16 %v4947, %v4943
      %v5308 = vpack.c.b16 %v4948, %v4944
      %v5309 = vpack.c.b16 %v4953, %v4949
      %v5310 = vpack.c.b16 %v4954, %v4950
      %v5311 = vpack.c.b16 %v4955, %v4951
      %v5312 = vpack.c.b16 %v4956, %v4952
      %v5313 = vpack.c.b16 %v4961, %v4957
      %v5314 = vpack.c.b16 %v4962, %v4958
      %v5315 = vpack.c.b16 %v4963, %v4959
      %v5316 = vpack.c.b16 %v4964, %v4960
      %v5317 = vpack.c.b16 %v4969, %v4965
      %v5318 = vpack.c.b16 %v4970, %v4966
      %v5319 = vpack.c.b16 %v4971, %v4967
      %v5320 = vpack.c.b16 %v4972, %v4968
      %v5321 = vpack.c.b16 %v4977, %v4973
      %v5322 = vpack.c.b16 %v4978, %v4974
      %v5323 = vpack.c.b16 %v4979, %v4975
      %v5324 = vpack.c.b16 %v4980, %v4976
      %v5325 = vpack.c.b16 %v4985, %v4981
      %v5326 = vpack.c.b16 %v4986, %v4982
      %v5327 = vpack.c.b16 %v4987, %v4983
      %v5328 = vpack.c.b16 %v4988, %v4984
      %v5329 = vpack.c.b16 %v4993, %v4989
      %v5330 = vpack.c.b16 %v4994, %v4990
      %v5331 = vpack.c.b16 %v4995, %v4991
      %v5332 = vpack.c.b16 %v4996, %v4992
      %v5333 = vpack.c.b16 %v5001, %v4997
      %v5334 = vpack.c.b16 %v5002, %v4998
      %v5335 = vpack.c.b16 %v5003, %v4999
      %v5336 = vpack.c.b16 %v5004, %v5000
      %v5337 = vpack.c.b16 %v5009, %v5005
      %v5338 = vpack.c.b16 %v5010, %v5006
      %v5339 = vpack.c.b16 %v5011, %v5007
      %v5340 = vpack.c.b16 %v5012, %v5008
      %v5341 = vpack.c.b16 %v5017, %v5013
      %v5342 = vpack.c.b16 %v5018, %v5014
      %v5343 = vpack.c.b16 %v5019, %v5015
      %v5344 = vpack.c.b16 %v5020, %v5016
      %v5345 = vpack.c.b16 %v5025, %v5021
      %v5346 = vpack.c.b16 %v5026, %v5022
      %v5347 = vpack.c.b16 %v5027, %v5023
      %v5348 = vpack.c.b16 %v5028, %v5024
      %v5349 = vpack.c.b16 %v5033, %v5029
      %v5350 = vpack.c.b16 %v5034, %v5030
      %v5351 = vpack.c.b16 %v5035, %v5031
      %v5352 = vpack.c.b16 %v5036, %v5032
      %v5353 = vpack.c.b16 %v5041, %v5037
      %v5354 = vpack.c.b16 %v5042, %v5038
      %v5355 = vpack.c.b16 %v5043, %v5039
      %v5356 = vpack.c.b16 %v5044, %v5040
      %v5357 = vpack.c.b16 %v5049, %v5045
      %v5358 = vpack.c.b16 %v5050, %v5046
      %v5359 = vpack.c.b16 %v5051, %v5047
      %v5360 = vpack.c.b16 %v5052, %v5048
      %v5361 = vpack.c.b16 %v5057, %v5053
      %v5362 = vpack.c.b16 %v5058, %v5054
      %v5363 = vpack.c.b16 %v5059, %v5055
      %v5364 = vpack.c.b16 %v5060, %v5056
      %v5365 = vpack.c.b16 %v5065, %v5061
      %v5366 = vpack.c.b16 %v5066, %v5062
      %v5367 = vpack.c.b16 %v5067, %v5063
      %v5368 = vpack.c.b16 %v5068, %v5064
      %v5369 = vpack.c.b16 %v5073, %v5069
      %v5370 = vpack.c.b16 %v5074, %v5070
      %v5371 = vpack.c.b16 %v5075, %v5071
      %v5372 = vpack.c.b16 %v5076, %v5072
      %v5373 = vpack.c.b16 %v5081, %v5077
      %v5374 = vpack.c.b16 %v5082, %v5078
      %v5375 = vpack.c.b16 %v5083, %v5079
      %v5376 = vpack.c.b16 %v5084, %v5080
      %v5377 = vpack.c.b16 %v5089, %v5085
      %v5378 = vpack.c.b16 %v5090, %v5086
      %v5379 = vpack.c.b16 %v5091, %v5087
      %v5380 = vpack.c.b16 %v5092, %v5088
      %v5381 = vpack.c.b16 %v5097, %v5093
      %v5382 = vpack.c.b16 %v5098, %v5094
      %v5383 = vpack.c.b16 %v5099, %v5095
      %v5384 = vpack.c.b16 %v5100, %v5096
      %v5385 = vpack.c.b16 %v5105, %v5101
      %v5386 = vpack.c.b16 %v5106, %v5102
      %v5387 = vpack.c.b16 %v5107, %v5103
      %v5388 = vpack.c.b16 %v5108, %v5104
      %v5389 = vpack.c.b16 %v5113, %v5109
      %v5390 = vpack.c.b16 %v5114, %v5110
      %v5391 = vpack.c.b16 %v5115, %v5111
      %v5392 = vpack.c.b16 %v5116, %v5112
      %v5393 = vpack.c.b16 %v5121, %v5117
      %v5394 = vpack.c.b16 %v5122, %v5118
      %v5395 = vpack.c.b16 %v5123, %v5119
      %v5396 = vpack.c.b16 %v5124, %v5120
      %v5397 = vpack.c.b16 %v5129, %v5125
      %v5398 = vpack.c.b16 %v5130, %v5126
      %v5399 = vpack.c.b16 %v5131, %v5127
      %v5400 = vpack.c.b16 %v5132, %v5128
      %v5401 = vpack.c.b16 %v5137, %v5133
      %v5402 = vpack.c.b16 %v5138, %v5134
      %v5403 = vpack.c.b16 %v5139, %v5135
      %v5404 = vpack.c.b16 %v5140, %v5136
      %v5405 = vpack.c.b16 %v5145, %v5141
      %v5406 = vpack.c.b16 %v5146, %v5142
      %v5407 = vpack.c.b16 %v5147, %v5143
      %v5408 = vpack.c.b16 %v5148, %v5144
      %v5409 = vpack.c.b16 %v5153, %v5149
      %v5410 = vpack.c.b16 %v5154, %v5150
      %v5411 = vpack.c.b16 %v5155, %v5151
      %v5412 = vpack.c.b16 %v5156, %v5152
      %5669 = vmatprep.subr.bf16.mxu0 %v5158
      %5670 = vmatpush1.bf16.msra.mxu0 %v5157
      %5671 = vmatprep.subr.bf16.mxu0 %v5162
      %5672 = vmatpush1.bf16.msra.mxu0 %v5161
      %5673 = vmatprep.subr.bf16.mxu0 %v5166
      %5674 = vmatpush1.bf16.msra.mxu0 %v5165
      %5675 = vmatprep.subr.bf16.mxu0 %v5170
      %5676 = vmatpush1.bf16.msra.mxu0 %v5169
      %5677 = vmatprep.subr.bf16.mxu0 %v5174
      %5678 = vmatpush1.bf16.msra.mxu0 %v5173
      %5679 = vmatprep.subr.bf16.mxu0 %v5178
      %5680 = vmatpush1.bf16.msra.mxu0 %v5177
      %5681 = vmatprep.subr.bf16.mxu0 %v5182
      %5682 = vmatpush1.bf16.msra.mxu0 %v5181
      %5683 = vmatprep.subr.bf16.mxu0 %v5186
      %5684 = vmatpush1.bf16.msra.mxu0 %v5185
      %5685 = vmatprep.subr.bf16.mxu0 %v5190
      %5686 = vmatpush1.bf16.msra.mxu0 %v5189
      %5687 = vmatprep.subr.bf16.mxu0 %v5194
      %5688 = vmatpush1.bf16.msra.mxu0 %v5193
      %5689 = vmatprep.subr.bf16.mxu0 %v5198
      %5690 = vmatpush1.bf16.msra.mxu0 %v5197
      %5691 = vmatprep.subr.bf16.mxu0 %v5202
      %5692 = vmatpush1.bf16.msra.mxu0 %v5201
      %5693 = vmatprep.subr.bf16.mxu0 %v5206
      %5694 = vmatpush1.bf16.msra.mxu0 %v5205
      %5695 = vmatprep.subr.bf16.mxu0 %v5210
      %5696 = vmatpush1.bf16.msra.mxu0 %v5209
      %5697 = vmatprep.subr.bf16.mxu0 %v5214
      %5698 = vmatpush1.bf16.msra.mxu0 %v5213
      %5699 = vmatprep.subr.bf16.mxu0 %v5218
      %5700 = vmatpush1.bf16.msra.mxu0 %v5217
      %5701 = vmatprep.mubr.bf16.mxu0 %v4369
      %5702 = vmatmul.mubr.bf16.gmra.mrb[0].mxu0 %v4355
      %v5703 = vpop.f32.mrb[0].mxu0
      %v5704 = vadd.f32 0.0, %v5703
      %v5705 = vpop.f32.mrb[0].mxu0
      %v5706 = vadd.f32 0.0, %v5705
      %v5707 = vpop.f32.mrb[0].mxu0
      %v5708 = vpop.f32.mrb[0].mxu0
      %5709 = vdwg.mxu0
      %5710 = vmatprep.subr.bf16.mxu0 %v5222
      %5711 = vmatpush1.bf16.msra.mxu0 %v5221
      %5712 = vmatprep.subr.bf16.mxu0 %v5226
      %5713 = vmatpush1.bf16.msra.mxu0 %v5225
      %5714 = vmatprep.subr.bf16.mxu0 %v5230
      %5715 = vmatpush1.bf16.msra.mxu0 %v5229
      %5716 = vmatprep.subr.bf16.mxu0 %v5234
      %5717 = vmatpush1.bf16.msra.mxu0 %v5233
      %5718 = vmatprep.subr.bf16.mxu0 %v5238
      %5719 = vmatpush1.bf16.msra.mxu0 %v5237
      %5720 = vmatprep.subr.bf16.mxu0 %v5242
      %5721 = vmatpush1.bf16.msra.mxu0 %v5241
      %5722 = vmatprep.subr.bf16.mxu0 %v5246
      %5723 = vmatpush1.bf16.msra.mxu0 %v5245
      %5724 = vmatprep.subr.bf16.mxu0 %v5250
      %5725 = vmatpush1.bf16.msra.mxu0 %v5249
      %5726 = vmatprep.subr.bf16.mxu0 %v5254
      %5727 = vmatpush1.bf16.msra.mxu0 %v5253
      %5728 = vmatprep.subr.bf16.mxu0 %v5258
      %5729 = vmatpush1.bf16.msra.mxu0 %v5257
      %5730 = vmatprep.subr.bf16.mxu0 %v5262
      %5731 = vmatpush1.bf16.msra.mxu0 %v5261
      %5732 = vmatprep.subr.bf16.mxu0 %v5266
      %5733 = vmatpush1.bf16.msra.mxu0 %v5265
      %5734 = vmatprep.subr.bf16.mxu0 %v5270
      %5735 = vmatpush1.bf16.msra.mxu0 %v5269
      %5736 = vmatprep.subr.bf16.mxu0 %v5274
      %5737 = vmatpush1.bf16.msra.mxu0 %v5273
      %5738 = vmatprep.subr.bf16.mxu0 %v5278
      %5739 = vmatpush1.bf16.msra.mxu0 %v5277
      %5740 = vmatprep.subr.bf16.mxu0 %v5282
      %5741 = vmatpush1.bf16.msra.mxu0 %v5281
      %5742 = vmatprep.mubr.bf16.mxu0 %v4379
      %5743 = vmatmul.mubr.bf16.gmra.mrb[0].mxu0 %v4377
      %v5744 = vpop.f32.mrb[0].mxu0
      %v5745 = vadd.f32 %v5704, %v5744
      %v5746 = vpop.f32.mrb[0].mxu0
      %v5747 = vadd.f32 %v5706, %v5746
      %v5748 = vpop.f32.mrb[0].mxu0
      %v5749 = vpop.f32.mrb[0].mxu0
      %5750 = vdwg.mxu0
      %5751 = vmatprep.subr.bf16.mxu0 %v5286
      %5752 = vmatpush1.bf16.msra.mxu0 %v5285
      %5753 = vmatprep.subr.bf16.mxu0 %v5290
      %5754 = vmatpush1.bf16.msra.mxu0 %v5289
      %5755 = vmatprep.subr.bf16.mxu0 %v5294
      %5756 = vmatpush1.bf16.msra.mxu0 %v5293
      %5757 = vmatprep.subr.bf16.mxu0 %v5298
      %5758 = vmatpush1.bf16.msra.mxu0 %v5297
      %5759 = vmatprep.subr.bf16.mxu0 %v5302
      %5760 = vmatpush1.bf16.msra.mxu0 %v5301
      %5761 = vmatprep.subr.bf16.mxu0 %v5306
      %5762 = vmatpush1.bf16.msra.mxu0 %v5305
      %5763 = vmatprep.subr.bf16.mxu0 %v5310
      %5764 = vmatpush1.bf16.msra.mxu0 %v5309
      %5765 = vmatprep.subr.bf16.mxu0 %v5314
      %5766 = vmatpush1.bf16.msra.mxu0 %v5313
      %5767 = vmatprep.subr.bf16.mxu0 %v5318
      %5768 = vmatpush1.bf16.msra.mxu0 %v5317
      %5769 = vmatprep.subr.bf16.mxu0 %v5322
      %5770 = vmatpush1.bf16.msra.mxu0 %v5321
      %5771 = vmatprep.subr.bf16.mxu0 %v5326
      %5772 = vmatpush1.bf16.msra.mxu0 %v5325
      %5773 = vmatprep.subr.bf16.mxu0 %v5330
      %5774 = vmatpush1.bf16.msra.mxu0 %v5329
      %5775 = vmatprep.subr.bf16.mxu0 %v5334
      %5776 = vmatpush1.bf16.msra.mxu0 %v5333
      %5777 = vmatprep.subr.bf16.mxu0 %v5338
      %5778 = vmatpush1.bf16.msra.mxu0 %v5337
      %5779 = vmatprep.subr.bf16.mxu0 %v5342
      %5780 = vmatpush1.bf16.msra.mxu0 %v5341
      %5781 = vmatprep.subr.bf16.mxu0 %v5346
      %5782 = vmatpush1.bf16.msra.mxu0 %v5345
      %5783 = vmatprep.mubr.bf16.mxu0 %v4376
      %5784 = vmatmul.mubr.bf16.gmra.mrb[0].mxu0 %v4362
      %v5785 = vpop.f32.mrb[0].mxu0
      %v5786 = vadd.f32 %v5745, %v5785
      %v5787 = vpop.f32.mrb[0].mxu0
      %v5788 = vadd.f32 %v5747, %v5787
      %v5789 = vpop.f32.mrb[0].mxu0
      %v5790 = vpop.f32.mrb[0].mxu0
      %5791 = vdwg.mxu0
      %5792 = vmatprep.subr.bf16.mxu0 %v5350
      %5793 = vmatpush1.bf16.msra.mxu0 %v5349
      %5794 = vmatprep.subr.bf16.mxu0 %v5354
      %5795 = vmatpush1.bf16.msra.mxu0 %v5353
      %5796 = vmatprep.subr.bf16.mxu0 %v5358
      %5797 = vmatpush1.bf16.msra.mxu0 %v5357
      %5798 = vmatprep.subr.bf16.mxu0 %v5362
      %5799 = vmatpush1.bf16.msra.mxu0 %v5361
      %5800 = vmatprep.subr.bf16.mxu0 %v5366
      %5801 = vmatpush1.bf16.msra.mxu0 %v5365
      %5802 = vmatprep.subr.bf16.mxu0 %v5370
      %5803 = vmatpush1.bf16.msra.mxu0 %v5369
      %5804 = vmatprep.subr.bf16.mxu0 %v5374
      %5805 = vmatpush1.bf16.msra.mxu0 %v5373
      %5806 = vmatprep.subr.bf16.mxu0 %v5378
      %5807 = vmatpush1.bf16.msra.mxu0 %v5377
      %5808 = vmatprep.subr.bf16.mxu0 %v5382
      %5809 = vmatpush1.bf16.msra.mxu0 %v5381
      %5810 = vmatprep.subr.bf16.mxu0 %v5386
      %5811 = vmatpush1.bf16.msra.mxu0 %v5385
      %5812 = vmatprep.subr.bf16.mxu0 %v5390
      %5813 = vmatpush1.bf16.msra.mxu0 %v5389
      %5814 = vmatprep.subr.bf16.mxu0 %v5394
      %5815 = vmatpush1.bf16.msra.mxu0 %v5393
      %5816 = vmatprep.subr.bf16.mxu0 %v5398
      %5817 = vmatpush1.bf16.msra.mxu0 %v5397
      %5818 = vmatprep.subr.bf16.mxu0 %v5402
      %5819 = vmatpush1.bf16.msra.mxu0 %v5401
      %5820 = vmatprep.subr.bf16.mxu0 %v5406
      %5821 = vmatpush1.bf16.msra.mxu0 %v5405
      %5822 = vmatprep.subr.bf16.mxu0 %v5410
      %5823 = vmatpush1.bf16.msra.mxu0 %v5409
      %5824 = vmatprep.mubr.bf16.mxu0 %v4380
      %5825 = vmatmul.mubr.bf16.gmra.mrb[0].mxu0 %v4378
      %v5826 = vpop.f32.mrb[0].mxu0
      %v5827 = vadd.f32 %v5786, %v5826
      %v5828 = vpop.f32.mrb[0].mxu0
      %v5829 = vadd.f32 %v5788, %v5828
      %v5830 = vpop.f32.mrb[0].mxu0
      %v5831 = vpop.f32.mrb[0].mxu0
      %5832 = vdwg.mxu0
      %5833 = vmatprep.subr.bf16.mxu0 %v5160
      %5834 = vmatpush1.bf16.msra.mxu0 %v5159
      %5835 = vmatprep.subr.bf16.mxu0 %v5164
      %5836 = vmatpush1.bf16.msra.mxu0 %v5163
      %5837 = vmatprep.subr.bf16.mxu0 %v5168
      %5838 = vmatpush1.bf16.msra.mxu0 %v5167
      %5839 = vmatprep.subr.bf16.mxu0 %v5172
      %5840 = vmatpush1.bf16.msra.mxu0 %v5171
      %5841 = vmatprep.subr.bf16.mxu0 %v5176
      %5842 = vmatpush1.bf16.msra.mxu0 %v5175
      %5843 = vmatprep.subr.bf16.mxu0 %v5180
      %5844 = vmatpush1.bf16.msra.mxu0 %v5179
      %5845 = vmatprep.subr.bf16.mxu0 %v5184
      %5846 = vmatpush1.bf16.msra.mxu0 %v5183
      %5847 = vmatprep.subr.bf16.mxu0 %v5188
      %5848 = vmatpush1.bf16.msra.mxu0 %v5187
      %5849 = vmatprep.subr.bf16.mxu0 %v5192
      %5850 = vmatpush1.bf16.msra.mxu0 %v5191
      %5851 = vmatprep.subr.bf16.mxu0 %v5196
      %5852 = vmatpush1.bf16.msra.mxu0 %v5195
      %5853 = vmatprep.subr.bf16.mxu0 %v5200
      %5854 = vmatpush1.bf16.msra.mxu0 %v5199
      %5855 = vmatprep.subr.bf16.mxu0 %v5204
      %5856 = vmatpush1.bf16.msra.mxu0 %v5203
      %5857 = vmatprep.subr.bf16.mxu0 %v5208
      %5858 = vmatpush1.bf16.msra.mxu0 %v5207
      %5859 = vmatprep.subr.bf16.mxu0 %v5212
      %5860 = vmatpush1.bf16.msra.mxu0 %v5211
      %5861 = vmatprep.subr.bf16.mxu0 %v5216
      %5862 = vmatpush1.bf16.msra.mxu0 %v5215
      %5863 = vmatprep.subr.bf16.mxu0 %v5220
      %5864 = vmatpush1.bf16.msra.mxu0 %v5219
      %5865 = vmatprep.mubr.bf16.mxu0 %v4369
      %5866 = vmatmul.mubr.bf16.gmra.mrb[0].mxu0 %v4355
      %v5867 = vpop.f32.mrb[0].mxu0
      %v5868 = vadd.f32 0.0, %v5867
      %v5869 = vpop.f32.mrb[0].mxu0
      %v5870 = vadd.f32 0.0, %v5869
      %v5871 = vpop.f32.mrb[0].mxu0
      %v5872 = vpop.f32.mrb[0].mxu0
      %5873 = vdwg.mxu0
      %5874 = vmatprep.subr.bf16.mxu0 %v5224
      %5875 = vmatpush1.bf16.msra.mxu0 %v5223
      %5876 = vmatprep.subr.bf16.mxu0 %v5228
      %5877 = vmatpush1.bf16.msra.mxu0 %v5227
      %5878 = vmatprep.subr.bf16.mxu0 %v5232
      %5879 = vmatpush1.bf16.msra.mxu0 %v5231
      %5880 = vmatprep.subr.bf16.mxu0 %v5236
      %5881 = vmatpush1.bf16.msra.mxu0 %v5235
      %5882 = vmatprep.subr.bf16.mxu0 %v5240
      %5883 = vmatpush1.bf16.msra.mxu0 %v5239
      %5884 = vmatprep.subr.bf16.mxu0 %v5244
      %5885 = vmatpush1.bf16.msra.mxu0 %v5243
      %5886 = vmatprep.subr.bf16.mxu0 %v5248
      %5887 = vmatpush1.bf16.msra.mxu0 %v5247
      %5888 = vmatprep.subr.bf16.mxu0 %v5252
      %5889 = vmatpush1.bf16.msra.mxu0 %v5251
      %5890 = vmatprep.subr.bf16.mxu0 %v5256
      %5891 = vmatpush1.bf16.msra.mxu0 %v5255
      %5892 = vmatprep.subr.bf16.mxu0 %v5260
      %5893 = vmatpush1.bf16.msra.mxu0 %v5259
      %5894 = vmatprep.subr.bf16.mxu0 %v5264
      %5895 = vmatpush1.bf16.msra.mxu0 %v5263
      %5896 = vmatprep.subr.bf16.mxu0 %v5268
      %5897 = vmatpush1.bf16.msra.mxu0 %v5267
      %5898 = vmatprep.subr.bf16.mxu0 %v5272
      %5899 = vmatpush1.bf16.msra.mxu0 %v5271
      %5900 = vmatprep.subr.bf16.mxu0 %v5276
      %5901 = vmatpush1.bf16.msra.mxu0 %v5275
      %5902 = vmatprep.subr.bf16.mxu0 %v5280
      %5903 = vmatpush1.bf16.msra.mxu0 %v5279
      %5904 = vmatprep.subr.bf16.mxu0 %v5284
      %5905 = vmatpush1.bf16.msra.mxu0 %v5283
      %5906 = vmatprep.mubr.bf16.mxu0 %v4379
      %5907 = vmatmul.mubr.bf16.gmra.mrb[0].mxu0 %v4377
      %v5908 = vpop.f32.mrb[0].mxu0
      %v5909 = vadd.f32 %v5868, %v5908
      %v5910 = vpop.f32.mrb[0].mxu0
      %v5911 = vadd.f32 %v5870, %v5910
      %v5912 = vpop.f32.mrb[0].mxu0
      %v5913 = vpop.f32.mrb[0].mxu0
      %5914 = vdwg.mxu0
      %5915 = vmatprep.subr.bf16.mxu0 %v5288
      %5916 = vmatpush1.bf16.msra.mxu0 %v5287
      %5917 = vmatprep.subr.bf16.mxu0 %v5292
      %5918 = vmatpush1.bf16.msra.mxu0 %v5291
      %5919 = vmatprep.subr.bf16.mxu0 %v5296
      %5920 = vmatpush1.bf16.msra.mxu0 %v5295
      %5921 = vmatprep.subr.bf16.mxu0 %v5300
      %5922 = vmatpush1.bf16.msra.mxu0 %v5299
      %5923 = vmatprep.subr.bf16.mxu0 %v5304
      %5924 = vmatpush1.bf16.msra.mxu0 %v5303
      %5925 = vmatprep.subr.bf16.mxu0 %v5308
      %5926 = vmatpush1.bf16.msra.mxu0 %v5307
      %5927 = vmatprep.subr.bf16.mxu0 %v5312
      %5928 = vmatpush1.bf16.msra.mxu0 %v5311
      %5929 = vmatprep.subr.bf16.mxu0 %v5316
      %5930 = vmatpush1.bf16.msra.mxu0 %v5315
      %5931 = vmatprep.subr.bf16.mxu0 %v5320
      %5932 = vmatpush1.bf16.msra.mxu0 %v5319
      %5933 = vmatprep.subr.bf16.mxu0 %v5324
      %5934 = vmatpush1.bf16.msra.mxu0 %v5323
      %5935 = vmatprep.subr.bf16.mxu0 %v5328
      %5936 = vmatpush1.bf16.msra.mxu0 %v5327
      %5937 = vmatprep.subr.bf16.mxu0 %v5332
      %5938 = vmatpush1.bf16.msra.mxu0 %v5331
      %5939 = vmatprep.subr.bf16.mxu0 %v5336
      %5940 = vmatpush1.bf16.msra.mxu0 %v5335
      %5941 = vmatprep.subr.bf16.mxu0 %v5340
      %5942 = vmatpush1.bf16.msra.mxu0 %v5339
      %5943 = vmatprep.subr.bf16.mxu0 %v5344
      %5944 = vmatpush1.bf16.msra.mxu0 %v5343
      %5945 = vmatprep.subr.bf16.mxu0 %v5348
      %5946 = vmatpush1.bf16.msra.mxu0 %v5347
      %5947 = vmatprep.mubr.bf16.mxu0 %v4376
      %5948 = vmatmul.mubr.bf16.gmra.mrb[0].mxu0 %v4362
      %v5949 = vpop.f32.mrb[0].mxu0
      %v5950 = vadd.f32 %v5909, %v5949
      %v5951 = vpop.f32.mrb[0].mxu0
      %v5952 = vadd.f32 %v5911, %v5951
      %v5953 = vpop.f32.mrb[0].mxu0
      %v5954 = vpop.f32.mrb[0].mxu0
      %5955 = vdwg.mxu0
      %5956 = vmatprep.subr.bf16.mxu0 %v5352
      %5957 = vmatpush1.bf16.msra.mxu0 %v5351
      %5958 = vmatprep.subr.bf16.mxu0 %v5356
      %5959 = vmatpush1.bf16.msra.mxu0 %v5355
      %5960 = vmatprep.subr.bf16.mxu0 %v5360
      %5961 = vmatpush1.bf16.msra.mxu0 %v5359
      %5962 = vmatprep.subr.bf16.mxu0 %v5364
      %5963 = vmatpush1.bf16.msra.mxu0 %v5363
      %5964 = vmatprep.subr.bf16.mxu0 %v5368
      %5965 = vmatpush1.bf16.msra.mxu0 %v5367
      %5966 = vmatprep.subr.bf16.mxu0 %v5372
      %5967 = vmatpush1.bf16.msra.mxu0 %v5371
      %5968 = vmatprep.subr.bf16.mxu0 %v5376
      %5969 = vmatpush1.bf16.msra.mxu0 %v5375
      %5970 = vmatprep.subr.bf16.mxu0 %v5380
      %5971 = vmatpush1.bf16.msra.mxu0 %v5379
      %5972 = vmatprep.subr.bf16.mxu0 %v5384
      %5973 = vmatpush1.bf16.msra.mxu0 %v5383
      %5974 = vmatprep.subr.bf16.mxu0 %v5388
      %5975 = vmatpush1.bf16.msra.mxu0 %v5387
      %5976 = vmatprep.subr.bf16.mxu0 %v5392
      %5977 = vmatpush1.bf16.msra.mxu0 %v5391
      %5978 = vmatprep.subr.bf16.mxu0 %v5396
      %5979 = vmatpush1.bf16.msra.mxu0 %v5395
      %5980 = vmatprep.subr.bf16.mxu0 %v5400
      %5981 = vmatpush1.bf16.msra.mxu0 %v5399
      %5982 = vmatprep.subr.bf16.mxu0 %v5404
      %5983 = vmatpush1.bf16.msra.mxu0 %v5403
      %5984 = vmatprep.subr.bf16.mxu0 %v5408
      %5985 = vmatpush1.bf16.msra.mxu0 %v5407
      %5986 = vmatprep.subr.bf16.mxu0 %v5412
      %5987 = vmatpush1.bf16.msra.mxu0 %v5411
      %5988 = vmatprep.mubr.bf16.mxu0 %v4380
      %5989 = vmatmul.mubr.bf16.gmra.mrb[0].mxu0 %v4378
      %v5990 = vpop.f32.mrb[0].mxu0
      %v5991 = vadd.f32 %v5950, %v5990
      %v5992 = vpop.f32.mrb[0].mxu0
      %v5993 = vadd.f32 %v5952, %v5992
      %v5994 = vpop.f32.mrb[0].mxu0
      %v5995 = vpop.f32.mrb[0].mxu0
      %5996 = vdwg.mxu0
      %v5997 = vadd.f32 %v3902, %v5827
      %v5998 = vadd.f32 %v3904, %v5829
      %v5999 = vadd.f32 %v4066, %v5991
      %v6000 = vadd.f32 %v4068, %v5993
      %v6001 = vld [vmem:[%s4072] sm:$0xff]
      %s6002 = scalar_lea.vmem %s1, 6144
      %v6003 = vld [vmem:[%s6002] sm:$0xff]
      %v6004 = vld [vmem:[%s6002 + $0x8] sm:$0xff]
      %v6005 = vld [vmem:[%s6002 + $0x10] sm:$0xff]
      %v6006 = vld [vmem:[%s6002 + $0x18] sm:$0xff]
      %v6007 = vld [vmem:[%s6002 + $0x20] sm:$0xff]
      %v6008 = vld [vmem:[%s6002 + $0x28] sm:$0xff]
      %v6009 = vld [vmem:[%s6002 + $0x30] sm:$0xff]
      %v6010 = vld [vmem:[%s6002 + $0x38] sm:$0xff]
      %v6011 = vld [vmem:[%s6002 + $0x40] sm:$0xff]
      %v6012 = vld [vmem:[%s6002 + $0x48] sm:$0xff]
      %v6013 = vld [vmem:[%s6002 + $0x50] sm:$0xff]
      %v6014 = vld [vmem:[%s6002 + $0x58] sm:$0xff]
      %v6015 = vld [vmem:[%s6002 + $0x60] sm:$0xff]
      %v6016 = vld [vmem:[%s6002 + $0x68] sm:$0xff]
      %v6017 = vld [vmem:[%s6002 + $0x70] sm:$0xff]
      %v6018 = vld [vmem:[%s6002 + $0x78] sm:$0xff]
      %v6019 = vld [vmem:[%s6002 + $0x80] sm:$0xff]
      %v6020 = vld [vmem:[%s6002 + $0x88] sm:$0xff]
      %v6021 = vld [vmem:[%s6002 + $0x90] sm:$0xff]
      %v6022 = vld [vmem:[%s6002 + $0x98] sm:$0xff]
      %v6023 = vld [vmem:[%s6002 + $0xa0] sm:$0xff]
      %v6024 = vld [vmem:[%s6002 + $0xa8] sm:$0xff]
      %v6025 = vld [vmem:[%s6002 + $0xb0] sm:$0xff]
      %v6026 = vld [vmem:[%s6002 + $0xb8] sm:$0xff]
      %v6027 = vld [vmem:[%s6002 + $0xc0] sm:$0xff]
      %v6028 = vld [vmem:[%s6002 + $0xc8] sm:$0xff]
      %v6029 = vld [vmem:[%s6002 + $0xd0] sm:$0xff]
      %v6030 = vld [vmem:[%s6002 + $0xd8] sm:$0xff]
      %v6031 = vld [vmem:[%s6002 + $0xe0] sm:$0xff]
      %v6032 = vld [vmem:[%s6002 + $0xe8] sm:$0xff]
      %v6033 = vld [vmem:[%s6002 + $0xf0] sm:$0xff]
      %v6034 = vld [vmem:[%s6002 + $0xf8] sm:$0xff]
      %v6035 = vld [vmem:[%s6002 + $0x100] sm:$0xff]
      %v6036 = vld [vmem:[%s6002 + $0x108] sm:$0xff]
      %v6037 = vld [vmem:[%s6002 + $0x110] sm:$0xff]
      %v6038 = vld [vmem:[%s6002 + $0x118] sm:$0xff]
      %v6039 = vld [vmem:[%s6002 + $0x120] sm:$0xff]
      %v6040 = vld [vmem:[%s6002 + $0x128] sm:$0xff]
      %v6041 = vld [vmem:[%s6002 + $0x130] sm:$0xff]
      %v6042 = vld [vmem:[%s6002 + $0x138] sm:$0xff]
      %v6043 = vld [vmem:[%s6002 + $0x140] sm:$0xff]
      %v6044 = vld [vmem:[%s6002 + $0x148] sm:$0xff]
      %v6045 = vld [vmem:[%s6002 + $0x150] sm:$0xff]
      %v6046 = vld [vmem:[%s6002 + $0x158] sm:$0xff]
      %v6047 = vld [vmem:[%s6002 + $0x160] sm:$0xff]
      %v6048 = vld [vmem:[%s6002 + $0x168] sm:$0xff]
      %v6049 = vld [vmem:[%s6002 + $0x170] sm:$0xff]
      %v6050 = vld [vmem:[%s6002 + $0x178] sm:$0xff]
      %v6051 = vld [vmem:[%s6002 + $0x180] sm:$0xff]
      %v6052 = vld [vmem:[%s6002 + $0x188] sm:$0xff]
      %v6053 = vld [vmem:[%s6002 + $0x190] sm:$0xff]
      %v6054 = vld [vmem:[%s6002 + $0x198] sm:$0xff]
      %v6055 = vld [vmem:[%s6002 + $0x1a0] sm:$0xff]
      %v6056 = vld [vmem:[%s6002 + $0x1a8] sm:$0xff]
      %v6057 = vld [vmem:[%s6002 + $0x1b0] sm:$0xff]
      %v6058 = vld [vmem:[%s6002 + $0x1b8] sm:$0xff]
      %v6059 = vld [vmem:[%s6002 + $0x1c0] sm:$0xff]
      %v6060 = vld [vmem:[%s6002 + $0x1c8] sm:$0xff]
      %v6061 = vld [vmem:[%s6002 + $0x1d0] sm:$0xff]
      %v6062 = vld [vmem:[%s6002 + $0x1d8] sm:$0xff]
      %v6063 = vld [vmem:[%s6002 + $0x1e0] sm:$0xff]
      %v6064 = vld [vmem:[%s6002 + $0x1e8] sm:$0xff]
      %v6065 = vld [vmem:[%s6002 + $0x1f0] sm:$0xff]
      %v6066 = vld [vmem:[%s6002 + $0x1f8] sm:$0xff]
      %v6067 = vld [vmem:[%s6002 + $0x200] sm:$0xff]
      %v6068 = vld [vmem:[%s6002 + $0x208] sm:$0xff]
      %v6069 = vld [vmem:[%s6002 + $0x210] sm:$0xff]
      %v6070 = vld [vmem:[%s6002 + $0x218] sm:$0xff]
      %v6071 = vld [vmem:[%s6002 + $0x220] sm:$0xff]
      %v6072 = vld [vmem:[%s6002 + $0x228] sm:$0xff]
      %v6073 = vld [vmem:[%s6002 + $0x230] sm:$0xff]
      %v6074 = vld [vmem:[%s6002 + $0x238] sm:$0xff]
      %v6075 = vld [vmem:[%s6002 + $0x240] sm:$0xff]
      %v6076 = vld [vmem:[%s6002 + $0x248] sm:$0xff]
      %v6077 = vld [vmem:[%s6002 + $0x250] sm:$0xff]
      %v6078 = vld [vmem:[%s6002 + $0x258] sm:$0xff]
      %v6079 = vld [vmem:[%s6002 + $0x260] sm:$0xff]
      %v6080 = vld [vmem:[%s6002 + $0x268] sm:$0xff]
      %v6081 = vld [vmem:[%s6002 + $0x270] sm:$0xff]
      %v6082 = vld [vmem:[%s6002 + $0x278] sm:$0xff]
      %v6083 = vld [vmem:[%s6002 + $0x280] sm:$0xff]
      %v6084 = vld [vmem:[%s6002 + $0x288] sm:$0xff]
      %v6085 = vld [vmem:[%s6002 + $0x290] sm:$0xff]
      %v6086 = vld [vmem:[%s6002 + $0x298] sm:$0xff]
      %v6087 = vld [vmem:[%s6002 + $0x2a0] sm:$0xff]
      %v6088 = vld [vmem:[%s6002 + $0x2a8] sm:$0xff]
      %v6089 = vld [vmem:[%s6002 + $0x2b0] sm:$0xff]
      %v6090 = vld [vmem:[%s6002 + $0x2b8] sm:$0xff]
      %v6091 = vld [vmem:[%s6002 + $0x2c0] sm:$0xff]
      %v6092 = vld [vmem:[%s6002 + $0x2c8] sm:$0xff]
      %v6093 = vld [vmem:[%s6002 + $0x2d0] sm:$0xff]
      %v6094 = vld [vmem:[%s6002 + $0x2d8] sm:$0xff]
      %v6095 = vld [vmem:[%s6002 + $0x2e0] sm:$0xff]
      %v6096 = vld [vmem:[%s6002 + $0x2e8] sm:$0xff]
      %v6097 = vld [vmem:[%s6002 + $0x2f0] sm:$0xff]
      %v6098 = vld [vmem:[%s6002 + $0x2f8] sm:$0xff]
      %v6099 = vld [vmem:[%s6002 + $0x300] sm:$0xff]
      %v6100 = vld [vmem:[%s6002 + $0x308] sm:$0xff]
      %v6101 = vld [vmem:[%s6002 + $0x310] sm:$0xff]
      %v6102 = vld [vmem:[%s6002 + $0x318] sm:$0xff]
      %v6103 = vld [vmem:[%s6002 + $0x320] sm:$0xff]
      %v6104 = vld [vmem:[%s6002 + $0x328] sm:$0xff]
      %v6105 = vld [vmem:[%s6002 + $0x330] sm:$0xff]
      %v6106 = vld [vmem:[%s6002 + $0x338] sm:$0xff]
      %v6107 = vld [vmem:[%s6002 + $0x340] sm:$0xff]
      %v6108 = vld [vmem:[%s6002 + $0x348] sm:$0xff]
      %v6109 = vld [vmem:[%s6002 + $0x350] sm:$0xff]
      %v6110 = vld [vmem:[%s6002 + $0x358] sm:$0xff]
      %v6111 = vld [vmem:[%s6002 + $0x360] sm:$0xff]
      %v6112 = vld [vmem:[%s6002 + $0x368] sm:$0xff]
      %v6113 = vld [vmem:[%s6002 + $0x370] sm:$0xff]
      %v6114 = vld [vmem:[%s6002 + $0x378] sm:$0xff]
      %v6115 = vld [vmem:[%s6002 + $0x380] sm:$0xff]
      %v6116 = vld [vmem:[%s6002 + $0x388] sm:$0xff]
      %v6117 = vld [vmem:[%s6002 + $0x390] sm:$0xff]
      %v6118 = vld [vmem:[%s6002 + $0x398] sm:$0xff]
      %v6119 = vld [vmem:[%s6002 + $0x3a0] sm:$0xff]
      %v6120 = vld [vmem:[%s6002 + $0x3a8] sm:$0xff]
      %v6121 = vld [vmem:[%s6002 + $0x3b0] sm:$0xff]
      %v6122 = vld [vmem:[%s6002 + $0x3b8] sm:$0xff]
      %v6123 = vld [vmem:[%s6002 + $0x3c0] sm:$0xff]
      %v6124 = vld [vmem:[%s6002 + $0x3c8] sm:$0xff]
      %v6125 = vld [vmem:[%s6002 + $0x3d0] sm:$0xff]
      %v6126 = vld [vmem:[%s6002 + $0x3d8] sm:$0xff]
      %v6127 = vld [vmem:[%s6002 + $0x3e0] sm:$0xff]
      %v6128 = vld [vmem:[%s6002 + $0x3e8] sm:$0xff]
      %v6129 = vld [vmem:[%s6002 + $0x3f0] sm:$0xff]
      %v6130 = vld [vmem:[%s6002 + $0x3f8] sm:$0xff]
      %v6131 = vld [vmem:[%s6002 + $0x400] sm:$0xff]
      %v6132 = vld [vmem:[%s6002 + $0x408] sm:$0xff]
      %v6133 = vld [vmem:[%s6002 + $0x410] sm:$0xff]
      %v6134 = vld [vmem:[%s6002 + $0x418] sm:$0xff]
      %v6135 = vld [vmem:[%s6002 + $0x420] sm:$0xff]
      %v6136 = vld [vmem:[%s6002 + $0x428] sm:$0xff]
      %v6137 = vld [vmem:[%s6002 + $0x430] sm:$0xff]
      %v6138 = vld [vmem:[%s6002 + $0x438] sm:$0xff]
      %v6139 = vld [vmem:[%s6002 + $0x440] sm:$0xff]
      %v6140 = vld [vmem:[%s6002 + $0x448] sm:$0xff]
      %v6141 = vld [vmem:[%s6002 + $0x450] sm:$0xff]
      %v6142 = vld [vmem:[%s6002 + $0x458] sm:$0xff]
      %v6143 = vld [vmem:[%s6002 + $0x460] sm:$0xff]
      %v6144 = vld [vmem:[%s6002 + $0x468] sm:$0xff]
      %v6145 = vld [vmem:[%s6002 + $0x470] sm:$0xff]
      %v6146 = vld [vmem:[%s6002 + $0x478] sm:$0xff]
      %v6147 = vld [vmem:[%s6002 + $0x480] sm:$0xff]
      %v6148 = vld [vmem:[%s6002 + $0x488] sm:$0xff]
      %v6149 = vld [vmem:[%s6002 + $0x490] sm:$0xff]
      %v6150 = vld [vmem:[%s6002 + $0x498] sm:$0xff]
      %v6151 = vld [vmem:[%s6002 + $0x4a0] sm:$0xff]
      %v6152 = vld [vmem:[%s6002 + $0x4a8] sm:$0xff]
      %v6153 = vld [vmem:[%s6002 + $0x4b0] sm:$0xff]
      %v6154 = vld [vmem:[%s6002 + $0x4b8] sm:$0xff]
      %v6155 = vld [vmem:[%s6002 + $0x4c0] sm:$0xff]
      %v6156 = vld [vmem:[%s6002 + $0x4c8] sm:$0xff]
      %v6157 = vld [vmem:[%s6002 + $0x4d0] sm:$0xff]
      %v6158 = vld [vmem:[%s6002 + $0x4d8] sm:$0xff]
      %v6159 = vld [vmem:[%s6002 + $0x4e0] sm:$0xff]
      %v6160 = vld [vmem:[%s6002 + $0x4e8] sm:$0xff]
      %v6161 = vld [vmem:[%s6002 + $0x4f0] sm:$0xff]
      %v6162 = vld [vmem:[%s6002 + $0x4f8] sm:$0xff]
      %v6163 = vld [vmem:[%s6002 + $0x500] sm:$0xff]
      %v6164 = vld [vmem:[%s6002 + $0x508] sm:$0xff]
      %v6165 = vld [vmem:[%s6002 + $0x510] sm:$0xff]
      %v6166 = vld [vmem:[%s6002 + $0x518] sm:$0xff]
      %v6167 = vld [vmem:[%s6002 + $0x520] sm:$0xff]
      %v6168 = vld [vmem:[%s6002 + $0x528] sm:$0xff]
      %v6169 = vld [vmem:[%s6002 + $0x530] sm:$0xff]
      %v6170 = vld [vmem:[%s6002 + $0x538] sm:$0xff]
      %v6171 = vld [vmem:[%s6002 + $0x540] sm:$0xff]
      %v6172 = vld [vmem:[%s6002 + $0x548] sm:$0xff]
      %v6173 = vld [vmem:[%s6002 + $0x550] sm:$0xff]
      %v6174 = vld [vmem:[%s6002 + $0x558] sm:$0xff]
      %v6175 = vld [vmem:[%s6002 + $0x560] sm:$0xff]
      %v6176 = vld [vmem:[%s6002 + $0x568] sm:$0xff]
      %v6177 = vld [vmem:[%s6002 + $0x570] sm:$0xff]
      %v6178 = vld [vmem:[%s6002 + $0x578] sm:$0xff]
      %v6179 = vld [vmem:[%s6002 + $0x580] sm:$0xff]
      %v6180 = vld [vmem:[%s6002 + $0x588] sm:$0xff]
      %v6181 = vld [vmem:[%s6002 + $0x590] sm:$0xff]
      %v6182 = vld [vmem:[%s6002 + $0x598] sm:$0xff]
      %v6183 = vld [vmem:[%s6002 + $0x5a0] sm:$0xff]
      %v6184 = vld [vmem:[%s6002 + $0x5a8] sm:$0xff]
      %v6185 = vld [vmem:[%s6002 + $0x5b0] sm:$0xff]
      %v6186 = vld [vmem:[%s6002 + $0x5b8] sm:$0xff]
      %v6187 = vld [vmem:[%s6002 + $0x5c0] sm:$0xff]
      %v6188 = vld [vmem:[%s6002 + $0x5c8] sm:$0xff]
      %v6189 = vld [vmem:[%s6002 + $0x5d0] sm:$0xff]
      %v6190 = vld [vmem:[%s6002 + $0x5d8] sm:$0xff]
      %v6191 = vld [vmem:[%s6002 + $0x5e0] sm:$0xff]
      %v6192 = vld [vmem:[%s6002 + $0x5e8] sm:$0xff]
      %v6193 = vld [vmem:[%s6002 + $0x5f0] sm:$0xff]
      %v6194 = vld [vmem:[%s6002 + $0x5f8] sm:$0xff]
      %v6195 = vld [vmem:[%s6002 + $0x600] sm:$0xff]
      %v6196 = vld [vmem:[%s6002 + $0x608] sm:$0xff]
      %v6197 = vld [vmem:[%s6002 + $0x610] sm:$0xff]
      %v6198 = vld [vmem:[%s6002 + $0x618] sm:$0xff]
      %v6199 = vld [vmem:[%s6002 + $0x620] sm:$0xff]
      %v6200 = vld [vmem:[%s6002 + $0x628] sm:$0xff]
      %v6201 = vld [vmem:[%s6002 + $0x630] sm:$0xff]
      %v6202 = vld [vmem:[%s6002 + $0x638] sm:$0xff]
      %v6203 = vld [vmem:[%s6002 + $0x640] sm:$0xff]
      %v6204 = vld [vmem:[%s6002 + $0x648] sm:$0xff]
      %v6205 = vld [vmem:[%s6002 + $0x650] sm:$0xff]
      %v6206 = vld [vmem:[%s6002 + $0x658] sm:$0xff]
      %v6207 = vld [vmem:[%s6002 + $0x660] sm:$0xff]
      %v6208 = vld [vmem:[%s6002 + $0x668] sm:$0xff]
      %v6209 = vld [vmem:[%s6002 + $0x670] sm:$0xff]
      %v6210 = vld [vmem:[%s6002 + $0x678] sm:$0xff]
      %v6211 = vld [vmem:[%s6002 + $0x680] sm:$0xff]
      %v6212 = vld [vmem:[%s6002 + $0x688] sm:$0xff]
      %v6213 = vld [vmem:[%s6002 + $0x690] sm:$0xff]
      %v6214 = vld [vmem:[%s6002 + $0x698] sm:$0xff]
      %v6215 = vld [vmem:[%s6002 + $0x6a0] sm:$0xff]
      %v6216 = vld [vmem:[%s6002 + $0x6a8] sm:$0xff]
      %v6217 = vld [vmem:[%s6002 + $0x6b0] sm:$0xff]
      %v6218 = vld [vmem:[%s6002 + $0x6b8] sm:$0xff]
      %v6219 = vld [vmem:[%s6002 + $0x6c0] sm:$0xff]
      %v6220 = vld [vmem:[%s6002 + $0x6c8] sm:$0xff]
      %v6221 = vld [vmem:[%s6002 + $0x6d0] sm:$0xff]
      %v6222 = vld [vmem:[%s6002 + $0x6d8] sm:$0xff]
      %v6223 = vld [vmem:[%s6002 + $0x6e0] sm:$0xff]
      %v6224 = vld [vmem:[%s6002 + $0x6e8] sm:$0xff]
      %v6225 = vld [vmem:[%s6002 + $0x6f0] sm:$0xff]
      %v6226 = vld [vmem:[%s6002 + $0x6f8] sm:$0xff]
      %v6227 = vld [vmem:[%s6002 + $0x700] sm:$0xff]
      %v6228 = vld [vmem:[%s6002 + $0x708] sm:$0xff]
      %v6229 = vld [vmem:[%s6002 + $0x710] sm:$0xff]
      %v6230 = vld [vmem:[%s6002 + $0x718] sm:$0xff]
      %v6231 = vld [vmem:[%s6002 + $0x720] sm:$0xff]
      %v6232 = vld [vmem:[%s6002 + $0x728] sm:$0xff]
      %v6233 = vld [vmem:[%s6002 + $0x730] sm:$0xff]
      %v6234 = vld [vmem:[%s6002 + $0x738] sm:$0xff]
      %v6235 = vld [vmem:[%s6002 + $0x740] sm:$0xff]
      %v6236 = vld [vmem:[%s6002 + $0x748] sm:$0xff]
      %v6237 = vld [vmem:[%s6002 + $0x750] sm:$0xff]
      %v6238 = vld [vmem:[%s6002 + $0x758] sm:$0xff]
      %v6239 = vld [vmem:[%s6002 + $0x760] sm:$0xff]
      %v6240 = vld [vmem:[%s6002 + $0x768] sm:$0xff]
      %v6241 = vld [vmem:[%s6002 + $0x770] sm:$0xff]
      %v6242 = vld [vmem:[%s6002 + $0x778] sm:$0xff]
      %v6243 = vld [vmem:[%s6002 + $0x780] sm:$0xff]
      %v6244 = vld [vmem:[%s6002 + $0x788] sm:$0xff]
      %v6245 = vld [vmem:[%s6002 + $0x790] sm:$0xff]
      %v6246 = vld [vmem:[%s6002 + $0x798] sm:$0xff]
      %v6247 = vld [vmem:[%s6002 + $0x7a0] sm:$0xff]
      %v6248 = vld [vmem:[%s6002 + $0x7a8] sm:$0xff]
      %v6249 = vld [vmem:[%s6002 + $0x7b0] sm:$0xff]
      %v6250 = vld [vmem:[%s6002 + $0x7b8] sm:$0xff]
      %v6251 = vld [vmem:[%s6002 + $0x7c0] sm:$0xff]
      %v6252 = vld [vmem:[%s6002 + $0x7c8] sm:$0xff]
      %v6253 = vld [vmem:[%s6002 + $0x7d0] sm:$0xff]
      %v6254 = vld [vmem:[%s6002 + $0x7d8] sm:$0xff]
      %v6255 = vld [vmem:[%s6002 + $0x7e0] sm:$0xff]
      %v6256 = vld [vmem:[%s6002 + $0x7e8] sm:$0xff]
      %v6257 = vld [vmem:[%s6002 + $0x7f0] sm:$0xff]
      %v6258 = vld [vmem:[%s6002 + $0x7f8] sm:$0xff]
      %v6260 = vcombine.high %v6001, %v6001
      %v6262 = vunpack.c.l.s4 1966171168
      %v6263 = vunpack.c.0.s8 %v6262
      %v6264 = vlaneseq
      %v6265 = vshrl.u32 %v6264, 7
      %v6266 = vsub.s32 %v6263, %v6265
      %v6267 = vrot.slane %v6001, %v6266
      %v6269 = vunpack.c.l.s4 1966171168
      %v6270 = vunpack.c.0.s8 %v6269
      %v6271 = vlaneseq
      %v6272 = vshrl.u32 %v6271, 7
      %v6273 = vsub.s32 %v6270, %v6272
      %v6274 = vrot.slane %v6260, %v6273
      %v6275 = vcombine.high %v6267, %v6267
      %v6276 = vcombine.high %v6274, %v6274
      %v6278 = vunpack.c.l.s4 1966171168
      %v6279 = vunpack.c.0.s8 %v6278
      %v6280 = vlaneseq
      %v6281 = vshrl.u32 %v6280, 7
      %v6282 = vsub.s32 %v6279, %v6281
      %v6283 = vrot.slane %v6267, %v6282
      %v6285 = vunpack.c.l.s4 1966171168
      %v6286 = vunpack.c.0.s8 %v6285
      %v6287 = vlaneseq
      %v6288 = vshrl.u32 %v6287, 7
      %v6289 = vsub.s32 %v6286, %v6288
      %v6290 = vrot.slane %v6274, %v6289
      %v6292 = vunpack.c.l.s4 1966171168
      %v6293 = vunpack.c.0.s8 %v6292
      %v6294 = vlaneseq
      %v6295 = vshrl.u32 %v6294, 7
      %v6296 = vsub.s32 %v6293, %v6295
      %v6297 = vrot.slane %v6275, %v6296
      %v6299 = vunpack.c.l.s4 1966171168
      %v6300 = vunpack.c.0.s8 %v6299
      %v6301 = vlaneseq
      %v6302 = vshrl.u32 %v6301, 7
      %v6303 = vsub.s32 %v6300, %v6302
      %v6304 = vrot.slane %v6276, %v6303
      %v6305 = vcombine.high %v6283, %v6283
      %v6306 = vcombine.high %v6290, %v6290
      %v6307 = vcombine.high %v6297, %v6297
      %v6308 = vcombine.high %v6304, %v6304
      %v6310 = vshrl.u32 %v6283, 16
      %v6313 = vshrl.u32 %v6297, 16
      %v6316 = vshrl.u32 %v6305, 16
      %v6319 = vshrl.u32 %v6307, 16
      %v6322 = vshrl.u32 %v6290, 16
      %v6325 = vshrl.u32 %v6304, 16
      %v6328 = vshrl.u32 %v6306, 16
      %v6331 = vshrl.u32 %v6308, 16
      %v6597 = vunpack.c.l.b16 %v6003
      %v6598 = vunpack.c.h.b16 %v6003
      %v6599 = vunpack.c.l.b16 %v6004
      %v6600 = vunpack.c.h.b16 %v6004
      %v6601 = vunpack.c.l.b16 %v6005
      %v6602 = vunpack.c.h.b16 %v6005
      %v6603 = vunpack.c.l.b16 %v6006
      %v6604 = vunpack.c.h.b16 %v6006
      %v6605 = vunpack.c.l.b16 %v6007
      %v6606 = vunpack.c.h.b16 %v6007
      %v6607 = vunpack.c.l.b16 %v6008
      %v6608 = vunpack.c.h.b16 %v6008
      %v6609 = vunpack.c.l.b16 %v6009
      %v6610 = vunpack.c.h.b16 %v6009
      %v6611 = vunpack.c.l.b16 %v6010
      %v6612 = vunpack.c.h.b16 %v6010
      %v6613 = vunpack.c.l.b16 %v6011
      %v6614 = vunpack.c.h.b16 %v6011
      %v6615 = vunpack.c.l.b16 %v6012
      %v6616 = vunpack.c.h.b16 %v6012
      %v6617 = vunpack.c.l.b16 %v6013
      %v6618 = vunpack.c.h.b16 %v6013
      %v6619 = vunpack.c.l.b16 %v6014
      %v6620 = vunpack.c.h.b16 %v6014
      %v6621 = vunpack.c.l.b16 %v6015
      %v6622 = vunpack.c.h.b16 %v6015
      %v6623 = vunpack.c.l.b16 %v6016
      %v6624 = vunpack.c.h.b16 %v6016
      %v6625 = vunpack.c.l.b16 %v6017
      %v6626 = vunpack.c.h.b16 %v6017
      %v6627 = vunpack.c.l.b16 %v6018
      %v6628 = vunpack.c.h.b16 %v6018
      %v6629 = vunpack.c.l.b16 %v6019
      %v6630 = vunpack.c.h.b16 %v6019
      %v6631 = vunpack.c.l.b16 %v6020
      %v6632 = vunpack.c.h.b16 %v6020
      %v6633 = vunpack.c.l.b16 %v6021
      %v6634 = vunpack.c.h.b16 %v6021
      %v6635 = vunpack.c.l.b16 %v6022
      %v6636 = vunpack.c.h.b16 %v6022
      %v6637 = vunpack.c.l.b16 %v6023
      %v6638 = vunpack.c.h.b16 %v6023
      %v6639 = vunpack.c.l.b16 %v6024
      %v6640 = vunpack.c.h.b16 %v6024
      %v6641 = vunpack.c.l.b16 %v6025
      %v6642 = vunpack.c.h.b16 %v6025
      %v6643 = vunpack.c.l.b16 %v6026
      %v6644 = vunpack.c.h.b16 %v6026
      %v6645 = vunpack.c.l.b16 %v6027
      %v6646 = vunpack.c.h.b16 %v6027
      %v6647 = vunpack.c.l.b16 %v6028
      %v6648 = vunpack.c.h.b16 %v6028
      %v6649 = vunpack.c.l.b16 %v6029
      %v6650 = vunpack.c.h.b16 %v6029
      %v6651 = vunpack.c.l.b16 %v6030
      %v6652 = vunpack.c.h.b16 %v6030
      %v6653 = vunpack.c.l.b16 %v6031
      %v6654 = vunpack.c.h.b16 %v6031
      %v6655 = vunpack.c.l.b16 %v6032
      %v6656 = vunpack.c.h.b16 %v6032
      %v6657 = vunpack.c.l.b16 %v6033
      %v6658 = vunpack.c.h.b16 %v6033
      %v6659 = vunpack.c.l.b16 %v6034
      %v6660 = vunpack.c.h.b16 %v6034
      %v6661 = vunpack.c.l.b16 %v6035
      %v6662 = vunpack.c.h.b16 %v6035
      %v6663 = vunpack.c.l.b16 %v6036
      %v6664 = vunpack.c.h.b16 %v6036
      %v6665 = vunpack.c.l.b16 %v6037
      %v6666 = vunpack.c.h.b16 %v6037
      %v6667 = vunpack.c.l.b16 %v6038
      %v6668 = vunpack.c.h.b16 %v6038
      %v6669 = vunpack.c.l.b16 %v6039
      %v6670 = vunpack.c.h.b16 %v6039
      %v6671 = vunpack.c.l.b16 %v6040
      %v6672 = vunpack.c.h.b16 %v6040
      %v6673 = vunpack.c.l.b16 %v6041
      %v6674 = vunpack.c.h.b16 %v6041
      %v6675 = vunpack.c.l.b16 %v6042
      %v6676 = vunpack.c.h.b16 %v6042
      %v6677 = vunpack.c.l.b16 %v6043
      %v6678 = vunpack.c.h.b16 %v6043
      %v6679 = vunpack.c.l.b16 %v6044
      %v6680 = vunpack.c.h.b16 %v6044
      %v6681 = vunpack.c.l.b16 %v6045
      %v6682 = vunpack.c.h.b16 %v6045
      %v6683 = vunpack.c.l.b16 %v6046
      %v6684 = vunpack.c.h.b16 %v6046
      %v6685 = vunpack.c.l.b16 %v6047
      %v6686 = vunpack.c.h.b16 %v6047
      %v6687 = vunpack.c.l.b16 %v6048
      %v6688 = vunpack.c.h.b16 %v6048
      %v6689 = vunpack.c.l.b16 %v6049
      %v6690 = vunpack.c.h.b16 %v6049
      %v6691 = vunpack.c.l.b16 %v6050
      %v6692 = vunpack.c.h.b16 %v6050
      %v6693 = vunpack.c.l.b16 %v6051
      %v6694 = vunpack.c.h.b16 %v6051
      %v6695 = vunpack.c.l.b16 %v6052
      %v6696 = vunpack.c.h.b16 %v6052
      %v6697 = vunpack.c.l.b16 %v6053
      %v6698 = vunpack.c.h.b16 %v6053
      %v6699 = vunpack.c.l.b16 %v6054
      %v6700 = vunpack.c.h.b16 %v6054
      %v6701 = vunpack.c.l.b16 %v6055
      %v6702 = vunpack.c.h.b16 %v6055
      %v6703 = vunpack.c.l.b16 %v6056
      %v6704 = vunpack.c.h.b16 %v6056
      %v6705 = vunpack.c.l.b16 %v6057
      %v6706 = vunpack.c.h.b16 %v6057
      %v6707 = vunpack.c.l.b16 %v6058
      %v6708 = vunpack.c.h.b16 %v6058
      %v6709 = vunpack.c.l.b16 %v6059
      %v6710 = vunpack.c.h.b16 %v6059
      %v6711 = vunpack.c.l.b16 %v6060
      %v6712 = vunpack.c.h.b16 %v6060
      %v6713 = vunpack.c.l.b16 %v6061
      %v6714 = vunpack.c.h.b16 %v6061
      %v6715 = vunpack.c.l.b16 %v6062
      %v6716 = vunpack.c.h.b16 %v6062
      %v6717 = vunpack.c.l.b16 %v6063
      %v6718 = vunpack.c.h.b16 %v6063
      %v6719 = vunpack.c.l.b16 %v6064
      %v6720 = vunpack.c.h.b16 %v6064
      %v6721 = vunpack.c.l.b16 %v6065
      %v6722 = vunpack.c.h.b16 %v6065
      %v6723 = vunpack.c.l.b16 %v6066
      %v6724 = vunpack.c.h.b16 %v6066
      %v6725 = vunpack.c.l.b16 %v6067
      %v6726 = vunpack.c.h.b16 %v6067
      %v6727 = vunpack.c.l.b16 %v6068
      %v6728 = vunpack.c.h.b16 %v6068
      %v6729 = vunpack.c.l.b16 %v6069
      %v6730 = vunpack.c.h.b16 %v6069
      %v6731 = vunpack.c.l.b16 %v6070
      %v6732 = vunpack.c.h.b16 %v6070
      %v6733 = vunpack.c.l.b16 %v6071
      %v6734 = vunpack.c.h.b16 %v6071
      %v6735 = vunpack.c.l.b16 %v6072
      %v6736 = vunpack.c.h.b16 %v6072
      %v6737 = vunpack.c.l.b16 %v6073
      %v6738 = vunpack.c.h.b16 %v6073
      %v6739 = vunpack.c.l.b16 %v6074
      %v6740 = vunpack.c.h.b16 %v6074
      %v6741 = vunpack.c.l.b16 %v6075
      %v6742 = vunpack.c.h.b16 %v6075
      %v6743 = vunpack.c.l.b16 %v6076
      %v6744 = vunpack.c.h.b16 %v6076
      %v6745 = vunpack.c.l.b16 %v6077
      %v6746 = vunpack.c.h.b16 %v6077
      %v6747 = vunpack.c.l.b16 %v6078
      %v6748 = vunpack.c.h.b16 %v6078
      %v6749 = vunpack.c.l.b16 %v6079
      %v6750 = vunpack.c.h.b16 %v6079
      %v6751 = vunpack.c.l.b16 %v6080
      %v6752 = vunpack.c.h.b16 %v6080
      %v6753 = vunpack.c.l.b16 %v6081
      %v6754 = vunpack.c.h.b16 %v6081
      %v6755 = vunpack.c.l.b16 %v6082
      %v6756 = vunpack.c.h.b16 %v6082
      %v6757 = vunpack.c.l.b16 %v6083
      %v6758 = vunpack.c.h.b16 %v6083
      %v6759 = vunpack.c.l.b16 %v6084
      %v6760 = vunpack.c.h.b16 %v6084
      %v6761 = vunpack.c.l.b16 %v6085
      %v6762 = vunpack.c.h.b16 %v6085
      %v6763 = vunpack.c.l.b16 %v6086
      %v6764 = vunpack.c.h.b16 %v6086
      %v6765 = vunpack.c.l.b16 %v6087
      %v6766 = vunpack.c.h.b16 %v6087
      %v6767 = vunpack.c.l.b16 %v6088
      %v6768 = vunpack.c.h.b16 %v6088
      %v6769 = vunpack.c.l.b16 %v6089
      %v6770 = vunpack.c.h.b16 %v6089
      %v6771 = vunpack.c.l.b16 %v6090
      %v6772 = vunpack.c.h.b16 %v6090
      %v6773 = vunpack.c.l.b16 %v6091
      %v6774 = vunpack.c.h.b16 %v6091
      %v6775 = vunpack.c.l.b16 %v6092
      %v6776 = vunpack.c.h.b16 %v6092
      %v6777 = vunpack.c.l.b16 %v6093
      %v6778 = vunpack.c.h.b16 %v6093
      %v6779 = vunpack.c.l.b16 %v6094
      %v6780 = vunpack.c.h.b16 %v6094
      %v6781 = vunpack.c.l.b16 %v6095
      %v6782 = vunpack.c.h.b16 %v6095
      %v6783 = vunpack.c.l.b16 %v6096
      %v6784 = vunpack.c.h.b16 %v6096
      %v6785 = vunpack.c.l.b16 %v6097
      %v6786 = vunpack.c.h.b16 %v6097
      %v6787 = vunpack.c.l.b16 %v6098
      %v6788 = vunpack.c.h.b16 %v6098
      %v6789 = vunpack.c.l.b16 %v6099
      %v6790 = vunpack.c.h.b16 %v6099
      %v6791 = vunpack.c.l.b16 %v6100
      %v6792 = vunpack.c.h.b16 %v6100
      %v6793 = vunpack.c.l.b16 %v6101
      %v6794 = vunpack.c.h.b16 %v6101
      %v6795 = vunpack.c.l.b16 %v6102
      %v6796 = vunpack.c.h.b16 %v6102
      %v6797 = vunpack.c.l.b16 %v6103
      %v6798 = vunpack.c.h.b16 %v6103
      %v6799 = vunpack.c.l.b16 %v6104
      %v6800 = vunpack.c.h.b16 %v6104
      %v6801 = vunpack.c.l.b16 %v6105
      %v6802 = vunpack.c.h.b16 %v6105
      %v6803 = vunpack.c.l.b16 %v6106
      %v6804 = vunpack.c.h.b16 %v6106
      %v6805 = vunpack.c.l.b16 %v6107
      %v6806 = vunpack.c.h.b16 %v6107
      %v6807 = vunpack.c.l.b16 %v6108
      %v6808 = vunpack.c.h.b16 %v6108
      %v6809 = vunpack.c.l.b16 %v6109
      %v6810 = vunpack.c.h.b16 %v6109
      %v6811 = vunpack.c.l.b16 %v6110
      %v6812 = vunpack.c.h.b16 %v6110
      %v6813 = vunpack.c.l.b16 %v6111
      %v6814 = vunpack.c.h.b16 %v6111
      %v6815 = vunpack.c.l.b16 %v6112
      %v6816 = vunpack.c.h.b16 %v6112
      %v6817 = vunpack.c.l.b16 %v6113
      %v6818 = vunpack.c.h.b16 %v6113
      %v6819 = vunpack.c.l.b16 %v6114
      %v6820 = vunpack.c.h.b16 %v6114
      %v6821 = vunpack.c.l.b16 %v6115
      %v6822 = vunpack.c.h.b16 %v6115
      %v6823 = vunpack.c.l.b16 %v6116
      %v6824 = vunpack.c.h.b16 %v6116
      %v6825 = vunpack.c.l.b16 %v6117
      %v6826 = vunpack.c.h.b16 %v6117
      %v6827 = vunpack.c.l.b16 %v6118
      %v6828 = vunpack.c.h.b16 %v6118
      %v6829 = vunpack.c.l.b16 %v6119
      %v6830 = vunpack.c.h.b16 %v6119
      %v6831 = vunpack.c.l.b16 %v6120
      %v6832 = vunpack.c.h.b16 %v6120
      %v6833 = vunpack.c.l.b16 %v6121
      %v6834 = vunpack.c.h.b16 %v6121
      %v6835 = vunpack.c.l.b16 %v6122
      %v6836 = vunpack.c.h.b16 %v6122
      %v6837 = vunpack.c.l.b16 %v6123
      %v6838 = vunpack.c.h.b16 %v6123
      %v6839 = vunpack.c.l.b16 %v6124
      %v6840 = vunpack.c.h.b16 %v6124
      %v6841 = vunpack.c.l.b16 %v6125
      %v6842 = vunpack.c.h.b16 %v6125
      %v6843 = vunpack.c.l.b16 %v6126
      %v6844 = vunpack.c.h.b16 %v6126
      %v6845 = vunpack.c.l.b16 %v6127
      %v6846 = vunpack.c.h.b16 %v6127
      %v6847 = vunpack.c.l.b16 %v6128
      %v6848 = vunpack.c.h.b16 %v6128
      %v6849 = vunpack.c.l.b16 %v6129
      %v6850 = vunpack.c.h.b16 %v6129
      %v6851 = vunpack.c.l.b16 %v6130
      %v6852 = vunpack.c.h.b16 %v6130
      %v6853 = vunpack.c.l.b16 %v6131
      %v6854 = vunpack.c.h.b16 %v6131
      %v6855 = vunpack.c.l.b16 %v6132
      %v6856 = vunpack.c.h.b16 %v6132
      %v6857 = vunpack.c.l.b16 %v6133
      %v6858 = vunpack.c.h.b16 %v6133
      %v6859 = vunpack.c.l.b16 %v6134
      %v6860 = vunpack.c.h.b16 %v6134
      %v6861 = vunpack.c.l.b16 %v6135
      %v6862 = vunpack.c.h.b16 %v6135
      %v6863 = vunpack.c.l.b16 %v6136
      %v6864 = vunpack.c.h.b16 %v6136
      %v6865 = vunpack.c.l.b16 %v6137
      %v6866 = vunpack.c.h.b16 %v6137
      %v6867 = vunpack.c.l.b16 %v6138
      %v6868 = vunpack.c.h.b16 %v6138
      %v6869 = vunpack.c.l.b16 %v6139
      %v6870 = vunpack.c.h.b16 %v6139
      %v6871 = vunpack.c.l.b16 %v6140
      %v6872 = vunpack.c.h.b16 %v6140
      %v6873 = vunpack.c.l.b16 %v6141
      %v6874 = vunpack.c.h.b16 %v6141
      %v6875 = vunpack.c.l.b16 %v6142
      %v6876 = vunpack.c.h.b16 %v6142
      %v6877 = vunpack.c.l.b16 %v6143
      %v6878 = vunpack.c.h.b16 %v6143
      %v6879 = vunpack.c.l.b16 %v6144
      %v6880 = vunpack.c.h.b16 %v6144
      %v6881 = vunpack.c.l.b16 %v6145
      %v6882 = vunpack.c.h.b16 %v6145
      %v6883 = vunpack.c.l.b16 %v6146
      %v6884 = vunpack.c.h.b16 %v6146
      %v6885 = vunpack.c.l.b16 %v6147
      %v6886 = vunpack.c.h.b16 %v6147
      %v6887 = vunpack.c.l.b16 %v6148
      %v6888 = vunpack.c.h.b16 %v6148
      %v6889 = vunpack.c.l.b16 %v6149
      %v6890 = vunpack.c.h.b16 %v6149
      %v6891 = vunpack.c.l.b16 %v6150
      %v6892 = vunpack.c.h.b16 %v6150
      %v6893 = vunpack.c.l.b16 %v6151
      %v6894 = vunpack.c.h.b16 %v6151
      %v6895 = vunpack.c.l.b16 %v6152
      %v6896 = vunpack.c.h.b16 %v6152
      %v6897 = vunpack.c.l.b16 %v6153
      %v6898 = vunpack.c.h.b16 %v6153
      %v6899 = vunpack.c.l.b16 %v6154
      %v6900 = vunpack.c.h.b16 %v6154
      %v6901 = vunpack.c.l.b16 %v6155
      %v6902 = vunpack.c.h.b16 %v6155
      %v6903 = vunpack.c.l.b16 %v6156
      %v6904 = vunpack.c.h.b16 %v6156
      %v6905 = vunpack.c.l.b16 %v6157
      %v6906 = vunpack.c.h.b16 %v6157
      %v6907 = vunpack.c.l.b16 %v6158
      %v6908 = vunpack.c.h.b16 %v6158
      %v6909 = vunpack.c.l.b16 %v6159
      %v6910 = vunpack.c.h.b16 %v6159
      %v6911 = vunpack.c.l.b16 %v6160
      %v6912 = vunpack.c.h.b16 %v6160
      %v6913 = vunpack.c.l.b16 %v6161
      %v6914 = vunpack.c.h.b16 %v6161
      %v6915 = vunpack.c.l.b16 %v6162
      %v6916 = vunpack.c.h.b16 %v6162
      %v6917 = vunpack.c.l.b16 %v6163
      %v6918 = vunpack.c.h.b16 %v6163
      %v6919 = vunpack.c.l.b16 %v6164
      %v6920 = vunpack.c.h.b16 %v6164
      %v6921 = vunpack.c.l.b16 %v6165
      %v6922 = vunpack.c.h.b16 %v6165
      %v6923 = vunpack.c.l.b16 %v6166
      %v6924 = vunpack.c.h.b16 %v6166
      %v6925 = vunpack.c.l.b16 %v6167
      %v6926 = vunpack.c.h.b16 %v6167
      %v6927 = vunpack.c.l.b16 %v6168
      %v6928 = vunpack.c.h.b16 %v6168
      %v6929 = vunpack.c.l.b16 %v6169
      %v6930 = vunpack.c.h.b16 %v6169
      %v6931 = vunpack.c.l.b16 %v6170
      %v6932 = vunpack.c.h.b16 %v6170
      %v6933 = vunpack.c.l.b16 %v6171
      %v6934 = vunpack.c.h.b16 %v6171
      %v6935 = vunpack.c.l.b16 %v6172
      %v6936 = vunpack.c.h.b16 %v6172
      %v6937 = vunpack.c.l.b16 %v6173
      %v6938 = vunpack.c.h.b16 %v6173
      %v6939 = vunpack.c.l.b16 %v6174
      %v6940 = vunpack.c.h.b16 %v6174
      %v6941 = vunpack.c.l.b16 %v6175
      %v6942 = vunpack.c.h.b16 %v6175
      %v6943 = vunpack.c.l.b16 %v6176
      %v6944 = vunpack.c.h.b16 %v6176
      %v6945 = vunpack.c.l.b16 %v6177
      %v6946 = vunpack.c.h.b16 %v6177
      %v6947 = vunpack.c.l.b16 %v6178
      %v6948 = vunpack.c.h.b16 %v6178
      %v6949 = vunpack.c.l.b16 %v6179
      %v6950 = vunpack.c.h.b16 %v6179
      %v6951 = vunpack.c.l.b16 %v6180
      %v6952 = vunpack.c.h.b16 %v6180
      %v6953 = vunpack.c.l.b16 %v6181
      %v6954 = vunpack.c.h.b16 %v6181
      %v6955 = vunpack.c.l.b16 %v6182
      %v6956 = vunpack.c.h.b16 %v6182
      %v6957 = vunpack.c.l.b16 %v6183
      %v6958 = vunpack.c.h.b16 %v6183
      %v6959 = vunpack.c.l.b16 %v6184
      %v6960 = vunpack.c.h.b16 %v6184
      %v6961 = vunpack.c.l.b16 %v6185
      %v6962 = vunpack.c.h.b16 %v6185
      %v6963 = vunpack.c.l.b16 %v6186
      %v6964 = vunpack.c.h.b16 %v6186
      %v6965 = vunpack.c.l.b16 %v6187
      %v6966 = vunpack.c.h.b16 %v6187
      %v6967 = vunpack.c.l.b16 %v6188
      %v6968 = vunpack.c.h.b16 %v6188
      %v6969 = vunpack.c.l.b16 %v6189
      %v6970 = vunpack.c.h.b16 %v6189
      %v6971 = vunpack.c.l.b16 %v6190
      %v6972 = vunpack.c.h.b16 %v6190
      %v6973 = vunpack.c.l.b16 %v6191
      %v6974 = vunpack.c.h.b16 %v6191
      %v6975 = vunpack.c.l.b16 %v6192
      %v6976 = vunpack.c.h.b16 %v6192
      %v6977 = vunpack.c.l.b16 %v6193
      %v6978 = vunpack.c.h.b16 %v6193
      %v6979 = vunpack.c.l.b16 %v6194
      %v6980 = vunpack.c.h.b16 %v6194
      %v6981 = vunpack.c.l.b16 %v6195
      %v6982 = vunpack.c.h.b16 %v6195
      %v6983 = vunpack.c.l.b16 %v6196
      %v6984 = vunpack.c.h.b16 %v6196
      %v6985 = vunpack.c.l.b16 %v6197
      %v6986 = vunpack.c.h.b16 %v6197
      %v6987 = vunpack.c.l.b16 %v6198
      %v6988 = vunpack.c.h.b16 %v6198
      %v6989 = vunpack.c.l.b16 %v6199
      %v6990 = vunpack.c.h.b16 %v6199
      %v6991 = vunpack.c.l.b16 %v6200
      %v6992 = vunpack.c.h.b16 %v6200
      %v6993 = vunpack.c.l.b16 %v6201
      %v6994 = vunpack.c.h.b16 %v6201
      %v6995 = vunpack.c.l.b16 %v6202
      %v6996 = vunpack.c.h.b16 %v6202
      %v6997 = vunpack.c.l.b16 %v6203
      %v6998 = vunpack.c.h.b16 %v6203
      %v6999 = vunpack.c.l.b16 %v6204
      %v7000 = vunpack.c.h.b16 %v6204
      %v7001 = vunpack.c.l.b16 %v6205
      %v7002 = vunpack.c.h.b16 %v6205
      %v7003 = vunpack.c.l.b16 %v6206
      %v7004 = vunpack.c.h.b16 %v6206
      %v7005 = vunpack.c.l.b16 %v6207
      %v7006 = vunpack.c.h.b16 %v6207
      %v7007 = vunpack.c.l.b16 %v6208
      %v7008 = vunpack.c.h.b16 %v6208
      %v7009 = vunpack.c.l.b16 %v6209
      %v7010 = vunpack.c.h.b16 %v6209
      %v7011 = vunpack.c.l.b16 %v6210
      %v7012 = vunpack.c.h.b16 %v6210
      %v7013 = vunpack.c.l.b16 %v6211
      %v7014 = vunpack.c.h.b16 %v6211
      %v7015 = vunpack.c.l.b16 %v6212
      %v7016 = vunpack.c.h.b16 %v6212
      %v7017 = vunpack.c.l.b16 %v6213
      %v7018 = vunpack.c.h.b16 %v6213
      %v7019 = vunpack.c.l.b16 %v6214
      %v7020 = vunpack.c.h.b16 %v6214
      %v7021 = vunpack.c.l.b16 %v6215
      %v7022 = vunpack.c.h.b16 %v6215
      %v7023 = vunpack.c.l.b16 %v6216
      %v7024 = vunpack.c.h.b16 %v6216
      %v7025 = vunpack.c.l.b16 %v6217
      %v7026 = vunpack.c.h.b16 %v6217
      %v7027 = vunpack.c.l.b16 %v6218
      %v7028 = vunpack.c.h.b16 %v6218
      %v7029 = vunpack.c.l.b16 %v6219
      %v7030 = vunpack.c.h.b16 %v6219
      %v7031 = vunpack.c.l.b16 %v6220
      %v7032 = vunpack.c.h.b16 %v6220
      %v7033 = vunpack.c.l.b16 %v6221
      %v7034 = vunpack.c.h.b16 %v6221
      %v7035 = vunpack.c.l.b16 %v6222
      %v7036 = vunpack.c.h.b16 %v6222
      %v7037 = vunpack.c.l.b16 %v6223
      %v7038 = vunpack.c.h.b16 %v6223
      %v7039 = vunpack.c.l.b16 %v6224
      %v7040 = vunpack.c.h.b16 %v6224
      %v7041 = vunpack.c.l.b16 %v6225
      %v7042 = vunpack.c.h.b16 %v6225
      %v7043 = vunpack.c.l.b16 %v6226
      %v7044 = vunpack.c.h.b16 %v6226
      %v7045 = vunpack.c.l.b16 %v6227
      %v7046 = vunpack.c.h.b16 %v6227
      %v7047 = vunpack.c.l.b16 %v6228
      %v7048 = vunpack.c.h.b16 %v6228
      %v7049 = vunpack.c.l.b16 %v6229
      %v7050 = vunpack.c.h.b16 %v6229
      %v7051 = vunpack.c.l.b16 %v6230
      %v7052 = vunpack.c.h.b16 %v6230
      %v7053 = vunpack.c.l.b16 %v6231
      %v7054 = vunpack.c.h.b16 %v6231
      %v7055 = vunpack.c.l.b16 %v6232
      %v7056 = vunpack.c.h.b16 %v6232
      %v7057 = vunpack.c.l.b16 %v6233
      %v7058 = vunpack.c.h.b16 %v6233
      %v7059 = vunpack.c.l.b16 %v6234
      %v7060 = vunpack.c.h.b16 %v6234
      %v7061 = vunpack.c.l.b16 %v6235
      %v7062 = vunpack.c.h.b16 %v6235
      %v7063 = vunpack.c.l.b16 %v6236
      %v7064 = vunpack.c.h.b16 %v6236
      %v7065 = vunpack.c.l.b16 %v6237
      %v7066 = vunpack.c.h.b16 %v6237
      %v7067 = vunpack.c.l.b16 %v6238
      %v7068 = vunpack.c.h.b16 %v6238
      %v7069 = vunpack.c.l.b16 %v6239
      %v7070 = vunpack.c.h.b16 %v6239
      %v7071 = vunpack.c.l.b16 %v6240
      %v7072 = vunpack.c.h.b16 %v6240
      %v7073 = vunpack.c.l.b16 %v6241
      %v7074 = vunpack.c.h.b16 %v6241
      %v7075 = vunpack.c.l.b16 %v6242
      %v7076 = vunpack.c.h.b16 %v6242
      %v7077 = vunpack.c.l.b16 %v6243
      %v7078 = vunpack.c.h.b16 %v6243
      %v7079 = vunpack.c.l.b16 %v6244
      %v7080 = vunpack.c.h.b16 %v6244
      %v7081 = vunpack.c.l.b16 %v6245
      %v7082 = vunpack.c.h.b16 %v6245
      %v7083 = vunpack.c.l.b16 %v6246
      %v7084 = vunpack.c.h.b16 %v6246
      %v7085 = vunpack.c.l.b16 %v6247
      %v7086 = vunpack.c.h.b16 %v6247
      %v7087 = vunpack.c.l.b16 %v6248
      %v7088 = vunpack.c.h.b16 %v6248
      %v7089 = vunpack.c.l.b16 %v6249
      %v7090 = vunpack.c.h.b16 %v6249
      %v7091 = vunpack.c.l.b16 %v6250
      %v7092 = vunpack.c.h.b16 %v6250
      %v7093 = vunpack.c.l.b16 %v6251
      %v7094 = vunpack.c.h.b16 %v6251
      %v7095 = vunpack.c.l.b16 %v6252
      %v7096 = vunpack.c.h.b16 %v6252
      %v7097 = vunpack.c.l.b16 %v6253
      %v7098 = vunpack.c.h.b16 %v6253
      %v7099 = vunpack.c.l.b16 %v6254
      %v7100 = vunpack.c.h.b16 %v6254
      %v7101 = vunpack.c.l.b16 %v6255
      %v7102 = vunpack.c.h.b16 %v6255
      %v7103 = vunpack.c.l.b16 %v6256
      %v7104 = vunpack.c.h.b16 %v6256
      %v7105 = vunpack.c.l.b16 %v6257
      %v7106 = vunpack.c.h.b16 %v6257
      %v7107 = vunpack.c.l.b16 %v6258
      %v7108 = vunpack.c.h.b16 %v6258
      %v7109 = vpack.c.b16 %v6601, %v6597
      %v7110 = vpack.c.b16 %v6602, %v6598
      %v7111 = vpack.c.b16 %v6603, %v6599
      %v7112 = vpack.c.b16 %v6604, %v6600
      %v7113 = vpack.c.b16 %v6609, %v6605
      %v7114 = vpack.c.b16 %v6610, %v6606
      %v7115 = vpack.c.b16 %v6611, %v6607
      %v7116 = vpack.c.b16 %v6612, %v6608
      %v7117 = vpack.c.b16 %v6617, %v6613
      %v7118 = vpack.c.b16 %v6618, %v6614
      %v7119 = vpack.c.b16 %v6619, %v6615
      %v7120 = vpack.c.b16 %v6620, %v6616
      %v7121 = vpack.c.b16 %v6625, %v6621
      %v7122 = vpack.c.b16 %v6626, %v6622
      %v7123 = vpack.c.b16 %v6627, %v6623
      %v7124 = vpack.c.b16 %v6628, %v6624
      %v7125 = vpack.c.b16 %v6633, %v6629
      %v7126 = vpack.c.b16 %v6634, %v6630
      %v7127 = vpack.c.b16 %v6635, %v6631
      %v7128 = vpack.c.b16 %v6636, %v6632
      %v7129 = vpack.c.b16 %v6641, %v6637
      %v7130 = vpack.c.b16 %v6642, %v6638
      %v7131 = vpack.c.b16 %v6643, %v6639
      %v7132 = vpack.c.b16 %v6644, %v6640
      %v7133 = vpack.c.b16 %v6649, %v6645
      %v7134 = vpack.c.b16 %v6650, %v6646
      %v7135 = vpack.c.b16 %v6651, %v6647
      %v7136 = vpack.c.b16 %v6652, %v6648
      %v7137 = vpack.c.b16 %v6657, %v6653
      %v7138 = vpack.c.b16 %v6658, %v6654
      %v7139 = vpack.c.b16 %v6659, %v6655
      %v7140 = vpack.c.b16 %v6660, %v6656
      %v7141 = vpack.c.b16 %v6665, %v6661
      %v7142 = vpack.c.b16 %v6666, %v6662
      %v7143 = vpack.c.b16 %v6667, %v6663
      %v7144 = vpack.c.b16 %v6668, %v6664
      %v7145 = vpack.c.b16 %v6673, %v6669
      %v7146 = vpack.c.b16 %v6674, %v6670
      %v7147 = vpack.c.b16 %v6675, %v6671
      %v7148 = vpack.c.b16 %v6676, %v6672
      %v7149 = vpack.c.b16 %v6681, %v6677
      %v7150 = vpack.c.b16 %v6682, %v6678
      %v7151 = vpack.c.b16 %v6683, %v6679
      %v7152 = vpack.c.b16 %v6684, %v6680
      %v7153 = vpack.c.b16 %v6689, %v6685
      %v7154 = vpack.c.b16 %v6690, %v6686
      %v7155 = vpack.c.b16 %v6691, %v6687
      %v7156 = vpack.c.b16 %v6692, %v6688
      %v7157 = vpack.c.b16 %v6697, %v6693
      %v7158 = vpack.c.b16 %v6698, %v6694
      %v7159 = vpack.c.b16 %v6699, %v6695
      %v7160 = vpack.c.b16 %v6700, %v6696
      %v7161 = vpack.c.b16 %v6705, %v6701
      %v7162 = vpack.c.b16 %v6706, %v6702
      %v7163 = vpack.c.b16 %v6707, %v6703
      %v7164 = vpack.c.b16 %v6708, %v6704
      %v7165 = vpack.c.b16 %v6713, %v6709
      %v7166 = vpack.c.b16 %v6714, %v6710
      %v7167 = vpack.c.b16 %v6715, %v6711
      %v7168 = vpack.c.b16 %v6716, %v6712
      %v7169 = vpack.c.b16 %v6721, %v6717
      %v7170 = vpack.c.b16 %v6722, %v6718
      %v7171 = vpack.c.b16 %v6723, %v6719
      %v7172 = vpack.c.b16 %v6724, %v6720
      %v7173 = vpack.c.b16 %v6729, %v6725
      %v7174 = vpack.c.b16 %v6730, %v6726
      %v7175 = vpack.c.b16 %v6731, %v6727
      %v7176 = vpack.c.b16 %v6732, %v6728
      %v7177 = vpack.c.b16 %v6737, %v6733
      %v7178 = vpack.c.b16 %v6738, %v6734
      %v7179 = vpack.c.b16 %v6739, %v6735
      %v7180 = vpack.c.b16 %v6740, %v6736
      %v7181 = vpack.c.b16 %v6745, %v6741
      %v7182 = vpack.c.b16 %v6746, %v6742
      %v7183 = vpack.c.b16 %v6747, %v6743
      %v7184 = vpack.c.b16 %v6748, %v6744
      %v7185 = vpack.c.b16 %v6753, %v6749
      %v7186 = vpack.c.b16 %v6754, %v6750
      %v7187 = vpack.c.b16 %v6755, %v6751
      %v7188 = vpack.c.b16 %v6756, %v6752
      %v7189 = vpack.c.b16 %v6761, %v6757
      %v7190 = vpack.c.b16 %v6762, %v6758
      %v7191 = vpack.c.b16 %v6763, %v6759
      %v7192 = vpack.c.b16 %v6764, %v6760
      %v7193 = vpack.c.b16 %v6769, %v6765
      %v7194 = vpack.c.b16 %v6770, %v6766
      %v7195 = vpack.c.b16 %v6771, %v6767
      %v7196 = vpack.c.b16 %v6772, %v6768
      %v7197 = vpack.c.b16 %v6777, %v6773
      %v7198 = vpack.c.b16 %v6778, %v6774
      %v7199 = vpack.c.b16 %v6779, %v6775
      %v7200 = vpack.c.b16 %v6780, %v6776
      %v7201 = vpack.c.b16 %v6785, %v6781
      %v7202 = vpack.c.b16 %v6786, %v6782
      %v7203 = vpack.c.b16 %v6787, %v6783
      %v7204 = vpack.c.b16 %v6788, %v6784
      %v7205 = vpack.c.b16 %v6793, %v6789
      %v7206 = vpack.c.b16 %v6794, %v6790
      %v7207 = vpack.c.b16 %v6795, %v6791
      %v7208 = vpack.c.b16 %v6796, %v6792
      %v7209 = vpack.c.b16 %v6801, %v6797
      %v7210 = vpack.c.b16 %v6802, %v6798
      %v7211 = vpack.c.b16 %v6803, %v6799
      %v7212 = vpack.c.b16 %v6804, %v6800
      %v7213 = vpack.c.b16 %v6809, %v6805
      %v7214 = vpack.c.b16 %v6810, %v6806
      %v7215 = vpack.c.b16 %v6811, %v6807
      %v7216 = vpack.c.b16 %v6812, %v6808
      %v7217 = vpack.c.b16 %v6817, %v6813
      %v7218 = vpack.c.b16 %v6818, %v6814
      %v7219 = vpack.c.b16 %v6819, %v6815
      %v7220 = vpack.c.b16 %v6820, %v6816
      %v7221 = vpack.c.b16 %v6825, %v6821
      %v7222 = vpack.c.b16 %v6826, %v6822
      %v7223 = vpack.c.b16 %v6827, %v6823
      %v7224 = vpack.c.b16 %v6828, %v6824
      %v7225 = vpack.c.b16 %v6833, %v6829
      %v7226 = vpack.c.b16 %v6834, %v6830
      %v7227 = vpack.c.b16 %v6835, %v6831
      %v7228 = vpack.c.b16 %v6836, %v6832
      %v7229 = vpack.c.b16 %v6841, %v6837
      %v7230 = vpack.c.b16 %v6842, %v6838
      %v7231 = vpack.c.b16 %v6843, %v6839
      %v7232 = vpack.c.b16 %v6844, %v6840
      %v7233 = vpack.c.b16 %v6849, %v6845
      %v7234 = vpack.c.b16 %v6850, %v6846
      %v7235 = vpack.c.b16 %v6851, %v6847
      %v7236 = vpack.c.b16 %v6852, %v6848
      %v7237 = vpack.c.b16 %v6857, %v6853
      %v7238 = vpack.c.b16 %v6858, %v6854
      %v7239 = vpack.c.b16 %v6859, %v6855
      %v7240 = vpack.c.b16 %v6860, %v6856
      %v7241 = vpack.c.b16 %v6865, %v6861
      %v7242 = vpack.c.b16 %v6866, %v6862
      %v7243 = vpack.c.b16 %v6867, %v6863
      %v7244 = vpack.c.b16 %v6868, %v6864
      %v7245 = vpack.c.b16 %v6873, %v6869
      %v7246 = vpack.c.b16 %v6874, %v6870
      %v7247 = vpack.c.b16 %v6875, %v6871
      %v7248 = vpack.c.b16 %v6876, %v6872
      %v7249 = vpack.c.b16 %v6881, %v6877
      %v7250 = vpack.c.b16 %v6882, %v6878
      %v7251 = vpack.c.b16 %v6883, %v6879
      %v7252 = vpack.c.b16 %v6884, %v6880
      %v7253 = vpack.c.b16 %v6889, %v6885
      %v7254 = vpack.c.b16 %v6890, %v6886
      %v7255 = vpack.c.b16 %v6891, %v6887
      %v7256 = vpack.c.b16 %v6892, %v6888
      %v7257 = vpack.c.b16 %v6897, %v6893
      %v7258 = vpack.c.b16 %v6898, %v6894
      %v7259 = vpack.c.b16 %v6899, %v6895
      %v7260 = vpack.c.b16 %v6900, %v6896
      %v7261 = vpack.c.b16 %v6905, %v6901
      %v7262 = vpack.c.b16 %v6906, %v6902
      %v7263 = vpack.c.b16 %v6907, %v6903
      %v7264 = vpack.c.b16 %v6908, %v6904
      %v7265 = vpack.c.b16 %v6913, %v6909
      %v7266 = vpack.c.b16 %v6914, %v6910
      %v7267 = vpack.c.b16 %v6915, %v6911
      %v7268 = vpack.c.b16 %v6916, %v6912
      %v7269 = vpack.c.b16 %v6921, %v6917
      %v7270 = vpack.c.b16 %v6922, %v6918
      %v7271 = vpack.c.b16 %v6923, %v6919
      %v7272 = vpack.c.b16 %v6924, %v6920
      %v7273 = vpack.c.b16 %v6929, %v6925
      %v7274 = vpack.c.b16 %v6930, %v6926
      %v7275 = vpack.c.b16 %v6931, %v6927
      %v7276 = vpack.c.b16 %v6932, %v6928
      %v7277 = vpack.c.b16 %v6937, %v6933
      %v7278 = vpack.c.b16 %v6938, %v6934
      %v7279 = vpack.c.b16 %v6939, %v6935
      %v7280 = vpack.c.b16 %v6940, %v6936
      %v7281 = vpack.c.b16 %v6945, %v6941
      %v7282 = vpack.c.b16 %v6946, %v6942
      %v7283 = vpack.c.b16 %v6947, %v6943
      %v7284 = vpack.c.b16 %v6948, %v6944
      %v7285 = vpack.c.b16 %v6953, %v6949
      %v7286 = vpack.c.b16 %v6954, %v6950
      %v7287 = vpack.c.b16 %v6955, %v6951
      %v7288 = vpack.c.b16 %v6956, %v6952
      %v7289 = vpack.c.b16 %v6961, %v6957
      %v7290 = vpack.c.b16 %v6962, %v6958
      %v7291 = vpack.c.b16 %v6963, %v6959
      %v7292 = vpack.c.b16 %v6964, %v6960
      %v7293 = vpack.c.b16 %v6969, %v6965
      %v7294 = vpack.c.b16 %v6970, %v6966
      %v7295 = vpack.c.b16 %v6971, %v6967
      %v7296 = vpack.c.b16 %v6972, %v6968
      %v7297 = vpack.c.b16 %v6977, %v6973
      %v7298 = vpack.c.b16 %v6978, %v6974
      %v7299 = vpack.c.b16 %v6979, %v6975
      %v7300 = vpack.c.b16 %v6980, %v6976
      %v7301 = vpack.c.b16 %v6985, %v6981
      %v7302 = vpack.c.b16 %v6986, %v6982
      %v7303 = vpack.c.b16 %v6987, %v6983
      %v7304 = vpack.c.b16 %v6988, %v6984
      %v7305 = vpack.c.b16 %v6993, %v6989
      %v7306 = vpack.c.b16 %v6994, %v6990
      %v7307 = vpack.c.b16 %v6995, %v6991
      %v7308 = vpack.c.b16 %v6996, %v6992
      %v7309 = vpack.c.b16 %v7001, %v6997
      %v7310 = vpack.c.b16 %v7002, %v6998
      %v7311 = vpack.c.b16 %v7003, %v6999
      %v7312 = vpack.c.b16 %v7004, %v7000
      %v7313 = vpack.c.b16 %v7009, %v7005
      %v7314 = vpack.c.b16 %v7010, %v7006
      %v7315 = vpack.c.b16 %v7011, %v7007
      %v7316 = vpack.c.b16 %v7012, %v7008
      %v7317 = vpack.c.b16 %v7017, %v7013
      %v7318 = vpack.c.b16 %v7018, %v7014
      %v7319 = vpack.c.b16 %v7019, %v7015
      %v7320 = vpack.c.b16 %v7020, %v7016
      %v7321 = vpack.c.b16 %v7025, %v7021
      %v7322 = vpack.c.b16 %v7026, %v7022
      %v7323 = vpack.c.b16 %v7027, %v7023
      %v7324 = vpack.c.b16 %v7028, %v7024
      %v7325 = vpack.c.b16 %v7033, %v7029
      %v7326 = vpack.c.b16 %v7034, %v7030
      %v7327 = vpack.c.b16 %v7035, %v7031
      %v7328 = vpack.c.b16 %v7036, %v7032
      %v7329 = vpack.c.b16 %v7041, %v7037
      %v7330 = vpack.c.b16 %v7042, %v7038
      %v7331 = vpack.c.b16 %v7043, %v7039
      %v7332 = vpack.c.b16 %v7044, %v7040
      %v7333 = vpack.c.b16 %v7049, %v7045
      %v7334 = vpack.c.b16 %v7050, %v7046
      %v7335 = vpack.c.b16 %v7051, %v7047
      %v7336 = vpack.c.b16 %v7052, %v7048
      %v7337 = vpack.c.b16 %v7057, %v7053
      %v7338 = vpack.c.b16 %v7058, %v7054
      %v7339 = vpack.c.b16 %v7059, %v7055
      %v7340 = vpack.c.b16 %v7060, %v7056
      %v7341 = vpack.c.b16 %v7065, %v7061
      %v7342 = vpack.c.b16 %v7066, %v7062
      %v7343 = vpack.c.b16 %v7067, %v7063
      %v7344 = vpack.c.b16 %v7068, %v7064
      %v7345 = vpack.c.b16 %v7073, %v7069
      %v7346 = vpack.c.b16 %v7074, %v7070
      %v7347 = vpack.c.b16 %v7075, %v7071
      %v7348 = vpack.c.b16 %v7076, %v7072
      %v7349 = vpack.c.b16 %v7081, %v7077
      %v7350 = vpack.c.b16 %v7082, %v7078
      %v7351 = vpack.c.b16 %v7083, %v7079
      %v7352 = vpack.c.b16 %v7084, %v7080
      %v7353 = vpack.c.b16 %v7089, %v7085
      %v7354 = vpack.c.b16 %v7090, %v7086
      %v7355 = vpack.c.b16 %v7091, %v7087
      %v7356 = vpack.c.b16 %v7092, %v7088
      %v7357 = vpack.c.b16 %v7097, %v7093
      %v7358 = vpack.c.b16 %v7098, %v7094
      %v7359 = vpack.c.b16 %v7099, %v7095
      %v7360 = vpack.c.b16 %v7100, %v7096
      %v7361 = vpack.c.b16 %v7105, %v7101
      %v7362 = vpack.c.b16 %v7106, %v7102
      %v7363 = vpack.c.b16 %v7107, %v7103
      %v7364 = vpack.c.b16 %v7108, %v7104
      %7621 = vmatprep.subr.bf16.mxu0 %v7110
      %7622 = vmatpush1.bf16.msra.mxu0 %v7109
      %7623 = vmatprep.subr.bf16.mxu0 %v7114
      %7624 = vmatpush1.bf16.msra.mxu0 %v7113
      %7625 = vmatprep.subr.bf16.mxu0 %v7118
      %7626 = vmatpush1.bf16.msra.mxu0 %v7117
      %7627 = vmatprep.subr.bf16.mxu0 %v7122
      %7628 = vmatpush1.bf16.msra.mxu0 %v7121
      %7629 = vmatprep.subr.bf16.mxu0 %v7126
      %7630 = vmatpush1.bf16.msra.mxu0 %v7125
      %7631 = vmatprep.subr.bf16.mxu0 %v7130
      %7632 = vmatpush1.bf16.msra.mxu0 %v7129
      %7633 = vmatprep.subr.bf16.mxu0 %v7134
      %7634 = vmatpush1.bf16.msra.mxu0 %v7133
      %7635 = vmatprep.subr.bf16.mxu0 %v7138
      %7636 = vmatpush1.bf16.msra.mxu0 %v7137
      %7637 = vmatprep.subr.bf16.mxu0 %v7142
      %7638 = vmatpush1.bf16.msra.mxu0 %v7141
      %7639 = vmatprep.subr.bf16.mxu0 %v7146
      %7640 = vmatpush1.bf16.msra.mxu0 %v7145
      %7641 = vmatprep.subr.bf16.mxu0 %v7150
      %7642 = vmatpush1.bf16.msra.mxu0 %v7149
      %7643 = vmatprep.subr.bf16.mxu0 %v7154
      %7644 = vmatpush1.bf16.msra.mxu0 %v7153
      %7645 = vmatprep.subr.bf16.mxu0 %v7158
      %7646 = vmatpush1.bf16.msra.mxu0 %v7157
      %7647 = vmatprep.subr.bf16.mxu0 %v7162
      %7648 = vmatpush1.bf16.msra.mxu0 %v7161
      %7649 = vmatprep.subr.bf16.mxu0 %v7166
      %7650 = vmatpush1.bf16.msra.mxu0 %v7165
      %7651 = vmatprep.subr.bf16.mxu0 %v7170
      %7652 = vmatpush1.bf16.msra.mxu0 %v7169
      %7653 = vmatprep.mubr.bf16.mxu0 %v6313
      %7654 = vmatmul.mubr.bf16.gmra.mrb[0].mxu0 %v6310
      %v7655 = vpop.f32.mrb[0].mxu0
      %v7656 = vadd.f32 0.0, %v7655
      %v7657 = vpop.f32.mrb[0].mxu0
      %v7658 = vadd.f32 0.0, %v7657
      %v7659 = vpop.f32.mrb[0].mxu0
      %v7660 = vpop.f32.mrb[0].mxu0
      %7661 = vdwg.mxu0
      %7662 = vmatprep.subr.bf16.mxu0 %v7174
      %7663 = vmatpush1.bf16.msra.mxu0 %v7173
      %7664 = vmatprep.subr.bf16.mxu0 %v7178
      %7665 = vmatpush1.bf16.msra.mxu0 %v7177
      %7666 = vmatprep.subr.bf16.mxu0 %v7182
      %7667 = vmatpush1.bf16.msra.mxu0 %v7181
      %7668 = vmatprep.subr.bf16.mxu0 %v7186
      %7669 = vmatpush1.bf16.msra.mxu0 %v7185
      %7670 = vmatprep.subr.bf16.mxu0 %v7190
      %7671 = vmatpush1.bf16.msra.mxu0 %v7189
      %7672 = vmatprep.subr.bf16.mxu0 %v7194
      %7673 = vmatpush1.bf16.msra.mxu0 %v7193
      %7674 = vmatprep.subr.bf16.mxu0 %v7198
      %7675 = vmatpush1.bf16.msra.mxu0 %v7197
      %7676 = vmatprep.subr.bf16.mxu0 %v7202
      %7677 = vmatpush1.bf16.msra.mxu0 %v7201
      %7678 = vmatprep.subr.bf16.mxu0 %v7206
      %7679 = vmatpush1.bf16.msra.mxu0 %v7205
      %7680 = vmatprep.subr.bf16.mxu0 %v7210
      %7681 = vmatpush1.bf16.msra.mxu0 %v7209
      %7682 = vmatprep.subr.bf16.mxu0 %v7214
      %7683 = vmatpush1.bf16.msra.mxu0 %v7213
      %7684 = vmatprep.subr.bf16.mxu0 %v7218
      %7685 = vmatpush1.bf16.msra.mxu0 %v7217
      %7686 = vmatprep.subr.bf16.mxu0 %v7222
      %7687 = vmatpush1.bf16.msra.mxu0 %v7221
      %7688 = vmatprep.subr.bf16.mxu0 %v7226
      %7689 = vmatpush1.bf16.msra.mxu0 %v7225
      %7690 = vmatprep.subr.bf16.mxu0 %v7230
      %7691 = vmatpush1.bf16.msra.mxu0 %v7229
      %7692 = vmatprep.subr.bf16.mxu0 %v7234
      %7693 = vmatpush1.bf16.msra.mxu0 %v7233
      %7694 = vmatprep.mubr.bf16.mxu0 %v6319
      %7695 = vmatmul.mubr.bf16.gmra.mrb[0].mxu0 %v6316
      %v7696 = vpop.f32.mrb[0].mxu0
      %v7697 = vadd.f32 %v7656, %v7696
      %v7698 = vpop.f32.mrb[0].mxu0
      %v7699 = vadd.f32 %v7658, %v7698
      %v7700 = vpop.f32.mrb[0].mxu0
      %v7701 = vpop.f32.mrb[0].mxu0
      %7702 = vdwg.mxu0
      %7703 = vmatprep.subr.bf16.mxu0 %v7238
      %7704 = vmatpush1.bf16.msra.mxu0 %v7237
      %7705 = vmatprep.subr.bf16.mxu0 %v7242
      %7706 = vmatpush1.bf16.msra.mxu0 %v7241
      %7707 = vmatprep.subr.bf16.mxu0 %v7246
      %7708 = vmatpush1.bf16.msra.mxu0 %v7245
      %7709 = vmatprep.subr.bf16.mxu0 %v7250
      %7710 = vmatpush1.bf16.msra.mxu0 %v7249
      %7711 = vmatprep.subr.bf16.mxu0 %v7254
      %7712 = vmatpush1.bf16.msra.mxu0 %v7253
      %7713 = vmatprep.subr.bf16.mxu0 %v7258
      %7714 = vmatpush1.bf16.msra.mxu0 %v7257
      %7715 = vmatprep.subr.bf16.mxu0 %v7262
      %7716 = vmatpush1.bf16.msra.mxu0 %v7261
      %7717 = vmatprep.subr.bf16.mxu0 %v7266
      %7718 = vmatpush1.bf16.msra.mxu0 %v7265
      %7719 = vmatprep.subr.bf16.mxu0 %v7270
      %7720 = vmatpush1.bf16.msra.mxu0 %v7269
      %7721 = vmatprep.subr.bf16.mxu0 %v7274
      %7722 = vmatpush1.bf16.msra.mxu0 %v7273
      %7723 = vmatprep.subr.bf16.mxu0 %v7278
      %7724 = vmatpush1.bf16.msra.mxu0 %v7277
      %7725 = vmatprep.subr.bf16.mxu0 %v7282
      %7726 = vmatpush1.bf16.msra.mxu0 %v7281
      %7727 = vmatprep.subr.bf16.mxu0 %v7286
      %7728 = vmatpush1.bf16.msra.mxu0 %v7285
      %7729 = vmatprep.subr.bf16.mxu0 %v7290
      %7730 = vmatpush1.bf16.msra.mxu0 %v7289
      %7731 = vmatprep.subr.bf16.mxu0 %v7294
      %7732 = vmatpush1.bf16.msra.mxu0 %v7293
      %7733 = vmatprep.subr.bf16.mxu0 %v7298
      %7734 = vmatpush1.bf16.msra.mxu0 %v7297
      %7735 = vmatprep.mubr.bf16.mxu0 %v6325
      %7736 = vmatmul.mubr.bf16.gmra.mrb[0].mxu0 %v6322
      %v7737 = vpop.f32.mrb[0].mxu0
      %v7738 = vadd.f32 %v7697, %v7737
      %v7739 = vpop.f32.mrb[0].mxu0
      %v7740 = vadd.f32 %v7699, %v7739
      %v7741 = vpop.f32.mrb[0].mxu0
      %v7742 = vpop.f32.mrb[0].mxu0
      %7743 = vdwg.mxu0
      %7744 = vmatprep.subr.bf16.mxu0 %v7302
      %7745 = vmatpush1.bf16.msra.mxu0 %v7301
      %7746 = vmatprep.subr.bf16.mxu0 %v7306
      %7747 = vmatpush1.bf16.msra.mxu0 %v7305
      %7748 = vmatprep.subr.bf16.mxu0 %v7310
      %7749 = vmatpush1.bf16.msra.mxu0 %v7309
      %7750 = vmatprep.subr.bf16.mxu0 %v7314
      %7751 = vmatpush1.bf16.msra.mxu0 %v7313
      %7752 = vmatprep.subr.bf16.mxu0 %v7318
      %7753 = vmatpush1.bf16.msra.mxu0 %v7317
      %7754 = vmatprep.subr.bf16.mxu0 %v7322
      %7755 = vmatpush1.bf16.msra.mxu0 %v7321
      %7756 = vmatprep.subr.bf16.mxu0 %v7326
      %7757 = vmatpush1.bf16.msra.mxu0 %v7325
      %7758 = vmatprep.subr.bf16.mxu0 %v7330
      %7759 = vmatpush1.bf16.msra.mxu0 %v7329
      %7760 = vmatprep.subr.bf16.mxu0 %v7334
      %7761 = vmatpush1.bf16.msra.mxu0 %v7333
      %7762 = vmatprep.subr.bf16.mxu0 %v7338
      %7763 = vmatpush1.bf16.msra.mxu0 %v7337
      %7764 = vmatprep.subr.bf16.mxu0 %v7342
      %7765 = vmatpush1.bf16.msra.mxu0 %v7341
      %7766 = vmatprep.subr.bf16.mxu0 %v7346
      %7767 = vmatpush1.bf16.msra.mxu0 %v7345
      %7768 = vmatprep.subr.bf16.mxu0 %v7350
      %7769 = vmatpush1.bf16.msra.mxu0 %v7349
      %7770 = vmatprep.subr.bf16.mxu0 %v7354
      %7771 = vmatpush1.bf16.msra.mxu0 %v7353
      %7772 = vmatprep.subr.bf16.mxu0 %v7358
      %7773 = vmatpush1.bf16.msra.mxu0 %v7357
      %7774 = vmatprep.subr.bf16.mxu0 %v7362
      %7775 = vmatpush1.bf16.msra.mxu0 %v7361
      %7776 = vmatprep.mubr.bf16.mxu0 %v6331
      %7777 = vmatmul.mubr.bf16.gmra.mrb[0].mxu0 %v6328
      %v7778 = vpop.f32.mrb[0].mxu0
      %v7779 = vadd.f32 %v7738, %v7778
      %v7780 = vpop.f32.mrb[0].mxu0
      %v7781 = vadd.f32 %v7740, %v7780
      %v7782 = vpop.f32.mrb[0].mxu0
      %v7783 = vpop.f32.mrb[0].mxu0
      %7784 = vdwg.mxu0
      %7785 = vmatprep.subr.bf16.mxu0 %v7112
      %7786 = vmatpush1.bf16.msra.mxu0 %v7111
      %7787 = vmatprep.subr.bf16.mxu0 %v7116
      %7788 = vmatpush1.bf16.msra.mxu0 %v7115
      %7789 = vmatprep.subr.bf16.mxu0 %v7120
      %7790 = vmatpush1.bf16.msra.mxu0 %v7119
      %7791 = vmatprep.subr.bf16.mxu0 %v7124
      %7792 = vmatpush1.bf16.msra.mxu0 %v7123
      %7793 = vmatprep.subr.bf16.mxu0 %v7128
      %7794 = vmatpush1.bf16.msra.mxu0 %v7127
      %7795 = vmatprep.subr.bf16.mxu0 %v7132
      %7796 = vmatpush1.bf16.msra.mxu0 %v7131
      %7797 = vmatprep.subr.bf16.mxu0 %v7136
      %7798 = vmatpush1.bf16.msra.mxu0 %v7135
      %7799 = vmatprep.subr.bf16.mxu0 %v7140
      %7800 = vmatpush1.bf16.msra.mxu0 %v7139
      %7801 = vmatprep.subr.bf16.mxu0 %v7144
      %7802 = vmatpush1.bf16.msra.mxu0 %v7143
      %7803 = vmatprep.subr.bf16.mxu0 %v7148
      %7804 = vmatpush1.bf16.msra.mxu0 %v7147
      %7805 = vmatprep.subr.bf16.mxu0 %v7152
      %7806 = vmatpush1.bf16.msra.mxu0 %v7151
      %7807 = vmatprep.subr.bf16.mxu0 %v7156
      %7808 = vmatpush1.bf16.msra.mxu0 %v7155
      %7809 = vmatprep.subr.bf16.mxu0 %v7160
      %7810 = vmatpush1.bf16.msra.mxu0 %v7159
      %7811 = vmatprep.subr.bf16.mxu0 %v7164
      %7812 = vmatpush1.bf16.msra.mxu0 %v7163
      %7813 = vmatprep.subr.bf16.mxu0 %v7168
      %7814 = vmatpush1.bf16.msra.mxu0 %v7167
      %7815 = vmatprep.subr.bf16.mxu0 %v7172
      %7816 = vmatpush1.bf16.msra.mxu0 %v7171
      %7817 = vmatprep.mubr.bf16.mxu0 %v6313
      %7818 = vmatmul.mubr.bf16.gmra.mrb[0].mxu0 %v6310
      %v7819 = vpop.f32.mrb[0].mxu0
      %v7820 = vadd.f32 0.0, %v7819
      %v7821 = vpop.f32.mrb[0].mxu0
      %v7822 = vadd.f32 0.0, %v7821
      %v7823 = vpop.f32.mrb[0].mxu0
      %v7824 = vpop.f32.mrb[0].mxu0
      %7825 = vdwg.mxu0
      %7826 = vmatprep.subr.bf16.mxu0 %v7176
      %7827 = vmatpush1.bf16.msra.mxu0 %v7175
      %7828 = vmatprep.subr.bf16.mxu0 %v7180
      %7829 = vmatpush1.bf16.msra.mxu0 %v7179
      %7830 = vmatprep.subr.bf16.mxu0 %v7184
      %7831 = vmatpush1.bf16.msra.mxu0 %v7183
      %7832 = vmatprep.subr.bf16.mxu0 %v7188
      %7833 = vmatpush1.bf16.msra.mxu0 %v7187
      %7834 = vmatprep.subr.bf16.mxu0 %v7192
      %7835 = vmatpush1.bf16.msra.mxu0 %v7191
      %7836 = vmatprep.subr.bf16.mxu0 %v7196
      %7837 = vmatpush1.bf16.msra.mxu0 %v7195
      %7838 = vmatprep.subr.bf16.mxu0 %v7200
      %7839 = vmatpush1.bf16.msra.mxu0 %v7199
      %7840 = vmatprep.subr.bf16.mxu0 %v7204
      %7841 = vmatpush1.bf16.msra.mxu0 %v7203
      %7842 = vmatprep.subr.bf16.mxu0 %v7208
      %7843 = vmatpush1.bf16.msra.mxu0 %v7207
      %7844 = vmatprep.subr.bf16.mxu0 %v7212
      %7845 = vmatpush1.bf16.msra.mxu0 %v7211
      %7846 = vmatprep.subr.bf16.mxu0 %v7216
      %7847 = vmatpush1.bf16.msra.mxu0 %v7215
      %7848 = vmatprep.subr.bf16.mxu0 %v7220
      %7849 = vmatpush1.bf16.msra.mxu0 %v7219
      %7850 = vmatprep.subr.bf16.mxu0 %v7224
      %7851 = vmatpush1.bf16.msra.mxu0 %v7223
      %7852 = vmatprep.subr.bf16.mxu0 %v7228
      %7853 = vmatpush1.bf16.msra.mxu0 %v7227
      %7854 = vmatprep.subr.bf16.mxu0 %v7232
      %7855 = vmatpush1.bf16.msra.mxu0 %v7231
      %7856 = vmatprep.subr.bf16.mxu0 %v7236
      %7857 = vmatpush1.bf16.msra.mxu0 %v7235
      %7858 = vmatprep.mubr.bf16.mxu0 %v6319
      %7859 = vmatmul.mubr.bf16.gmra.mrb[0].mxu0 %v6316
      %v7860 = vpop.f32.mrb[0].mxu0
      %v7861 = vadd.f32 %v7820, %v7860
      %v7862 = vpop.f32.mrb[0].mxu0
      %v7863 = vadd.f32 %v7822, %v7862
      %v7864 = vpop.f32.mrb[0].mxu0
      %v7865 = vpop.f32.mrb[0].mxu0
      %7866 = vdwg.mxu0
      %7867 = vmatprep.subr.bf16.mxu0 %v7240
      %7868 = vmatpush1.bf16.msra.mxu0 %v7239
      %7869 = vmatprep.subr.bf16.mxu0 %v7244
      %7870 = vmatpush1.bf16.msra.mxu0 %v7243
      %7871 = vmatprep.subr.bf16.mxu0 %v7248
      %7872 = vmatpush1.bf16.msra.mxu0 %v7247
      %7873 = vmatprep.subr.bf16.mxu0 %v7252
      %7874 = vmatpush1.bf16.msra.mxu0 %v7251
      %7875 = vmatprep.subr.bf16.mxu0 %v7256
      %7876 = vmatpush1.bf16.msra.mxu0 %v7255
      %7877 = vmatprep.subr.bf16.mxu0 %v7260
      %7878 = vmatpush1.bf16.msra.mxu0 %v7259
      %7879 = vmatprep.subr.bf16.mxu0 %v7264
      %7880 = vmatpush1.bf16.msra.mxu0 %v7263
      %7881 = vmatprep.subr.bf16.mxu0 %v7268
      %7882 = vmatpush1.bf16.msra.mxu0 %v7267
      %7883 = vmatprep.subr.bf16.mxu0 %v7272
      %7884 = vmatpush1.bf16.msra.mxu0 %v7271
      %7885 = vmatprep.subr.bf16.mxu0 %v7276
      %7886 = vmatpush1.bf16.msra.mxu0 %v7275
      %7887 = vmatprep.subr.bf16.mxu0 %v7280
      %7888 = vmatpush1.bf16.msra.mxu0 %v7279
      %7889 = vmatprep.subr.bf16.mxu0 %v7284
      %7890 = vmatpush1.bf16.msra.mxu0 %v7283
      %7891 = vmatprep.subr.bf16.mxu0 %v7288
      %7892 = vmatpush1.bf16.msra.mxu0 %v7287
      %7893 = vmatprep.subr.bf16.mxu0 %v7292
      %7894 = vmatpush1.bf16.msra.mxu0 %v7291
      %7895 = vmatprep.subr.bf16.mxu0 %v7296
      %7896 = vmatpush1.bf16.msra.mxu0 %v7295
      %7897 = vmatprep.subr.bf16.mxu0 %v7300
      %7898 = vmatpush1.bf16.msra.mxu0 %v7299
      %7899 = vmatprep.mubr.bf16.mxu0 %v6325
      %7900 = vmatmul.mubr.bf16.gmra.mrb[0].mxu0 %v6322
      %v7901 = vpop.f32.mrb[0].mxu0
      %v7902 = vadd.f32 %v7861, %v7901
      %v7903 = vpop.f32.mrb[0].mxu0
      %v7904 = vadd.f32 %v7863, %v7903
      %v7905 = vpop.f32.mrb[0].mxu0
      %v7906 = vpop.f32.mrb[0].mxu0
      %7907 = vdwg.mxu0
      %7908 = vmatprep.subr.bf16.mxu0 %v7304
      %7909 = vmatpush1.bf16.msra.mxu0 %v7303
      %7910 = vmatprep.subr.bf16.mxu0 %v7308
      %7911 = vmatpush1.bf16.msra.mxu0 %v7307
      %7912 = vmatprep.subr.bf16.mxu0 %v7312
      %7913 = vmatpush1.bf16.msra.mxu0 %v7311
      %7914 = vmatprep.subr.bf16.mxu0 %v7316
      %7915 = vmatpush1.bf16.msra.mxu0 %v7315
      %7916 = vmatprep.subr.bf16.mxu0 %v7320
      %7917 = vmatpush1.bf16.msra.mxu0 %v7319
      %7918 = vmatprep.subr.bf16.mxu0 %v7324
      %7919 = vmatpush1.bf16.msra.mxu0 %v7323
      %7920 = vmatprep.subr.bf16.mxu0 %v7328
      %7921 = vmatpush1.bf16.msra.mxu0 %v7327
      %7922 = vmatprep.subr.bf16.mxu0 %v7332
      %7923 = vmatpush1.bf16.msra.mxu0 %v7331
      %7924 = vmatprep.subr.bf16.mxu0 %v7336
      %7925 = vmatpush1.bf16.msra.mxu0 %v7335
      %7926 = vmatprep.subr.bf16.mxu0 %v7340
      %7927 = vmatpush1.bf16.msra.mxu0 %v7339
      %7928 = vmatprep.subr.bf16.mxu0 %v7344
      %7929 = vmatpush1.bf16.msra.mxu0 %v7343
      %7930 = vmatprep.subr.bf16.mxu0 %v7348
      %7931 = vmatpush1.bf16.msra.mxu0 %v7347
      %7932 = vmatprep.subr.bf16.mxu0 %v7352
      %7933 = vmatpush1.bf16.msra.mxu0 %v7351
      %7934 = vmatprep.subr.bf16.mxu0 %v7356
      %7935 = vmatpush1.bf16.msra.mxu0 %v7355
      %7936 = vmatprep.subr.bf16.mxu0 %v7360
      %7937 = vmatpush1.bf16.msra.mxu0 %v7359
      %7938 = vmatprep.subr.bf16.mxu0 %v7364
      %7939 = vmatpush1.bf16.msra.mxu0 %v7363
      %7940 = vmatprep.mubr.bf16.mxu0 %v6331
      %7941 = vmatmul.mubr.bf16.gmra.mrb[0].mxu0 %v6328
      %v7942 = vpop.f32.mrb[0].mxu0
      %v7943 = vadd.f32 %v7902, %v7942
      %v7944 = vpop.f32.mrb[0].mxu0
      %v7945 = vadd.f32 %v7904, %v7944
      %v7946 = vpop.f32.mrb[0].mxu0
      %v7947 = vpop.f32.mrb[0].mxu0
      %7948 = vdwg.mxu0
      %v7949 = vadd.f32 %v5997, %v7779
      %v7950 = vadd.f32 %v5998, %v7781
      %v7951 = vadd.f32 %v5999, %v7943
      %v7952 = vadd.f32 %v6000, %v7945
      %v7953 = vld [vmem:[%s2] sm:$0xf]
      %v7955 = vlaneseq
      %v7956 = vshrl.u32 %v7955, 7
      %v7957 = vsub.s32 0, %v7956
      %v7958 = vrot.slane %v7953, %v7957
      %v7959 = vlaneseq
      %v7960 = vshrl.u32 %v7959, 7
      %v7961 = vsub.s32 1, %v7960
      %v7962 = vrot.slane %v7953, %v7961
      %v7963 = vlaneseq
      %v7964 = vshrl.u32 %v7963, 7
      %v7965 = vsub.s32 2, %v7964
      %v7966 = vrot.slane %v7953, %v7965
      %v7967 = vlaneseq
      %v7968 = vshrl.u32 %v7967, 7
      %v7969 = vsub.s32 3, %v7968
      %v7970 = vrot.slane %v7953, %v7969
      %v7975 = vadd.f32 %v7949, %v7958
      %v7976 = vadd.f32 %v7950, %v7962
      %v7977 = vadd.f32 %v7951, %v7966
      %v7978 = vadd.f32 %v7952, %v7970
      %v7979 = vadd.f32 %v7975, 0.0
      %v7980 = vadd.f32 %v7976, 0.0
      %v7981 = vadd.f32 %v7977, 0.0
      %v7982 = vadd.f32 %v7978, 0.0
      %v7983 = vmul.f32 %v7975, %v7975
      %v7984 = vmul.f32 %v7976, %v7976
      %v7985 = vmul.f32 %v7977, %v7977
      %v7986 = vmul.f32 %v7978, %v7978
      %v7987 = vadd.f32 %v7983, 0.0
      %v7988 = vadd.f32 %v7984, 0.0
      %v7989 = vadd.f32 %v7985, 0.0
      %v7990 = vadd.f32 %v7986, 0.0
      %v7995 = vrot.slane %v7987, 7
      %v7996 = vrot.slane %v7988, 7
      %v7997 = vrot.slane %v7989, 7
      %v7998 = vrot.slane %v7990, 7
      %vm8003 = vcmask 1040384
      %v8004 = vsel %vm8003, %v7979, %v7995
      %v8005 = vsel %vm8003, %v7980, %v7996
      %v8006 = vsel %vm8003, %v7981, %v7997
      %v8007 = vsel %vm8003, %v7982, %v7998
      %v8012 = vcombine.low %v8004, %v8005
      %v8013 = vcombine.low %v8006, %v8007
      %v8015 = vunpack.c.l.s4 1983009808
      %v8016 = vunpack.c.0.s8 %v8015
      %v8017 = vlaneseq
      %v8018 = vshrl.u32 %v8017, 7
      %v8019 = vsub.s32 %v8016, %v8018
      %v8020 = vrot.slane %v8012, %v8019
      %v8022 = vunpack.c.l.s4 1983009808
      %v8023 = vunpack.c.0.s8 %v8022
      %v8024 = vlaneseq
      %v8025 = vshrl.u32 %v8024, 7
      %v8026 = vsub.s32 %v8023, %v8025
      %v8027 = vrot.slane %v8013, %v8026
      %v8028 = vcombine.low %v8020, %v8027
      %8030 = vst [vmem:[%s251] sm:$0xff] %v8028
      %v8035 = vcombine.low %v7975, %v7976
      %v8036 = vcombine.low %v7977, %v7978
      %v8038 = vunpack.c.l.s4 1966171168
      %v8039 = vunpack.c.0.s8 %v8038
      %v8040 = vlaneseq
      %v8041 = vshrl.u32 %v8040, 7
      %v8042 = vsub.s32 %v8039, %v8041
      %v8043 = vrot.slane %v8035, %v8042
      %v8045 = vunpack.c.l.s4 1966171168
      %v8046 = vunpack.c.0.s8 %v8045
      %v8047 = vlaneseq
      %v8048 = vshrl.u32 %v8047, 7
      %v8049 = vsub.s32 %v8046, %v8048
      %v8050 = vrot.slane %v8036, %v8049
      %v8051 = vcombine.low %v8043, %v8050
      %v8053 = vunpack.c.l.s4 1966171168
      %v8054 = vunpack.c.0.s8 %v8053
      %v8055 = vlaneseq
      %v8056 = vshrl.u32 %v8055, 7
      %v8057 = vsub.s32 %v8054, %v8056
      %v8058 = vrot.slane %v8051, %v8057
      %v8060 = vlaneseq
      %vm8061 = vcmp.ge.s32.totalorder %v8060, 0
      %vm8062 = vcmp.lt.s32.totalorder %v8060, 512
      %vm8063 = vmand %vm8061, %vm8062
      %8064 = vst.msk [vmem:[%s242] sm:$0xf] %vm8063, %v8058
      %p8065 = scmp.lt.s32.totalorder %s20, 1
      %s8066 = scalar_select %p8065, %s20, 1
      %p8067 = scmp.lt.s32.totalorder %s21, 0
      %s8068 = scalar_select %p8067, %s21, 0
      %s8069 = smul.addr %s8068, 4
      %s8070 = smul.addr %s8066, 4
      %s8071 = sadd.s32 %s8069, %s8070
      %s8072 = scalar_lea.vmem %s3, %s8071
      %p8073 = scmp.lt.s32.totalorder %s20, 1
      %s8074 = scalar_select %p8073, %s20, 1
      %p8075 = scmp.lt.s32.totalorder %s21, 0
      %s8076 = scalar_select %p8075, %s21, 0
      %s8077 = smul.addr %s8076, 4
      %s8078 = smul.addr %s8074, 4
      %s8079 = sadd.s32 %s8077, %s8078
      %s8080 = smul.addr %s8079, 2
      %s8081 = scalar_lea.vmem %s4, %s8080
      // Predicated region
      $region33: #{pathgan_forward.8} parent=31 // pred_check
        %p8082 = pneg %p118
      $region34: #{pathgan_forward.8} parent=31 // pred_check_branch
        %8084 = sbr.rel (%p8082) target = $region36
      $region35: #{pathgan_forward.8} parent=31 // pred_region
        _
      $region36: #{pathgan_forward.8} parent=31 // pred_fallthru
        _
      // Predicated region
      $region37: #{pathgan_forward.8} parent=31 // pred_check
        %p8085 = pneg %p146
      $region38: #{pathgan_forward.8} parent=31 // pred_check_branch
        %8087 = sbr.rel (%p8085) target = $region40
      $region39: #{pathgan_forward.8} parent=31 // pred_region
        _
      $region40: #{pathgan_forward.8} parent=31 // pred_fallthru
        _
    $region32: #{pathgan_forward.8} parent=5 // pred_fallthru
      _
    %p8088 = scmp.le.s32.totalorder 2, %s11
    // Predicated region
    $region41: #{pathgan_forward.8} parent=5 // pred_check
      %p8089 = pneg %p8088
    $region42: #{pathgan_forward.8} parent=5 // pred_check_branch
      %8091 = sbr.rel (%p8089) target = $region44
    $region43: #{pathgan_forward.8} parent=5 // pred_region
      %s8092 = ssub.s32 %s11, 2
      // Predicated region
      $region45: #{pathgan_forward.8} parent=43 // pred_check
        %p8093 = pneg %p124
      $region46: #{pathgan_forward.8} parent=43 // pred_check_branch
        %8095 = sbr.rel (%p8093) target = $region48
      $region47: #{pathgan_forward.8} parent=43 // pred_region
        %p8096 = scmp.lt.s32.totalorder %s22, 1
        %s8097 = scalar_select %p8096, %s22, 1
        %p8098 = scmp.lt.s32.totalorder %s23, 0
        %s8099 = scalar_select %p8098, %s23, 0
        %s8100 = smul.addr %s8099, 4
        %s8101 = smul.addr %s8097, 4
        %s8102 = sadd.s32 %s8100, %s8101
        %s8103 = scalar_lea.vmem %s3, %s8102
      $region48: #{pathgan_forward.8} parent=43 // pred_fallthru
        _
      // Predicated region
      $region49: #{pathgan_forward.8} parent=43 // pred_check
        %p8104 = pneg %p152
      $region50: #{pathgan_forward.8} parent=43 // pred_check_branch
        %8106 = sbr.rel (%p8104) target = $region52
      $region51: #{pathgan_forward.8} parent=43 // pred_region
        %p8107 = scmp.lt.s32.totalorder %s22, 1
        %s8108 = scalar_select %p8107, %s22, 1
        %p8109 = scmp.lt.s32.totalorder %s23, 0
        %s8110 = scalar_select %p8109, %s23, 0
        %s8111 = smul.addr %s8110, 4
        %s8112 = smul.addr %s8108, 4
        %s8113 = sadd.s32 %s8111, %s8112
        %s8114 = smul.addr %s8113, 2
        %s8115 = scalar_lea.vmem %s4, %s8114
      $region52: #{pathgan_forward.8} parent=43 // pred_fallthru
        _
    $region44: #{pathgan_forward.8} parent=5 // pred_fallthru
      _
  $region6: #{pathgan_forward.8} parent=0 // loop_footer
    %s15 = sadd.s32 1, %s11
  $region7: #{pathgan_forward.8} parent=0 // loop_footer_branch
    %10 = sbr.rel target = $region3
  $region8: #{pathgan_forward.8} parent=0 // loop_exit
    _

</llo_original>
